<compile_context>
chip_gen: v6e
topology: v6e:2x2x1
jax: 0.10.0
libtpu: 0.0.40
codegen_flags: <defaults>
</compile_context>

<pallas_src>
from functools import partial

import jax
import jax.numpy as jnp
from jax.experimental import pallas as pl
from jax.experimental.pallas import tpu as pltpu

BN_EPS = 1e-5
LANE = 128


def _round_up(n, m):
    return (n + m - 1) // m * m


_VMEM_CAP = None


def _vmem_capacity_bytes():
    """Physical VMEM per core (falls back to the smallest generation, v7x)."""
    global _VMEM_CAP
    if _VMEM_CAP is None:
        cap = None
        try:
            info = pltpu.get_tpu_info()
            for name in ("vmem_capacity_bytes", "vmem_size_bytes", "vmem_bytes"):
                v = getattr(info, name, None)
                if v:
                    cap = int(v)
                    break
        except Exception:
            cap = None
        _VMEM_CAP = cap if cap else 64 * 1024 * 1024
    return _VMEM_CAP


def _pick_row_tile(rows, row_bytes, fixed_bytes, budget):
    """Largest multiple-of-8 divisor of `rows` whose double-buffered block
    footprint (plus resident weights/constants) fits `budget` bytes."""
    avail = budget - 2 * fixed_bytes
    cap = avail // max(2 * row_bytes, 1)
    cap = int(min(max(cap, 8), rows, 4096))
    best = None
    for t in range(8, cap + 1, 8):
        if rows % t == 0:
            best = t
    if best is None:          # rows < 8 or no multiple-of-8 divisor fits
        best = rows
    return best


# --------------------------------------------------------------------------
# in-kernel helpers
# --------------------------------------------------------------------------
def _partial_stats(h):
    """Per-channel (sum, sum_sq) of f32 h packed as a (1, 2, C) block."""
    s1 = jnp.sum(h, axis=0, keepdims=True)          # (1, C)
    s2 = jnp.sum(h * h, axis=0, keepdims=True)      # (1, C)
    return jnp.concatenate([s1, s2], axis=0)[None]  # (1, 2, C)


# --------------------------------------------------------------------------
# kernels
# --------------------------------------------------------------------------
def _conv1_kernel(x_ref, w_ref, h_ref, st_ref):
    # 1x1 conv as channel matmul (bf16 in, f32 accumulate) + partial BN stats.
    h = jnp.dot(x_ref[...], w_ref[...], preferred_element_type=jnp.float32)
    h_ref[...] = h.astype(h_ref.dtype)
    st_ref[...] = _partial_stats(h)


def _bn_relu_conv1_kernel(x_ref, sc_ref, sh_ref, w_ref, h_ref, st_ref):
    # fused BN(prev)+ReLU epilogue, then 1x1 conv + partial BN stats.
    z = jnp.maximum(x_ref[...] * sc_ref[...] + sh_ref[...], 0.0)
    h = jnp.dot(z.astype(jnp.bfloat16), w_ref[...],
                preferred_element_type=jnp.float32)
    h_ref[...] = h.astype(h_ref.dtype)
    st_ref[...] = _partial_stats(h)


def _bn_relu_conv3x3_kernel(h1_ref, sc_ref, sh_ref, w2_ref, h2_ref, st_ref,
                            zbuf_ref, *, H, W):
    # One image per grid step: BN1+ReLU once, pack the three horizontally
    # shifted+masked variants into a zero-padded VMEM scratch, then the 3x3
    # "same" conv is 3 matmuls (K = 3*Pp) whose vertical shift is just an
    # offset pl.ds read into the scratch.
    HW = H * W
    Pp = h1_ref.shape[-1]
    hw_pad = zbuf_ref.shape[0]
    bf16 = jnp.bfloat16

    z = jnp.maximum(h1_ref[0] * sc_ref[...] + sh_ref[...], 0.0)   # (HW, Pp) f32

    col = jax.lax.broadcasted_iota(jnp.int32, (HW, 1), 0) % W
    zrow = jnp.zeros((1, Pp), z.dtype)
    # output-row-aligned variants: v_ox[r] = z[r + ox] masked at image border
    v_m = jnp.where(col != 0, jnp.concatenate([zrow, z[:-1]], axis=0), 0.0)
    v_p = jnp.where(col != W - 1, jnp.concatenate([z[1:], zrow], axis=0), 0.0)

    # zero the halo rows every step (cheap: 2W rows) so the kernel is correct
    # regardless of which core / grid step runs first under megacore sharding
    zbuf_ref[pl.ds(0, W), :] = jnp.zeros((W, 3 * Pp), bf16)
    tail = hw_pad - (W + HW)
    if tail > 0:
        zbuf_ref[pl.ds(W + HW, tail), :] = jnp.zeros((tail, 3 * Pp), bf16)

    # pack [ox=-1 | ox=0 | ox=+1] at row offset W
    zbuf_ref[pl.ds(W, HW), pl.ds(0, Pp)] = v_m.astype(bf16)
    zbuf_ref[pl.ds(W, HW), pl.ds(Pp, Pp)] = z.astype(bf16)
    zbuf_ref[pl.ds(W, HW), pl.ds(2 * Pp, Pp)] = v_p.astype(bf16)

    acc = None
    for ky in range(3):                      # oy = ky - 1
        tap = zbuf_ref[pl.ds(ky * W, HW), :]               # (HW, 3*Pp) bf16
        part = jnp.dot(tap, w2_ref[ky], preferred_element_type=jnp.float32)
        acc = part if acc is None else acc + part

    h2_ref[...] = acc.astype(h2_ref.dtype)[None]
    st_ref[...] = _partial_stats(acc)


def _bn_residual_relu_kernel(h_ref, sc_ref, sh_ref, x_ref, o_ref):
    o = h_ref[...] * sc_ref[...] + sh_ref[...] + x_ref[...]
    o_ref[...] = jnp.maximum(o, 0.0).astype(o_ref.dtype)


# --------------------------------------------------------------------------
# host-side glue
# --------------------------------------------------------------------------
def _bn_scale_shift(partials, gamma, beta, count):
    """Fold per-tile (sum, sum_sq) into per-channel affine scale/shift."""
    tot = jnp.sum(partials, axis=0)                     # (2, C)
    mean = tot[0] / count
    var = jnp.maximum(tot[1] / count - mean * mean, 0.0)
    scale = gamma * jax.lax.rsqrt(var + BN_EPS)
    shift = beta - mean * scale
    return scale[None].astype(jnp.float32), shift[None].astype(jnp.float32)


def bottleneck_forward_nhwc(x, params):
    """x: (N, H, W, Cin) with Cin == 4 * planes (downsample is None)."""
    w1, g1, b1, w2, g2, b2, w3, g3, b3 = params
    N, H, W, Cin = x.shape
    P = w1.shape[1]
    Cout = w3.shape[1]
    assert Cin == Cout, "residual add requires inplanes == 4*planes"

    f32, bf16 = jnp.float32, jnp.bfloat16
    Cp = _round_up(Cin, LANE)          # padded input/output channels
    Pp = _round_up(P, LANE)            # padded bottleneck channels
    rows, HW = N * H * W, H * W

    # Zero-pad channels to lane width; pad gammas with 1 / betas with 0 so the
    # padded channels stay identically zero through every BN + ReLU stage.
    w1p = jnp.pad(w1, ((0, Cp - Cin), (0, Pp - P))).astype(bf16)
    w2p = jnp.pad(w2, ((0, 0), (0, 0), (0, Pp - P), (0, Pp - P))).astype(bf16)
    w2f = w2p.reshape(3, 3 * Pp, Pp)   # fold kx taps into the K dimension
    w3p = jnp.pad(w3, ((0, Pp - P), (0, Cp - Cout))).astype(bf16)
    g1p = jnp.pad(g1, (0, Pp - P), constant_values=1.0)
    b1p = jnp.pad(b1, (0, Pp - P))
    g2p = jnp.pad(g2, (0, Pp - P), constant_values=1.0)
    b2p = jnp.pad(b2, (0, Pp - P))
    g3p = jnp.pad(g3, (0, Cp - Cout), constant_values=1.0)
    b3p = jnp.pad(b3, (0, Cp - Cout))

    # Input travels in bf16; pad channels only when not already lane-aligned.
    x_nhwc = x if Cin == Cp else jnp.pad(
        x, ((0, 0), (0, 0), (0, 0), (0, Cp - Cin)))
    x2d = x_nhwc.astype(bf16).reshape(rows, Cp)

    vmem_cap = _vmem_capacity_bytes()
    vmem_limit = int(min(vmem_cap * 3 // 4, 100 * 1024 * 1024))
    budget = int(vmem_limit * 0.7)
    cparams = pltpu.CompilerParams(dimension_semantics=("parallel",),
                                   vmem_limit_bytes=vmem_limit)

    def row_spec(tr, c):
        return pl.BlockSpec((tr, c), lambda i: (i, 0))

    def const_spec(shape):
        nd = len(shape)
        return pl.BlockSpec(shape, lambda i, _n=nd: (0,) * _n)

    def stat_spec(c):
        return pl.BlockSpec((1, 2, c), lambda i: (i, 0, 0))

    # ---- conv1 (1x1) + BN1 partial stats -----------------------------------
    tr1 = _pick_row_tile(rows, 2 * Cp + 2 * Pp, 2 * Cp * Pp, budget)
    h1, st1 = pl.pallas_call(
        _conv1_kernel,
        grid=(rows // tr1,),
        in_specs=[row_spec(tr1, Cp), const_spec((Cp, Pp))],
        out_specs=(row_spec(tr1, Pp), stat_spec(Pp)),
        out_shape=(jax.ShapeDtypeStruct((rows, Pp), bf16),
                   jax.ShapeDtypeStruct((rows // tr1, 2, Pp), f32)),
        compiler_params=cparams,
    )(x2d, w1p)
    sc1, sh1 = _bn_scale_shift(st1, g1p, b1p, rows)

    # ---- BN1+ReLU -> conv2 (3x3, pad=1) + BN2 partial stats -----------------
    # TODO(synk): on v7x, row-striping each image with a 1-row halo would give
    # the two TensorCores more than N grid steps; kept one-image-per-step here.
    hw_pad = _round_up(HW + 2 * W, 8)
    h2, st2 = pl.pallas_call(
        partial(_bn_relu_conv3x3_kernel, H=H, W=W),
        grid=(N,),
        in_specs=[pl.BlockSpec((1, HW, Pp), lambda n: (n, 0, 0)),
                  pl.BlockSpec((1, Pp), lambda n: (0, 0)),
                  pl.BlockSpec((1, Pp), lambda n: (0, 0)),
                  pl.BlockSpec((3, 3 * Pp, Pp), lambda n: (0, 0, 0))],
        out_specs=(pl.BlockSpec((1, HW, Pp), lambda n: (n, 0, 0)),
                   pl.BlockSpec((1, 2, Pp), lambda n: (n, 0, 0))),
        out_shape=(jax.ShapeDtypeStruct((N, HW, Pp), bf16),
                   jax.ShapeDtypeStruct((N, 2, Pp), f32)),
        scratch_shapes=[pltpu.VMEM((hw_pad, 3 * Pp), bf16)],
        compiler_params=cparams,
    )(h1.reshape(N, HW, Pp), sc1, sh1, w2f)
    sc2, sh2 = _bn_scale_shift(st2, g2p, b2p, rows)

    # ---- BN2+ReLU -> conv3 (1x1) + BN3 partial stats ------------------------
    tr3 = _pick_row_tile(rows, 2 * Pp + 2 * Cp, 2 * Pp * Cp + 8 * Pp, budget)
    h3, st3 = pl.pallas_call(
        _bn_relu_conv1_kernel,
        grid=(rows // tr3,),
        in_specs=[row_spec(tr3, Pp), const_spec((1, Pp)), const_spec((1, Pp)),
                  const_spec((Pp, Cp))],
        out_specs=(row_spec(tr3, Cp), stat_spec(Cp)),
        out_shape=(jax.ShapeDtypeStruct((rows, Cp), bf16),
                   jax.ShapeDtypeStruct((rows // tr3, 2, Cp), f32)),
        compiler_params=cparams,
    )(h2.reshape(rows, Pp), sc2, sh2, w3p)
    sc3, sh3 = _bn_scale_shift(st3, g3p, b3p, rows)

    # ---- BN3 + residual add + ReLU ------------------------------------------
    out_bytes = jnp.dtype(x.dtype).itemsize
    tr4 = _pick_row_tile(rows, (4 + out_bytes) * Cp, 8 * Cp, budget)
    out2d = pl.pallas_call(
        _bn_residual_relu_kernel,
        grid=(rows // tr4,),
        in_specs=[row_spec(tr4, Cp), const_spec((1, Cp)), const_spec((1, Cp)),
                  row_spec(tr4, Cp)],
        out_specs=row_spec(tr4, Cp),
        out_shape=jax.ShapeDtypeStruct((rows, Cp), x.dtype),
        compiler_params=cparams,
    )(h3, sc3, sh3, x2d)

    out = out2d.reshape(N, H, W, Cp)
    if Cout != Cp:
        out = out[..., :Cout]
    return out


def bottleneck_forward(x_nchw, params):
    # PyTorch-layout convenience wrapper.  The two permutes are XLA ops at the
    # boundary; keep the surrounding model NHWC end-to-end to avoid them.
    x = jnp.transpose(x_nchw, (0, 2, 3, 1))
    y = bottleneck_forward_nhwc(x, params)
    return jnp.transpose(y, (0, 3, 1, 2))


# --------------------------------------------------------------------------
# pure-JAX reference (PyTorch train-mode BN semantics) + demo
# --------------------------------------------------------------------------
def bottleneck_reference(x_nchw, params):
    w1, g1, b1, w2, g2, b2, w3, g3, b3 = params
    x = jnp.transpose(x_nchw, (0, 2, 3, 1)).astype(jnp.float32)

    def bn(h, g, b):
        m = jnp.mean(h, axis=(0, 1, 2))
        v = jnp.var(h, axis=(0, 1, 2))
        return (h - m) * jax.lax.rsqrt(v + BN_EPS) * g + b

    h = jnp.einsum('nhwc,cp->nhwp', x, w1)
    h = jax.nn.relu(bn(h, g1, b1))
    h = jax.lax.conv_general_dilated(
        h, w2, window_strides=(1, 1), padding='SAME',
        dimension_numbers=('NHWC', 'HWIO', 'NHWC'))
    h = jax.nn.relu(bn(h, g2, b2))
    h = jnp.einsum('nhwc,cp->nhwp', h, w3)
    h = bn(h, g3, b3)
    out = jax.nn.relu(h + x)
    return jnp.transpose(out, (0, 3, 1, 2))


def init_params(key, inplanes, planes):
    ks = jax.random.split(key, 6)
    w1 = 0.1 * jax.random.normal(ks[0], (inplanes, planes), jnp.float32)
    w2 = 0.1 * jax.random.normal(ks[1], (3, 3, planes, planes), jnp.float32)
    w3 = 0.1 * jax.random.normal(ks[2], (planes, planes * 4), jnp.float32)
    g1 = 1.0 + 0.1 * jax.random.normal(ks[3], (planes,), jnp.float32)
    g2 = 1.0 + 0.1 * jax.random.normal(ks[4], (planes,), jnp.float32)
    g3 = 1.0 + 0.1 * jax.random.normal(ks[5], (planes * 4,), jnp.float32)
    b1 = 0.01 * jnp.arange(planes, dtype=jnp.float32)
    b2 = -0.01 * jnp.arange(planes, dtype=jnp.float32)
    b3 = 0.005 * jnp.arange(planes * 4, dtype=jnp.float32)
    return (w1, g1, b1, w2, g2, b2, w3, g3, b3)


if __name__ == "__main__":
    planes = 8
    inplanes = planes * 4      # downsample is None -> residual requires this
    N, H, W = 2, 16, 16

    key = jax.random.PRNGKey(0)
    kx, kp = jax.random.split(key)
    x = jax.random.normal(kx, (N, inplanes, H, W), jnp.float32)   # NCHW input
    params = init_params(kp, inplanes, planes)

    y = jax.jit(bottleneck_forward)(x, params)
    jax.block_until_ready(y)
    assert y.shape == (N, planes * 4, H, W)

    y_ref = bottleneck_reference(x, params)
    err = float(jnp.max(jnp.abs(y - y_ref)))
    if err > 0.3:   # bf16 matmuls + bf16 inter-stage tensors vs f32 reference
        raise AssertionError(f"kernel/reference mismatch: max|diff|={err:.4f}")
    print("KERNEL_OK")
</pallas_src>

<mosaic_0001>
module attributes {stable_mosaic.version = 11 : i64} {
  func.func @_conv1_kernel(%arg0: i32, %arg1: memref<512x128xbf16, #tpu.memory_space<vmem>>, %arg2: memref<128x128xbf16, #tpu.memory_space<vmem>>, %arg3: memref<512x128xbf16, #tpu.memory_space<vmem>>, %arg4: memref<1x2x128xf32, #tpu.memory_space<vmem>>) attributes {dimension_semantics = [#tpu.dimension_semantics<parallel>], iteration_bounds = array<i64: 1>, scalar_prefetch = 0 : i64, scratch_operands = 0 : i64, tpu.core_type = #tpu.core_type<tc>, window_params = [{transform_indices = @transform_0, window_bounds = array<i64: 512, 128>}, {pipeline_mode = #tpu.pipeline_mode<synchronous>, transform_indices = @transform_1, window_bounds = array<i64: 128, 128>}, {transform_indices = @transform_2, window_bounds = array<i64: 512, 128>}, {transform_indices = @transform_3, window_bounds = array<i64: 1, 2, 128>}]} {
    %c0 = arith.constant 0 : index
    %c0_0 = arith.constant 0 : index
    %0 = vector.load %arg1[%c0, %c0_0] : memref<512x128xbf16, #tpu.memory_space<vmem>>, vector<512x128xbf16>
    %c0_1 = arith.constant 0 : index
    %c0_2 = arith.constant 0 : index
    %1 = vector.load %arg2[%c0_1, %c0_2] : memref<128x128xbf16, #tpu.memory_space<vmem>>, vector<128x128xbf16>
    %cst = arith.constant dense<0.000000e+00> : vector<512x128xf32>
    %2 = tpu.matmul %0, %1, %cst {dimension_numbers = #tpu.dot_dimension_numbers<[1], [0], [0], [1], [0, 0, 1, 1], [], []>} : vector<512x128xbf16>, vector<128x128xbf16>, vector<512x128xf32> -> vector<512x128xf32>
    %3 = arith.truncf %2 : vector<512x128xf32> to vector<512x128xbf16>
    %c0_3 = arith.constant 0 : index
    %c0_4 = arith.constant 0 : index
    %4 = vector.load %arg3[%c0_3, %c0_4] : memref<512x128xbf16, #tpu.memory_space<vmem>>, vector<512x128xbf16>
    tpu.vector_store %arg3[%c0_3, %c0_4], %3 {strides = array<i32>} : memref<512x128xbf16, #tpu.memory_space<vmem>>, vector<512x128xbf16>,
    %cst_5 = arith.constant dense<0.000000e+00> : vector<128xf32>
    %5 = vector.multi_reduction <add>, %2, %cst_5 [0] : vector<512x128xf32> to vector<128xf32>
    %6 = vector.shape_cast %5 : vector<128xf32> to vector<1x128xf32>
    %7 = arith.mulf %2, %2 : vector<512x128xf32>
    %cst_6 = arith.constant dense<0.000000e+00> : vector<128xf32>
    %8 = vector.multi_reduction <add>, %7, %cst_6 [0] : vector<512x128xf32> to vector<128xf32>
    %9 = vector.shape_cast %8 : vector<128xf32> to vector<1x128xf32>
    %10 = tpu.concatenate %6, %9 in 0 : vector<1x128xf32>, vector<1x128xf32> -> vector<2x128xf32>
    %11 = vector.shape_cast %10 : vector<2x128xf32> to vector<1x2x128xf32>
    %c0_7 = arith.constant 0 : index
    %c0_8 = arith.constant 0 : index
    %c0_9 = arith.constant 0 : index
    %12 = vector.load %arg4[%c0_7, %c0_8, %c0_9] : memref<1x2x128xf32, #tpu.memory_space<vmem>>, vector<1x2x128xf32>
    tpu.vector_store %arg4[%c0_7, %c0_8, %c0_9], %11 {strides = array<i32>} : memref<1x2x128xf32, #tpu.memory_space<vmem>>, vector<1x2x128xf32>,
    return
  }
  func.func @transform_0(%arg0: i32) -> (i32, i32) {
    %c0_i32 = arith.constant 0 : i32
    %c0_i32_0 = arith.constant 0 : i32
    return %arg0, %c0_i32 : i32, i32
  }
  func.func @transform_1(%arg0: i32) -> (i32, i32) {
    %c0_i32 = arith.constant 0 : i32
    %c0_i32_0 = arith.constant 0 : i32
    %c0_i32_1 = arith.constant 0 : i32
    return %c0_i32, %c0_i32_0 : i32, i32
  }
  func.func @transform_2(%arg0: i32) -> (i32, i32) {
    %c0_i32 = arith.constant 0 : i32
    %c0_i32_0 = arith.constant 0 : i32
    return %arg0, %c0_i32 : i32, i32
  }
  func.func @transform_3(%arg0: i32) -> (i32, i32, i32) {
    %c0_i32 = arith.constant 0 : i32
    %c0_i32_0 = arith.constant 0 : i32
    %c0_i32_1 = arith.constant 0 : i32
    return %arg0, %c0_i32, %c0_i32_0 : i32, i32, i32
  }
}

module attributes {stable_mosaic.version = 11 : i64} {
  func.func @_bn_relu_conv3x3_kernel(%arg0: i32, %arg1: memref<1x256x128xbf16, #tpu.memory_space<vmem>>, %arg2: memref<1x128xf32, #tpu.memory_space<vmem>>, %arg3: memref<1x128xf32, #tpu.memory_space<vmem>>, %arg4: memref<3x384x128xbf16, #tpu.memory_space<vmem>>, %arg5: memref<1x256x128xbf16, #tpu.memory_space<vmem>>, %arg6: memref<1x2x128xf32, #tpu.memory_space<vmem>>, %arg7: memref<288x384xbf16, #tpu.memory_space<vmem>>) attributes {dimension_semantics = [#tpu.dimension_semantics<parallel>], iteration_bounds = array<i64: 2>, scalar_prefetch = 0 : i64, scratch_operands = 1 : i64, tpu.core_type = #tpu.core_type<tc>, window_params = [{transform_indices = @transform_0, window_bounds = array<i64: 1, 256, 128>}, {pipeline_mode = #tpu.pipeline_mode<synchronous>, transform_indices = @transform_1, window_bounds = array<i64: 1, 128>}, {pipeline_mode = #tpu.pipeline_mode<synchronous>, transform_indices = @transform_2, window_bounds = array<i64: 1, 128>}, {pipeline_mode = #tpu.pipeline_mode<synchronous>, transform_indices = @transform_3, window_bounds = array<i64: 3, 384, 128>}, {transform_indices = @transform_4, window_bounds = array<i64: 1, 256, 128>}, {transform_indices = @transform_5, window_bounds = array<i64: 1, 2, 128>}]} {
    %c0 = arith.constant 0 : index
    %c0_0 = arith.constant 0 : index
    %c0_1 = arith.constant 0 : index
    %0 = vector.load %arg1[%c0, %c0_0, %c0_1] : memref<1x256x128xbf16, #tpu.memory_space<vmem>>, vector<1x256x128xbf16>
    %1 = vector.shape_cast %0 : vector<1x256x128xbf16> to vector<256x128xbf16>
    %c0_2 = arith.constant 0 : index
    %c0_3 = arith.constant 0 : index
    %2 = vector.load %arg2[%c0_2, %c0_3] : memref<1x128xf32, #tpu.memory_space<vmem>>, vector<1x128xf32>
    %3 = arith.extf %1 : vector<256x128xbf16> to vector<256x128xf32>
    %4 = vector.broadcast %2 : vector<1x128xf32> to vector<256x128xf32>
    %5 = arith.mulf %3, %4 : vector<256x128xf32>
    %c0_4 = arith.constant 0 : index
    %c0_5 = arith.constant 0 : index
    %6 = vector.load %arg3[%c0_4, %c0_5] : memref<1x128xf32, #tpu.memory_space<vmem>>, vector<1x128xf32>
    %7 = vector.broadcast %6 : vector<1x128xf32> to vector<256x128xf32>
    %8 = arith.addf %5, %7 : vector<256x128xf32>
    %cst = arith.constant 0.000000e+00 : f32
    %9 = vector.broadcast %cst : f32 to vector<256x128xf32>
    %10 = arith.maximumf %8, %9 : vector<256x128xf32>
    %11 = tpu.iota {dimensions = array<i32: 0>} : vector<256x1xi32>
    %c16_i32 = arith.constant 16 : i32
    %c0_i32 = arith.constant 0 : i32
    %12 = arith.cmpi eq, %c16_i32, %c0_i32 : i32
    %c1_i32 = arith.constant 1 : i32
    %13 = arith.select %12, %c1_i32, %c16_i32 : i32
    %14 = vector.broadcast %13 : i32 to vector<256x1xi32>
    %15 = arith.remsi %11, %14 : vector<256x1xi32>
    %c0_i32_6 = arith.constant 0 : i32
    %16 = vector.broadcast %c0_i32_6 : i32 to vector<256x1xi32>
    %17 = arith.cmpi ne, %15, %16 : vector<256x1xi32>
    %c0_i32_7 = arith.constant 0 : i32
    %18 = vector.broadcast %c0_i32_7 : i32 to vector<256x1xi32>
    %19 = arith.cmpi slt, %15, %18 : vector<256x1xi32>
    %c0_i32_8 = arith.constant 0 : i32
    %20 = arith.cmpi slt, %13, %c0_i32_8 : i32
    %21 = vector.broadcast %20 : i1 to vector<256x1xi1>
    %22 = vector.broadcast %21 : vector<256x1xi1> to vector<256x1xi1>
    %23 = arith.xori %19, %22 : vector<256x1xi1>
    %24 = arith.andi %23, %17 : vector<256x1xi1>
    %25 = vector.broadcast %13 : i32 to vector<256x1xi32>
    %26 = arith.addi %15, %25 : vector<256x1xi32>
    %27 = arith.select %24, %26, %15 : vector<256x1xi1>, vector<256x1xi32>
    %cst_9 = arith.constant 0.000000e+00 : f32
    %28 = vector.broadcast %cst_9 : f32 to vector<1x128xf32>
    %c0_i32_10 = arith.constant 0 : i32
    %29 = vector.broadcast %c0_i32_10 : i32 to vector<256x1xi32>
    %30 = arith.cmpi ne, %27, %29 : vector<256x1xi32>
    %31 = vector.extract_strided_slice %10 {offsets = [0, 0], sizes = [255, 128], strides = [1, 1]} : vector<256x128xf32> to vector<255x128xf32>
    %32 = tpu.concatenate %28, %31 in 0 : vector<1x128xf32>, vector<255x128xf32> -> vector<256x128xf32>
    %cst_11 = arith.constant 0.000000e+00 : f32
    %33 = vector.shape_cast %30 : vector<256x1xi1> to vector<256x1xi1>
    %34 = vector.broadcast %33 : vector<256x1xi1> to vector<256x128xi1>
    %35 = vector.broadcast %cst_11 : f32 to vector<256x128xf32>
    %36 = arith.select %34, %32, %35 : vector<256x128xi1>, vector<256x128xf32>
    %c15_i32 = arith.constant 15 : i32
    %37 = vector.broadcast %c15_i32 : i32 to vector<256x1xi32>
    %38 = arith.cmpi ne, %27, %37 : vector<256x1xi32>
    %39 = vector.extract_strided_slice %10 {offsets = [1, 0], sizes = [255, 128], strides = [1, 1]} : vector<256x128xf32> to vector<255x128xf32>
    %40 = tpu.concatenate %39, %28 in 0 : vector<255x128xf32>, vector<1x128xf32> -> vector<256x128xf32>
    %cst_12 = arith.constant 0.000000e+00 : f32
    %41 = vector.shape_cast %38 : vector<256x1xi1> to vector<256x1xi1>
    %42 = vector.broadcast %41 : vector<256x1xi1> to vector<256x128xi1>
    %43 = vector.broadcast %cst_12 : f32 to vector<256x128xf32>
    %44 = arith.select %42, %40, %43 : vector<256x128xi1>, vector<256x128xf32>
    %cst_13 = arith.constant 0.000000e+00 : bf16
    %45 = vector.broadcast %cst_13 : bf16 to vector<16x384xbf16>
    %c0_14 = arith.constant 0 : index
    %c0_15 = arith.constant 0 : index
    %46 = vector.load %arg7[%c0_14, %c0_15] : memref<288x384xbf16, #tpu.memory_space<vmem>>, vector<16x384xbf16>
    tpu.vector_store %arg7[%c0_14, %c0_15], %45 {strides = array<i32>} : memref<288x384xbf16, #tpu.memory_space<vmem>>, vector<16x384xbf16>,
    %cst_16 = arith.constant 0.000000e+00 : bf16
    %47 = vector.broadcast %cst_16 : bf16 to vector<16x384xbf16>
    %c272 = arith.constant 272 : index
    %c0_17 = arith.constant 0 : index
    %48 = vector.load %arg7[%c272, %c0_17] : memref<288x384xbf16, #tpu.memory_space<vmem>>, vector<16x384xbf16>
    tpu.vector_store %arg7[%c272, %c0_17], %47 {strides = array<i32>} : memref<288x384xbf16, #tpu.memory_space<vmem>>, vector<16x384xbf16>,
    %49 = arith.truncf %36 : vector<256x128xf32> to vector<256x128xbf16>
    %c16 = arith.constant 16 : index
    %c0_18 = arith.constant 0 : index
    %50 = vector.load %arg7[%c16, %c0_18] : memref<288x384xbf16, #tpu.memory_space<vmem>>, vector<256x128xbf16>
    tpu.vector_store %arg7[%c16, %c0_18], %49 {strides = array<i32>} : memref<288x384xbf16, #tpu.memory_space<vmem>>, vector<256x128xbf16>,
    %51 = arith.truncf %10 : vector<256x128xf32> to vector<256x128xbf16>
    %c16_19 = arith.constant 16 : index
    %c128 = arith.constant 128 : index
    %52 = vector.load %arg7[%c16_19, %c128] : memref<288x384xbf16, #tpu.memory_space<vmem>>, vector<256x128xbf16>
    tpu.vector_store %arg7[%c16_19, %c128], %51 {strides = array<i32>} : memref<288x384xbf16, #tpu.memory_space<vmem>>, vector<256x128xbf16>,
    %53 = arith.truncf %44 : vector<256x128xf32> to vector<256x128xbf16>
    %c16_20 = arith.constant 16 : index
    %c256 = arith.constant 256 : index
    %54 = vector.load %arg7[%c16_20, %c256] : memref<288x384xbf16, #tpu.memory_space<vmem>>, vector<256x128xbf16>
    tpu.vector_store %arg7[%c16_20, %c256], %53 {strides = array<i32>} : memref<288x384xbf16, #tpu.memory_space<vmem>>, vector<256x128xbf16>,
    %c0_21 = arith.constant 0 : index
    %c0_22 = arith.constant 0 : index
    %55 = vector.load %arg7[%c0_21, %c0_22] : memref<288x384xbf16, #tpu.memory_space<vmem>>, vector<256x384xbf16>
    %c0_23 = arith.constant 0 : index
    %c0_24 = arith.constant 0 : index
    %c0_25 = arith.constant 0 : index
    %56 = vector.load %arg4[%c0_23, %c0_24, %c0_25] : memref<3x384x128xbf16, #tpu.memory_space<vmem>>, vector<1x384x128xbf16>
    %57 = vector.shape_cast %56 : vector<1x384x128xbf16> to vector<384x128xbf16>
    %cst_26 = arith.constant dense<0.000000e+00> : vector<256x128xf32>
    %58 = tpu.matmul %55, %57, %cst_26 {dimension_numbers = #tpu.dot_dimension_numbers<[1], [0], [0], [1], [0, 0, 1, 1], [], []>} : vector<256x384xbf16>, vector<384x128xbf16>, vector<256x128xf32> -> vector<256x128xf32>
    %c16_27 = arith.constant 16 : index
    %c0_28 = arith.constant 0 : index
    %59 = vector.load %arg7[%c16_27, %c0_28] : memref<288x384xbf16, #tpu.memory_space<vmem>>, vector<256x384xbf16>
    %c1 = arith.constant 1 : index
    %c0_29 = arith.constant 0 : index
    %c0_30 = arith.constant 0 : index
    %60 = vector.load %arg4[%c1, %c0_29, %c0_30] : memref<3x384x128xbf16, #tpu.memory_space<vmem>>, vector<1x384x128xbf16>
    %61 = vector.shape_cast %60 : vector<1x384x128xbf16> to vector<384x128xbf16>
    %cst_31 = arith.constant dense<0.000000e+00> : vector<256x128xf32>
    %62 = tpu.matmul %59, %61, %cst_31 {dimension_numbers = #tpu.dot_dimension_numbers<[1], [0], [0], [1], [0, 0, 1, 1], [], []>} : vector<256x384xbf16>, vector<384x128xbf16>, vector<256x128xf32> -> vector<256x128xf32>
    %63 = arith.addf %58, %62 : vector<256x128xf32>
    %c32 = arith.constant 32 : index
    %c0_32 = arith.constant 0 : index
    %64 = vector.load %arg7[%c32, %c0_32] : memref<288x384xbf16, #tpu.memory_space<vmem>>, vector<256x384xbf16>
    %c2 = arith.constant 2 : index
    %c0_33 = arith.constant 0 : index
    %c0_34 = arith.constant 0 : index
    %65 = vector.load %arg4[%c2, %c0_33, %c0_34] : memref<3x384x128xbf16, #tpu.memory_space<vmem>>, vector<1x384x128xbf16>
    %66 = vector.shape_cast %65 : vector<1x384x128xbf16> to vector<384x128xbf16>
    %cst_35 = arith.constant dense<0.000000e+00> : vector<256x128xf32>
    %67 = tpu.matmul %64, %66, %cst_35 {dimension_numbers = #tpu.dot_dimension_numbers<[1], [0], [0], [1], [0, 0, 1, 1], [], []>} : vector<256x384xbf16>, vector<384x128xbf16>, vector<256x128xf32> -> vector<256x128xf32>
    %68 = arith.addf %63, %67 : vector<256x128xf32>
    %69 = arith.truncf %68 : vector<256x128xf32> to vector<256x128xbf16>
    %70 = vector.shape_cast %69 : vector<256x128xbf16> to vector<1x256x128xbf16>
    %c0_36 = arith.constant 0 : index
    %c0_37 = arith.constant 0 : index
    %c0_38 = arith.constant 0 : index
    %71 = vector.load %arg5[%c0_36, %c0_37, %c0_38] : memref<1x256x128xbf16, #tpu.memory_space<vmem>>, vector<1x256x128xbf16>
    tpu.vector_store %arg5[%c0_36, %c0_37, %c0_38], %70 {strides = array<i32>} : memref<1x256x128xbf16, #tpu.memory_space<vmem>>, vector<1x256x128xbf16>,
    %cst_39 = arith.constant dense<0.000000e+00> : vector<128xf32>
    %72 = vector.multi_reduction <add>, %68, %cst_39 [0] : vector<256x128xf32> to vector<128xf32>
    %73 = vector.shape_cast %72 : vector<128xf32> to vector<1x128xf32>
    %74 = arith.mulf %68, %68 : vector<256x128xf32>
    %cst_40 = arith.constant dense<0.000000e+00> : vector<128xf32>
    %75 = vector.multi_reduction <add>, %74, %cst_40 [0] : vector<256x128xf32> to vector<128xf32>
    %76 = vector.shape_cast %75 : vector<128xf32> to vector<1x128xf32>
    %77 = tpu.concatenate %73, %76 in 0 : vector<1x128xf32>, vector<1x128xf32> -> vector<2x128xf32>
    %78 = vector.shape_cast %77 : vector<2x128xf32> to vector<1x2x128xf32>
    %c0_41 = arith.constant 0 : index
    %c0_42 = arith.constant 0 : index
    %c0_43 = arith.constant 0 : index
    %79 = vector.load %arg6[%c0_41, %c0_42, %c0_43] : memref<1x2x128xf32, #tpu.memory_space<vmem>>, vector<1x2x128xf32>
    tpu.vector_store %arg6[%c0_41, %c0_42, %c0_43], %78 {strides = array<i32>} : memref<1x2x128xf32, #tpu.memory_space<vmem>>, vector<1x2x128xf32>,
    return
  }
  func.func @transform_0(%arg0: i32) -> (i32, i32, i32) {
    %c0_i32 = arith.constant 0 : i32
    %c0_i32_0 = arith.constant 0 : i32
    %c0_i32_1 = arith.constant 0 : i32
    return %arg0, %c0_i32, %c0_i32_0 : i32, i32, i32
  }
  func.func @transform_1(%arg0: i32) -> (i32, i32) {
    %c0_i32 = arith.constant 0 : i32
    %c0_i32_0 = arith.constant 0 : i32
    %c0_i32_1 = arith.constant 0 : i32
    return %c0_i32, %c0_i32_0 : i32, i32
  }
  func.func @transform_2(%arg0: i32) -> (i32, i32) {
    %c0_i32 = arith.constant 0 : i32
    %c0_i32_0 = arith.constant 0 : i32
    %c0_i32_1 = arith.constant 0 : i32
    return %c0_i32, %c0_i32_0 : i32, i32
  }
  func.func @transform_3(%arg0: i32) -> (i32, i32, i32) {
    %c0_i32 = arith.constant 0 : i32
    %c0_i32_0 = arith.constant 0 : i32
    %c0_i32_1 = arith.constant 0 : i32
    %c0_i32_2 = arith.constant 0 : i32
    return %c0_i32, %c0_i32_0, %c0_i32_1 : i32, i32, i32
  }
  func.func @transform_4(%arg0: i32) -> (i32, i32, i32) {
    %c0_i32 = arith.constant 0 : i32
    %c0_i32_0 = arith.constant 0 : i32
    %c0_i32_1 = arith.constant 0 : i32
    return %arg0, %c0_i32, %c0_i32_0 : i32, i32, i32
  }
  func.func @transform_5(%arg0: i32) -> (i32, i32, i32) {
    %c0_i32 = arith.constant 0 : i32
    %c0_i32_0 = arith.constant 0 : i32
    %c0_i32_1 = arith.constant 0 : i32
    return %arg0, %c0_i32, %c0_i32_0 : i32, i32, i32
  }
}

module attributes {stable_mosaic.version = 11 : i64} {
  func.func @_bn_relu_conv1_kernel(%arg0: i32, %arg1: memref<512x128xbf16, #tpu.memory_space<vmem>>, %arg2: memref<1x128xf32, #tpu.memory_space<vmem>>, %arg3: memref<1x128xf32, #tpu.memory_space<vmem>>, %arg4: memref<128x128xbf16, #tpu.memory_space<vmem>>, %arg5: memref<512x128xbf16, #tpu.memory_space<vmem>>, %arg6: memref<1x2x128xf32, #tpu.memory_space<vmem>>) attributes {dimension_semantics = [#tpu.dimension_semantics<parallel>], iteration_bounds = array<i64: 1>, scalar_prefetch = 0 : i64, scratch_operands = 0 : i64, tpu.core_type = #tpu.core_type<tc>, window_params = [{transform_indices = @transform_0, window_bounds = array<i64: 512, 128>}, {pipeline_mode = #tpu.pipeline_mode<synchronous>, transform_indices = @transform_1, window_bounds = array<i64: 1, 128>}, {pipeline_mode = #tpu.pipeline_mode<synchronous>, transform_indices = @transform_2, window_bounds = array<i64: 1, 128>}, {pipeline_mode = #tpu.pipeline_mode<synchronous>, transform_indices = @transform_3, window_bounds = array<i64: 128, 128>}, {transform_indices = @transform_4, window_bounds = array<i64: 512, 128>}, {transform_indices = @transform_5, window_bounds = array<i64: 1, 2, 128>}]} {
    %c0 = arith.constant 0 : index
    %c0_0 = arith.constant 0 : index
    %0 = vector.load %arg1[%c0, %c0_0] : memref<512x128xbf16, #tpu.memory_space<vmem>>, vector<512x128xbf16>
    %c0_1 = arith.constant 0 : index
    %c0_2 = arith.constant 0 : index
    %1 = vector.load %arg2[%c0_1, %c0_2] : memref<1x128xf32, #tpu.memory_space<vmem>>, vector<1x128xf32>
    %2 = arith.extf %0 : vector<512x128xbf16> to vector<512x128xf32>
    %3 = vector.broadcast %1 : vector<1x128xf32> to vector<512x128xf32>
    %4 = arith.mulf %2, %3 : vector<512x128xf32>
    %c0_3 = arith.constant 0 : index
    %c0_4 = arith.constant 0 : index
    %5 = vector.load %arg3[%c0_3, %c0_4] : memref<1x128xf32, #tpu.memory_space<vmem>>, vector<1x128xf32>
    %6 = vector.broadcast %5 : vector<1x128xf32> to vector<512x128xf32>
    %7 = arith.addf %4, %6 : vector<512x128xf32>
    %cst = arith.constant 0.000000e+00 : f32
    %8 = vector.broadcast %cst : f32 to vector<512x128xf32>
    %9 = arith.maximumf %7, %8 : vector<512x128xf32>
    %10 = arith.truncf %9 : vector<512x128xf32> to vector<512x128xbf16>
    %c0_5 = arith.constant 0 : index
    %c0_6 = arith.constant 0 : index
    %11 = vector.load %arg4[%c0_5, %c0_6] : memref<128x128xbf16, #tpu.memory_space<vmem>>, vector<128x128xbf16>
    %cst_7 = arith.constant dense<0.000000e+00> : vector<512x128xf32>
    %12 = tpu.matmul %10, %11, %cst_7 {dimension_numbers = #tpu.dot_dimension_numbers<[1], [0], [0], [1], [0, 0, 1, 1], [], []>} : vector<512x128xbf16>, vector<128x128xbf16>, vector<512x128xf32> -> vector<512x128xf32>
    %13 = arith.truncf %12 : vector<512x128xf32> to vector<512x128xbf16>
    %c0_8 = arith.constant 0 : index
    %c0_9 = arith.constant 0 : index
    %14 = vector.load %arg5[%c0_8, %c0_9] : memref<512x128xbf16, #tpu.memory_space<vmem>>, vector<512x128xbf16>
    tpu.vector_store %arg5[%c0_8, %c0_9], %13 {strides = array<i32>} : memref<512x128xbf16, #tpu.memory_space<vmem>>, vector<512x128xbf16>,
    %cst_10 = arith.constant dense<0.000000e+00> : vector<128xf32>
    %15 = vector.multi_reduction <add>, %12, %cst_10 [0] : vector<512x128xf32> to vector<128xf32>
    %16 = vector.shape_cast %15 : vector<128xf32> to vector<1x128xf32>
    %17 = arith.mulf %12, %12 : vector<512x128xf32>
    %cst_11 = arith.constant dense<0.000000e+00> : vector<128xf32>
    %18 = vector.multi_reduction <add>, %17, %cst_11 [0] : vector<512x128xf32> to vector<128xf32>
    %19 = vector.shape_cast %18 : vector<128xf32> to vector<1x128xf32>
    %20 = tpu.concatenate %16, %19 in 0 : vector<1x128xf32>, vector<1x128xf32> -> vector<2x128xf32>
    %21 = vector.shape_cast %20 : vector<2x128xf32> to vector<1x2x128xf32>
    %c0_12 = arith.constant 0 : index
    %c0_13 = arith.constant 0 : index
    %c0_14 = arith.constant 0 : index
    %22 = vector.load %arg6[%c0_12, %c0_13, %c0_14] : memref<1x2x128xf32, #tpu.memory_space<vmem>>, vector<1x2x128xf32>
    tpu.vector_store %arg6[%c0_12, %c0_13, %c0_14], %21 {strides = array<i32>} : memref<1x2x128xf32, #tpu.memory_space<vmem>>, vector<1x2x128xf32>,
    return
  }
  func.func @transform_0(%arg0: i32) -> (i32, i32) {
    %c0_i32 = arith.constant 0 : i32
    %c0_i32_0 = arith.constant 0 : i32
    return %arg0, %c0_i32 : i32, i32
  }
  func.func @transform_1(%arg0: i32) -> (i32, i32) {
    %c0_i32 = arith.constant 0 : i32
    %c0_i32_0 = arith.constant 0 : i32
    %c0_i32_1 = arith.constant 0 : i32
    return %c0_i32, %c0_i32_0 : i32, i32
  }
  func.func @transform_2(%arg0: i32) -> (i32, i32) {
    %c0_i32 = arith.constant 0 : i32
    %c0_i32_0 = arith.constant 0 : i32
    %c0_i32_1 = arith.constant 0 : i32
    return %c0_i32, %c0_i32_0 : i32, i32
  }
  func.func @transform_3(%arg0: i32) -> (i32, i32) {
    %c0_i32 = arith.constant 0 : i32
    %c0_i32_0 = arith.constant 0 : i32
    %c0_i32_1 = arith.constant 0 : i32
    return %c0_i32, %c0_i32_0 : i32, i32
  }
  func.func @transform_4(%arg0: i32) -> (i32, i32) {
    %c0_i32 = arith.constant 0 : i32
    %c0_i32_0 = arith.constant 0 : i32
    return %arg0, %c0_i32 : i32, i32
  }
  func.func @transform_5(%arg0: i32) -> (i32, i32, i32) {
    %c0_i32 = arith.constant 0 : i32
    %c0_i32_0 = arith.constant 0 : i32
    %c0_i32_1 = arith.constant 0 : i32
    return %arg0, %c0_i32, %c0_i32_0 : i32, i32, i32
  }
}

module attributes {stable_mosaic.version = 11 : i64} {
  func.func @_bn_residual_relu_kernel(%arg0: i32, %arg1: memref<512x128xbf16, #tpu.memory_space<vmem>>, %arg2: memref<1x128xf32, #tpu.memory_space<vmem>>, %arg3: memref<1x128xf32, #tpu.memory_space<vmem>>, %arg4: memref<512x128xbf16, #tpu.memory_space<vmem>>, %arg5: memref<512x128xf32, #tpu.memory_space<vmem>>) attributes {dimension_semantics = [#tpu.dimension_semantics<parallel>], iteration_bounds = array<i64: 1>, scalar_prefetch = 0 : i64, scratch_operands = 0 : i64, tpu.core_type = #tpu.core_type<tc>, window_params = [{transform_indices = @transform_0, window_bounds = array<i64: 512, 128>}, {pipeline_mode = #tpu.pipeline_mode<synchronous>, transform_indices = @transform_1, window_bounds = array<i64: 1, 128>}, {pipeline_mode = #tpu.pipeline_mode<synchronous>, transform_indices = @transform_2, window_bounds = array<i64: 1, 128>}, {transform_indices = @transform_3, window_bounds = array<i64: 512, 128>}, {transform_indices = @transform_4, window_bounds = array<i64: 512, 128>}]} {
    %c0 = arith.constant 0 : index
    %c0_0 = arith.constant 0 : index
    %0 = vector.load %arg1[%c0, %c0_0] : memref<512x128xbf16, #tpu.memory_space<vmem>>, vector<512x128xbf16>
    %c0_1 = arith.constant 0 : index
    %c0_2 = arith.constant 0 : index
    %1 = vector.load %arg2[%c0_1, %c0_2] : memref<1x128xf32, #tpu.memory_space<vmem>>, vector<1x128xf32>
    %2 = arith.extf %0 : vector<512x128xbf16> to vector<512x128xf32>
    %3 = vector.broadcast %1 : vector<1x128xf32> to vector<512x128xf32>
    %4 = arith.mulf %2, %3 : vector<512x128xf32>
    %c0_3 = arith.constant 0 : index
    %c0_4 = arith.constant 0 : index
    %5 = vector.load %arg3[%c0_3, %c0_4] : memref<1x128xf32, #tpu.memory_space<vmem>>, vector<1x128xf32>
    %6 = vector.broadcast %5 : vector<1x128xf32> to vector<512x128xf32>
    %7 = arith.addf %4, %6 : vector<512x128xf32>
    %c0_5 = arith.constant 0 : index
    %c0_6 = arith.constant 0 : index
    %8 = vector.load %arg4[%c0_5, %c0_6] : memref<512x128xbf16, #tpu.memory_space<vmem>>, vector<512x128xbf16>
    %9 = arith.extf %8 : vector<512x128xbf16> to vector<512x128xf32>
    %10 = arith.addf %7, %9 : vector<512x128xf32>
    %cst = arith.constant 0.000000e+00 : f32
    %11 = vector.broadcast %cst : f32 to vector<512x128xf32>
    %12 = arith.maximumf %10, %11 : vector<512x128xf32>
    %c0_7 = arith.constant 0 : index
    %c0_8 = arith.constant 0 : index
    %13 = vector.load %arg5[%c0_7, %c0_8] : memref<512x128xf32, #tpu.memory_space<vmem>>, vector<512x128xf32>
    tpu.vector_store %arg5[%c0_7, %c0_8], %12 {strides = array<i32>} : memref<512x128xf32, #tpu.memory_space<vmem>>, vector<512x128xf32>,
    return
  }
  func.func @transform_0(%arg0: i32) -> (i32, i32) {
    %c0_i32 = arith.constant 0 : i32
    %c0_i32_0 = arith.constant 0 : i32
    return %arg0, %c0_i32 : i32, i32
  }
  func.func @transform_1(%arg0: i32) -> (i32, i32) {
    %c0_i32 = arith.constant 0 : i32
    %c0_i32_0 = arith.constant 0 : i32
    %c0_i32_1 = arith.constant 0 : i32
    return %c0_i32, %c0_i32_0 : i32, i32
  }
  func.func @transform_2(%arg0: i32) -> (i32, i32) {
    %c0_i32 = arith.constant 0 : i32
    %c0_i32_0 = arith.constant 0 : i32
    %c0_i32_1 = arith.constant 0 : i32
    return %c0_i32, %c0_i32_0 : i32, i32
  }
  func.func @transform_3(%arg0: i32) -> (i32, i32) {
    %c0_i32 = arith.constant 0 : i32
    %c0_i32_0 = arith.constant 0 : i32
    return %arg0, %c0_i32 : i32, i32
  }
  func.func @transform_4(%arg0: i32) -> (i32, i32) {
    %c0_i32 = arith.constant 0 : i32
    %c0_i32_0 = arith.constant 0 : i32
    return %arg0, %c0_i32 : i32, i32
  }
}

</mosaic_0001>

<llo_original>
// kernel: bottleneck_forward.4
$region0: #{bottleneck_forward.4}
  #allocation0 [shape = 'u32[]', space=smem, size = 0x4, offset = 0x4, fixed_abs, tag = 'smem constant byte address 0x4 - core index']
  #allocation1 [shape = 'u32[144,128]{1,0:T(1,128)}', space=vmem, size = 0x12000, scoped, tag = 'internal scratch']
  %s0 = inlined_call_operand.vmem [shape: bf16[512,128], index: 0, kind: input, shape index: {}]
  %s1 = inlined_call_operand.vmem [shape: bf16[128,128], index: 1, kind: input, shape index: {}]
  %s2 = inlined_call_operand.vmem [shape: bf16[512,128], index: 2, kind: output, shape index: {0}]
  %s3 = inlined_call_operand.vmem [shape: f32[1,2,128], index: 3, kind: output, shape index: {1}]
  %4 = xla_tuple %s2, %s3
  %s5 = sld [smem:[#allocation0]]
  $region26: #{bottleneck_forward.4} parent=0
    _
  %s7 = ssub.s32 1, %s5
  %s8 = scalar_select 0, %s7, %s5
  // Predicated region
  $region2: #{bottleneck_forward.4} parent=0 // pred_check
    _
  $region3: #{bottleneck_forward.4} parent=0 // pred_check_branch
    %10 = sbr.rel (0) target = $region5
  $region4: #{bottleneck_forward.4} parent=0 // pred_region
    _
  $region5: #{bottleneck_forward.4} parent=0 // pred_fallthru
    _
  // Predicated region
  $region6: #{bottleneck_forward.4} parent=0 // pred_check
    _
  $region7: #{bottleneck_forward.4} parent=0 // pred_check_branch
    %12 = sbr.rel (0) target = $region9
  $region8: #{bottleneck_forward.4} parent=0 // pred_region
    _
  $region9: #{bottleneck_forward.4} parent=0 // pred_fallthru
    _
  %v14 = vld [vmem:[%s0] sm:$0xf]
  %v15 = vld [vmem:[%s0 + $0x4] sm:$0xf]
  %v16 = vld [vmem:[%s0 + $0x8] sm:$0xf]
  %v17 = vld [vmem:[%s0 + $0xc] sm:$0xf]
  %v18 = vld [vmem:[%s0 + $0x10] sm:$0xf]
  %v19 = vld [vmem:[%s0 + $0x14] sm:$0xf]
  %v20 = vld [vmem:[%s0 + $0x18] sm:$0xf]
  %v21 = vld [vmem:[%s0 + $0x1c] sm:$0xf]
  %v22 = vld [vmem:[%s0 + $0x20] sm:$0xf]
  %v23 = vld [vmem:[%s0 + $0x24] sm:$0xf]
  %v24 = vld [vmem:[%s0 + $0x28] sm:$0xf]
  %v25 = vld [vmem:[%s0 + $0x2c] sm:$0xf]
  %v26 = vld [vmem:[%s0 + $0x30] sm:$0xf]
  %v27 = vld [vmem:[%s0 + $0x34] sm:$0xf]
  %v28 = vld [vmem:[%s0 + $0x38] sm:$0xf]
  %v29 = vld [vmem:[%s0 + $0x3c] sm:$0xf]
  %v30 = vld [vmem:[%s0 + $0x40] sm:$0xf]
  %v31 = vld [vmem:[%s0 + $0x44] sm:$0xf]
  %v32 = vld [vmem:[%s0 + $0x48] sm:$0xf]
  %v33 = vld [vmem:[%s0 + $0x4c] sm:$0xf]
  %v34 = vld [vmem:[%s0 + $0x50] sm:$0xf]
  %v35 = vld [vmem:[%s0 + $0x54] sm:$0xf]
  %v36 = vld [vmem:[%s0 + $0x58] sm:$0xf]
  %v37 = vld [vmem:[%s0 + $0x5c] sm:$0xf]
  %v38 = vld [vmem:[%s0 + $0x60] sm:$0xf]
  %v39 = vld [vmem:[%s0 + $0x64] sm:$0xf]
  %v40 = vld [vmem:[%s0 + $0x68] sm:$0xf]
  %v41 = vld [vmem:[%s0 + $0x6c] sm:$0xf]
  %v42 = vld [vmem:[%s0 + $0x70] sm:$0xf]
  %v43 = vld [vmem:[%s0 + $0x74] sm:$0xf]
  %v44 = vld [vmem:[%s0 + $0x78] sm:$0xf]
  %v45 = vld [vmem:[%s0 + $0x7c] sm:$0xf]
  %v46 = vld [vmem:[%s0 + $0x80] sm:$0xf]
  %v47 = vld [vmem:[%s0 + $0x84] sm:$0xf]
  %v48 = vld [vmem:[%s0 + $0x88] sm:$0xf]
  %v49 = vld [vmem:[%s0 + $0x8c] sm:$0xf]
  %v50 = vld [vmem:[%s0 + $0x90] sm:$0xf]
  %v51 = vld [vmem:[%s0 + $0x94] sm:$0xf]
  %v52 = vld [vmem:[%s0 + $0x98] sm:$0xf]
  %v53 = vld [vmem:[%s0 + $0x9c] sm:$0xf]
  %v54 = vld [vmem:[%s0 + $0xa0] sm:$0xf]
  %v55 = vld [vmem:[%s0 + $0xa4] sm:$0xf]
  %v56 = vld [vmem:[%s0 + $0xa8] sm:$0xf]
  %v57 = vld [vmem:[%s0 + $0xac] sm:$0xf]
  %v58 = vld [vmem:[%s0 + $0xb0] sm:$0xf]
  %v59 = vld [vmem:[%s0 + $0xb4] sm:$0xf]
  %v60 = vld [vmem:[%s0 + $0xb8] sm:$0xf]
  %v61 = vld [vmem:[%s0 + $0xbc] sm:$0xf]
  %v62 = vld [vmem:[%s0 + $0xc0] sm:$0xf]
  %v63 = vld [vmem:[%s0 + $0xc4] sm:$0xf]
  %v64 = vld [vmem:[%s0 + $0xc8] sm:$0xf]
  %v65 = vld [vmem:[%s0 + $0xcc] sm:$0xf]
  %v66 = vld [vmem:[%s0 + $0xd0] sm:$0xf]
  %v67 = vld [vmem:[%s0 + $0xd4] sm:$0xf]
  %v68 = vld [vmem:[%s0 + $0xd8] sm:$0xf]
  %v69 = vld [vmem:[%s0 + $0xdc] sm:$0xf]
  %v70 = vld [vmem:[%s0 + $0xe0] sm:$0xf]
  %v71 = vld [vmem:[%s0 + $0xe4] sm:$0xf]
  %v72 = vld [vmem:[%s0 + $0xe8] sm:$0xf]
  %v73 = vld [vmem:[%s0 + $0xec] sm:$0xf]
  %v74 = vld [vmem:[%s0 + $0xf0] sm:$0xf]
  %v75 = vld [vmem:[%s0 + $0xf4] sm:$0xf]
  %v76 = vld [vmem:[%s0 + $0xf8] sm:$0xf]
  %v77 = vld [vmem:[%s0 + $0xfc] sm:$0xf]
  %v78 = vld [vmem:[%s1] sm:$0xf]
  %v79 = vld [vmem:[%s1 + $0x4] sm:$0xf]
  %v80 = vld [vmem:[%s1 + $0x8] sm:$0xf]
  %v81 = vld [vmem:[%s1 + $0xc] sm:$0xf]
  %v82 = vld [vmem:[%s1 + $0x10] sm:$0xf]
  %v83 = vld [vmem:[%s1 + $0x14] sm:$0xf]
  %v84 = vld [vmem:[%s1 + $0x18] sm:$0xf]
  %v85 = vld [vmem:[%s1 + $0x1c] sm:$0xf]
  %v86 = vld [vmem:[%s1 + $0x20] sm:$0xf]
  %v87 = vld [vmem:[%s1 + $0x24] sm:$0xf]
  %v88 = vld [vmem:[%s1 + $0x28] sm:$0xf]
  %v89 = vld [vmem:[%s1 + $0x2c] sm:$0xf]
  %v90 = vld [vmem:[%s1 + $0x30] sm:$0xf]
  %v91 = vld [vmem:[%s1 + $0x34] sm:$0xf]
  %v92 = vld [vmem:[%s1 + $0x38] sm:$0xf]
  %v93 = vld [vmem:[%s1 + $0x3c] sm:$0xf]
  %v158 = vunpack.c.l.b16 %v14
  %v159 = vunpack.c.l.b16 %v15
  %v160 = vunpack.c.l.b16 %v16
  %v161 = vunpack.c.l.b16 %v17
  %v162 = vunpack.c.l.b16 %v18
  %v163 = vunpack.c.l.b16 %v19
  %v164 = vunpack.c.l.b16 %v20
  %v165 = vunpack.c.l.b16 %v21
  %v166 = vunpack.c.l.b16 %v22
  %v167 = vunpack.c.l.b16 %v23
  %v168 = vunpack.c.l.b16 %v24
  %v169 = vunpack.c.l.b16 %v25
  %v170 = vunpack.c.l.b16 %v26
  %v171 = vunpack.c.l.b16 %v27
  %v172 = vunpack.c.l.b16 %v28
  %v173 = vunpack.c.l.b16 %v29
  %v174 = vunpack.c.l.b16 %v30
  %v175 = vunpack.c.l.b16 %v31
  %v176 = vunpack.c.l.b16 %v32
  %v177 = vunpack.c.l.b16 %v33
  %v178 = vunpack.c.l.b16 %v34
  %v179 = vunpack.c.l.b16 %v35
  %v180 = vunpack.c.l.b16 %v36
  %v181 = vunpack.c.l.b16 %v37
  %v182 = vunpack.c.l.b16 %v38
  %v183 = vunpack.c.l.b16 %v39
  %v184 = vunpack.c.l.b16 %v40
  %v185 = vunpack.c.l.b16 %v41
  %v186 = vunpack.c.l.b16 %v42
  %v187 = vunpack.c.l.b16 %v43
  %v188 = vunpack.c.l.b16 %v44
  %v189 = vunpack.c.l.b16 %v45
  %v190 = vunpack.c.l.b16 %v46
  %v191 = vunpack.c.l.b16 %v47
  %v192 = vunpack.c.l.b16 %v48
  %v193 = vunpack.c.l.b16 %v49
  %v194 = vunpack.c.l.b16 %v50
  %v195 = vunpack.c.l.b16 %v51
  %v196 = vunpack.c.l.b16 %v52
  %v197 = vunpack.c.l.b16 %v53
  %v198 = vunpack.c.l.b16 %v54
  %v199 = vunpack.c.l.b16 %v55
  %v200 = vunpack.c.l.b16 %v56
  %v201 = vunpack.c.l.b16 %v57
  %v202 = vunpack.c.l.b16 %v58
  %v203 = vunpack.c.l.b16 %v59
  %v204 = vunpack.c.l.b16 %v60
  %v205 = vunpack.c.l.b16 %v61
  %v206 = vunpack.c.l.b16 %v62
  %v207 = vunpack.c.l.b16 %v63
  %v208 = vunpack.c.l.b16 %v64
  %v209 = vunpack.c.l.b16 %v65
  %v210 = vunpack.c.l.b16 %v66
  %v211 = vunpack.c.l.b16 %v67
  %v212 = vunpack.c.l.b16 %v68
  %v213 = vunpack.c.l.b16 %v69
  %v214 = vunpack.c.l.b16 %v70
  %v215 = vunpack.c.l.b16 %v71
  %v216 = vunpack.c.l.b16 %v72
  %v217 = vunpack.c.l.b16 %v73
  %v218 = vunpack.c.l.b16 %v74
  %v219 = vunpack.c.l.b16 %v75
  %v220 = vunpack.c.l.b16 %v76
  %v221 = vunpack.c.l.b16 %v77
  %v222 = vpack.c.b16 %v159, %v158
  %v223 = vpack.c.b16 %v161, %v160
  %v224 = vpack.c.b16 %v163, %v162
  %v225 = vpack.c.b16 %v165, %v164
  %v226 = vpack.c.b16 %v167, %v166
  %v227 = vpack.c.b16 %v169, %v168
  %v228 = vpack.c.b16 %v171, %v170
  %v229 = vpack.c.b16 %v173, %v172
  %v230 = vpack.c.b16 %v175, %v174
  %v231 = vpack.c.b16 %v177, %v176
  %v232 = vpack.c.b16 %v179, %v178
  %v233 = vpack.c.b16 %v181, %v180
  %v234 = vpack.c.b16 %v183, %v182
  %v235 = vpack.c.b16 %v185, %v184
  %v236 = vpack.c.b16 %v187, %v186
  %v237 = vpack.c.b16 %v189, %v188
  %v238 = vpack.c.b16 %v191, %v190
  %v239 = vpack.c.b16 %v193, %v192
  %v240 = vpack.c.b16 %v195, %v194
  %v241 = vpack.c.b16 %v197, %v196
  %v242 = vpack.c.b16 %v199, %v198
  %v243 = vpack.c.b16 %v201, %v200
  %v244 = vpack.c.b16 %v203, %v202
  %v245 = vpack.c.b16 %v205, %v204
  %v246 = vpack.c.b16 %v207, %v206
  %v247 = vpack.c.b16 %v209, %v208
  %v248 = vpack.c.b16 %v211, %v210
  %v249 = vpack.c.b16 %v213, %v212
  %v250 = vpack.c.b16 %v215, %v214
  %v251 = vpack.c.b16 %v217, %v216
  %v252 = vpack.c.b16 %v219, %v218
  %v253 = vpack.c.b16 %v221, %v220
  %v302 = vunpack.c.l.b16 %v78
  %v303 = vunpack.c.l.b16 %v79
  %v304 = vunpack.c.l.b16 %v80
  %v305 = vunpack.c.l.b16 %v81
  %v306 = vunpack.c.l.b16 %v82
  %v307 = vunpack.c.l.b16 %v83
  %v308 = vunpack.c.l.b16 %v84
  %v309 = vunpack.c.l.b16 %v85
  %v310 = vunpack.c.l.b16 %v86
  %v311 = vunpack.c.l.b16 %v87
  %v312 = vunpack.c.l.b16 %v88
  %v313 = vunpack.c.l.b16 %v89
  %v314 = vunpack.c.l.b16 %v90
  %v315 = vunpack.c.l.b16 %v91
  %v316 = vunpack.c.l.b16 %v92
  %v317 = vunpack.c.l.b16 %v93
  %v318 = vpack.c.b16 %v303, %v302
  %v319 = vpack.c.b16 %v305, %v304
  %v320 = vpack.c.b16 %v307, %v306
  %v321 = vpack.c.b16 %v309, %v308
  %v322 = vpack.c.b16 %v311, %v310
  %v323 = vpack.c.b16 %v313, %v312
  %v324 = vpack.c.b16 %v315, %v314
  %v325 = vpack.c.b16 %v317, %v316
  %334 = vmatprep.subr.bf16.mxu0 0
  %335 = vmatpush1.bf16.msra.mxu0 %v325
  %336 = vmatprep.subr.bf16.mxu0 0
  %337 = vmatpush1.bf16.msra.mxu0 %v324
  %338 = vmatprep.subr.bf16.mxu0 0
  %339 = vmatpush1.bf16.msra.mxu0 %v323
  %340 = vmatprep.subr.bf16.mxu0 0
  %341 = vmatpush1.bf16.msra.mxu0 %v322
  %342 = vmatprep.subr.bf16.mxu0 0
  %343 = vmatpush1.bf16.msra.mxu0 %v321
  %344 = vmatprep.subr.bf16.mxu0 0
  %345 = vmatpush1.bf16.msra.mxu0 %v320
  %346 = vmatprep.subr.bf16.mxu0 0
  %347 = vmatpush1.bf16.msra.mxu0 %v319
  %348 = vmatprep.subr.bf16.mxu0 0
  %349 = vmatpush1.bf16.msra.mxu0 %v318
  %350 = vmatprep.subr.bf16.mxu0 0
  %351 = vmatpush2.bf16.msra.mxu0 0
  %352 = vmatprep.subr.bf16.mxu0 0
  %353 = vmatpush2.bf16.msra.mxu0 0
  %354 = vmatprep.subr.bf16.mxu0 0
  %355 = vmatpush2.bf16.msra.mxu0 0
  %356 = vmatprep.subr.bf16.mxu0 0
  %357 = vmatpush2.bf16.msra.mxu0 0
  %358 = vmatprep.subr.bf16.mxu0 0
  %359 = vmatpush2.bf16.msra.mxu0 0
  %360 = vmatprep.subr.bf16.mxu0 0
  %361 = vmatpush2.bf16.msra.mxu0 0
  %362 = vmatprep.subr.bf16.mxu0 0
  %363 = vmatpush2.bf16.msra.mxu0 0
  %364 = vmatprep.subr.bf16.mxu0 0
  %365 = vmatpush2.bf16.msra.mxu0 0
  %366 = vmatprep.mubr.bf16.mxu0 0
  %367 = vmatmul.mubr.bf16.gmra.mxu0 %v222
  %v368 = vpop.f32.mrf.mxu0
  %v369 = vadd.f32 0.0, %v368
  %v370 = vpop.f32.mrf.mxu0
  %v371 = vpop.f32.mrf.mxu0
  %v372 = vadd.f32 0.0, %v371
  %v373 = vpop.f32.mrf.mxu0
  %374 = vmatprep.mubr.bf16.mxu0 0
  %375 = vmatmul.mubr.bf16.gmra.mxu0 %v223
  %v376 = vpop.f32.mrf.mxu0
  %v377 = vadd.f32 0.0, %v376
  %v378 = vpop.f32.mrf.mxu0
  %v379 = vpop.f32.mrf.mxu0
  %v380 = vadd.f32 0.0, %v379
  %v381 = vpop.f32.mrf.mxu0
  %382 = vmatprep.mubr.bf16.mxu0 0
  %383 = vmatmul.mubr.bf16.gmra.mxu0 %v224
  %v384 = vpop.f32.mrf.mxu0
  %v385 = vadd.f32 0.0, %v384
  %v386 = vpop.f32.mrf.mxu0
  %v387 = vpop.f32.mrf.mxu0
  %v388 = vadd.f32 0.0, %v387
  %v389 = vpop.f32.mrf.mxu0
  %390 = vmatprep.mubr.bf16.mxu0 0
  %391 = vmatmul.mubr.bf16.gmra.mxu0 %v225
  %v392 = vpop.f32.mrf.mxu0
  %v393 = vadd.f32 0.0, %v392
  %v394 = vpop.f32.mrf.mxu0
  %v395 = vpop.f32.mrf.mxu0
  %v396 = vadd.f32 0.0, %v395
  %v397 = vpop.f32.mrf.mxu0
  %398 = vmatprep.mubr.bf16.mxu0 0
  %399 = vmatmul.mubr.bf16.gmra.mxu0 %v226
  %v400 = vpop.f32.mrf.mxu0
  %v401 = vadd.f32 0.0, %v400
  %v402 = vpop.f32.mrf.mxu0
  %v403 = vpop.f32.mrf.mxu0
  %v404 = vadd.f32 0.0, %v403
  %v405 = vpop.f32.mrf.mxu0
  %406 = vmatprep.mubr.bf16.mxu0 0
  %407 = vmatmul.mubr.bf16.gmra.mxu0 %v227
  %v408 = vpop.f32.mrf.mxu0
  %v409 = vadd.f32 0.0, %v408
  %v410 = vpop.f32.mrf.mxu0
  %v411 = vpop.f32.mrf.mxu0
  %v412 = vadd.f32 0.0, %v411
  %v413 = vpop.f32.mrf.mxu0
  %414 = vmatprep.mubr.bf16.mxu0 0
  %415 = vmatmul.mubr.bf16.gmra.mxu0 %v228
  %v416 = vpop.f32.mrf.mxu0
  %v417 = vadd.f32 0.0, %v416
  %v418 = vpop.f32.mrf.mxu0
  %v419 = vpop.f32.mrf.mxu0
  %v420 = vadd.f32 0.0, %v419
  %v421 = vpop.f32.mrf.mxu0
  %422 = vmatprep.mubr.bf16.mxu0 0
  %423 = vmatmul.mubr.bf16.gmra.mxu0 %v229
  %v424 = vpop.f32.mrf.mxu0
  %v425 = vadd.f32 0.0, %v424
  %v426 = vpop.f32.mrf.mxu0
  %v427 = vpop.f32.mrf.mxu0
  %v428 = vadd.f32 0.0, %v427
  %v429 = vpop.f32.mrf.mxu0
  %430 = vmatprep.mubr.bf16.mxu0 0
  %431 = vmatmul.mubr.bf16.gmra.mxu0 %v230
  %v432 = vpop.f32.mrf.mxu0
  %v433 = vadd.f32 0.0, %v432
  %v434 = vpop.f32.mrf.mxu0
  %v435 = vpop.f32.mrf.mxu0
  %v436 = vadd.f32 0.0, %v435
  %v437 = vpop.f32.mrf.mxu0
  %438 = vmatprep.mubr.bf16.mxu0 0
  %439 = vmatmul.mubr.bf16.gmra.mxu0 %v231
  %v440 = vpop.f32.mrf.mxu0
  %v441 = vadd.f32 0.0, %v440
  %v442 = vpop.f32.mrf.mxu0
  %v443 = vpop.f32.mrf.mxu0
  %v444 = vadd.f32 0.0, %v443
  %v445 = vpop.f32.mrf.mxu0
  %446 = vmatprep.mubr.bf16.mxu0 0
  %447 = vmatmul.mubr.bf16.gmra.mxu0 %v232
  %v448 = vpop.f32.mrf.mxu0
  %v449 = vadd.f32 0.0, %v448
  %v450 = vpop.f32.mrf.mxu0
  %v451 = vpop.f32.mrf.mxu0
  %v452 = vadd.f32 0.0, %v451
  %v453 = vpop.f32.mrf.mxu0
  %454 = vmatprep.mubr.bf16.mxu0 0
  %455 = vmatmul.mubr.bf16.gmra.mxu0 %v233
  %v456 = vpop.f32.mrf.mxu0
  %v457 = vadd.f32 0.0, %v456
  %v458 = vpop.f32.mrf.mxu0
  %v459 = vpop.f32.mrf.mxu0
  %v460 = vadd.f32 0.0, %v459
  %v461 = vpop.f32.mrf.mxu0
  %462 = vmatprep.mubr.bf16.mxu0 0
  %463 = vmatmul.mubr.bf16.gmra.mxu0 %v234
  %v464 = vpop.f32.mrf.mxu0
  %v465 = vadd.f32 0.0, %v464
  %v466 = vpop.f32.mrf.mxu0
  %v467 = vpop.f32.mrf.mxu0
  %v468 = vadd.f32 0.0, %v467
  %v469 = vpop.f32.mrf.mxu0
  %470 = vmatprep.mubr.bf16.mxu0 0
  %471 = vmatmul.mubr.bf16.gmra.mxu0 %v235
  %v472 = vpop.f32.mrf.mxu0
  %v473 = vadd.f32 0.0, %v472
  %v474 = vpop.f32.mrf.mxu0
  %v475 = vpop.f32.mrf.mxu0
  %v476 = vadd.f32 0.0, %v475
  %v477 = vpop.f32.mrf.mxu0
  %478 = vmatprep.mubr.bf16.mxu0 0
  %479 = vmatmul.mubr.bf16.gmra.mxu0 %v236
  %v480 = vpop.f32.mrf.mxu0
  %v481 = vadd.f32 0.0, %v480
  %v482 = vpop.f32.mrf.mxu0
  %v483 = vpop.f32.mrf.mxu0
  %v484 = vadd.f32 0.0, %v483
  %v485 = vpop.f32.mrf.mxu0
  %486 = vmatprep.mubr.bf16.mxu0 0
  %487 = vmatmul.mubr.bf16.gmra.mxu0 %v237
  %v488 = vpop.f32.mrf.mxu0
  %v489 = vadd.f32 0.0, %v488
  %v490 = vpop.f32.mrf.mxu0
  %v491 = vpop.f32.mrf.mxu0
  %v492 = vadd.f32 0.0, %v491
  %v493 = vpop.f32.mrf.mxu0
  %494 = vmatprep.mubr.bf16.mxu0 0
  %495 = vmatmul.mubr.bf16.gmra.mxu0 %v238
  %v496 = vpop.f32.mrf.mxu0
  %v497 = vadd.f32 0.0, %v496
  %v498 = vpop.f32.mrf.mxu0
  %v499 = vpop.f32.mrf.mxu0
  %v500 = vadd.f32 0.0, %v499
  %v501 = vpop.f32.mrf.mxu0
  %502 = vmatprep.mubr.bf16.mxu0 0
  %503 = vmatmul.mubr.bf16.gmra.mxu0 %v239
  %v504 = vpop.f32.mrf.mxu0
  %v505 = vadd.f32 0.0, %v504
  %v506 = vpop.f32.mrf.mxu0
  %v507 = vpop.f32.mrf.mxu0
  %v508 = vadd.f32 0.0, %v507
  %v509 = vpop.f32.mrf.mxu0
  %510 = vmatprep.mubr.bf16.mxu0 0
  %511 = vmatmul.mubr.bf16.gmra.mxu0 %v240
  %v512 = vpop.f32.mrf.mxu0
  %v513 = vadd.f32 0.0, %v512
  %v514 = vpop.f32.mrf.mxu0
  %v515 = vpop.f32.mrf.mxu0
  %v516 = vadd.f32 0.0, %v515
  %v517 = vpop.f32.mrf.mxu0
  %518 = vmatprep.mubr.bf16.mxu0 0
  %519 = vmatmul.mubr.bf16.gmra.mxu0 %v241
  %v520 = vpop.f32.mrf.mxu0
  %v521 = vadd.f32 0.0, %v520
  %v522 = vpop.f32.mrf.mxu0
  %v523 = vpop.f32.mrf.mxu0
  %v524 = vadd.f32 0.0, %v523
  %v525 = vpop.f32.mrf.mxu0
  %526 = vmatprep.mubr.bf16.mxu0 0
  %527 = vmatmul.mubr.bf16.gmra.mxu0 %v242
  %v528 = vpop.f32.mrf.mxu0
  %v529 = vadd.f32 0.0, %v528
  %v530 = vpop.f32.mrf.mxu0
  %v531 = vpop.f32.mrf.mxu0
  %v532 = vadd.f32 0.0, %v531
  %v533 = vpop.f32.mrf.mxu0
  %534 = vmatprep.mubr.bf16.mxu0 0
  %535 = vmatmul.mubr.bf16.gmra.mxu0 %v243
  %v536 = vpop.f32.mrf.mxu0
  %v537 = vadd.f32 0.0, %v536
  %v538 = vpop.f32.mrf.mxu0
  %v539 = vpop.f32.mrf.mxu0
  %v540 = vadd.f32 0.0, %v539
  %v541 = vpop.f32.mrf.mxu0
  %542 = vmatprep.mubr.bf16.mxu0 0
  %543 = vmatmul.mubr.bf16.gmra.mxu0 %v244
  %v544 = vpop.f32.mrf.mxu0
  %v545 = vadd.f32 0.0, %v544
  %v546 = vpop.f32.mrf.mxu0
  %v547 = vpop.f32.mrf.mxu0
  %v548 = vadd.f32 0.0, %v547
  %v549 = vpop.f32.mrf.mxu0
  %550 = vmatprep.mubr.bf16.mxu0 0
  %551 = vmatmul.mubr.bf16.gmra.mxu0 %v245
  %v552 = vpop.f32.mrf.mxu0
  %v553 = vadd.f32 0.0, %v552
  %v554 = vpop.f32.mrf.mxu0
  %v555 = vpop.f32.mrf.mxu0
  %v556 = vadd.f32 0.0, %v555
  %v557 = vpop.f32.mrf.mxu0
  %558 = vmatprep.mubr.bf16.mxu0 0
  %559 = vmatmul.mubr.bf16.gmra.mxu0 %v246
  %v560 = vpop.f32.mrf.mxu0
  %v561 = vadd.f32 0.0, %v560
  %v562 = vpop.f32.mrf.mxu0
  %v563 = vpop.f32.mrf.mxu0
  %v564 = vadd.f32 0.0, %v563
  %v565 = vpop.f32.mrf.mxu0
  %566 = vmatprep.mubr.bf16.mxu0 0
  %567 = vmatmul.mubr.bf16.gmra.mxu0 %v247
  %v568 = vpop.f32.mrf.mxu0
  %v569 = vadd.f32 0.0, %v568
  %v570 = vpop.f32.mrf.mxu0
  %v571 = vpop.f32.mrf.mxu0
  %v572 = vadd.f32 0.0, %v571
  %v573 = vpop.f32.mrf.mxu0
  %574 = vmatprep.mubr.bf16.mxu0 0
  %575 = vmatmul.mubr.bf16.gmra.mxu0 %v248
  %v576 = vpop.f32.mrf.mxu0
  %v577 = vadd.f32 0.0, %v576
  %v578 = vpop.f32.mrf.mxu0
  %v579 = vpop.f32.mrf.mxu0
  %v580 = vadd.f32 0.0, %v579
  %v581 = vpop.f32.mrf.mxu0
  %582 = vmatprep.mubr.bf16.mxu0 0
  %583 = vmatmul.mubr.bf16.gmra.mxu0 %v249
  %v584 = vpop.f32.mrf.mxu0
  %v585 = vadd.f32 0.0, %v584
  %v586 = vpop.f32.mrf.mxu0
  %v587 = vpop.f32.mrf.mxu0
  %v588 = vadd.f32 0.0, %v587
  %v589 = vpop.f32.mrf.mxu0
  %590 = vmatprep.mubr.bf16.mxu0 0
  %591 = vmatmul.mubr.bf16.gmra.mxu0 %v250
  %v592 = vpop.f32.mrf.mxu0
  %v593 = vadd.f32 0.0, %v592
  %v594 = vpop.f32.mrf.mxu0
  %v595 = vpop.f32.mrf.mxu0
  %v596 = vadd.f32 0.0, %v595
  %v597 = vpop.f32.mrf.mxu0
  %598 = vmatprep.mubr.bf16.mxu0 0
  %599 = vmatmul.mubr.bf16.gmra.mxu0 %v251
  %v600 = vpop.f32.mrf.mxu0
  %v601 = vadd.f32 0.0, %v600
  %v602 = vpop.f32.mrf.mxu0
  %v603 = vpop.f32.mrf.mxu0
  %v604 = vadd.f32 0.0, %v603
  %v605 = vpop.f32.mrf.mxu0
  %606 = vmatprep.mubr.bf16.mxu0 0
  %607 = vmatmul.mubr.bf16.gmra.mxu0 %v252
  %v608 = vpop.f32.mrf.mxu0
  %v609 = vadd.f32 0.0, %v608
  %v610 = vpop.f32.mrf.mxu0
  %v611 = vpop.f32.mrf.mxu0
  %v612 = vadd.f32 0.0, %v611
  %v613 = vpop.f32.mrf.mxu0
  %614 = vmatprep.mubr.bf16.mxu0 0
  %615 = vmatmul.mubr.bf16.gmra.mxu0 %v253
  %v616 = vpop.f32.mrf.mxu0
  %v617 = vadd.f32 0.0, %v616
  %v618 = vpop.f32.mrf.mxu0
  %v619 = vpop.f32.mrf.mxu0
  %v620 = vadd.f32 0.0, %v619
  %v621 = vpop.f32.mrf.mxu0
  %622 = vdwg.mxu0
  %v623 = vpack.c.bf16 %v372, %v369
  %v624 = vpack.c.bf16 %v380, %v377
  %v625 = vpack.c.bf16 %v388, %v385
  %v626 = vpack.c.bf16 %v396, %v393
  %v627 = vpack.c.bf16 %v404, %v401
  %v628 = vpack.c.bf16 %v412, %v409
  %v629 = vpack.c.bf16 %v420, %v417
  %v630 = vpack.c.bf16 %v428, %v425
  %v631 = vpack.c.bf16 %v436, %v433
  %v632 = vpack.c.bf16 %v444, %v441
  %v633 = vpack.c.bf16 %v452, %v449
  %v634 = vpack.c.bf16 %v460, %v457
  %v635 = vpack.c.bf16 %v468, %v465
  %v636 = vpack.c.bf16 %v476, %v473
  %v637 = vpack.c.bf16 %v484, %v481
  %v638 = vpack.c.bf16 %v492, %v489
  %v639 = vpack.c.bf16 %v500, %v497
  %v640 = vpack.c.bf16 %v508, %v505
  %v641 = vpack.c.bf16 %v516, %v513
  %v642 = vpack.c.bf16 %v524, %v521
  %v643 = vpack.c.bf16 %v532, %v529
  %v644 = vpack.c.bf16 %v540, %v537
  %v645 = vpack.c.bf16 %v548, %v545
  %v646 = vpack.c.bf16 %v556, %v553
  %v647 = vpack.c.bf16 %v564, %v561
  %v648 = vpack.c.bf16 %v572, %v569
  %v649 = vpack.c.bf16 %v580, %v577
  %v650 = vpack.c.bf16 %v588, %v585
  %v651 = vpack.c.bf16 %v596, %v593
  %v652 = vpack.c.bf16 %v604, %v601
  %v653 = vpack.c.bf16 %v612, %v609
  %v654 = vpack.c.bf16 %v620, %v617
  %v687 = vunpack.c.l.b16 %v623
  %v688 = vunpack.c.h.b16 %v623
  %v689 = vunpack.c.l.b16 %v624
  %v690 = vunpack.c.h.b16 %v624
  %v691 = vunpack.c.l.b16 %v625
  %v692 = vunpack.c.h.b16 %v625
  %v693 = vunpack.c.l.b16 %v626
  %v694 = vunpack.c.h.b16 %v626
  %v695 = vunpack.c.l.b16 %v627
  %v696 = vunpack.c.h.b16 %v627
  %v697 = vunpack.c.l.b16 %v628
  %v698 = vunpack.c.h.b16 %v628
  %v699 = vunpack.c.l.b16 %v629
  %v700 = vunpack.c.h.b16 %v629
  %v701 = vunpack.c.l.b16 %v630
  %v702 = vunpack.c.h.b16 %v630
  %v703 = vunpack.c.l.b16 %v631
  %v704 = vunpack.c.h.b16 %v631
  %v705 = vunpack.c.l.b16 %v632
  %v706 = vunpack.c.h.b16 %v632
  %v707 = vunpack.c.l.b16 %v633
  %v708 = vunpack.c.h.b16 %v633
  %v709 = vunpack.c.l.b16 %v634
  %v710 = vunpack.c.h.b16 %v634
  %v711 = vunpack.c.l.b16 %v635
  %v712 = vunpack.c.h.b16 %v635
  %v713 = vunpack.c.l.b16 %v636
  %v714 = vunpack.c.h.b16 %v636
  %v715 = vunpack.c.l.b16 %v637
  %v716 = vunpack.c.h.b16 %v637
  %v717 = vunpack.c.l.b16 %v638
  %v718 = vunpack.c.h.b16 %v638
  %v719 = vunpack.c.l.b16 %v639
  %v720 = vunpack.c.h.b16 %v639
  %v721 = vunpack.c.l.b16 %v640
  %v722 = vunpack.c.h.b16 %v640
  %v723 = vunpack.c.l.b16 %v641
  %v724 = vunpack.c.h.b16 %v641
  %v725 = vunpack.c.l.b16 %v642
  %v726 = vunpack.c.h.b16 %v642
  %v727 = vunpack.c.l.b16 %v643
  %v728 = vunpack.c.h.b16 %v643
  %v729 = vunpack.c.l.b16 %v644
  %v730 = vunpack.c.h.b16 %v644
  %v731 = vunpack.c.l.b16 %v645
  %v732 = vunpack.c.h.b16 %v645
  %v733 = vunpack.c.l.b16 %v646
  %v734 = vunpack.c.h.b16 %v646
  %v735 = vunpack.c.l.b16 %v647
  %v736 = vunpack.c.h.b16 %v647
  %v737 = vunpack.c.l.b16 %v648
  %v738 = vunpack.c.h.b16 %v648
  %v739 = vunpack.c.l.b16 %v649
  %v740 = vunpack.c.h.b16 %v649
  %v741 = vunpack.c.l.b16 %v650
  %v742 = vunpack.c.h.b16 %v650
  %v743 = vunpack.c.l.b16 %v651
  %v744 = vunpack.c.h.b16 %v651
  %v745 = vunpack.c.l.b16 %v652
  %v746 = vunpack.c.h.b16 %v652
  %v747 = vunpack.c.l.b16 %v653
  %v748 = vunpack.c.h.b16 %v653
  %v749 = vunpack.c.l.b16 %v654
  %v750 = vunpack.c.h.b16 %v654
  %v751 = vpack.c.b16 %v687, %v687
  %v752 = vpack.c.b16 %v688, %v688
  %v753 = vpack.c.b16 %v689, %v689
  %v754 = vpack.c.b16 %v690, %v690
  %v755 = vpack.c.b16 %v691, %v691
  %v756 = vpack.c.b16 %v692, %v692
  %v757 = vpack.c.b16 %v693, %v693
  %v758 = vpack.c.b16 %v694, %v694
  %v759 = vpack.c.b16 %v695, %v695
  %v760 = vpack.c.b16 %v696, %v696
  %v761 = vpack.c.b16 %v697, %v697
  %v762 = vpack.c.b16 %v698, %v698
  %v763 = vpack.c.b16 %v699, %v699
  %v764 = vpack.c.b16 %v700, %v700
  %v765 = vpack.c.b16 %v701, %v701
  %v766 = vpack.c.b16 %v702, %v702
  %v767 = vpack.c.b16 %v703, %v703
  %v768 = vpack.c.b16 %v704, %v704
  %v769 = vpack.c.b16 %v705, %v705
  %v770 = vpack.c.b16 %v706, %v706
  %v771 = vpack.c.b16 %v707, %v707
  %v772 = vpack.c.b16 %v708, %v708
  %v773 = vpack.c.b16 %v709, %v709
  %v774 = vpack.c.b16 %v710, %v710
  %v775 = vpack.c.b16 %v711, %v711
  %v776 = vpack.c.b16 %v712, %v712
  %v777 = vpack.c.b16 %v713, %v713
  %v778 = vpack.c.b16 %v714, %v714
  %v779 = vpack.c.b16 %v715, %v715
  %v780 = vpack.c.b16 %v716, %v716
  %v781 = vpack.c.b16 %v717, %v717
  %v782 = vpack.c.b16 %v718, %v718
  %v783 = vpack.c.b16 %v719, %v719
  %v784 = vpack.c.b16 %v720, %v720
  %v785 = vpack.c.b16 %v721, %v721
  %v786 = vpack.c.b16 %v722, %v722
  %v787 = vpack.c.b16 %v723, %v723
  %v788 = vpack.c.b16 %v724, %v724
  %v789 = vpack.c.b16 %v725, %v725
  %v790 = vpack.c.b16 %v726, %v726
  %v791 = vpack.c.b16 %v727, %v727
  %v792 = vpack.c.b16 %v728, %v728
  %v793 = vpack.c.b16 %v729, %v729
  %v794 = vpack.c.b16 %v730, %v730
  %v795 = vpack.c.b16 %v731, %v731
  %v796 = vpack.c.b16 %v732, %v732
  %v797 = vpack.c.b16 %v733, %v733
  %v798 = vpack.c.b16 %v734, %v734
  %v799 = vpack.c.b16 %v735, %v735
  %v800 = vpack.c.b16 %v736, %v736
  %v801 = vpack.c.b16 %v737, %v737
  %v802 = vpack.c.b16 %v738, %v738
  %v803 = vpack.c.b16 %v739, %v739
  %v804 = vpack.c.b16 %v740, %v740
  %v805 = vpack.c.b16 %v741, %v741
  %v806 = vpack.c.b16 %v742, %v742
  %v807 = vpack.c.b16 %v743, %v743
  %v808 = vpack.c.b16 %v744, %v744
  %v809 = vpack.c.b16 %v745, %v745
  %v810 = vpack.c.b16 %v746, %v746
  %v811 = vpack.c.b16 %v747, %v747
  %v812 = vpack.c.b16 %v748, %v748
  %v813 = vpack.c.b16 %v749, %v749
  %v814 = vpack.c.b16 %v750, %v750
  %879 = vst [vmem:[%s2] sm:$0xf] %v751
  %880 = vst [vmem:[%s2 + $0x4] sm:$0xf] %v752
  %881 = vst [vmem:[%s2 + $0x8] sm:$0xf] %v753
  %882 = vst [vmem:[%s2 + $0xc] sm:$0xf] %v754
  %883 = vst [vmem:[%s2 + $0x10] sm:$0xf] %v755
  %884 = vst [vmem:[%s2 + $0x14] sm:$0xf] %v756
  %885 = vst [vmem:[%s2 + $0x18] sm:$0xf] %v757
  %886 = vst [vmem:[%s2 + $0x1c] sm:$0xf] %v758
  %887 = vst [vmem:[%s2 + $0x20] sm:$0xf] %v759
  %888 = vst [vmem:[%s2 + $0x24] sm:$0xf] %v760
  %889 = vst [vmem:[%s2 + $0x28] sm:$0xf] %v761
  %890 = vst [vmem:[%s2 + $0x2c] sm:$0xf] %v762
  %891 = vst [vmem:[%s2 + $0x30] sm:$0xf] %v763
  %892 = vst [vmem:[%s2 + $0x34] sm:$0xf] %v764
  %893 = vst [vmem:[%s2 + $0x38] sm:$0xf] %v765
  %894 = vst [vmem:[%s2 + $0x3c] sm:$0xf] %v766
  %895 = vst [vmem:[%s2 + $0x40] sm:$0xf] %v767
  %896 = vst [vmem:[%s2 + $0x44] sm:$0xf] %v768
  %897 = vst [vmem:[%s2 + $0x48] sm:$0xf] %v769
  %898 = vst [vmem:[%s2 + $0x4c] sm:$0xf] %v770
  %899 = vst [vmem:[%s2 + $0x50] sm:$0xf] %v771
  %900 = vst [vmem:[%s2 + $0x54] sm:$0xf] %v772
  %901 = vst [vmem:[%s2 + $0x58] sm:$0xf] %v773
  %902 = vst [vmem:[%s2 + $0x5c] sm:$0xf] %v774
  %903 = vst [vmem:[%s2 + $0x60] sm:$0xf] %v775
  %904 = vst [vmem:[%s2 + $0x64] sm:$0xf] %v776
  %905 = vst [vmem:[%s2 + $0x68] sm:$0xf] %v777
  %906 = vst [vmem:[%s2 + $0x6c] sm:$0xf] %v778
  %907 = vst [vmem:[%s2 + $0x70] sm:$0xf] %v779
  %908 = vst [vmem:[%s2 + $0x74] sm:$0xf] %v780
  %909 = vst [vmem:[%s2 + $0x78] sm:$0xf] %v781
  %910 = vst [vmem:[%s2 + $0x7c] sm:$0xf] %v782
  %911 = vst [vmem:[%s2 + $0x80] sm:$0xf] %v783
  %912 = vst [vmem:[%s2 + $0x84] sm:$0xf] %v784
  %913 = vst [vmem:[%s2 + $0x88] sm:$0xf] %v785
  %914 = vst [vmem:[%s2 + $0x8c] sm:$0xf] %v786
  %915 = vst [vmem:[%s2 + $0x90] sm:$0xf] %v787
  %916 = vst [vmem:[%s2 + $0x94] sm:$0xf] %v788
  %917 = vst [vmem:[%s2 + $0x98] sm:$0xf] %v789
  %918 = vst [vmem:[%s2 + $0x9c] sm:$0xf] %v790
  %919 = vst [vmem:[%s2 + $0xa0] sm:$0xf] %v791
  %920 = vst [vmem:[%s2 + $0xa4] sm:$0xf] %v792
  %921 = vst [vmem:[%s2 + $0xa8] sm:$0xf] %v793
  %922 = vst [vmem:[%s2 + $0xac] sm:$0xf] %v794
  %923 = vst [vmem:[%s2 + $0xb0] sm:$0xf] %v795
  %924 = vst [vmem:[%s2 + $0xb4] sm:$0xf] %v796
  %925 = vst [vmem:[%s2 + $0xb8] sm:$0xf] %v797
  %926 = vst [vmem:[%s2 + $0xbc] sm:$0xf] %v798
  %927 = vst [vmem:[%s2 + $0xc0] sm:$0xf] %v799
  %928 = vst [vmem:[%s2 + $0xc4] sm:$0xf] %v800
  %929 = vst [vmem:[%s2 + $0xc8] sm:$0xf] %v801
  %930 = vst [vmem:[%s2 + $0xcc] sm:$0xf] %v802
  %931 = vst [vmem:[%s2 + $0xd0] sm:$0xf] %v803
  %932 = vst [vmem:[%s2 + $0xd4] sm:$0xf] %v804
  %933 = vst [vmem:[%s2 + $0xd8] sm:$0xf] %v805
  %934 = vst [vmem:[%s2 + $0xdc] sm:$0xf] %v806
  %935 = vst [vmem:[%s2 + $0xe0] sm:$0xf] %v807
  %936 = vst [vmem:[%s2 + $0xe4] sm:$0xf] %v808
  %937 = vst [vmem:[%s2 + $0xe8] sm:$0xf] %v809
  %938 = vst [vmem:[%s2 + $0xec] sm:$0xf] %v810
  %939 = vst [vmem:[%s2 + $0xf0] sm:$0xf] %v811
  %940 = vst [vmem:[%s2 + $0xf4] sm:$0xf] %v812
  %941 = vst [vmem:[%s2 + $0xf8] sm:$0xf] %v813
  %942 = vst [vmem:[%s2 + $0xfc] sm:$0xf] %v814
  %v943 = vadd.f32 %v369, %v372
  %v944 = vadd.f32 %v943, %v377
  %v945 = vadd.f32 %v944, %v380
  %v946 = vadd.f32 %v945, %v385
  %v947 = vadd.f32 %v946, %v388
  %v948 = vadd.f32 %v947, %v393
  %v949 = vadd.f32 %v948, %v396
  %v950 = vadd.f32 %v949, %v401
  %v951 = vadd.f32 %v950, %v404
  %v952 = vadd.f32 %v951, %v409
  %v953 = vadd.f32 %v952, %v412
  %v954 = vadd.f32 %v953, %v417
  %v955 = vadd.f32 %v954, %v420
  %v956 = vadd.f32 %v955, %v425
  %v957 = vadd.f32 %v956, %v428
  %v958 = vadd.f32 %v957, %v433
  %v959 = vadd.f32 %v958, %v436
  %v960 = vadd.f32 %v959, %v441
  %v961 = vadd.f32 %v960, %v444
  %v962 = vadd.f32 %v961, %v449
  %v963 = vadd.f32 %v962, %v452
  %v964 = vadd.f32 %v963, %v457
  %v965 = vadd.f32 %v964, %v460
  %v966 = vadd.f32 %v965, %v465
  %v967 = vadd.f32 %v966, %v468
  %v968 = vadd.f32 %v967, %v473
  %v969 = vadd.f32 %v968, %v476
  %v970 = vadd.f32 %v969, %v481
  %v971 = vadd.f32 %v970, %v484
  %v972 = vadd.f32 %v971, %v489
  %v973 = vadd.f32 %v972, %v492
  %v974 = vadd.f32 %v973, %v497
  %v975 = vadd.f32 %v974, %v500
  %v976 = vadd.f32 %v975, %v505
  %v977 = vadd.f32 %v976, %v508
  %v978 = vadd.f32 %v977, %v513
  %v979 = vadd.f32 %v978, %v516
  %v980 = vadd.f32 %v979, %v521
  %v981 = vadd.f32 %v980, %v524
  %v982 = vadd.f32 %v981, %v529
  %v983 = vadd.f32 %v982, %v532
  %v984 = vadd.f32 %v983, %v537
  %v985 = vadd.f32 %v984, %v540
  %v986 = vadd.f32 %v985, %v545
  %v987 = vadd.f32 %v986, %v548
  %v988 = vadd.f32 %v987, %v553
  %v989 = vadd.f32 %v988, %v556
  %v990 = vadd.f32 %v989, %v561
  %v991 = vadd.f32 %v990, %v564
  %v992 = vadd.f32 %v991, %v569
  %v993 = vadd.f32 %v992, %v572
  %v994 = vadd.f32 %v993, %v577
  %v995 = vadd.f32 %v994, %v580
  %v996 = vadd.f32 %v995, %v585
  %v997 = vadd.f32 %v996, %v588
  %v998 = vadd.f32 %v997, %v593
  %v999 = vadd.f32 %v998, %v596
  %v1000 = vadd.f32 %v999, %v601
  %v1001 = vadd.f32 %v1000, %v604
  %v1002 = vadd.f32 %v1001, %v609
  %v1003 = vadd.f32 %v1002, %v612
  %v1004 = vadd.f32 %v1003, %v617
  %v1005 = vadd.f32 %v1004, %v620
  %v1006 = vrot.slane %v1005, 4
  %v1007 = vadd.f32 %v1005, %v1006
  %v1008 = vrot.slane %v1007, 2
  %v1009 = vadd.f32 %v1007, %v1008
  %v1010 = vrot.slane %v1009, 1
  %v1011 = vadd.f32 %v1009, %v1010
  %v1012 = vmul.f32 %v369, %v369
  %v1013 = vmul.f32 %v372, %v372
  %v1014 = vmul.f32 %v377, %v377
  %v1015 = vmul.f32 %v380, %v380
  %v1016 = vmul.f32 %v385, %v385
  %v1017 = vmul.f32 %v388, %v388
  %v1018 = vmul.f32 %v393, %v393
  %v1019 = vmul.f32 %v396, %v396
  %v1020 = vmul.f32 %v401, %v401
  %v1021 = vmul.f32 %v404, %v404
  %v1022 = vmul.f32 %v409, %v409
  %v1023 = vmul.f32 %v412, %v412
  %v1024 = vmul.f32 %v417, %v417
  %v1025 = vmul.f32 %v420, %v420
  %v1026 = vmul.f32 %v425, %v425
  %v1027 = vmul.f32 %v428, %v428
  %v1028 = vmul.f32 %v433, %v433
  %v1029 = vmul.f32 %v436, %v436
  %v1030 = vmul.f32 %v441, %v441
  %v1031 = vmul.f32 %v444, %v444
  %v1032 = vmul.f32 %v449, %v449
  %v1033 = vmul.f32 %v452, %v452
  %v1034 = vmul.f32 %v457, %v457
  %v1035 = vmul.f32 %v460, %v460
  %v1036 = vmul.f32 %v465, %v465
  %v1037 = vmul.f32 %v468, %v468
  %v1038 = vmul.f32 %v473, %v473
  %v1039 = vmul.f32 %v476, %v476
  %v1040 = vmul.f32 %v481, %v481
  %v1041 = vmul.f32 %v484, %v484
  %v1042 = vmul.f32 %v489, %v489
  %v1043 = vmul.f32 %v492, %v492
  %v1044 = vmul.f32 %v497, %v497
  %v1045 = vmul.f32 %v500, %v500
  %v1046 = vmul.f32 %v505, %v505
  %v1047 = vmul.f32 %v508, %v508
  %v1048 = vmul.f32 %v513, %v513
  %v1049 = vmul.f32 %v516, %v516
  %v1050 = vmul.f32 %v521, %v521
  %v1051 = vmul.f32 %v524, %v524
  %v1052 = vmul.f32 %v529, %v529
  %v1053 = vmul.f32 %v532, %v532
  %v1054 = vmul.f32 %v537, %v537
  %v1055 = vmul.f32 %v540, %v540
  %v1056 = vmul.f32 %v545, %v545
  %v1057 = vmul.f32 %v548, %v548
  %v1058 = vmul.f32 %v553, %v553
  %v1059 = vmul.f32 %v556, %v556
  %v1060 = vmul.f32 %v561, %v561
  %v1061 = vmul.f32 %v564, %v564
  %v1062 = vmul.f32 %v569, %v569
  %v1063 = vmul.f32 %v572, %v572
  %v1064 = vmul.f32 %v577, %v577
  %v1065 = vmul.f32 %v580, %v580
  %v1066 = vmul.f32 %v585, %v585
  %v1067 = vmul.f32 %v588, %v588
  %v1068 = vmul.f32 %v593, %v593
  %v1069 = vmul.f32 %v596, %v596
  %v1070 = vmul.f32 %v601, %v601
  %v1071 = vmul.f32 %v604, %v604
  %v1072 = vmul.f32 %v609, %v609
  %v1073 = vmul.f32 %v612, %v612
  %v1074 = vmul.f32 %v617, %v617
  %v1075 = vmul.f32 %v620, %v620
  %v1076 = vadd.f32 %v1012, %v1013
  %v1077 = vadd.f32 %v1076, %v1014
  %v1078 = vadd.f32 %v1077, %v1015
  %v1079 = vadd.f32 %v1078, %v1016
  %v1080 = vadd.f32 %v1079, %v1017
  %v1081 = vadd.f32 %v1080, %v1018
  %v1082 = vadd.f32 %v1081, %v1019
  %v1083 = vadd.f32 %v1082, %v1020
  %v1084 = vadd.f32 %v1083, %v1021
  %v1085 = vadd.f32 %v1084, %v1022
  %v1086 = vadd.f32 %v1085, %v1023
  %v1087 = vadd.f32 %v1086, %v1024
  %v1088 = vadd.f32 %v1087, %v1025
  %v1089 = vadd.f32 %v1088, %v1026
  %v1090 = vadd.f32 %v1089, %v1027
  %v1091 = vadd.f32 %v1090, %v1028
  %v1092 = vadd.f32 %v1091, %v1029
  %v1093 = vadd.f32 %v1092, %v1030
  %v1094 = vadd.f32 %v1093, %v1031
  %v1095 = vadd.f32 %v1094, %v1032
  %v1096 = vadd.f32 %v1095, %v1033
  %v1097 = vadd.f32 %v1096, %v1034
  %v1098 = vadd.f32 %v1097, %v1035
  %v1099 = vadd.f32 %v1098, %v1036
  %v1100 = vadd.f32 %v1099, %v1037
  %v1101 = vadd.f32 %v1100, %v1038
  %v1102 = vadd.f32 %v1101, %v1039
  %v1103 = vadd.f32 %v1102, %v1040
  %v1104 = vadd.f32 %v1103, %v1041
  %v1105 = vadd.f32 %v1104, %v1042
  %v1106 = vadd.f32 %v1105, %v1043
  %v1107 = vadd.f32 %v1106, %v1044
  %v1108 = vadd.f32 %v1107, %v1045
  %v1109 = vadd.f32 %v1108, %v1046
  %v1110 = vadd.f32 %v1109, %v1047
  %v1111 = vadd.f32 %v1110, %v1048
  %v1112 = vadd.f32 %v1111, %v1049
  %v1113 = vadd.f32 %v1112, %v1050
  %v1114 = vadd.f32 %v1113, %v1051
  %v1115 = vadd.f32 %v1114, %v1052
  %v1116 = vadd.f32 %v1115, %v1053
  %v1117 = vadd.f32 %v1116, %v1054
  %v1118 = vadd.f32 %v1117, %v1055
  %v1119 = vadd.f32 %v1118, %v1056
  %v1120 = vadd.f32 %v1119, %v1057
  %v1121 = vadd.f32 %v1120, %v1058
  %v1122 = vadd.f32 %v1121, %v1059
  %v1123 = vadd.f32 %v1122, %v1060
  %v1124 = vadd.f32 %v1123, %v1061
  %v1125 = vadd.f32 %v1124, %v1062
  %v1126 = vadd.f32 %v1125, %v1063
  %v1127 = vadd.f32 %v1126, %v1064
  %v1128 = vadd.f32 %v1127, %v1065
  %v1129 = vadd.f32 %v1128, %v1066
  %v1130 = vadd.f32 %v1129, %v1067
  %v1131 = vadd.f32 %v1130, %v1068
  %v1132 = vadd.f32 %v1131, %v1069
  %v1133 = vadd.f32 %v1132, %v1070
  %v1134 = vadd.f32 %v1133, %v1071
  %v1135 = vadd.f32 %v1134, %v1072
  %v1136 = vadd.f32 %v1135, %v1073
  %v1137 = vadd.f32 %v1136, %v1074
  %v1138 = vadd.f32 %v1137, %v1075
  %v1139 = vrot.slane %v1138, 4
  %v1140 = vadd.f32 %v1138, %v1139
  %v1141 = vrot.slane %v1140, 2
  %v1142 = vadd.f32 %v1140, %v1141
  %v1143 = vrot.slane %v1142, 1
  %v1144 = vadd.f32 %v1142, %v1143
  %vm1145 = vcmask 1040384
  %v1146 = vsel %vm1145, %v1011, %v1144
  %1147 = vst [vmem:[%s3] sm:$0x3] %v1146
  // Predicated region
  $region10: #{bottleneck_forward.4} parent=0 // pred_check
    _
  $region11: #{bottleneck_forward.4} parent=0 // pred_check_branch
    %1149 = sbr.rel (0) target = $region13
  $region12: #{bottleneck_forward.4} parent=0 // pred_region
    _
  $region13: #{bottleneck_forward.4} parent=0 // pred_fallthru
    _
  // Predicated region
  $region14: #{bottleneck_forward.4} parent=0 // pred_check
    _
  $region15: #{bottleneck_forward.4} parent=0 // pred_check_branch
    %1151 = sbr.rel (0) target = $region17
  $region16: #{bottleneck_forward.4} parent=0 // pred_region
    _
  $region17: #{bottleneck_forward.4} parent=0 // pred_fallthru
    _
  // Predicated region
  $region18: #{bottleneck_forward.4} parent=0 // pred_check
    _
  $region19: #{bottleneck_forward.4} parent=0 // pred_check_branch
    %1153 = sbr.rel (0) target = $region21
  $region20: #{bottleneck_forward.4} parent=0 // pred_region
    _
  $region21: #{bottleneck_forward.4} parent=0 // pred_fallthru
    _
  // Predicated region
  $region22: #{bottleneck_forward.4} parent=0 // pred_check
    _
  $region23: #{bottleneck_forward.4} parent=0 // pred_check_branch
    %1155 = sbr.rel (0) target = $region25
  $region24: #{bottleneck_forward.4} parent=0 // pred_region
    _
  $region25: #{bottleneck_forward.4} parent=0 // pred_fallthru
    _

// kernel: bottleneck_forward.7
$region0: #{bottleneck_forward.7}
  #allocation0 [shape = 'u32[]', space=smem, size = 0x4, offset = 0x4, fixed_abs, tag = 'smem constant byte address 0x4 - core index']
  #allocation1 [shape = 'u32[144,128]{1,0:T(1,128)}', space=vmem, size = 0x12000, scoped, tag = 'internal scratch']
  %s0 = inlined_call_operand.vmem [shape: bf16[512,128], index: 0, kind: input, shape index: {}]
  %s1 = inlined_call_operand.vmem [shape: f32[1,128], index: 1, kind: input, shape index: {}]
  %s2 = inlined_call_operand.vmem [shape: f32[1,128], index: 2, kind: input, shape index: {}]
  %s3 = inlined_call_operand.vmem [shape: bf16[512,128], index: 3, kind: input, shape index: {}]
  %s4 = inlined_call_operand.vmem [shape: f32[512,128], index: 4, kind: output, shape index: {}]
  %s5 = sld [smem:[#allocation0]]
  $region26: #{bottleneck_forward.7} parent=0
    _
  %s7 = ssub.s32 1, %s5
  %s8 = scalar_select 0, %s7, %s5
  // Predicated region
  $region2: #{bottleneck_forward.7} parent=0 // pred_check
    _
  $region3: #{bottleneck_forward.7} parent=0 // pred_check_branch
    %10 = sbr.rel (0) target = $region5
  $region4: #{bottleneck_forward.7} parent=0 // pred_region
    _
  $region5: #{bottleneck_forward.7} parent=0 // pred_fallthru
    _
  // Predicated region
  $region6: #{bottleneck_forward.7} parent=0 // pred_check
    _
  $region7: #{bottleneck_forward.7} parent=0 // pred_check_branch
    %12 = sbr.rel (0) target = $region9
  $region8: #{bottleneck_forward.7} parent=0 // pred_region
    _
  $region9: #{bottleneck_forward.7} parent=0 // pred_fallthru
    _
  // Predicated region
  $region10: #{bottleneck_forward.7} parent=0 // pred_check
    _
  $region11: #{bottleneck_forward.7} parent=0 // pred_check_branch
    %14 = sbr.rel (0) target = $region13
  $region12: #{bottleneck_forward.7} parent=0 // pred_region
    _
  $region13: #{bottleneck_forward.7} parent=0 // pred_fallthru
    _
  // Predicated region
  $region14: #{bottleneck_forward.7} parent=0 // pred_check
    _
  $region15: #{bottleneck_forward.7} parent=0 // pred_check_branch
    %16 = sbr.rel (0) target = $region17
  $region16: #{bottleneck_forward.7} parent=0 // pred_region
    _
  $region17: #{bottleneck_forward.7} parent=0 // pred_fallthru
    _
  %v17 = vld [vmem:[%s0] sm:$0xf]
  %v18 = vld [vmem:[%s0 + $0x4] sm:$0xf]
  %v19 = vld [vmem:[%s0 + $0x8] sm:$0xf]
  %v20 = vld [vmem:[%s0 + $0xc] sm:$0xf]
  %v21 = vld [vmem:[%s0 + $0x10] sm:$0xf]
  %v22 = vld [vmem:[%s0 + $0x14] sm:$0xf]
  %v23 = vld [vmem:[%s0 + $0x18] sm:$0xf]
  %v24 = vld [vmem:[%s0 + $0x1c] sm:$0xf]
  %v25 = vld [vmem:[%s0 + $0x20] sm:$0xf]
  %v26 = vld [vmem:[%s0 + $0x24] sm:$0xf]
  %v27 = vld [vmem:[%s0 + $0x28] sm:$0xf]
  %v28 = vld [vmem:[%s0 + $0x2c] sm:$0xf]
  %v29 = vld [vmem:[%s0 + $0x30] sm:$0xf]
  %v30 = vld [vmem:[%s0 + $0x34] sm:$0xf]
  %v31 = vld [vmem:[%s0 + $0x38] sm:$0xf]
  %v32 = vld [vmem:[%s0 + $0x3c] sm:$0xf]
  %v33 = vld [vmem:[%s0 + $0x40] sm:$0xf]
  %v34 = vld [vmem:[%s0 + $0x44] sm:$0xf]
  %v35 = vld [vmem:[%s0 + $0x48] sm:$0xf]
  %v36 = vld [vmem:[%s0 + $0x4c] sm:$0xf]
  %v37 = vld [vmem:[%s0 + $0x50] sm:$0xf]
  %v38 = vld [vmem:[%s0 + $0x54] sm:$0xf]
  %v39 = vld [vmem:[%s0 + $0x58] sm:$0xf]
  %v40 = vld [vmem:[%s0 + $0x5c] sm:$0xf]
  %v41 = vld [vmem:[%s0 + $0x60] sm:$0xf]
  %v42 = vld [vmem:[%s0 + $0x64] sm:$0xf]
  %v43 = vld [vmem:[%s0 + $0x68] sm:$0xf]
  %v44 = vld [vmem:[%s0 + $0x6c] sm:$0xf]
  %v45 = vld [vmem:[%s0 + $0x70] sm:$0xf]
  %v46 = vld [vmem:[%s0 + $0x74] sm:$0xf]
  %v47 = vld [vmem:[%s0 + $0x78] sm:$0xf]
  %v48 = vld [vmem:[%s0 + $0x7c] sm:$0xf]
  %v49 = vld [vmem:[%s0 + $0x80] sm:$0xf]
  %v50 = vld [vmem:[%s0 + $0x84] sm:$0xf]
  %v51 = vld [vmem:[%s0 + $0x88] sm:$0xf]
  %v52 = vld [vmem:[%s0 + $0x8c] sm:$0xf]
  %v53 = vld [vmem:[%s0 + $0x90] sm:$0xf]
  %v54 = vld [vmem:[%s0 + $0x94] sm:$0xf]
  %v55 = vld [vmem:[%s0 + $0x98] sm:$0xf]
  %v56 = vld [vmem:[%s0 + $0x9c] sm:$0xf]
  %v57 = vld [vmem:[%s0 + $0xa0] sm:$0xf]
  %v58 = vld [vmem:[%s0 + $0xa4] sm:$0xf]
  %v59 = vld [vmem:[%s0 + $0xa8] sm:$0xf]
  %v60 = vld [vmem:[%s0 + $0xac] sm:$0xf]
  %v61 = vld [vmem:[%s0 + $0xb0] sm:$0xf]
  %v62 = vld [vmem:[%s0 + $0xb4] sm:$0xf]
  %v63 = vld [vmem:[%s0 + $0xb8] sm:$0xf]
  %v64 = vld [vmem:[%s0 + $0xbc] sm:$0xf]
  %v65 = vld [vmem:[%s0 + $0xc0] sm:$0xf]
  %v66 = vld [vmem:[%s0 + $0xc4] sm:$0xf]
  %v67 = vld [vmem:[%s0 + $0xc8] sm:$0xf]
  %v68 = vld [vmem:[%s0 + $0xcc] sm:$0xf]
  %v69 = vld [vmem:[%s0 + $0xd0] sm:$0xf]
  %v70 = vld [vmem:[%s0 + $0xd4] sm:$0xf]
  %v71 = vld [vmem:[%s0 + $0xd8] sm:$0xf]
  %v72 = vld [vmem:[%s0 + $0xdc] sm:$0xf]
  %v73 = vld [vmem:[%s0 + $0xe0] sm:$0xf]
  %v74 = vld [vmem:[%s0 + $0xe4] sm:$0xf]
  %v75 = vld [vmem:[%s0 + $0xe8] sm:$0xf]
  %v76 = vld [vmem:[%s0 + $0xec] sm:$0xf]
  %v77 = vld [vmem:[%s0 + $0xf0] sm:$0xf]
  %v78 = vld [vmem:[%s0 + $0xf4] sm:$0xf]
  %v79 = vld [vmem:[%s0 + $0xf8] sm:$0xf]
  %v80 = vld [vmem:[%s0 + $0xfc] sm:$0xf]
  %v81 = vld [vmem:[%s1] sm:$0x1]
  %v82 = vunpack.c.l.bf16 %v17
  %v83 = vunpack.c.l.bf16 %v18
  %v84 = vunpack.c.l.bf16 %v19
  %v85 = vunpack.c.l.bf16 %v20
  %v86 = vunpack.c.l.bf16 %v21
  %v87 = vunpack.c.l.bf16 %v22
  %v88 = vunpack.c.l.bf16 %v23
  %v89 = vunpack.c.l.bf16 %v24
  %v90 = vunpack.c.l.bf16 %v25
  %v91 = vunpack.c.l.bf16 %v26
  %v92 = vunpack.c.l.bf16 %v27
  %v93 = vunpack.c.l.bf16 %v28
  %v94 = vunpack.c.l.bf16 %v29
  %v95 = vunpack.c.l.bf16 %v30
  %v96 = vunpack.c.l.bf16 %v31
  %v97 = vunpack.c.l.bf16 %v32
  %v98 = vunpack.c.l.bf16 %v33
  %v99 = vunpack.c.l.bf16 %v34
  %v100 = vunpack.c.l.bf16 %v35
  %v101 = vunpack.c.l.bf16 %v36
  %v102 = vunpack.c.l.bf16 %v37
  %v103 = vunpack.c.l.bf16 %v38
  %v104 = vunpack.c.l.bf16 %v39
  %v105 = vunpack.c.l.bf16 %v40
  %v106 = vunpack.c.l.bf16 %v41
  %v107 = vunpack.c.l.bf16 %v42
  %v108 = vunpack.c.l.bf16 %v43
  %v109 = vunpack.c.l.bf16 %v44
  %v110 = vunpack.c.l.bf16 %v45
  %v111 = vunpack.c.l.bf16 %v46
  %v112 = vunpack.c.l.bf16 %v47
  %v113 = vunpack.c.l.bf16 %v48
  %v114 = vunpack.c.l.bf16 %v49
  %v115 = vunpack.c.l.bf16 %v50
  %v116 = vunpack.c.l.bf16 %v51
  %v117 = vunpack.c.l.bf16 %v52
  %v118 = vunpack.c.l.bf16 %v53
  %v119 = vunpack.c.l.bf16 %v54
  %v120 = vunpack.c.l.bf16 %v55
  %v121 = vunpack.c.l.bf16 %v56
  %v122 = vunpack.c.l.bf16 %v57
  %v123 = vunpack.c.l.bf16 %v58
  %v124 = vunpack.c.l.bf16 %v59
  %v125 = vunpack.c.l.bf16 %v60
  %v126 = vunpack.c.l.bf16 %v61
  %v127 = vunpack.c.l.bf16 %v62
  %v128 = vunpack.c.l.bf16 %v63
  %v129 = vunpack.c.l.bf16 %v64
  %v130 = vunpack.c.l.bf16 %v65
  %v131 = vunpack.c.l.bf16 %v66
  %v132 = vunpack.c.l.bf16 %v67
  %v133 = vunpack.c.l.bf16 %v68
  %v134 = vunpack.c.l.bf16 %v69
  %v135 = vunpack.c.l.bf16 %v70
  %v136 = vunpack.c.l.bf16 %v71
  %v137 = vunpack.c.l.bf16 %v72
  %v138 = vunpack.c.l.bf16 %v73
  %v139 = vunpack.c.l.bf16 %v74
  %v140 = vunpack.c.l.bf16 %v75
  %v141 = vunpack.c.l.bf16 %v76
  %v142 = vunpack.c.l.bf16 %v77
  %v143 = vunpack.c.l.bf16 %v78
  %v144 = vunpack.c.l.bf16 %v79
  %v145 = vunpack.c.l.bf16 %v80
  %v147 = vlaneseq
  %v148 = vshrl.u32 %v147, 7
  %v149 = vsub.s32 0, %v148
  %v150 = vrot.slane %v81, %v149
  %v152 = vmul.f32 %v82, %v150
  %v153 = vmul.f32 %v83, %v150
  %v154 = vmul.f32 %v84, %v150
  %v155 = vmul.f32 %v85, %v150
  %v156 = vmul.f32 %v86, %v150
  %v157 = vmul.f32 %v87, %v150
  %v158 = vmul.f32 %v88, %v150
  %v159 = vmul.f32 %v89, %v150
  %v160 = vmul.f32 %v90, %v150
  %v161 = vmul.f32 %v91, %v150
  %v162 = vmul.f32 %v92, %v150
  %v163 = vmul.f32 %v93, %v150
  %v164 = vmul.f32 %v94, %v150
  %v165 = vmul.f32 %v95, %v150
  %v166 = vmul.f32 %v96, %v150
  %v167 = vmul.f32 %v97, %v150
  %v168 = vmul.f32 %v98, %v150
  %v169 = vmul.f32 %v99, %v150
  %v170 = vmul.f32 %v100, %v150
  %v171 = vmul.f32 %v101, %v150
  %v172 = vmul.f32 %v102, %v150
  %v173 = vmul.f32 %v103, %v150
  %v174 = vmul.f32 %v104, %v150
  %v175 = vmul.f32 %v105, %v150
  %v176 = vmul.f32 %v106, %v150
  %v177 = vmul.f32 %v107, %v150
  %v178 = vmul.f32 %v108, %v150
  %v179 = vmul.f32 %v109, %v150
  %v180 = vmul.f32 %v110, %v150
  %v181 = vmul.f32 %v111, %v150
  %v182 = vmul.f32 %v112, %v150
  %v183 = vmul.f32 %v113, %v150
  %v184 = vmul.f32 %v114, %v150
  %v185 = vmul.f32 %v115, %v150
  %v186 = vmul.f32 %v116, %v150
  %v187 = vmul.f32 %v117, %v150
  %v188 = vmul.f32 %v118, %v150
  %v189 = vmul.f32 %v119, %v150
  %v190 = vmul.f32 %v120, %v150
  %v191 = vmul.f32 %v121, %v150
  %v192 = vmul.f32 %v122, %v150
  %v193 = vmul.f32 %v123, %v150
  %v194 = vmul.f32 %v124, %v150
  %v195 = vmul.f32 %v125, %v150
  %v196 = vmul.f32 %v126, %v150
  %v197 = vmul.f32 %v127, %v150
  %v198 = vmul.f32 %v128, %v150
  %v199 = vmul.f32 %v129, %v150
  %v200 = vmul.f32 %v130, %v150
  %v201 = vmul.f32 %v131, %v150
  %v202 = vmul.f32 %v132, %v150
  %v203 = vmul.f32 %v133, %v150
  %v204 = vmul.f32 %v134, %v150
  %v205 = vmul.f32 %v135, %v150
  %v206 = vmul.f32 %v136, %v150
  %v207 = vmul.f32 %v137, %v150
  %v208 = vmul.f32 %v138, %v150
  %v209 = vmul.f32 %v139, %v150
  %v210 = vmul.f32 %v140, %v150
  %v211 = vmul.f32 %v141, %v150
  %v212 = vmul.f32 %v142, %v150
  %v213 = vmul.f32 %v143, %v150
  %v214 = vmul.f32 %v144, %v150
  %v215 = vmul.f32 %v145, %v150
  %v216 = vld [vmem:[%s2] sm:$0x1]
  %v218 = vlaneseq
  %v219 = vshrl.u32 %v218, 7
  %v220 = vsub.s32 0, %v219
  %v221 = vrot.slane %v216, %v220
  %v223 = vadd.f32 %v152, %v221
  %v224 = vadd.f32 %v153, %v221
  %v225 = vadd.f32 %v154, %v221
  %v226 = vadd.f32 %v155, %v221
  %v227 = vadd.f32 %v156, %v221
  %v228 = vadd.f32 %v157, %v221
  %v229 = vadd.f32 %v158, %v221
  %v230 = vadd.f32 %v159, %v221
  %v231 = vadd.f32 %v160, %v221
  %v232 = vadd.f32 %v161, %v221
  %v233 = vadd.f32 %v162, %v221
  %v234 = vadd.f32 %v163, %v221
  %v235 = vadd.f32 %v164, %v221
  %v236 = vadd.f32 %v165, %v221
  %v237 = vadd.f32 %v166, %v221
  %v238 = vadd.f32 %v167, %v221
  %v239 = vadd.f32 %v168, %v221
  %v240 = vadd.f32 %v169, %v221
  %v241 = vadd.f32 %v170, %v221
  %v242 = vadd.f32 %v171, %v221
  %v243 = vadd.f32 %v172, %v221
  %v244 = vadd.f32 %v173, %v221
  %v245 = vadd.f32 %v174, %v221
  %v246 = vadd.f32 %v175, %v221
  %v247 = vadd.f32 %v176, %v221
  %v248 = vadd.f32 %v177, %v221
  %v249 = vadd.f32 %v178, %v221
  %v250 = vadd.f32 %v179, %v221
  %v251 = vadd.f32 %v180, %v221
  %v252 = vadd.f32 %v181, %v221
  %v253 = vadd.f32 %v182, %v221
  %v254 = vadd.f32 %v183, %v221
  %v255 = vadd.f32 %v184, %v221
  %v256 = vadd.f32 %v185, %v221
  %v257 = vadd.f32 %v186, %v221
  %v258 = vadd.f32 %v187, %v221
  %v259 = vadd.f32 %v188, %v221
  %v260 = vadd.f32 %v189, %v221
  %v261 = vadd.f32 %v190, %v221
  %v262 = vadd.f32 %v191, %v221
  %v263 = vadd.f32 %v192, %v221
  %v264 = vadd.f32 %v193, %v221
  %v265 = vadd.f32 %v194, %v221
  %v266 = vadd.f32 %v195, %v221
  %v267 = vadd.f32 %v196, %v221
  %v268 = vadd.f32 %v197, %v221
  %v269 = vadd.f32 %v198, %v221
  %v270 = vadd.f32 %v199, %v221
  %v271 = vadd.f32 %v200, %v221
  %v272 = vadd.f32 %v201, %v221
  %v273 = vadd.f32 %v202, %v221
  %v274 = vadd.f32 %v203, %v221
  %v275 = vadd.f32 %v204, %v221
  %v276 = vadd.f32 %v205, %v221
  %v277 = vadd.f32 %v206, %v221
  %v278 = vadd.f32 %v207, %v221
  %v279 = vadd.f32 %v208, %v221
  %v280 = vadd.f32 %v209, %v221
  %v281 = vadd.f32 %v210, %v221
  %v282 = vadd.f32 %v211, %v221
  %v283 = vadd.f32 %v212, %v221
  %v284 = vadd.f32 %v213, %v221
  %v285 = vadd.f32 %v214, %v221
  %v286 = vadd.f32 %v215, %v221
  %v287 = vld [vmem:[%s3] sm:$0xf]
  %v288 = vld [vmem:[%s3 + $0x4] sm:$0xf]
  %v289 = vld [vmem:[%s3 + $0x8] sm:$0xf]
  %v290 = vld [vmem:[%s3 + $0xc] sm:$0xf]
  %v291 = vld [vmem:[%s3 + $0x10] sm:$0xf]
  %v292 = vld [vmem:[%s3 + $0x14] sm:$0xf]
  %v293 = vld [vmem:[%s3 + $0x18] sm:$0xf]
  %v294 = vld [vmem:[%s3 + $0x1c] sm:$0xf]
  %v295 = vld [vmem:[%s3 + $0x20] sm:$0xf]
  %v296 = vld [vmem:[%s3 + $0x24] sm:$0xf]
  %v297 = vld [vmem:[%s3 + $0x28] sm:$0xf]
  %v298 = vld [vmem:[%s3 + $0x2c] sm:$0xf]
  %v299 = vld [vmem:[%s3 + $0x30] sm:$0xf]
  %v300 = vld [vmem:[%s3 + $0x34] sm:$0xf]
  %v301 = vld [vmem:[%s3 + $0x38] sm:$0xf]
  %v302 = vld [vmem:[%s3 + $0x3c] sm:$0xf]
  %v303 = vld [vmem:[%s3 + $0x40] sm:$0xf]
  %v304 = vld [vmem:[%s3 + $0x44] sm:$0xf]
  %v305 = vld [vmem:[%s3 + $0x48] sm:$0xf]
  %v306 = vld [vmem:[%s3 + $0x4c] sm:$0xf]
  %v307 = vld [vmem:[%s3 + $0x50] sm:$0xf]
  %v308 = vld [vmem:[%s3 + $0x54] sm:$0xf]
  %v309 = vld [vmem:[%s3 + $0x58] sm:$0xf]
  %v310 = vld [vmem:[%s3 + $0x5c] sm:$0xf]
  %v311 = vld [vmem:[%s3 + $0x60] sm:$0xf]
  %v312 = vld [vmem:[%s3 + $0x64] sm:$0xf]
  %v313 = vld [vmem:[%s3 + $0x68] sm:$0xf]
  %v314 = vld [vmem:[%s3 + $0x6c] sm:$0xf]
  %v315 = vld [vmem:[%s3 + $0x70] sm:$0xf]
  %v316 = vld [vmem:[%s3 + $0x74] sm:$0xf]
  %v317 = vld [vmem:[%s3 + $0x78] sm:$0xf]
  %v318 = vld [vmem:[%s3 + $0x7c] sm:$0xf]
  %v319 = vld [vmem:[%s3 + $0x80] sm:$0xf]
  %v320 = vld [vmem:[%s3 + $0x84] sm:$0xf]
  %v321 = vld [vmem:[%s3 + $0x88] sm:$0xf]
  %v322 = vld [vmem:[%s3 + $0x8c] sm:$0xf]
  %v323 = vld [vmem:[%s3 + $0x90] sm:$0xf]
  %v324 = vld [vmem:[%s3 + $0x94] sm:$0xf]
  %v325 = vld [vmem:[%s3 + $0x98] sm:$0xf]
  %v326 = vld [vmem:[%s3 + $0x9c] sm:$0xf]
  %v327 = vld [vmem:[%s3 + $0xa0] sm:$0xf]
  %v328 = vld [vmem:[%s3 + $0xa4] sm:$0xf]
  %v329 = vld [vmem:[%s3 + $0xa8] sm:$0xf]
  %v330 = vld [vmem:[%s3 + $0xac] sm:$0xf]
  %v331 = vld [vmem:[%s3 + $0xb0] sm:$0xf]
  %v332 = vld [vmem:[%s3 + $0xb4] sm:$0xf]
  %v333 = vld [vmem:[%s3 + $0xb8] sm:$0xf]
  %v334 = vld [vmem:[%s3 + $0xbc] sm:$0xf]
  %v335 = vld [vmem:[%s3 + $0xc0] sm:$0xf]
  %v336 = vld [vmem:[%s3 + $0xc4] sm:$0xf]
  %v337 = vld [vmem:[%s3 + $0xc8] sm:$0xf]
  %v338 = vld [vmem:[%s3 + $0xcc] sm:$0xf]
  %v339 = vld [vmem:[%s3 + $0xd0] sm:$0xf]
  %v340 = vld [vmem:[%s3 + $0xd4] sm:$0xf]
  %v341 = vld [vmem:[%s3 + $0xd8] sm:$0xf]
  %v342 = vld [vmem:[%s3 + $0xdc] sm:$0xf]
  %v343 = vld [vmem:[%s3 + $0xe0] sm:$0xf]
  %v344 = vld [vmem:[%s3 + $0xe4] sm:$0xf]
  %v345 = vld [vmem:[%s3 + $0xe8] sm:$0xf]
  %v346 = vld [vmem:[%s3 + $0xec] sm:$0xf]
  %v347 = vld [vmem:[%s3 + $0xf0] sm:$0xf]
  %v348 = vld [vmem:[%s3 + $0xf4] sm:$0xf]
  %v349 = vld [vmem:[%s3 + $0xf8] sm:$0xf]
  %v350 = vld [vmem:[%s3 + $0xfc] sm:$0xf]
  %v351 = vunpack.c.l.bf16 %v287
  %v352 = vunpack.c.l.bf16 %v288
  %v353 = vunpack.c.l.bf16 %v289
  %v354 = vunpack.c.l.bf16 %v290
  %v355 = vunpack.c.l.bf16 %v291
  %v356 = vunpack.c.l.bf16 %v292
  %v357 = vunpack.c.l.bf16 %v293
  %v358 = vunpack.c.l.bf16 %v294
  %v359 = vunpack.c.l.bf16 %v295
  %v360 = vunpack.c.l.bf16 %v296
  %v361 = vunpack.c.l.bf16 %v297
  %v362 = vunpack.c.l.bf16 %v298
  %v363 = vunpack.c.l.bf16 %v299
  %v364 = vunpack.c.l.bf16 %v300
  %v365 = vunpack.c.l.bf16 %v301
  %v366 = vunpack.c.l.bf16 %v302
  %v367 = vunpack.c.l.bf16 %v303
  %v368 = vunpack.c.l.bf16 %v304
  %v369 = vunpack.c.l.bf16 %v305
  %v370 = vunpack.c.l.bf16 %v306
  %v371 = vunpack.c.l.bf16 %v307
  %v372 = vunpack.c.l.bf16 %v308
  %v373 = vunpack.c.l.bf16 %v309
  %v374 = vunpack.c.l.bf16 %v310
  %v375 = vunpack.c.l.bf16 %v311
  %v376 = vunpack.c.l.bf16 %v312
  %v377 = vunpack.c.l.bf16 %v313
  %v378 = vunpack.c.l.bf16 %v314
  %v379 = vunpack.c.l.bf16 %v315
  %v380 = vunpack.c.l.bf16 %v316
  %v381 = vunpack.c.l.bf16 %v317
  %v382 = vunpack.c.l.bf16 %v318
  %v383 = vunpack.c.l.bf16 %v319
  %v384 = vunpack.c.l.bf16 %v320
  %v385 = vunpack.c.l.bf16 %v321
  %v386 = vunpack.c.l.bf16 %v322
  %v387 = vunpack.c.l.bf16 %v323
  %v388 = vunpack.c.l.bf16 %v324
  %v389 = vunpack.c.l.bf16 %v325
  %v390 = vunpack.c.l.bf16 %v326
  %v391 = vunpack.c.l.bf16 %v327
  %v392 = vunpack.c.l.bf16 %v328
  %v393 = vunpack.c.l.bf16 %v329
  %v394 = vunpack.c.l.bf16 %v330
  %v395 = vunpack.c.l.bf16 %v331
  %v396 = vunpack.c.l.bf16 %v332
  %v397 = vunpack.c.l.bf16 %v333
  %v398 = vunpack.c.l.bf16 %v334
  %v399 = vunpack.c.l.bf16 %v335
  %v400 = vunpack.c.l.bf16 %v336
  %v401 = vunpack.c.l.bf16 %v337
  %v402 = vunpack.c.l.bf16 %v338
  %v403 = vunpack.c.l.bf16 %v339
  %v404 = vunpack.c.l.bf16 %v340
  %v405 = vunpack.c.l.bf16 %v341
  %v406 = vunpack.c.l.bf16 %v342
  %v407 = vunpack.c.l.bf16 %v343
  %v408 = vunpack.c.l.bf16 %v344
  %v409 = vunpack.c.l.bf16 %v345
  %v410 = vunpack.c.l.bf16 %v346
  %v411 = vunpack.c.l.bf16 %v347
  %v412 = vunpack.c.l.bf16 %v348
  %v413 = vunpack.c.l.bf16 %v349
  %v414 = vunpack.c.l.bf16 %v350
  %v415 = vadd.f32 %v223, %v351
  %v416 = vadd.f32 %v224, %v352
  %v417 = vadd.f32 %v225, %v353
  %v418 = vadd.f32 %v226, %v354
  %v419 = vadd.f32 %v227, %v355
  %v420 = vadd.f32 %v228, %v356
  %v421 = vadd.f32 %v229, %v357
  %v422 = vadd.f32 %v230, %v358
  %v423 = vadd.f32 %v231, %v359
  %v424 = vadd.f32 %v232, %v360
  %v425 = vadd.f32 %v233, %v361
  %v426 = vadd.f32 %v234, %v362
  %v427 = vadd.f32 %v235, %v363
  %v428 = vadd.f32 %v236, %v364
  %v429 = vadd.f32 %v237, %v365
  %v430 = vadd.f32 %v238, %v366
  %v431 = vadd.f32 %v239, %v367
  %v432 = vadd.f32 %v240, %v368
  %v433 = vadd.f32 %v241, %v369
  %v434 = vadd.f32 %v242, %v370
  %v435 = vadd.f32 %v243, %v371
  %v436 = vadd.f32 %v244, %v372
  %v437 = vadd.f32 %v245, %v373
  %v438 = vadd.f32 %v246, %v374
  %v439 = vadd.f32 %v247, %v375
  %v440 = vadd.f32 %v248, %v376
  %v441 = vadd.f32 %v249, %v377
  %v442 = vadd.f32 %v250, %v378
  %v443 = vadd.f32 %v251, %v379
  %v444 = vadd.f32 %v252, %v380
  %v445 = vadd.f32 %v253, %v381
  %v446 = vadd.f32 %v254, %v382
  %v447 = vadd.f32 %v255, %v383
  %v448 = vadd.f32 %v256, %v384
  %v449 = vadd.f32 %v257, %v385
  %v450 = vadd.f32 %v258, %v386
  %v451 = vadd.f32 %v259, %v387
  %v452 = vadd.f32 %v260, %v388
  %v453 = vadd.f32 %v261, %v389
  %v454 = vadd.f32 %v262, %v390
  %v455 = vadd.f32 %v263, %v391
  %v456 = vadd.f32 %v264, %v392
  %v457 = vadd.f32 %v265, %v393
  %v458 = vadd.f32 %v266, %v394
  %v459 = vadd.f32 %v267, %v395
  %v460 = vadd.f32 %v268, %v396
  %v461 = vadd.f32 %v269, %v397
  %v462 = vadd.f32 %v270, %v398
  %v463 = vadd.f32 %v271, %v399
  %v464 = vadd.f32 %v272, %v400
  %v465 = vadd.f32 %v273, %v401
  %v466 = vadd.f32 %v274, %v402
  %v467 = vadd.f32 %v275, %v403
  %v468 = vadd.f32 %v276, %v404
  %v469 = vadd.f32 %v277, %v405
  %v470 = vadd.f32 %v278, %v406
  %v471 = vadd.f32 %v279, %v407
  %v472 = vadd.f32 %v280, %v408
  %v473 = vadd.f32 %v281, %v409
  %v474 = vadd.f32 %v282, %v410
  %v475 = vadd.f32 %v283, %v411
  %v476 = vadd.f32 %v284, %v412
  %v477 = vadd.f32 %v285, %v413
  %v478 = vadd.f32 %v286, %v414
  %v479 = vmax.f32 %v415, 0.0
  %v480 = vmax.f32 %v416, 0.0
  %v481 = vmax.f32 %v417, 0.0
  %v482 = vmax.f32 %v418, 0.0
  %v483 = vmax.f32 %v419, 0.0
  %v484 = vmax.f32 %v420, 0.0
  %v485 = vmax.f32 %v421, 0.0
  %v486 = vmax.f32 %v422, 0.0
  %v487 = vmax.f32 %v423, 0.0
  %v488 = vmax.f32 %v424, 0.0
  %v489 = vmax.f32 %v425, 0.0
  %v490 = vmax.f32 %v426, 0.0
  %v491 = vmax.f32 %v427, 0.0
  %v492 = vmax.f32 %v428, 0.0
  %v493 = vmax.f32 %v429, 0.0
  %v494 = vmax.f32 %v430, 0.0
  %v495 = vmax.f32 %v431, 0.0
  %v496 = vmax.f32 %v432, 0.0
  %v497 = vmax.f32 %v433, 0.0
  %v498 = vmax.f32 %v434, 0.0
  %v499 = vmax.f32 %v435, 0.0
  %v500 = vmax.f32 %v436, 0.0
  %v501 = vmax.f32 %v437, 0.0
  %v502 = vmax.f32 %v438, 0.0
  %v503 = vmax.f32 %v439, 0.0
  %v504 = vmax.f32 %v440, 0.0
  %v505 = vmax.f32 %v441, 0.0
  %v506 = vmax.f32 %v442, 0.0
  %v507 = vmax.f32 %v443, 0.0
  %v508 = vmax.f32 %v444, 0.0
  %v509 = vmax.f32 %v445, 0.0
  %v510 = vmax.f32 %v446, 0.0
  %v511 = vmax.f32 %v447, 0.0
  %v512 = vmax.f32 %v448, 0.0
  %v513 = vmax.f32 %v449, 0.0
  %v514 = vmax.f32 %v450, 0.0
  %v515 = vmax.f32 %v451, 0.0
  %v516 = vmax.f32 %v452, 0.0
  %v517 = vmax.f32 %v453, 0.0
  %v518 = vmax.f32 %v454, 0.0
  %v519 = vmax.f32 %v455, 0.0
  %v520 = vmax.f32 %v456, 0.0
  %v521 = vmax.f32 %v457, 0.0
  %v522 = vmax.f32 %v458, 0.0
  %v523 = vmax.f32 %v459, 0.0
  %v524 = vmax.f32 %v460, 0.0
  %v525 = vmax.f32 %v461, 0.0
  %v526 = vmax.f32 %v462, 0.0
  %v527 = vmax.f32 %v463, 0.0
  %v528 = vmax.f32 %v464, 0.0
  %v529 = vmax.f32 %v465, 0.0
  %v530 = vmax.f32 %v466, 0.0
  %v531 = vmax.f32 %v467, 0.0
  %v532 = vmax.f32 %v468, 0.0
  %v533 = vmax.f32 %v469, 0.0
  %v534 = vmax.f32 %v470, 0.0
  %v535 = vmax.f32 %v471, 0.0
  %v536 = vmax.f32 %v472, 0.0
  %v537 = vmax.f32 %v473, 0.0
  %v538 = vmax.f32 %v474, 0.0
  %v539 = vmax.f32 %v475, 0.0
  %v540 = vmax.f32 %v476, 0.0
  %v541 = vmax.f32 %v477, 0.0
  %v542 = vmax.f32 %v478, 0.0
  %543 = vst [vmem:[%s4] sm:$0xff] %v479
  %544 = vst [vmem:[%s4 + $0x8] sm:$0xff] %v480
  %545 = vst [vmem:[%s4 + $0x10] sm:$0xff] %v481
  %546 = vst [vmem:[%s4 + $0x18] sm:$0xff] %v482
  %547 = vst [vmem:[%s4 + $0x20] sm:$0xff] %v483
  %548 = vst [vmem:[%s4 + $0x28] sm:$0xff] %v484
  %549 = vst [vmem:[%s4 + $0x30] sm:$0xff] %v485
  %550 = vst [vmem:[%s4 + $0x38] sm:$0xff] %v486
  %551 = vst [vmem:[%s4 + $0x40] sm:$0xff] %v487
  %552 = vst [vmem:[%s4 + $0x48] sm:$0xff] %v488
  %553 = vst [vmem:[%s4 + $0x50] sm:$0xff] %v489
  %554 = vst [vmem:[%s4 + $0x58] sm:$0xff] %v490
  %555 = vst [vmem:[%s4 + $0x60] sm:$0xff] %v491
  %556 = vst [vmem:[%s4 + $0x68] sm:$0xff] %v492
  %557 = vst [vmem:[%s4 + $0x70] sm:$0xff] %v493
  %558 = vst [vmem:[%s4 + $0x78] sm:$0xff] %v494
  %559 = vst [vmem:[%s4 + $0x80] sm:$0xff] %v495
  %560 = vst [vmem:[%s4 + $0x88] sm:$0xff] %v496
  %561 = vst [vmem:[%s4 + $0x90] sm:$0xff] %v497
  %562 = vst [vmem:[%s4 + $0x98] sm:$0xff] %v498
  %563 = vst [vmem:[%s4 + $0xa0] sm:$0xff] %v499
  %564 = vst [vmem:[%s4 + $0xa8] sm:$0xff] %v500
  %565 = vst [vmem:[%s4 + $0xb0] sm:$0xff] %v501
  %566 = vst [vmem:[%s4 + $0xb8] sm:$0xff] %v502
  %567 = vst [vmem:[%s4 + $0xc0] sm:$0xff] %v503
  %568 = vst [vmem:[%s4 + $0xc8] sm:$0xff] %v504
  %569 = vst [vmem:[%s4 + $0xd0] sm:$0xff] %v505
  %570 = vst [vmem:[%s4 + $0xd8] sm:$0xff] %v506
  %571 = vst [vmem:[%s4 + $0xe0] sm:$0xff] %v507
  %572 = vst [vmem:[%s4 + $0xe8] sm:$0xff] %v508
  %573 = vst [vmem:[%s4 + $0xf0] sm:$0xff] %v509
  %574 = vst [vmem:[%s4 + $0xf8] sm:$0xff] %v510
  %575 = vst [vmem:[%s4 + $0x100] sm:$0xff] %v511
  %576 = vst [vmem:[%s4 + $0x108] sm:$0xff] %v512
  %577 = vst [vmem:[%s4 + $0x110] sm:$0xff] %v513
  %578 = vst [vmem:[%s4 + $0x118] sm:$0xff] %v514
  %579 = vst [vmem:[%s4 + $0x120] sm:$0xff] %v515
  %580 = vst [vmem:[%s4 + $0x128] sm:$0xff] %v516
  %581 = vst [vmem:[%s4 + $0x130] sm:$0xff] %v517
  %582 = vst [vmem:[%s4 + $0x138] sm:$0xff] %v518
  %583 = vst [vmem:[%s4 + $0x140] sm:$0xff] %v519
  %584 = vst [vmem:[%s4 + $0x148] sm:$0xff] %v520
  %585 = vst [vmem:[%s4 + $0x150] sm:$0xff] %v521
  %586 = vst [vmem:[%s4 + $0x158] sm:$0xff] %v522
  %587 = vst [vmem:[%s4 + $0x160] sm:$0xff] %v523
  %588 = vst [vmem:[%s4 + $0x168] sm:$0xff] %v524
  %589 = vst [vmem:[%s4 + $0x170] sm:$0xff] %v525
  %590 = vst [vmem:[%s4 + $0x178] sm:$0xff] %v526
  %591 = vst [vmem:[%s4 + $0x180] sm:$0xff] %v527
  %592 = vst [vmem:[%s4 + $0x188] sm:$0xff] %v528
  %593 = vst [vmem:[%s4 + $0x190] sm:$0xff] %v529
  %594 = vst [vmem:[%s4 + $0x198] sm:$0xff] %v530
  %595 = vst [vmem:[%s4 + $0x1a0] sm:$0xff] %v531
  %596 = vst [vmem:[%s4 + $0x1a8] sm:$0xff] %v532
  %597 = vst [vmem:[%s4 + $0x1b0] sm:$0xff] %v533
  %598 = vst [vmem:[%s4 + $0x1b8] sm:$0xff] %v534
  %599 = vst [vmem:[%s4 + $0x1c0] sm:$0xff] %v535
  %600 = vst [vmem:[%s4 + $0x1c8] sm:$0xff] %v536
  %601 = vst [vmem:[%s4 + $0x1d0] sm:$0xff] %v537
  %602 = vst [vmem:[%s4 + $0x1d8] sm:$0xff] %v538
  %603 = vst [vmem:[%s4 + $0x1e0] sm:$0xff] %v539
  %604 = vst [vmem:[%s4 + $0x1e8] sm:$0xff] %v540
  %605 = vst [vmem:[%s4 + $0x1f0] sm:$0xff] %v541
  %606 = vst [vmem:[%s4 + $0x1f8] sm:$0xff] %v542
  // Predicated region
  $region18: #{bottleneck_forward.7} parent=0 // pred_check
    _
  $region19: #{bottleneck_forward.7} parent=0 // pred_check_branch
    %608 = sbr.rel (0) target = $region21
  $region20: #{bottleneck_forward.7} parent=0 // pred_region
    _
  $region21: #{bottleneck_forward.7} parent=0 // pred_fallthru
    _
  // Predicated region
  $region22: #{bottleneck_forward.7} parent=0 // pred_check
    _
  $region23: #{bottleneck_forward.7} parent=0 // pred_check_branch
    %610 = sbr.rel (0) target = $region25
  $region24: #{bottleneck_forward.7} parent=0 // pred_region
    _
  $region25: #{bottleneck_forward.7} parent=0 // pred_fallthru
    _

// kernel: bottleneck_forward.6
$region0: #{bottleneck_forward.6}
  #allocation0 [shape = 'u32[]', space=smem, size = 0x4, offset = 0x4, fixed_abs, tag = 'smem constant byte address 0x4 - core index']
  #allocation1 [shape = 'u32[144,128]{1,0:T(1,128)}', space=vmem, size = 0x12000, scoped, tag = 'internal scratch']
  %s0 = inlined_call_operand.vmem [shape: bf16[512,128], index: 0, kind: input, shape index: {}]
  %s1 = inlined_call_operand.vmem [shape: f32[1,128], index: 1, kind: input, shape index: {}]
  %s2 = inlined_call_operand.vmem [shape: f32[1,128], index: 2, kind: input, shape index: {}]
  %s3 = inlined_call_operand.vmem [shape: bf16[128,128], index: 3, kind: input, shape index: {}]
  %s4 = inlined_call_operand.vmem [shape: bf16[512,128], index: 4, kind: output, shape index: {0}]
  %s5 = inlined_call_operand.vmem [shape: f32[1,2,128], index: 5, kind: output, shape index: {1}]
  %6 = xla_tuple %s4, %s5
  %s7 = sld [smem:[#allocation0]]
  $region34: #{bottleneck_forward.6} parent=0
    _
  %s9 = ssub.s32 1, %s7
  %s10 = scalar_select 0, %s9, %s7
  // Predicated region
  $region2: #{bottleneck_forward.6} parent=0 // pred_check
    _
  $region3: #{bottleneck_forward.6} parent=0 // pred_check_branch
    %12 = sbr.rel (0) target = $region5
  $region4: #{bottleneck_forward.6} parent=0 // pred_region
    _
  $region5: #{bottleneck_forward.6} parent=0 // pred_fallthru
    _
  // Predicated region
  $region6: #{bottleneck_forward.6} parent=0 // pred_check
    _
  $region7: #{bottleneck_forward.6} parent=0 // pred_check_branch
    %14 = sbr.rel (0) target = $region9
  $region8: #{bottleneck_forward.6} parent=0 // pred_region
    _
  $region9: #{bottleneck_forward.6} parent=0 // pred_fallthru
    _
  // Predicated region
  $region10: #{bottleneck_forward.6} parent=0 // pred_check
    _
  $region11: #{bottleneck_forward.6} parent=0 // pred_check_branch
    %16 = sbr.rel (0) target = $region13
  $region12: #{bottleneck_forward.6} parent=0 // pred_region
    _
  $region13: #{bottleneck_forward.6} parent=0 // pred_fallthru
    _
  // Predicated region
  $region14: #{bottleneck_forward.6} parent=0 // pred_check
    _
  $region15: #{bottleneck_forward.6} parent=0 // pred_check_branch
    %18 = sbr.rel (0) target = $region17
  $region16: #{bottleneck_forward.6} parent=0 // pred_region
    _
  $region17: #{bottleneck_forward.6} parent=0 // pred_fallthru
    _
  %v20 = vld [vmem:[%s0] sm:$0xf]
  %v21 = vld [vmem:[%s0 + $0x4] sm:$0xf]
  %v22 = vld [vmem:[%s0 + $0x8] sm:$0xf]
  %v23 = vld [vmem:[%s0 + $0xc] sm:$0xf]
  %v24 = vld [vmem:[%s0 + $0x10] sm:$0xf]
  %v25 = vld [vmem:[%s0 + $0x14] sm:$0xf]
  %v26 = vld [vmem:[%s0 + $0x18] sm:$0xf]
  %v27 = vld [vmem:[%s0 + $0x1c] sm:$0xf]
  %v28 = vld [vmem:[%s0 + $0x20] sm:$0xf]
  %v29 = vld [vmem:[%s0 + $0x24] sm:$0xf]
  %v30 = vld [vmem:[%s0 + $0x28] sm:$0xf]
  %v31 = vld [vmem:[%s0 + $0x2c] sm:$0xf]
  %v32 = vld [vmem:[%s0 + $0x30] sm:$0xf]
  %v33 = vld [vmem:[%s0 + $0x34] sm:$0xf]
  %v34 = vld [vmem:[%s0 + $0x38] sm:$0xf]
  %v35 = vld [vmem:[%s0 + $0x3c] sm:$0xf]
  %v36 = vld [vmem:[%s0 + $0x40] sm:$0xf]
  %v37 = vld [vmem:[%s0 + $0x44] sm:$0xf]
  %v38 = vld [vmem:[%s0 + $0x48] sm:$0xf]
  %v39 = vld [vmem:[%s0 + $0x4c] sm:$0xf]
  %v40 = vld [vmem:[%s0 + $0x50] sm:$0xf]
  %v41 = vld [vmem:[%s0 + $0x54] sm:$0xf]
  %v42 = vld [vmem:[%s0 + $0x58] sm:$0xf]
  %v43 = vld [vmem:[%s0 + $0x5c] sm:$0xf]
  %v44 = vld [vmem:[%s0 + $0x60] sm:$0xf]
  %v45 = vld [vmem:[%s0 + $0x64] sm:$0xf]
  %v46 = vld [vmem:[%s0 + $0x68] sm:$0xf]
  %v47 = vld [vmem:[%s0 + $0x6c] sm:$0xf]
  %v48 = vld [vmem:[%s0 + $0x70] sm:$0xf]
  %v49 = vld [vmem:[%s0 + $0x74] sm:$0xf]
  %v50 = vld [vmem:[%s0 + $0x78] sm:$0xf]
  %v51 = vld [vmem:[%s0 + $0x7c] sm:$0xf]
  %v52 = vld [vmem:[%s0 + $0x80] sm:$0xf]
  %v53 = vld [vmem:[%s0 + $0x84] sm:$0xf]
  %v54 = vld [vmem:[%s0 + $0x88] sm:$0xf]
  %v55 = vld [vmem:[%s0 + $0x8c] sm:$0xf]
  %v56 = vld [vmem:[%s0 + $0x90] sm:$0xf]
  %v57 = vld [vmem:[%s0 + $0x94] sm:$0xf]
  %v58 = vld [vmem:[%s0 + $0x98] sm:$0xf]
  %v59 = vld [vmem:[%s0 + $0x9c] sm:$0xf]
  %v60 = vld [vmem:[%s0 + $0xa0] sm:$0xf]
  %v61 = vld [vmem:[%s0 + $0xa4] sm:$0xf]
  %v62 = vld [vmem:[%s0 + $0xa8] sm:$0xf]
  %v63 = vld [vmem:[%s0 + $0xac] sm:$0xf]
  %v64 = vld [vmem:[%s0 + $0xb0] sm:$0xf]
  %v65 = vld [vmem:[%s0 + $0xb4] sm:$0xf]
  %v66 = vld [vmem:[%s0 + $0xb8] sm:$0xf]
  %v67 = vld [vmem:[%s0 + $0xbc] sm:$0xf]
  %v68 = vld [vmem:[%s0 + $0xc0] sm:$0xf]
  %v69 = vld [vmem:[%s0 + $0xc4] sm:$0xf]
  %v70 = vld [vmem:[%s0 + $0xc8] sm:$0xf]
  %v71 = vld [vmem:[%s0 + $0xcc] sm:$0xf]
  %v72 = vld [vmem:[%s0 + $0xd0] sm:$0xf]
  %v73 = vld [vmem:[%s0 + $0xd4] sm:$0xf]
  %v74 = vld [vmem:[%s0 + $0xd8] sm:$0xf]
  %v75 = vld [vmem:[%s0 + $0xdc] sm:$0xf]
  %v76 = vld [vmem:[%s0 + $0xe0] sm:$0xf]
  %v77 = vld [vmem:[%s0 + $0xe4] sm:$0xf]
  %v78 = vld [vmem:[%s0 + $0xe8] sm:$0xf]
  %v79 = vld [vmem:[%s0 + $0xec] sm:$0xf]
  %v80 = vld [vmem:[%s0 + $0xf0] sm:$0xf]
  %v81 = vld [vmem:[%s0 + $0xf4] sm:$0xf]
  %v82 = vld [vmem:[%s0 + $0xf8] sm:$0xf]
  %v83 = vld [vmem:[%s0 + $0xfc] sm:$0xf]
  %v84 = vld [vmem:[%s1] sm:$0x1]
  %v85 = vunpack.c.l.bf16 %v20
  %v86 = vunpack.c.l.bf16 %v21
  %v87 = vunpack.c.l.bf16 %v22
  %v88 = vunpack.c.l.bf16 %v23
  %v89 = vunpack.c.l.bf16 %v24
  %v90 = vunpack.c.l.bf16 %v25
  %v91 = vunpack.c.l.bf16 %v26
  %v92 = vunpack.c.l.bf16 %v27
  %v93 = vunpack.c.l.bf16 %v28
  %v94 = vunpack.c.l.bf16 %v29
  %v95 = vunpack.c.l.bf16 %v30
  %v96 = vunpack.c.l.bf16 %v31
  %v97 = vunpack.c.l.bf16 %v32
  %v98 = vunpack.c.l.bf16 %v33
  %v99 = vunpack.c.l.bf16 %v34
  %v100 = vunpack.c.l.bf16 %v35
  %v101 = vunpack.c.l.bf16 %v36
  %v102 = vunpack.c.l.bf16 %v37
  %v103 = vunpack.c.l.bf16 %v38
  %v104 = vunpack.c.l.bf16 %v39
  %v105 = vunpack.c.l.bf16 %v40
  %v106 = vunpack.c.l.bf16 %v41
  %v107 = vunpack.c.l.bf16 %v42
  %v108 = vunpack.c.l.bf16 %v43
  %v109 = vunpack.c.l.bf16 %v44
  %v110 = vunpack.c.l.bf16 %v45
  %v111 = vunpack.c.l.bf16 %v46
  %v112 = vunpack.c.l.bf16 %v47
  %v113 = vunpack.c.l.bf16 %v48
  %v114 = vunpack.c.l.bf16 %v49
  %v115 = vunpack.c.l.bf16 %v50
  %v116 = vunpack.c.l.bf16 %v51
  %v117 = vunpack.c.l.bf16 %v52
  %v118 = vunpack.c.l.bf16 %v53
  %v119 = vunpack.c.l.bf16 %v54
  %v120 = vunpack.c.l.bf16 %v55
  %v121 = vunpack.c.l.bf16 %v56
  %v122 = vunpack.c.l.bf16 %v57
  %v123 = vunpack.c.l.bf16 %v58
  %v124 = vunpack.c.l.bf16 %v59
  %v125 = vunpack.c.l.bf16 %v60
  %v126 = vunpack.c.l.bf16 %v61
  %v127 = vunpack.c.l.bf16 %v62
  %v128 = vunpack.c.l.bf16 %v63
  %v129 = vunpack.c.l.bf16 %v64
  %v130 = vunpack.c.l.bf16 %v65
  %v131 = vunpack.c.l.bf16 %v66
  %v132 = vunpack.c.l.bf16 %v67
  %v133 = vunpack.c.l.bf16 %v68
  %v134 = vunpack.c.l.bf16 %v69
  %v135 = vunpack.c.l.bf16 %v70
  %v136 = vunpack.c.l.bf16 %v71
  %v137 = vunpack.c.l.bf16 %v72
  %v138 = vunpack.c.l.bf16 %v73
  %v139 = vunpack.c.l.bf16 %v74
  %v140 = vunpack.c.l.bf16 %v75
  %v141 = vunpack.c.l.bf16 %v76
  %v142 = vunpack.c.l.bf16 %v77
  %v143 = vunpack.c.l.bf16 %v78
  %v144 = vunpack.c.l.bf16 %v79
  %v145 = vunpack.c.l.bf16 %v80
  %v146 = vunpack.c.l.bf16 %v81
  %v147 = vunpack.c.l.bf16 %v82
  %v148 = vunpack.c.l.bf16 %v83
  %v150 = vlaneseq
  %v151 = vshrl.u32 %v150, 7
  %v152 = vsub.s32 0, %v151
  %v153 = vrot.slane %v84, %v152
  %v155 = vmul.f32 %v85, %v153
  %v156 = vmul.f32 %v86, %v153
  %v157 = vmul.f32 %v87, %v153
  %v158 = vmul.f32 %v88, %v153
  %v159 = vmul.f32 %v89, %v153
  %v160 = vmul.f32 %v90, %v153
  %v161 = vmul.f32 %v91, %v153
  %v162 = vmul.f32 %v92, %v153
  %v163 = vmul.f32 %v93, %v153
  %v164 = vmul.f32 %v94, %v153
  %v165 = vmul.f32 %v95, %v153
  %v166 = vmul.f32 %v96, %v153
  %v167 = vmul.f32 %v97, %v153
  %v168 = vmul.f32 %v98, %v153
  %v169 = vmul.f32 %v99, %v153
  %v170 = vmul.f32 %v100, %v153
  %v171 = vmul.f32 %v101, %v153
  %v172 = vmul.f32 %v102, %v153
  %v173 = vmul.f32 %v103, %v153
  %v174 = vmul.f32 %v104, %v153
  %v175 = vmul.f32 %v105, %v153
  %v176 = vmul.f32 %v106, %v153
  %v177 = vmul.f32 %v107, %v153
  %v178 = vmul.f32 %v108, %v153
  %v179 = vmul.f32 %v109, %v153
  %v180 = vmul.f32 %v110, %v153
  %v181 = vmul.f32 %v111, %v153
  %v182 = vmul.f32 %v112, %v153
  %v183 = vmul.f32 %v113, %v153
  %v184 = vmul.f32 %v114, %v153
  %v185 = vmul.f32 %v115, %v153
  %v186 = vmul.f32 %v116, %v153
  %v187 = vmul.f32 %v117, %v153
  %v188 = vmul.f32 %v118, %v153
  %v189 = vmul.f32 %v119, %v153
  %v190 = vmul.f32 %v120, %v153
  %v191 = vmul.f32 %v121, %v153
  %v192 = vmul.f32 %v122, %v153
  %v193 = vmul.f32 %v123, %v153
  %v194 = vmul.f32 %v124, %v153
  %v195 = vmul.f32 %v125, %v153
  %v196 = vmul.f32 %v126, %v153
  %v197 = vmul.f32 %v127, %v153
  %v198 = vmul.f32 %v128, %v153
  %v199 = vmul.f32 %v129, %v153
  %v200 = vmul.f32 %v130, %v153
  %v201 = vmul.f32 %v131, %v153
  %v202 = vmul.f32 %v132, %v153
  %v203 = vmul.f32 %v133, %v153
  %v204 = vmul.f32 %v134, %v153
  %v205 = vmul.f32 %v135, %v153
  %v206 = vmul.f32 %v136, %v153
  %v207 = vmul.f32 %v137, %v153
  %v208 = vmul.f32 %v138, %v153
  %v209 = vmul.f32 %v139, %v153
  %v210 = vmul.f32 %v140, %v153
  %v211 = vmul.f32 %v141, %v153
  %v212 = vmul.f32 %v142, %v153
  %v213 = vmul.f32 %v143, %v153
  %v214 = vmul.f32 %v144, %v153
  %v215 = vmul.f32 %v145, %v153
  %v216 = vmul.f32 %v146, %v153
  %v217 = vmul.f32 %v147, %v153
  %v218 = vmul.f32 %v148, %v153
  %v219 = vld [vmem:[%s2] sm:$0x1]
  %v221 = vlaneseq
  %v222 = vshrl.u32 %v221, 7
  %v223 = vsub.s32 0, %v222
  %v224 = vrot.slane %v219, %v223
  %v226 = vadd.f32 %v155, %v224
  %v227 = vadd.f32 %v156, %v224
  %v228 = vadd.f32 %v157, %v224
  %v229 = vadd.f32 %v158, %v224
  %v230 = vadd.f32 %v159, %v224
  %v231 = vadd.f32 %v160, %v224
  %v232 = vadd.f32 %v161, %v224
  %v233 = vadd.f32 %v162, %v224
  %v234 = vadd.f32 %v163, %v224
  %v235 = vadd.f32 %v164, %v224
  %v236 = vadd.f32 %v165, %v224
  %v237 = vadd.f32 %v166, %v224
  %v238 = vadd.f32 %v167, %v224
  %v239 = vadd.f32 %v168, %v224
  %v240 = vadd.f32 %v169, %v224
  %v241 = vadd.f32 %v170, %v224
  %v242 = vadd.f32 %v171, %v224
  %v243 = vadd.f32 %v172, %v224
  %v244 = vadd.f32 %v173, %v224
  %v245 = vadd.f32 %v174, %v224
  %v246 = vadd.f32 %v175, %v224
  %v247 = vadd.f32 %v176, %v224
  %v248 = vadd.f32 %v177, %v224
  %v249 = vadd.f32 %v178, %v224
  %v250 = vadd.f32 %v179, %v224
  %v251 = vadd.f32 %v180, %v224
  %v252 = vadd.f32 %v181, %v224
  %v253 = vadd.f32 %v182, %v224
  %v254 = vadd.f32 %v183, %v224
  %v255 = vadd.f32 %v184, %v224
  %v256 = vadd.f32 %v185, %v224
  %v257 = vadd.f32 %v186, %v224
  %v258 = vadd.f32 %v187, %v224
  %v259 = vadd.f32 %v188, %v224
  %v260 = vadd.f32 %v189, %v224
  %v261 = vadd.f32 %v190, %v224
  %v262 = vadd.f32 %v191, %v224
  %v263 = vadd.f32 %v192, %v224
  %v264 = vadd.f32 %v193, %v224
  %v265 = vadd.f32 %v194, %v224
  %v266 = vadd.f32 %v195, %v224
  %v267 = vadd.f32 %v196, %v224
  %v268 = vadd.f32 %v197, %v224
  %v269 = vadd.f32 %v198, %v224
  %v270 = vadd.f32 %v199, %v224
  %v271 = vadd.f32 %v200, %v224
  %v272 = vadd.f32 %v201, %v224
  %v273 = vadd.f32 %v202, %v224
  %v274 = vadd.f32 %v203, %v224
  %v275 = vadd.f32 %v204, %v224
  %v276 = vadd.f32 %v205, %v224
  %v277 = vadd.f32 %v206, %v224
  %v278 = vadd.f32 %v207, %v224
  %v279 = vadd.f32 %v208, %v224
  %v280 = vadd.f32 %v209, %v224
  %v281 = vadd.f32 %v210, %v224
  %v282 = vadd.f32 %v211, %v224
  %v283 = vadd.f32 %v212, %v224
  %v284 = vadd.f32 %v213, %v224
  %v285 = vadd.f32 %v214, %v224
  %v286 = vadd.f32 %v215, %v224
  %v287 = vadd.f32 %v216, %v224
  %v288 = vadd.f32 %v217, %v224
  %v289 = vadd.f32 %v218, %v224
  %v290 = vmax.f32 %v226, 0.0
  %v291 = vmax.f32 %v227, 0.0
  %v292 = vmax.f32 %v228, 0.0
  %v293 = vmax.f32 %v229, 0.0
  %v294 = vmax.f32 %v230, 0.0
  %v295 = vmax.f32 %v231, 0.0
  %v296 = vmax.f32 %v232, 0.0
  %v297 = vmax.f32 %v233, 0.0
  %v298 = vmax.f32 %v234, 0.0
  %v299 = vmax.f32 %v235, 0.0
  %v300 = vmax.f32 %v236, 0.0
  %v301 = vmax.f32 %v237, 0.0
  %v302 = vmax.f32 %v238, 0.0
  %v303 = vmax.f32 %v239, 0.0
  %v304 = vmax.f32 %v240, 0.0
  %v305 = vmax.f32 %v241, 0.0
  %v306 = vmax.f32 %v242, 0.0
  %v307 = vmax.f32 %v243, 0.0
  %v308 = vmax.f32 %v244, 0.0
  %v309 = vmax.f32 %v245, 0.0
  %v310 = vmax.f32 %v246, 0.0
  %v311 = vmax.f32 %v247, 0.0
  %v312 = vmax.f32 %v248, 0.0
  %v313 = vmax.f32 %v249, 0.0
  %v314 = vmax.f32 %v250, 0.0
  %v315 = vmax.f32 %v251, 0.0
  %v316 = vmax.f32 %v252, 0.0
  %v317 = vmax.f32 %v253, 0.0
  %v318 = vmax.f32 %v254, 0.0
  %v319 = vmax.f32 %v255, 0.0
  %v320 = vmax.f32 %v256, 0.0
  %v321 = vmax.f32 %v257, 0.0
  %v322 = vmax.f32 %v258, 0.0
  %v323 = vmax.f32 %v259, 0.0
  %v324 = vmax.f32 %v260, 0.0
  %v325 = vmax.f32 %v261, 0.0
  %v326 = vmax.f32 %v262, 0.0
  %v327 = vmax.f32 %v263, 0.0
  %v328 = vmax.f32 %v264, 0.0
  %v329 = vmax.f32 %v265, 0.0
  %v330 = vmax.f32 %v266, 0.0
  %v331 = vmax.f32 %v267, 0.0
  %v332 = vmax.f32 %v268, 0.0
  %v333 = vmax.f32 %v269, 0.0
  %v334 = vmax.f32 %v270, 0.0
  %v335 = vmax.f32 %v271, 0.0
  %v336 = vmax.f32 %v272, 0.0
  %v337 = vmax.f32 %v273, 0.0
  %v338 = vmax.f32 %v274, 0.0
  %v339 = vmax.f32 %v275, 0.0
  %v340 = vmax.f32 %v276, 0.0
  %v341 = vmax.f32 %v277, 0.0
  %v342 = vmax.f32 %v278, 0.0
  %v343 = vmax.f32 %v279, 0.0
  %v344 = vmax.f32 %v280, 0.0
  %v345 = vmax.f32 %v281, 0.0
  %v346 = vmax.f32 %v282, 0.0
  %v347 = vmax.f32 %v283, 0.0
  %v348 = vmax.f32 %v284, 0.0
  %v349 = vmax.f32 %v285, 0.0
  %v350 = vmax.f32 %v286, 0.0
  %v351 = vmax.f32 %v287, 0.0
  %v352 = vmax.f32 %v288, 0.0
  %v353 = vmax.f32 %v289, 0.0
  %v354 = vpack.c.bf16 %v291, %v290
  %v355 = vpack.c.bf16 %v293, %v292
  %v356 = vpack.c.bf16 %v295, %v294
  %v357 = vpack.c.bf16 %v297, %v296
  %v358 = vpack.c.bf16 %v299, %v298
  %v359 = vpack.c.bf16 %v301, %v300
  %v360 = vpack.c.bf16 %v303, %v302
  %v361 = vpack.c.bf16 %v305, %v304
  %v362 = vpack.c.bf16 %v307, %v306
  %v363 = vpack.c.bf16 %v309, %v308
  %v364 = vpack.c.bf16 %v311, %v310
  %v365 = vpack.c.bf16 %v313, %v312
  %v366 = vpack.c.bf16 %v315, %v314
  %v367 = vpack.c.bf16 %v317, %v316
  %v368 = vpack.c.bf16 %v319, %v318
  %v369 = vpack.c.bf16 %v321, %v320
  %v370 = vpack.c.bf16 %v323, %v322
  %v371 = vpack.c.bf16 %v325, %v324
  %v372 = vpack.c.bf16 %v327, %v326
  %v373 = vpack.c.bf16 %v329, %v328
  %v374 = vpack.c.bf16 %v331, %v330
  %v375 = vpack.c.bf16 %v333, %v332
  %v376 = vpack.c.bf16 %v335, %v334
  %v377 = vpack.c.bf16 %v337, %v336
  %v378 = vpack.c.bf16 %v339, %v338
  %v379 = vpack.c.bf16 %v341, %v340
  %v380 = vpack.c.bf16 %v343, %v342
  %v381 = vpack.c.bf16 %v345, %v344
  %v382 = vpack.c.bf16 %v347, %v346
  %v383 = vpack.c.bf16 %v349, %v348
  %v384 = vpack.c.bf16 %v351, %v350
  %v385 = vpack.c.bf16 %v353, %v352
  %v386 = vld [vmem:[%s3] sm:$0xf]
  %v387 = vld [vmem:[%s3 + $0x4] sm:$0xf]
  %v388 = vld [vmem:[%s3 + $0x8] sm:$0xf]
  %v389 = vld [vmem:[%s3 + $0xc] sm:$0xf]
  %v390 = vld [vmem:[%s3 + $0x10] sm:$0xf]
  %v391 = vld [vmem:[%s3 + $0x14] sm:$0xf]
  %v392 = vld [vmem:[%s3 + $0x18] sm:$0xf]
  %v393 = vld [vmem:[%s3 + $0x1c] sm:$0xf]
  %v394 = vld [vmem:[%s3 + $0x20] sm:$0xf]
  %v395 = vld [vmem:[%s3 + $0x24] sm:$0xf]
  %v396 = vld [vmem:[%s3 + $0x28] sm:$0xf]
  %v397 = vld [vmem:[%s3 + $0x2c] sm:$0xf]
  %v398 = vld [vmem:[%s3 + $0x30] sm:$0xf]
  %v399 = vld [vmem:[%s3 + $0x34] sm:$0xf]
  %v400 = vld [vmem:[%s3 + $0x38] sm:$0xf]
  %v401 = vld [vmem:[%s3 + $0x3c] sm:$0xf]
  %v418 = vunpack.c.l.b16 %v386
  %v419 = vunpack.c.l.b16 %v387
  %v420 = vunpack.c.l.b16 %v388
  %v421 = vunpack.c.l.b16 %v389
  %v422 = vunpack.c.l.b16 %v390
  %v423 = vunpack.c.l.b16 %v391
  %v424 = vunpack.c.l.b16 %v392
  %v425 = vunpack.c.l.b16 %v393
  %v426 = vunpack.c.l.b16 %v394
  %v427 = vunpack.c.l.b16 %v395
  %v428 = vunpack.c.l.b16 %v396
  %v429 = vunpack.c.l.b16 %v397
  %v430 = vunpack.c.l.b16 %v398
  %v431 = vunpack.c.l.b16 %v399
  %v432 = vunpack.c.l.b16 %v400
  %v433 = vunpack.c.l.b16 %v401
  %v434 = vpack.c.b16 %v419, %v418
  %v435 = vpack.c.b16 %v421, %v420
  %v436 = vpack.c.b16 %v423, %v422
  %v437 = vpack.c.b16 %v425, %v424
  %v438 = vpack.c.b16 %v427, %v426
  %v439 = vpack.c.b16 %v429, %v428
  %v440 = vpack.c.b16 %v431, %v430
  %v441 = vpack.c.b16 %v433, %v432
  %450 = vmatprep.subr.bf16.mxu0 0
  %451 = vmatpush1.bf16.msra.mxu0 %v441
  %452 = vmatprep.subr.bf16.mxu0 0
  %453 = vmatpush1.bf16.msra.mxu0 %v440
  %454 = vmatprep.subr.bf16.mxu0 0
  %455 = vmatpush1.bf16.msra.mxu0 %v439
  %456 = vmatprep.subr.bf16.mxu0 0
  %457 = vmatpush1.bf16.msra.mxu0 %v438
  %458 = vmatprep.subr.bf16.mxu0 0
  %459 = vmatpush1.bf16.msra.mxu0 %v437
  %460 = vmatprep.subr.bf16.mxu0 0
  %461 = vmatpush1.bf16.msra.mxu0 %v436
  %462 = vmatprep.subr.bf16.mxu0 0
  %463 = vmatpush1.bf16.msra.mxu0 %v435
  %464 = vmatprep.subr.bf16.mxu0 0
  %465 = vmatpush1.bf16.msra.mxu0 %v434
  %466 = vmatprep.subr.bf16.mxu0 0
  %467 = vmatpush2.bf16.msra.mxu0 0
  %468 = vmatprep.subr.bf16.mxu0 0
  %469 = vmatpush2.bf16.msra.mxu0 0
  %470 = vmatprep.subr.bf16.mxu0 0
  %471 = vmatpush2.bf16.msra.mxu0 0
  %472 = vmatprep.subr.bf16.mxu0 0
  %473 = vmatpush2.bf16.msra.mxu0 0
  %474 = vmatprep.subr.bf16.mxu0 0
  %475 = vmatpush2.bf16.msra.mxu0 0
  %476 = vmatprep.subr.bf16.mxu0 0
  %477 = vmatpush2.bf16.msra.mxu0 0
  %478 = vmatprep.subr.bf16.mxu0 0
  %479 = vmatpush2.bf16.msra.mxu0 0
  %480 = vmatprep.subr.bf16.mxu0 0
  %481 = vmatpush2.bf16.msra.mxu0 0
  %482 = vmatprep.mubr.bf16.mxu0 0
  %483 = vmatmul.mubr.bf16.gmra.mxu0 %v354
  %v484 = vpop.f32.mrf.mxu0
  %v485 = vadd.f32 0.0, %v484
  %v486 = vpop.f32.mrf.mxu0
  %v487 = vpop.f32.mrf.mxu0
  %v488 = vadd.f32 0.0, %v487
  %v489 = vpop.f32.mrf.mxu0
  %490 = vmatprep.mubr.bf16.mxu0 0
  %491 = vmatmul.mubr.bf16.gmra.mxu0 %v355
  %v492 = vpop.f32.mrf.mxu0
  %v493 = vadd.f32 0.0, %v492
  %v494 = vpop.f32.mrf.mxu0
  %v495 = vpop.f32.mrf.mxu0
  %v496 = vadd.f32 0.0, %v495
  %v497 = vpop.f32.mrf.mxu0
  %498 = vmatprep.mubr.bf16.mxu0 0
  %499 = vmatmul.mubr.bf16.gmra.mxu0 %v356
  %v500 = vpop.f32.mrf.mxu0
  %v501 = vadd.f32 0.0, %v500
  %v502 = vpop.f32.mrf.mxu0
  %v503 = vpop.f32.mrf.mxu0
  %v504 = vadd.f32 0.0, %v503
  %v505 = vpop.f32.mrf.mxu0
  %506 = vmatprep.mubr.bf16.mxu0 0
  %507 = vmatmul.mubr.bf16.gmra.mxu0 %v357
  %v508 = vpop.f32.mrf.mxu0
  %v509 = vadd.f32 0.0, %v508
  %v510 = vpop.f32.mrf.mxu0
  %v511 = vpop.f32.mrf.mxu0
  %v512 = vadd.f32 0.0, %v511
  %v513 = vpop.f32.mrf.mxu0
  %514 = vmatprep.mubr.bf16.mxu0 0
  %515 = vmatmul.mubr.bf16.gmra.mxu0 %v358
  %v516 = vpop.f32.mrf.mxu0
  %v517 = vadd.f32 0.0, %v516
  %v518 = vpop.f32.mrf.mxu0
  %v519 = vpop.f32.mrf.mxu0
  %v520 = vadd.f32 0.0, %v519
  %v521 = vpop.f32.mrf.mxu0
  %522 = vmatprep.mubr.bf16.mxu0 0
  %523 = vmatmul.mubr.bf16.gmra.mxu0 %v359
  %v524 = vpop.f32.mrf.mxu0
  %v525 = vadd.f32 0.0, %v524
  %v526 = vpop.f32.mrf.mxu0
  %v527 = vpop.f32.mrf.mxu0
  %v528 = vadd.f32 0.0, %v527
  %v529 = vpop.f32.mrf.mxu0
  %530 = vmatprep.mubr.bf16.mxu0 0
  %531 = vmatmul.mubr.bf16.gmra.mxu0 %v360
  %v532 = vpop.f32.mrf.mxu0
  %v533 = vadd.f32 0.0, %v532
  %v534 = vpop.f32.mrf.mxu0
  %v535 = vpop.f32.mrf.mxu0
  %v536 = vadd.f32 0.0, %v535
  %v537 = vpop.f32.mrf.mxu0
  %538 = vmatprep.mubr.bf16.mxu0 0
  %539 = vmatmul.mubr.bf16.gmra.mxu0 %v361
  %v540 = vpop.f32.mrf.mxu0
  %v541 = vadd.f32 0.0, %v540
  %v542 = vpop.f32.mrf.mxu0
  %v543 = vpop.f32.mrf.mxu0
  %v544 = vadd.f32 0.0, %v543
  %v545 = vpop.f32.mrf.mxu0
  %546 = vmatprep.mubr.bf16.mxu0 0
  %547 = vmatmul.mubr.bf16.gmra.mxu0 %v362
  %v548 = vpop.f32.mrf.mxu0
  %v549 = vadd.f32 0.0, %v548
  %v550 = vpop.f32.mrf.mxu0
  %v551 = vpop.f32.mrf.mxu0
  %v552 = vadd.f32 0.0, %v551
  %v553 = vpop.f32.mrf.mxu0
  %554 = vmatprep.mubr.bf16.mxu0 0
  %555 = vmatmul.mubr.bf16.gmra.mxu0 %v363
  %v556 = vpop.f32.mrf.mxu0
  %v557 = vadd.f32 0.0, %v556
  %v558 = vpop.f32.mrf.mxu0
  %v559 = vpop.f32.mrf.mxu0
  %v560 = vadd.f32 0.0, %v559
  %v561 = vpop.f32.mrf.mxu0
  %562 = vmatprep.mubr.bf16.mxu0 0
  %563 = vmatmul.mubr.bf16.gmra.mxu0 %v364
  %v564 = vpop.f32.mrf.mxu0
  %v565 = vadd.f32 0.0, %v564
  %v566 = vpop.f32.mrf.mxu0
  %v567 = vpop.f32.mrf.mxu0
  %v568 = vadd.f32 0.0, %v567
  %v569 = vpop.f32.mrf.mxu0
  %570 = vmatprep.mubr.bf16.mxu0 0
  %571 = vmatmul.mubr.bf16.gmra.mxu0 %v365
  %v572 = vpop.f32.mrf.mxu0
  %v573 = vadd.f32 0.0, %v572
  %v574 = vpop.f32.mrf.mxu0
  %v575 = vpop.f32.mrf.mxu0
  %v576 = vadd.f32 0.0, %v575
  %v577 = vpop.f32.mrf.mxu0
  %578 = vmatprep.mubr.bf16.mxu0 0
  %579 = vmatmul.mubr.bf16.gmra.mxu0 %v366
  %v580 = vpop.f32.mrf.mxu0
  %v581 = vadd.f32 0.0, %v580
  %v582 = vpop.f32.mrf.mxu0
  %v583 = vpop.f32.mrf.mxu0
  %v584 = vadd.f32 0.0, %v583
  %v585 = vpop.f32.mrf.mxu0
  %586 = vmatprep.mubr.bf16.mxu0 0
  %587 = vmatmul.mubr.bf16.gmra.mxu0 %v367
  %v588 = vpop.f32.mrf.mxu0
  %v589 = vadd.f32 0.0, %v588
  %v590 = vpop.f32.mrf.mxu0
  %v591 = vpop.f32.mrf.mxu0
  %v592 = vadd.f32 0.0, %v591
  %v593 = vpop.f32.mrf.mxu0
  %594 = vmatprep.mubr.bf16.mxu0 0
  %595 = vmatmul.mubr.bf16.gmra.mxu0 %v368
  %v596 = vpop.f32.mrf.mxu0
  %v597 = vadd.f32 0.0, %v596
  %v598 = vpop.f32.mrf.mxu0
  %v599 = vpop.f32.mrf.mxu0
  %v600 = vadd.f32 0.0, %v599
  %v601 = vpop.f32.mrf.mxu0
  %602 = vmatprep.mubr.bf16.mxu0 0
  %603 = vmatmul.mubr.bf16.gmra.mxu0 %v369
  %v604 = vpop.f32.mrf.mxu0
  %v605 = vadd.f32 0.0, %v604
  %v606 = vpop.f32.mrf.mxu0
  %v607 = vpop.f32.mrf.mxu0
  %v608 = vadd.f32 0.0, %v607
  %v609 = vpop.f32.mrf.mxu0
  %610 = vmatprep.mubr.bf16.mxu0 0
  %611 = vmatmul.mubr.bf16.gmra.mxu0 %v370
  %v612 = vpop.f32.mrf.mxu0
  %v613 = vadd.f32 0.0, %v612
  %v614 = vpop.f32.mrf.mxu0
  %v615 = vpop.f32.mrf.mxu0
  %v616 = vadd.f32 0.0, %v615
  %v617 = vpop.f32.mrf.mxu0
  %618 = vmatprep.mubr.bf16.mxu0 0
  %619 = vmatmul.mubr.bf16.gmra.mxu0 %v371
  %v620 = vpop.f32.mrf.mxu0
  %v621 = vadd.f32 0.0, %v620
  %v622 = vpop.f32.mrf.mxu0
  %v623 = vpop.f32.mrf.mxu0
  %v624 = vadd.f32 0.0, %v623
  %v625 = vpop.f32.mrf.mxu0
  %626 = vmatprep.mubr.bf16.mxu0 0
  %627 = vmatmul.mubr.bf16.gmra.mxu0 %v372
  %v628 = vpop.f32.mrf.mxu0
  %v629 = vadd.f32 0.0, %v628
  %v630 = vpop.f32.mrf.mxu0
  %v631 = vpop.f32.mrf.mxu0
  %v632 = vadd.f32 0.0, %v631
  %v633 = vpop.f32.mrf.mxu0
  %634 = vmatprep.mubr.bf16.mxu0 0
  %635 = vmatmul.mubr.bf16.gmra.mxu0 %v373
  %v636 = vpop.f32.mrf.mxu0
  %v637 = vadd.f32 0.0, %v636
  %v638 = vpop.f32.mrf.mxu0
  %v639 = vpop.f32.mrf.mxu0
  %v640 = vadd.f32 0.0, %v639
  %v641 = vpop.f32.mrf.mxu0
  %642 = vmatprep.mubr.bf16.mxu0 0
  %643 = vmatmul.mubr.bf16.gmra.mxu0 %v374
  %v644 = vpop.f32.mrf.mxu0
  %v645 = vadd.f32 0.0, %v644
  %v646 = vpop.f32.mrf.mxu0
  %v647 = vpop.f32.mrf.mxu0
  %v648 = vadd.f32 0.0, %v647
  %v649 = vpop.f32.mrf.mxu0
  %650 = vmatprep.mubr.bf16.mxu0 0
  %651 = vmatmul.mubr.bf16.gmra.mxu0 %v375
  %v652 = vpop.f32.mrf.mxu0
  %v653 = vadd.f32 0.0, %v652
  %v654 = vpop.f32.mrf.mxu0
  %v655 = vpop.f32.mrf.mxu0
  %v656 = vadd.f32 0.0, %v655
  %v657 = vpop.f32.mrf.mxu0
  %658 = vmatprep.mubr.bf16.mxu0 0
  %659 = vmatmul.mubr.bf16.gmra.mxu0 %v376
  %v660 = vpop.f32.mrf.mxu0
  %v661 = vadd.f32 0.0, %v660
  %v662 = vpop.f32.mrf.mxu0
  %v663 = vpop.f32.mrf.mxu0
  %v664 = vadd.f32 0.0, %v663
  %v665 = vpop.f32.mrf.mxu0
  %666 = vmatprep.mubr.bf16.mxu0 0
  %667 = vmatmul.mubr.bf16.gmra.mxu0 %v377
  %v668 = vpop.f32.mrf.mxu0
  %v669 = vadd.f32 0.0, %v668
  %v670 = vpop.f32.mrf.mxu0
  %v671 = vpop.f32.mrf.mxu0
  %v672 = vadd.f32 0.0, %v671
  %v673 = vpop.f32.mrf.mxu0
  %674 = vmatprep.mubr.bf16.mxu0 0
  %675 = vmatmul.mubr.bf16.gmra.mxu0 %v378
  %v676 = vpop.f32.mrf.mxu0
  %v677 = vadd.f32 0.0, %v676
  %v678 = vpop.f32.mrf.mxu0
  %v679 = vpop.f32.mrf.mxu0
  %v680 = vadd.f32 0.0, %v679
  %v681 = vpop.f32.mrf.mxu0
  %682 = vmatprep.mubr.bf16.mxu0 0
  %683 = vmatmul.mubr.bf16.gmra.mxu0 %v379
  %v684 = vpop.f32.mrf.mxu0
  %v685 = vadd.f32 0.0, %v684
  %v686 = vpop.f32.mrf.mxu0
  %v687 = vpop.f32.mrf.mxu0
  %v688 = vadd.f32 0.0, %v687
  %v689 = vpop.f32.mrf.mxu0
  %690 = vmatprep.mubr.bf16.mxu0 0
  %691 = vmatmul.mubr.bf16.gmra.mxu0 %v380
  %v692 = vpop.f32.mrf.mxu0
  %v693 = vadd.f32 0.0, %v692
  %v694 = vpop.f32.mrf.mxu0
  %v695 = vpop.f32.mrf.mxu0
  %v696 = vadd.f32 0.0, %v695
  %v697 = vpop.f32.mrf.mxu0
  %698 = vmatprep.mubr.bf16.mxu0 0
  %699 = vmatmul.mubr.bf16.gmra.mxu0 %v381
  %v700 = vpop.f32.mrf.mxu0
  %v701 = vadd.f32 0.0, %v700
  %v702 = vpop.f32.mrf.mxu0
  %v703 = vpop.f32.mrf.mxu0
  %v704 = vadd.f32 0.0, %v703
  %v705 = vpop.f32.mrf.mxu0
  %706 = vmatprep.mubr.bf16.mxu0 0
  %707 = vmatmul.mubr.bf16.gmra.mxu0 %v382
  %v708 = vpop.f32.mrf.mxu0
  %v709 = vadd.f32 0.0, %v708
  %v710 = vpop.f32.mrf.mxu0
  %v711 = vpop.f32.mrf.mxu0
  %v712 = vadd.f32 0.0, %v711
  %v713 = vpop.f32.mrf.mxu0
  %714 = vmatprep.mubr.bf16.mxu0 0
  %715 = vmatmul.mubr.bf16.gmra.mxu0 %v383
  %v716 = vpop.f32.mrf.mxu0
  %v717 = vadd.f32 0.0, %v716
  %v718 = vpop.f32.mrf.mxu0
  %v719 = vpop.f32.mrf.mxu0
  %v720 = vadd.f32 0.0, %v719
  %v721 = vpop.f32.mrf.mxu0
  %722 = vmatprep.mubr.bf16.mxu0 0
  %723 = vmatmul.mubr.bf16.gmra.mxu0 %v384
  %v724 = vpop.f32.mrf.mxu0
  %v725 = vadd.f32 0.0, %v724
  %v726 = vpop.f32.mrf.mxu0
  %v727 = vpop.f32.mrf.mxu0
  %v728 = vadd.f32 0.0, %v727
  %v729 = vpop.f32.mrf.mxu0
  %730 = vmatprep.mubr.bf16.mxu0 0
  %731 = vmatmul.mubr.bf16.gmra.mxu0 %v385
  %v732 = vpop.f32.mrf.mxu0
  %v733 = vadd.f32 0.0, %v732
  %v734 = vpop.f32.mrf.mxu0
  %v735 = vpop.f32.mrf.mxu0
  %v736 = vadd.f32 0.0, %v735
  %v737 = vpop.f32.mrf.mxu0
  %738 = vdwg.mxu0
  %v739 = vpack.c.bf16 %v488, %v485
  %v740 = vpack.c.bf16 %v496, %v493
  %v741 = vpack.c.bf16 %v504, %v501
  %v742 = vpack.c.bf16 %v512, %v509
  %v743 = vpack.c.bf16 %v520, %v517
  %v744 = vpack.c.bf16 %v528, %v525
  %v745 = vpack.c.bf16 %v536, %v533
  %v746 = vpack.c.bf16 %v544, %v541
  %v747 = vpack.c.bf16 %v552, %v549
  %v748 = vpack.c.bf16 %v560, %v557
  %v749 = vpack.c.bf16 %v568, %v565
  %v750 = vpack.c.bf16 %v576, %v573
  %v751 = vpack.c.bf16 %v584, %v581
  %v752 = vpack.c.bf16 %v592, %v589
  %v753 = vpack.c.bf16 %v600, %v597
  %v754 = vpack.c.bf16 %v608, %v605
  %v755 = vpack.c.bf16 %v616, %v613
  %v756 = vpack.c.bf16 %v624, %v621
  %v757 = vpack.c.bf16 %v632, %v629
  %v758 = vpack.c.bf16 %v640, %v637
  %v759 = vpack.c.bf16 %v648, %v645
  %v760 = vpack.c.bf16 %v656, %v653
  %v761 = vpack.c.bf16 %v664, %v661
  %v762 = vpack.c.bf16 %v672, %v669
  %v763 = vpack.c.bf16 %v680, %v677
  %v764 = vpack.c.bf16 %v688, %v685
  %v765 = vpack.c.bf16 %v696, %v693
  %v766 = vpack.c.bf16 %v704, %v701
  %v767 = vpack.c.bf16 %v712, %v709
  %v768 = vpack.c.bf16 %v720, %v717
  %v769 = vpack.c.bf16 %v728, %v725
  %v770 = vpack.c.bf16 %v736, %v733
  %v803 = vunpack.c.l.b16 %v739
  %v804 = vunpack.c.h.b16 %v739
  %v805 = vunpack.c.l.b16 %v740
  %v806 = vunpack.c.h.b16 %v740
  %v807 = vunpack.c.l.b16 %v741
  %v808 = vunpack.c.h.b16 %v741
  %v809 = vunpack.c.l.b16 %v742
  %v810 = vunpack.c.h.b16 %v742
  %v811 = vunpack.c.l.b16 %v743
  %v812 = vunpack.c.h.b16 %v743
  %v813 = vunpack.c.l.b16 %v744
  %v814 = vunpack.c.h.b16 %v744
  %v815 = vunpack.c.l.b16 %v745
  %v816 = vunpack.c.h.b16 %v745
  %v817 = vunpack.c.l.b16 %v746
  %v818 = vunpack.c.h.b16 %v746
  %v819 = vunpack.c.l.b16 %v747
  %v820 = vunpack.c.h.b16 %v747
  %v821 = vunpack.c.l.b16 %v748
  %v822 = vunpack.c.h.b16 %v748
  %v823 = vunpack.c.l.b16 %v749
  %v824 = vunpack.c.h.b16 %v749
  %v825 = vunpack.c.l.b16 %v750
  %v826 = vunpack.c.h.b16 %v750
  %v827 = vunpack.c.l.b16 %v751
  %v828 = vunpack.c.h.b16 %v751
  %v829 = vunpack.c.l.b16 %v752
  %v830 = vunpack.c.h.b16 %v752
  %v831 = vunpack.c.l.b16 %v753
  %v832 = vunpack.c.h.b16 %v753
  %v833 = vunpack.c.l.b16 %v754
  %v834 = vunpack.c.h.b16 %v754
  %v835 = vunpack.c.l.b16 %v755
  %v836 = vunpack.c.h.b16 %v755
  %v837 = vunpack.c.l.b16 %v756
  %v838 = vunpack.c.h.b16 %v756
  %v839 = vunpack.c.l.b16 %v757
  %v840 = vunpack.c.h.b16 %v757
  %v841 = vunpack.c.l.b16 %v758
  %v842 = vunpack.c.h.b16 %v758
  %v843 = vunpack.c.l.b16 %v759
  %v844 = vunpack.c.h.b16 %v759
  %v845 = vunpack.c.l.b16 %v760
  %v846 = vunpack.c.h.b16 %v760
  %v847 = vunpack.c.l.b16 %v761
  %v848 = vunpack.c.h.b16 %v761
  %v849 = vunpack.c.l.b16 %v762
  %v850 = vunpack.c.h.b16 %v762
  %v851 = vunpack.c.l.b16 %v763
  %v852 = vunpack.c.h.b16 %v763
  %v853 = vunpack.c.l.b16 %v764
  %v854 = vunpack.c.h.b16 %v764
  %v855 = vunpack.c.l.b16 %v765
  %v856 = vunpack.c.h.b16 %v765
  %v857 = vunpack.c.l.b16 %v766
  %v858 = vunpack.c.h.b16 %v766
  %v859 = vunpack.c.l.b16 %v767
  %v860 = vunpack.c.h.b16 %v767
  %v861 = vunpack.c.l.b16 %v768
  %v862 = vunpack.c.h.b16 %v768
  %v863 = vunpack.c.l.b16 %v769
  %v864 = vunpack.c.h.b16 %v769
  %v865 = vunpack.c.l.b16 %v770
  %v866 = vunpack.c.h.b16 %v770
  %v867 = vpack.c.b16 %v803, %v803
  %v868 = vpack.c.b16 %v804, %v804
  %v869 = vpack.c.b16 %v805, %v805
  %v870 = vpack.c.b16 %v806, %v806
  %v871 = vpack.c.b16 %v807, %v807
  %v872 = vpack.c.b16 %v808, %v808
  %v873 = vpack.c.b16 %v809, %v809
  %v874 = vpack.c.b16 %v810, %v810
  %v875 = vpack.c.b16 %v811, %v811
  %v876 = vpack.c.b16 %v812, %v812
  %v877 = vpack.c.b16 %v813, %v813
  %v878 = vpack.c.b16 %v814, %v814
  %v879 = vpack.c.b16 %v815, %v815
  %v880 = vpack.c.b16 %v816, %v816
  %v881 = vpack.c.b16 %v817, %v817
  %v882 = vpack.c.b16 %v818, %v818
  %v883 = vpack.c.b16 %v819, %v819
  %v884 = vpack.c.b16 %v820, %v820
  %v885 = vpack.c.b16 %v821, %v821
  %v886 = vpack.c.b16 %v822, %v822
  %v887 = vpack.c.b16 %v823, %v823
  %v888 = vpack.c.b16 %v824, %v824
  %v889 = vpack.c.b16 %v825, %v825
  %v890 = vpack.c.b16 %v826, %v826
  %v891 = vpack.c.b16 %v827, %v827
  %v892 = vpack.c.b16 %v828, %v828
  %v893 = vpack.c.b16 %v829, %v829
  %v894 = vpack.c.b16 %v830, %v830
  %v895 = vpack.c.b16 %v831, %v831
  %v896 = vpack.c.b16 %v832, %v832
  %v897 = vpack.c.b16 %v833, %v833
  %v898 = vpack.c.b16 %v834, %v834
  %v899 = vpack.c.b16 %v835, %v835
  %v900 = vpack.c.b16 %v836, %v836
  %v901 = vpack.c.b16 %v837, %v837
  %v902 = vpack.c.b16 %v838, %v838
  %v903 = vpack.c.b16 %v839, %v839
  %v904 = vpack.c.b16 %v840, %v840
  %v905 = vpack.c.b16 %v841, %v841
  %v906 = vpack.c.b16 %v842, %v842
  %v907 = vpack.c.b16 %v843, %v843
  %v908 = vpack.c.b16 %v844, %v844
  %v909 = vpack.c.b16 %v845, %v845
  %v910 = vpack.c.b16 %v846, %v846
  %v911 = vpack.c.b16 %v847, %v847
  %v912 = vpack.c.b16 %v848, %v848
  %v913 = vpack.c.b16 %v849, %v849
  %v914 = vpack.c.b16 %v850, %v850
  %v915 = vpack.c.b16 %v851, %v851
  %v916 = vpack.c.b16 %v852, %v852
  %v917 = vpack.c.b16 %v853, %v853
  %v918 = vpack.c.b16 %v854, %v854
  %v919 = vpack.c.b16 %v855, %v855
  %v920 = vpack.c.b16 %v856, %v856
  %v921 = vpack.c.b16 %v857, %v857
  %v922 = vpack.c.b16 %v858, %v858
  %v923 = vpack.c.b16 %v859, %v859
  %v924 = vpack.c.b16 %v860, %v860
  %v925 = vpack.c.b16 %v861, %v861
  %v926 = vpack.c.b16 %v862, %v862
  %v927 = vpack.c.b16 %v863, %v863
  %v928 = vpack.c.b16 %v864, %v864
  %v929 = vpack.c.b16 %v865, %v865
  %v930 = vpack.c.b16 %v866, %v866
  %995 = vst [vmem:[%s4] sm:$0xf] %v867
  %996 = vst [vmem:[%s4 + $0x4] sm:$0xf] %v868
  %997 = vst [vmem:[%s4 + $0x8] sm:$0xf] %v869
  %998 = vst [vmem:[%s4 + $0xc] sm:$0xf] %v870
  %999 = vst [vmem:[%s4 + $0x10] sm:$0xf] %v871
  %1000 = vst [vmem:[%s4 + $0x14] sm:$0xf] %v872
  %1001 = vst [vmem:[%s4 + $0x18] sm:$0xf] %v873
  %1002 = vst [vmem:[%s4 + $0x1c] sm:$0xf] %v874
  %1003 = vst [vmem:[%s4 + $0x20] sm:$0xf] %v875
  %1004 = vst [vmem:[%s4 + $0x24] sm:$0xf] %v876
  %1005 = vst [vmem:[%s4 + $0x28] sm:$0xf] %v877
  %1006 = vst [vmem:[%s4 + $0x2c] sm:$0xf] %v878
  %1007 = vst [vmem:[%s4 + $0x30] sm:$0xf] %v879
  %1008 = vst [vmem:[%s4 + $0x34] sm:$0xf] %v880
  %1009 = vst [vmem:[%s4 + $0x38] sm:$0xf] %v881
  %1010 = vst [vmem:[%s4 + $0x3c] sm:$0xf] %v882
  %1011 = vst [vmem:[%s4 + $0x40] sm:$0xf] %v883
  %1012 = vst [vmem:[%s4 + $0x44] sm:$0xf] %v884
  %1013 = vst [vmem:[%s4 + $0x48] sm:$0xf] %v885
  %1014 = vst [vmem:[%s4 + $0x4c] sm:$0xf] %v886
  %1015 = vst [vmem:[%s4 + $0x50] sm:$0xf] %v887
  %1016 = vst [vmem:[%s4 + $0x54] sm:$0xf] %v888
  %1017 = vst [vmem:[%s4 + $0x58] sm:$0xf] %v889
  %1018 = vst [vmem:[%s4 + $0x5c] sm:$0xf] %v890
  %1019 = vst [vmem:[%s4 + $0x60] sm:$0xf] %v891
  %1020 = vst [vmem:[%s4 + $0x64] sm:$0xf] %v892
  %1021 = vst [vmem:[%s4 + $0x68] sm:$0xf] %v893
  %1022 = vst [vmem:[%s4 + $0x6c] sm:$0xf] %v894
  %1023 = vst [vmem:[%s4 + $0x70] sm:$0xf] %v895
  %1024 = vst [vmem:[%s4 + $0x74] sm:$0xf] %v896
  %1025 = vst [vmem:[%s4 + $0x78] sm:$0xf] %v897
  %1026 = vst [vmem:[%s4 + $0x7c] sm:$0xf] %v898
  %1027 = vst [vmem:[%s4 + $0x80] sm:$0xf] %v899
  %1028 = vst [vmem:[%s4 + $0x84] sm:$0xf] %v900
  %1029 = vst [vmem:[%s4 + $0x88] sm:$0xf] %v901
  %1030 = vst [vmem:[%s4 + $0x8c] sm:$0xf] %v902
  %1031 = vst [vmem:[%s4 + $0x90] sm:$0xf] %v903
  %1032 = vst [vmem:[%s4 + $0x94] sm:$0xf] %v904
  %1033 = vst [vmem:[%s4 + $0x98] sm:$0xf] %v905
  %1034 = vst [vmem:[%s4 + $0x9c] sm:$0xf] %v906
  %1035 = vst [vmem:[%s4 + $0xa0] sm:$0xf] %v907
  %1036 = vst [vmem:[%s4 + $0xa4] sm:$0xf] %v908
  %1037 = vst [vmem:[%s4 + $0xa8] sm:$0xf] %v909
  %1038 = vst [vmem:[%s4 + $0xac] sm:$0xf] %v910
  %1039 = vst [vmem:[%s4 + $0xb0] sm:$0xf] %v911
  %1040 = vst [vmem:[%s4 + $0xb4] sm:$0xf] %v912
  %1041 = vst [vmem:[%s4 + $0xb8] sm:$0xf] %v913
  %1042 = vst [vmem:[%s4 + $0xbc] sm:$0xf] %v914
  %1043 = vst [vmem:[%s4 + $0xc0] sm:$0xf] %v915
  %1044 = vst [vmem:[%s4 + $0xc4] sm:$0xf] %v916
  %1045 = vst [vmem:[%s4 + $0xc8] sm:$0xf] %v917
  %1046 = vst [vmem:[%s4 + $0xcc] sm:$0xf] %v918
  %1047 = vst [vmem:[%s4 + $0xd0] sm:$0xf] %v919
  %1048 = vst [vmem:[%s4 + $0xd4] sm:$0xf] %v920
  %1049 = vst [vmem:[%s4 + $0xd8] sm:$0xf] %v921
  %1050 = vst [vmem:[%s4 + $0xdc] sm:$0xf] %v922
  %1051 = vst [vmem:[%s4 + $0xe0] sm:$0xf] %v923
  %1052 = vst [vmem:[%s4 + $0xe4] sm:$0xf] %v924
  %1053 = vst [vmem:[%s4 + $0xe8] sm:$0xf] %v925
  %1054 = vst [vmem:[%s4 + $0xec] sm:$0xf] %v926
  %1055 = vst [vmem:[%s4 + $0xf0] sm:$0xf] %v927
  %1056 = vst [vmem:[%s4 + $0xf4] sm:$0xf] %v928
  %1057 = vst [vmem:[%s4 + $0xf8] sm:$0xf] %v929
  %1058 = vst [vmem:[%s4 + $0xfc] sm:$0xf] %v930
  %v1059 = vadd.f32 %v485, %v488
  %v1060 = vadd.f32 %v1059, %v493
  %v1061 = vadd.f32 %v1060, %v496
  %v1062 = vadd.f32 %v1061, %v501
  %v1063 = vadd.f32 %v1062, %v504
  %v1064 = vadd.f32 %v1063, %v509
  %v1065 = vadd.f32 %v1064, %v512
  %v1066 = vadd.f32 %v1065, %v517
  %v1067 = vadd.f32 %v1066, %v520
  %v1068 = vadd.f32 %v1067, %v525
  %v1069 = vadd.f32 %v1068, %v528
  %v1070 = vadd.f32 %v1069, %v533
  %v1071 = vadd.f32 %v1070, %v536
  %v1072 = vadd.f32 %v1071, %v541
  %v1073 = vadd.f32 %v1072, %v544
  %v1074 = vadd.f32 %v1073, %v549
  %v1075 = vadd.f32 %v1074, %v552
  %v1076 = vadd.f32 %v1075, %v557
  %v1077 = vadd.f32 %v1076, %v560
  %v1078 = vadd.f32 %v1077, %v565
  %v1079 = vadd.f32 %v1078, %v568
  %v1080 = vadd.f32 %v1079, %v573
  %v1081 = vadd.f32 %v1080, %v576
  %v1082 = vadd.f32 %v1081, %v581
  %v1083 = vadd.f32 %v1082, %v584
  %v1084 = vadd.f32 %v1083, %v589
  %v1085 = vadd.f32 %v1084, %v592
  %v1086 = vadd.f32 %v1085, %v597
  %v1087 = vadd.f32 %v1086, %v600
  %v1088 = vadd.f32 %v1087, %v605
  %v1089 = vadd.f32 %v1088, %v608
  %v1090 = vadd.f32 %v1089, %v613
  %v1091 = vadd.f32 %v1090, %v616
  %v1092 = vadd.f32 %v1091, %v621
  %v1093 = vadd.f32 %v1092, %v624
  %v1094 = vadd.f32 %v1093, %v629
  %v1095 = vadd.f32 %v1094, %v632
  %v1096 = vadd.f32 %v1095, %v637
  %v1097 = vadd.f32 %v1096, %v640
  %v1098 = vadd.f32 %v1097, %v645
  %v1099 = vadd.f32 %v1098, %v648
  %v1100 = vadd.f32 %v1099, %v653
  %v1101 = vadd.f32 %v1100, %v656
  %v1102 = vadd.f32 %v1101, %v661
  %v1103 = vadd.f32 %v1102, %v664
  %v1104 = vadd.f32 %v1103, %v669
  %v1105 = vadd.f32 %v1104, %v672
  %v1106 = vadd.f32 %v1105, %v677
  %v1107 = vadd.f32 %v1106, %v680
  %v1108 = vadd.f32 %v1107, %v685
  %v1109 = vadd.f32 %v1108, %v688
  %v1110 = vadd.f32 %v1109, %v693
  %v1111 = vadd.f32 %v1110, %v696
  %v1112 = vadd.f32 %v1111, %v701
  %v1113 = vadd.f32 %v1112, %v704
  %v1114 = vadd.f32 %v1113, %v709
  %v1115 = vadd.f32 %v1114, %v712
  %v1116 = vadd.f32 %v1115, %v717
  %v1117 = vadd.f32 %v1116, %v720
  %v1118 = vadd.f32 %v1117, %v725
  %v1119 = vadd.f32 %v1118, %v728
  %v1120 = vadd.f32 %v1119, %v733
  %v1121 = vadd.f32 %v1120, %v736
  %v1122 = vrot.slane %v1121, 4
  %v1123 = vadd.f32 %v1121, %v1122
  %v1124 = vrot.slane %v1123, 2
  %v1125 = vadd.f32 %v1123, %v1124
  %v1126 = vrot.slane %v1125, 1
  %v1127 = vadd.f32 %v1125, %v1126
  %v1128 = vmul.f32 %v485, %v485
  %v1129 = vmul.f32 %v488, %v488
  %v1130 = vmul.f32 %v493, %v493
  %v1131 = vmul.f32 %v496, %v496
  %v1132 = vmul.f32 %v501, %v501
  %v1133 = vmul.f32 %v504, %v504
  %v1134 = vmul.f32 %v509, %v509
  %v1135 = vmul.f32 %v512, %v512
  %v1136 = vmul.f32 %v517, %v517
  %v1137 = vmul.f32 %v520, %v520
  %v1138 = vmul.f32 %v525, %v525
  %v1139 = vmul.f32 %v528, %v528
  %v1140 = vmul.f32 %v533, %v533
  %v1141 = vmul.f32 %v536, %v536
  %v1142 = vmul.f32 %v541, %v541
  %v1143 = vmul.f32 %v544, %v544
  %v1144 = vmul.f32 %v549, %v549
  %v1145 = vmul.f32 %v552, %v552
  %v1146 = vmul.f32 %v557, %v557
  %v1147 = vmul.f32 %v560, %v560
  %v1148 = vmul.f32 %v565, %v565
  %v1149 = vmul.f32 %v568, %v568
  %v1150 = vmul.f32 %v573, %v573
  %v1151 = vmul.f32 %v576, %v576
  %v1152 = vmul.f32 %v581, %v581
  %v1153 = vmul.f32 %v584, %v584
  %v1154 = vmul.f32 %v589, %v589
  %v1155 = vmul.f32 %v592, %v592
  %v1156 = vmul.f32 %v597, %v597
  %v1157 = vmul.f32 %v600, %v600
  %v1158 = vmul.f32 %v605, %v605
  %v1159 = vmul.f32 %v608, %v608
  %v1160 = vmul.f32 %v613, %v613
  %v1161 = vmul.f32 %v616, %v616
  %v1162 = vmul.f32 %v621, %v621
  %v1163 = vmul.f32 %v624, %v624
  %v1164 = vmul.f32 %v629, %v629
  %v1165 = vmul.f32 %v632, %v632
  %v1166 = vmul.f32 %v637, %v637
  %v1167 = vmul.f32 %v640, %v640
  %v1168 = vmul.f32 %v645, %v645
  %v1169 = vmul.f32 %v648, %v648
  %v1170 = vmul.f32 %v653, %v653
  %v1171 = vmul.f32 %v656, %v656
  %v1172 = vmul.f32 %v661, %v661
  %v1173 = vmul.f32 %v664, %v664
  %v1174 = vmul.f32 %v669, %v669
  %v1175 = vmul.f32 %v672, %v672
  %v1176 = vmul.f32 %v677, %v677
  %v1177 = vmul.f32 %v680, %v680
  %v1178 = vmul.f32 %v685, %v685
  %v1179 = vmul.f32 %v688, %v688
  %v1180 = vmul.f32 %v693, %v693
  %v1181 = vmul.f32 %v696, %v696
  %v1182 = vmul.f32 %v701, %v701
  %v1183 = vmul.f32 %v704, %v704
  %v1184 = vmul.f32 %v709, %v709
  %v1185 = vmul.f32 %v712, %v712
  %v1186 = vmul.f32 %v717, %v717
  %v1187 = vmul.f32 %v720, %v720
  %v1188 = vmul.f32 %v725, %v725
  %v1189 = vmul.f32 %v728, %v728
  %v1190 = vmul.f32 %v733, %v733
  %v1191 = vmul.f32 %v736, %v736
  %v1192 = vadd.f32 %v1128, %v1129
  %v1193 = vadd.f32 %v1192, %v1130
  %v1194 = vadd.f32 %v1193, %v1131
  %v1195 = vadd.f32 %v1194, %v1132
  %v1196 = vadd.f32 %v1195, %v1133
  %v1197 = vadd.f32 %v1196, %v1134
  %v1198 = vadd.f32 %v1197, %v1135
  %v1199 = vadd.f32 %v1198, %v1136
  %v1200 = vadd.f32 %v1199, %v1137
  %v1201 = vadd.f32 %v1200, %v1138
  %v1202 = vadd.f32 %v1201, %v1139
  %v1203 = vadd.f32 %v1202, %v1140
  %v1204 = vadd.f32 %v1203, %v1141
  %v1205 = vadd.f32 %v1204, %v1142
  %v1206 = vadd.f32 %v1205, %v1143
  %v1207 = vadd.f32 %v1206, %v1144
  %v1208 = vadd.f32 %v1207, %v1145
  %v1209 = vadd.f32 %v1208, %v1146
  %v1210 = vadd.f32 %v1209, %v1147
  %v1211 = vadd.f32 %v1210, %v1148
  %v1212 = vadd.f32 %v1211, %v1149
  %v1213 = vadd.f32 %v1212, %v1150
  %v1214 = vadd.f32 %v1213, %v1151
  %v1215 = vadd.f32 %v1214, %v1152
  %v1216 = vadd.f32 %v1215, %v1153
  %v1217 = vadd.f32 %v1216, %v1154
  %v1218 = vadd.f32 %v1217, %v1155
  %v1219 = vadd.f32 %v1218, %v1156
  %v1220 = vadd.f32 %v1219, %v1157
  %v1221 = vadd.f32 %v1220, %v1158
  %v1222 = vadd.f32 %v1221, %v1159
  %v1223 = vadd.f32 %v1222, %v1160
  %v1224 = vadd.f32 %v1223, %v1161
  %v1225 = vadd.f32 %v1224, %v1162
  %v1226 = vadd.f32 %v1225, %v1163
  %v1227 = vadd.f32 %v1226, %v1164
  %v1228 = vadd.f32 %v1227, %v1165
  %v1229 = vadd.f32 %v1228, %v1166
  %v1230 = vadd.f32 %v1229, %v1167
  %v1231 = vadd.f32 %v1230, %v1168
  %v1232 = vadd.f32 %v1231, %v1169
  %v1233 = vadd.f32 %v1232, %v1170
  %v1234 = vadd.f32 %v1233, %v1171
  %v1235 = vadd.f32 %v1234, %v1172
  %v1236 = vadd.f32 %v1235, %v1173
  %v1237 = vadd.f32 %v1236, %v1174
  %v1238 = vadd.f32 %v1237, %v1175
  %v1239 = vadd.f32 %v1238, %v1176
  %v1240 = vadd.f32 %v1239, %v1177
  %v1241 = vadd.f32 %v1240, %v1178
  %v1242 = vadd.f32 %v1241, %v1179
  %v1243 = vadd.f32 %v1242, %v1180
  %v1244 = vadd.f32 %v1243, %v1181
  %v1245 = vadd.f32 %v1244, %v1182
  %v1246 = vadd.f32 %v1245, %v1183
  %v1247 = vadd.f32 %v1246, %v1184
  %v1248 = vadd.f32 %v1247, %v1185
  %v1249 = vadd.f32 %v1248, %v1186
  %v1250 = vadd.f32 %v1249, %v1187
  %v1251 = vadd.f32 %v1250, %v1188
  %v1252 = vadd.f32 %v1251, %v1189
  %v1253 = vadd.f32 %v1252, %v1190
  %v1254 = vadd.f32 %v1253, %v1191
  %v1255 = vrot.slane %v1254, 4
  %v1256 = vadd.f32 %v1254, %v1255
  %v1257 = vrot.slane %v1256, 2
  %v1258 = vadd.f32 %v1256, %v1257
  %v1259 = vrot.slane %v1258, 1
  %v1260 = vadd.f32 %v1258, %v1259
  %vm1261 = vcmask 1040384
  %v1262 = vsel %vm1261, %v1127, %v1260
  %1263 = vst [vmem:[%s5] sm:$0x3] %v1262
  // Predicated region
  $region18: #{bottleneck_forward.6} parent=0 // pred_check
    _
  $region19: #{bottleneck_forward.6} parent=0 // pred_check_branch
    %1265 = sbr.rel (0) target = $region21
  $region20: #{bottleneck_forward.6} parent=0 // pred_region
    _
  $region21: #{bottleneck_forward.6} parent=0 // pred_fallthru
    _
  // Predicated region
  $region22: #{bottleneck_forward.6} parent=0 // pred_check
    _
  $region23: #{bottleneck_forward.6} parent=0 // pred_check_branch
    %1267 = sbr.rel (0) target = $region25
  $region24: #{bottleneck_forward.6} parent=0 // pred_region
    _
  $region25: #{bottleneck_forward.6} parent=0 // pred_fallthru
    _
  // Predicated region
  $region26: #{bottleneck_forward.6} parent=0 // pred_check
    _
  $region27: #{bottleneck_forward.6} parent=0 // pred_check_branch
    %1269 = sbr.rel (0) target = $region29
  $region28: #{bottleneck_forward.6} parent=0 // pred_region
    _
  $region29: #{bottleneck_forward.6} parent=0 // pred_fallthru
    _
  // Predicated region
  $region30: #{bottleneck_forward.6} parent=0 // pred_check
    _
  $region31: #{bottleneck_forward.6} parent=0 // pred_check_branch
    %1271 = sbr.rel (0) target = $region33
  $region32: #{bottleneck_forward.6} parent=0 // pred_region
    _
  $region33: #{bottleneck_forward.6} parent=0 // pred_fallthru
    _

// kernel: bottleneck_forward.5
$region0: #{bottleneck_forward.5}
  #allocation0 [shape = 'u32[]', space=smem, size = 0x4, offset = 0x4, fixed_abs, tag = 'smem constant byte address 0x4 - core index']
  #allocation1 [shape = 'u32[144,128]{1,0:T(1,128)}', space=vmem, size = 0x12000, scoped, tag = 'internal scratch']
  #allocation2 [shape = 'bf16[288,384]{1,0:T(8,128)(2,1)}', space=vmem, size = 0x36000, scoped, tag = 'scratch operand']
  %s0 = inlined_call_operand.vmem [shape: bf16[2,256,128], index: 0, kind: input, shape index: {}]
  %s1 = inlined_call_operand.vmem [shape: f32[1,128], index: 1, kind: input, shape index: {}]
  %s2 = inlined_call_operand.vmem [shape: f32[1,128], index: 2, kind: input, shape index: {}]
  %s3 = inlined_call_operand.vmem [shape: bf16[3,384,128], index: 3, kind: input, shape index: {}]
  %s4 = inlined_call_operand.vmem [shape: bf16[2,256,128], index: 4, kind: output, shape index: {0}]
  %s5 = inlined_call_operand.vmem [shape: f32[2,2,128], index: 5, kind: output, shape index: {1}]
  %6 = xla_tuple %s4, %s5
  %s7 = sld [smem:[#allocation0]]
  $region57: #{bottleneck_forward.5} parent=0
    _
  %s9 = ssub.s32 1, %s7
  %s10 = scalar_select 0, %s9, %s7
  loop: start=0, step=1, limit=4
  $region2: #{bottleneck_forward.5} parent=0 // loop_pre_header
    _
  $region3: #{bottleneck_forward.5} parent=0 // loop_header
    %s12 = sphi 0, %s16
    %p13 = scmp.ge.s32.totalorder %s12, 4
    %s22 = sphi 0, %s24
    %s25 = sphi 0, %s22
    %s26 = sphi 0, %s25
    %s42 = sphi 0, %s26
    %s46 = sphi 0, %s46
    %s48 = sphi 0, %s46
    %s49 = sphi 0, %s48
    %s63 = sphi 0, %s49
    %s67 = sphi 0, %s67
    %s69 = sphi 0, %s67
    %s70 = sphi 0, %s69
    %s84 = sphi 0, %s70
    %s88 = sphi 0, %s88
    %s90 = sphi 0, %s88
    %s91 = sphi 0, %s90
    %s105 = sphi 0, %s91
    %s111 = sphi 0, %s113
    %s114 = sphi 0, %s111
    %s115 = sphi 0, %s114
    %s131 = sphi 0, %s115
    %s137 = sphi 0, %s139
    %s140 = sphi 0, %s137
    %s141 = sphi 0, %s140
    %s157 = sphi 0, %s141
  $region4: #{bottleneck_forward.5} parent=0 // loop_header_branch
    %15 = sbr.rel (%p13) target = $region8
  $region5: #{bottleneck_forward.5} parent=0 // loop_body
    %s17 = ssub.s32 %s12, 1
    %s18 = ssub.s32 %s12, 2
    %s19 = sadd.s32 %s12, 1
    %s20 = ssub.s32 %s12, %s19
    %p21 = scmp.eq.s32.totalorder %s20, 0
    %s23 = sadd.s32 %s22, 1
    %s24 = scalar_select %p21, %s22, %s23
    %p27 = pneg %p21
    %p28 = scmp.eq.s32.totalorder %s12, 1
    %p29 = por %p27, %p28
    %p30 = scmp.ne.s32.totalorder %s22, %s25
    %p31 = scmp.eq.s32.totalorder %s12, 0
    %p32 = por %p30, %p31
    %p33 = scmp.ne.s32.totalorder %s22, %s25
    %p34 = scmp.eq.s32.totalorder %s17, 1
    %p35 = por %p33, %p34
    %p36 = scmp.ne.s32.totalorder %s25, %s26
    %p37 = scmp.eq.s32.totalorder %s17, 0
    %p38 = por %p36, %p37
    %p39 = scmp.ne.s32.totalorder %s25, %s26
    %p40 = scmp.eq.s32.totalorder %s18, 1
    %p41 = por %p39, %p40
    %p43 = scmp.ne.s32.totalorder %s26, %s42
    %p44 = scmp.eq.s32.totalorder %s18, 0
    %p45 = por %p43, %p44
    %s47 = sadd.s32 %s46, 1
    %p50 = scmp.eq.s32.totalorder %s12, 1
    %p51 = scmp.ne.s32.totalorder %s46, %s48
    %p52 = scmp.eq.s32.totalorder %s12, 0
    %p53 = por %p51, %p52
    %p54 = scmp.ne.s32.totalorder %s46, %s48
    %p55 = scmp.eq.s32.totalorder %s17, 1
    %p56 = por %p54, %p55
    %p57 = scmp.ne.s32.totalorder %s48, %s49
    %p58 = scmp.eq.s32.totalorder %s17, 0
    %p59 = por %p57, %p58
    %p60 = scmp.ne.s32.totalorder %s48, %s49
    %p61 = scmp.eq.s32.totalorder %s18, 1
    %p62 = por %p60, %p61
    %p64 = scmp.ne.s32.totalorder %s49, %s63
    %p65 = scmp.eq.s32.totalorder %s18, 0
    %p66 = por %p64, %p65
    %s68 = sadd.s32 %s67, 1
    %p71 = scmp.eq.s32.totalorder %s12, 1
    %p72 = scmp.ne.s32.totalorder %s67, %s69
    %p73 = scmp.eq.s32.totalorder %s12, 0
    %p74 = por %p72, %p73
    %p75 = scmp.ne.s32.totalorder %s67, %s69
    %p76 = scmp.eq.s32.totalorder %s17, 1
    %p77 = por %p75, %p76
    %p78 = scmp.ne.s32.totalorder %s69, %s70
    %p79 = scmp.eq.s32.totalorder %s17, 0
    %p80 = por %p78, %p79
    %p81 = scmp.ne.s32.totalorder %s69, %s70
    %p82 = scmp.eq.s32.totalorder %s18, 1
    %p83 = por %p81, %p82
    %p85 = scmp.ne.s32.totalorder %s70, %s84
    %p86 = scmp.eq.s32.totalorder %s18, 0
    %p87 = por %p85, %p86
    %s89 = sadd.s32 %s88, 1
    %p92 = scmp.eq.s32.totalorder %s12, 1
    %p93 = scmp.ne.s32.totalorder %s88, %s90
    %p94 = scmp.eq.s32.totalorder %s12, 0
    %p95 = por %p93, %p94
    %p96 = scmp.ne.s32.totalorder %s88, %s90
    %p97 = scmp.eq.s32.totalorder %s17, 1
    %p98 = por %p96, %p97
    %p99 = scmp.ne.s32.totalorder %s90, %s91
    %p100 = scmp.eq.s32.totalorder %s17, 0
    %p101 = por %p99, %p100
    %p102 = scmp.ne.s32.totalorder %s90, %s91
    %p103 = scmp.eq.s32.totalorder %s18, 1
    %p104 = por %p102, %p103
    %p106 = scmp.ne.s32.totalorder %s91, %s105
    %p107 = scmp.eq.s32.totalorder %s18, 0
    %p108 = por %p106, %p107
    %s109 = ssub.s32 %s12, %s19
    %p110 = scmp.eq.s32.totalorder %s109, 0
    %s112 = sadd.s32 %s111, 1
    %s113 = scalar_select %p110, %s111, %s112
    %p116 = pneg %p110
    %p117 = scmp.eq.s32.totalorder %s12, 1
    %p118 = por %p116, %p117
    %p119 = scmp.ne.s32.totalorder %s111, %s114
    %p120 = scmp.eq.s32.totalorder %s12, 0
    %p121 = por %p119, %p120
    %p122 = scmp.ne.s32.totalorder %s111, %s114
    %p123 = scmp.eq.s32.totalorder %s17, 1
    %p124 = por %p122, %p123
    %p125 = scmp.ne.s32.totalorder %s114, %s115
    %p126 = scmp.eq.s32.totalorder %s17, 0
    %p127 = por %p125, %p126
    %p128 = scmp.ne.s32.totalorder %s114, %s115
    %p129 = scmp.eq.s32.totalorder %s18, 1
    %p130 = por %p128, %p129
    %p132 = scmp.ne.s32.totalorder %s115, %s131
    %p133 = scmp.eq.s32.totalorder %s18, 0
    %p134 = por %p132, %p133
    %s135 = ssub.s32 %s12, %s19
    %p136 = scmp.eq.s32.totalorder %s135, 0
    %s138 = sadd.s32 %s137, 1
    %s139 = scalar_select %p136, %s137, %s138
    %p142 = pneg %p136
    %p143 = scmp.eq.s32.totalorder %s12, 1
    %p144 = por %p142, %p143
    %p145 = scmp.ne.s32.totalorder %s137, %s140
    %p146 = scmp.eq.s32.totalorder %s12, 0
    %p147 = por %p145, %p146
    %p148 = scmp.ne.s32.totalorder %s137, %s140
    %p149 = scmp.eq.s32.totalorder %s17, 1
    %p150 = por %p148, %p149
    %p151 = scmp.ne.s32.totalorder %s140, %s141
    %p152 = scmp.eq.s32.totalorder %s17, 0
    %p153 = por %p151, %p152
    %p154 = scmp.ne.s32.totalorder %s140, %s141
    %p155 = scmp.eq.s32.totalorder %s18, 1
    %p156 = por %p154, %p155
    %p158 = scmp.ne.s32.totalorder %s141, %s157
    %p159 = scmp.eq.s32.totalorder %s18, 0
    %p160 = por %p158, %p159
    %p161 = scmp.le.s32.totalorder 1, %s12
    %p162 = scmp.lt.s32.totalorder %s12, 3
    %p163 = pnand %p161, %p162
    %p164 = pneg %p163
    // Predicated region
    $region9: #{bottleneck_forward.5} parent=5 // pred_check
      _
    $region10: #{bottleneck_forward.5} parent=5 // pred_check_branch
      %166 = sbr.rel (%p163) target = $region12
    $region11: #{bottleneck_forward.5} parent=5 // pred_region
      %s167 = ssub.s32 %s12, 1
      // Predicated region
      $region13: #{bottleneck_forward.5} parent=11 // pred_check
        %p168 = pneg %p59
      $region14: #{bottleneck_forward.5} parent=11 // pred_check_branch
        %170 = sbr.rel (%p168) target = $region16
      $region15: #{bottleneck_forward.5} parent=11 // pred_region
        _
      $region16: #{bottleneck_forward.5} parent=11 // pred_fallthru
        _
      // Predicated region
      $region17: #{bottleneck_forward.5} parent=11 // pred_check
        %p171 = pneg %p80
      $region18: #{bottleneck_forward.5} parent=11 // pred_check_branch
        %173 = sbr.rel (%p171) target = $region20
      $region19: #{bottleneck_forward.5} parent=11 // pred_region
        _
      $region20: #{bottleneck_forward.5} parent=11 // pred_fallthru
        _
      // Predicated region
      $region21: #{bottleneck_forward.5} parent=11 // pred_check
        %p174 = pneg %p101
      $region22: #{bottleneck_forward.5} parent=11 // pred_check_branch
        %176 = sbr.rel (%p174) target = $region24
      $region23: #{bottleneck_forward.5} parent=11 // pred_region
        _
      $region24: #{bottleneck_forward.5} parent=11 // pred_fallthru
        _
    $region12: #{bottleneck_forward.5} parent=5 // pred_fallthru
      _
    %p177 = scmp.lt.s32.totalorder %s12, 2
    // Predicated region
    $region25: #{bottleneck_forward.5} parent=5 // pred_check
      %p178 = pneg %p177
    $region26: #{bottleneck_forward.5} parent=5 // pred_check_branch
      %180 = sbr.rel (%p178) target = $region28
    $region27: #{bottleneck_forward.5} parent=5 // pred_region
      // Predicated region
      $region29: #{bottleneck_forward.5} parent=27 // pred_check
        %p181 = pneg %p32
      $region30: #{bottleneck_forward.5} parent=27 // pred_check_branch
        %183 = sbr.rel (%p181) target = $region32
      $region31: #{bottleneck_forward.5} parent=27 // pred_region
        %p184 = scmp.lt.s32.totalorder %s12, 1
        %s185 = scalar_select %p184, %s12, 1
        %s186 = smul.addr %s185, 32
        %s187 = smul.addr %s186, 4
        %s188 = scalar_lea.vmem %s0, %s187
      $region32: #{bottleneck_forward.5} parent=27 // pred_fallthru
        _
    $region28: #{bottleneck_forward.5} parent=5 // pred_fallthru
      _
    %p189 = scmp.le.s32.totalorder 1, %s12
    %p190 = scmp.lt.s32.totalorder %s12, 3
    %p191 = pnand %p189, %p190
    %p192 = pneg %p191
    // Predicated region
    $region33: #{bottleneck_forward.5} parent=5 // pred_check
      _
    $region34: #{bottleneck_forward.5} parent=5 // pred_check_branch
      %194 = sbr.rel (%p191) target = $region36
    $region35: #{bottleneck_forward.5} parent=5 // pred_region
      %s195 = ssub.s32 %s12, 1
      %p196 = scmp.lt.s32.totalorder %s17, 1
      %s197 = scalar_select %p196, %s17, 1
      %s198 = smul.addr %s197, 32
      %s199 = smul.addr %s198, 4
      %s200 = scalar_lea.vmem %s0, %s199
      %p201 = pneg %p38
      %p202 = pneg %p35
      %p203 = pneg %p59
      %p204 = pneg %p56
      %p205 = pneg %p80
      %p206 = pneg %p77
      %p207 = pneg %p101
      %p208 = pneg %p98
      %p209 = pneg %p127
      %p210 = pneg %p124
      %p211 = scmp.lt.s32.totalorder %s17, 1
      %s212 = scalar_select %p211, %s17, 1
      %s213 = smul.addr %s212, 32
      %s214 = smul.addr %s213, 4
      %s215 = scalar_lea.vmem %s4, %s214
      %p216 = pneg %p153
      %p217 = pneg %p150
      %p218 = scmp.lt.s32.totalorder %s17, 1
      %s219 = scalar_select %p218, %s17, 1
      %s220 = smul.addr %s219, 2
      %s221 = scalar_lea.vmem %s5, %s220
      %p222 = scmp.lt.s32.totalorder %s17, 1
      %s223 = scalar_select %p222, %s17, 1
      %s224 = smul.addr %s223, 32
      %s225 = smul.addr %s224, 4
      %s226 = scalar_lea.vmem %s0, %s225
      %p227 = scmp.lt.s32.totalorder %s17, 1
      %s228 = scalar_select %p227, %s17, 1
      %s229 = smul.addr %s228, 32
      %s230 = smul.addr %s229, 4
      %s231 = scalar_lea.vmem %s4, %s230
      %p232 = scmp.lt.s32.totalorder %s17, 1
      %s233 = scalar_select %p232, %s17, 1
      %s234 = smul.addr %s233, 2
      %s235 = scalar_lea.vmem %s5, %s234
      %v237 = vld [vmem:[%s226] sm:$0xf]
      %v238 = vld [vmem:[%s226 + $0x4] sm:$0xf]
      %v239 = vld [vmem:[%s226 + $0x8] sm:$0xf]
      %v240 = vld [vmem:[%s226 + $0xc] sm:$0xf]
      %v241 = vld [vmem:[%s226 + $0x10] sm:$0xf]
      %v242 = vld [vmem:[%s226 + $0x14] sm:$0xf]
      %v243 = vld [vmem:[%s226 + $0x18] sm:$0xf]
      %v244 = vld [vmem:[%s226 + $0x1c] sm:$0xf]
      %v245 = vld [vmem:[%s226 + $0x20] sm:$0xf]
      %v246 = vld [vmem:[%s226 + $0x24] sm:$0xf]
      %v247 = vld [vmem:[%s226 + $0x28] sm:$0xf]
      %v248 = vld [vmem:[%s226 + $0x2c] sm:$0xf]
      %v249 = vld [vmem:[%s226 + $0x30] sm:$0xf]
      %v250 = vld [vmem:[%s226 + $0x34] sm:$0xf]
      %v251 = vld [vmem:[%s226 + $0x38] sm:$0xf]
      %v252 = vld [vmem:[%s226 + $0x3c] sm:$0xf]
      %v253 = vld [vmem:[%s226 + $0x40] sm:$0xf]
      %v254 = vld [vmem:[%s226 + $0x44] sm:$0xf]
      %v255 = vld [vmem:[%s226 + $0x48] sm:$0xf]
      %v256 = vld [vmem:[%s226 + $0x4c] sm:$0xf]
      %v257 = vld [vmem:[%s226 + $0x50] sm:$0xf]
      %v258 = vld [vmem:[%s226 + $0x54] sm:$0xf]
      %v259 = vld [vmem:[%s226 + $0x58] sm:$0xf]
      %v260 = vld [vmem:[%s226 + $0x5c] sm:$0xf]
      %v261 = vld [vmem:[%s226 + $0x60] sm:$0xf]
      %v262 = vld [vmem:[%s226 + $0x64] sm:$0xf]
      %v263 = vld [vmem:[%s226 + $0x68] sm:$0xf]
      %v264 = vld [vmem:[%s226 + $0x6c] sm:$0xf]
      %v265 = vld [vmem:[%s226 + $0x70] sm:$0xf]
      %v266 = vld [vmem:[%s226 + $0x74] sm:$0xf]
      %v267 = vld [vmem:[%s226 + $0x78] sm:$0xf]
      %v268 = vld [vmem:[%s226 + $0x7c] sm:$0xf]
      %v269 = vld [vmem:[%s1] sm:$0x1]
      %v270 = vunpack.c.l.bf16 %v237
      %v271 = vunpack.c.l.bf16 %v238
      %v272 = vunpack.c.l.bf16 %v239
      %v273 = vunpack.c.l.bf16 %v240
      %v274 = vunpack.c.l.bf16 %v241
      %v275 = vunpack.c.l.bf16 %v242
      %v276 = vunpack.c.l.bf16 %v243
      %v277 = vunpack.c.l.bf16 %v244
      %v278 = vunpack.c.l.bf16 %v245
      %v279 = vunpack.c.l.bf16 %v246
      %v280 = vunpack.c.l.bf16 %v247
      %v281 = vunpack.c.l.bf16 %v248
      %v282 = vunpack.c.l.bf16 %v249
      %v283 = vunpack.c.l.bf16 %v250
      %v284 = vunpack.c.l.bf16 %v251
      %v285 = vunpack.c.l.bf16 %v252
      %v286 = vunpack.c.l.bf16 %v253
      %v287 = vunpack.c.l.bf16 %v254
      %v288 = vunpack.c.l.bf16 %v255
      %v289 = vunpack.c.l.bf16 %v256
      %v290 = vunpack.c.l.bf16 %v257
      %v291 = vunpack.c.l.bf16 %v258
      %v292 = vunpack.c.l.bf16 %v259
      %v293 = vunpack.c.l.bf16 %v260
      %v294 = vunpack.c.l.bf16 %v261
      %v295 = vunpack.c.l.bf16 %v262
      %v296 = vunpack.c.l.bf16 %v263
      %v297 = vunpack.c.l.bf16 %v264
      %v298 = vunpack.c.l.bf16 %v265
      %v299 = vunpack.c.l.bf16 %v266
      %v300 = vunpack.c.l.bf16 %v267
      %v301 = vunpack.c.l.bf16 %v268
      %v303 = vlaneseq
      %v304 = vshrl.u32 %v303, 7
      %v305 = vsub.s32 0, %v304
      %v306 = vrot.slane %v269, %v305
      %v308 = vmul.f32 %v270, %v306
      %v309 = vmul.f32 %v271, %v306
      %v310 = vmul.f32 %v272, %v306
      %v311 = vmul.f32 %v273, %v306
      %v312 = vmul.f32 %v274, %v306
      %v313 = vmul.f32 %v275, %v306
      %v314 = vmul.f32 %v276, %v306
      %v315 = vmul.f32 %v277, %v306
      %v316 = vmul.f32 %v278, %v306
      %v317 = vmul.f32 %v279, %v306
      %v318 = vmul.f32 %v280, %v306
      %v319 = vmul.f32 %v281, %v306
      %v320 = vmul.f32 %v282, %v306
      %v321 = vmul.f32 %v283, %v306
      %v322 = vmul.f32 %v284, %v306
      %v323 = vmul.f32 %v285, %v306
      %v324 = vmul.f32 %v286, %v306
      %v325 = vmul.f32 %v287, %v306
      %v326 = vmul.f32 %v288, %v306
      %v327 = vmul.f32 %v289, %v306
      %v328 = vmul.f32 %v290, %v306
      %v329 = vmul.f32 %v291, %v306
      %v330 = vmul.f32 %v292, %v306
      %v331 = vmul.f32 %v293, %v306
      %v332 = vmul.f32 %v294, %v306
      %v333 = vmul.f32 %v295, %v306
      %v334 = vmul.f32 %v296, %v306
      %v335 = vmul.f32 %v297, %v306
      %v336 = vmul.f32 %v298, %v306
      %v337 = vmul.f32 %v299, %v306
      %v338 = vmul.f32 %v300, %v306
      %v339 = vmul.f32 %v301, %v306
      %v340 = vld [vmem:[%s2] sm:$0x1]
      %v342 = vlaneseq
      %v343 = vshrl.u32 %v342, 7
      %v344 = vsub.s32 0, %v343
      %v345 = vrot.slane %v340, %v344
      %v347 = vadd.f32 %v308, %v345
      %v348 = vadd.f32 %v309, %v345
      %v349 = vadd.f32 %v310, %v345
      %v350 = vadd.f32 %v311, %v345
      %v351 = vadd.f32 %v312, %v345
      %v352 = vadd.f32 %v313, %v345
      %v353 = vadd.f32 %v314, %v345
      %v354 = vadd.f32 %v315, %v345
      %v355 = vadd.f32 %v316, %v345
      %v356 = vadd.f32 %v317, %v345
      %v357 = vadd.f32 %v318, %v345
      %v358 = vadd.f32 %v319, %v345
      %v359 = vadd.f32 %v320, %v345
      %v360 = vadd.f32 %v321, %v345
      %v361 = vadd.f32 %v322, %v345
      %v362 = vadd.f32 %v323, %v345
      %v363 = vadd.f32 %v324, %v345
      %v364 = vadd.f32 %v325, %v345
      %v365 = vadd.f32 %v326, %v345
      %v366 = vadd.f32 %v327, %v345
      %v367 = vadd.f32 %v328, %v345
      %v368 = vadd.f32 %v329, %v345
      %v369 = vadd.f32 %v330, %v345
      %v370 = vadd.f32 %v331, %v345
      %v371 = vadd.f32 %v332, %v345
      %v372 = vadd.f32 %v333, %v345
      %v373 = vadd.f32 %v334, %v345
      %v374 = vadd.f32 %v335, %v345
      %v375 = vadd.f32 %v336, %v345
      %v376 = vadd.f32 %v337, %v345
      %v377 = vadd.f32 %v338, %v345
      %v378 = vadd.f32 %v339, %v345
      %v379 = vmax.f32 %v347, 0.0
      %v380 = vmax.f32 %v348, 0.0
      %v381 = vmax.f32 %v349, 0.0
      %v382 = vmax.f32 %v350, 0.0
      %v383 = vmax.f32 %v351, 0.0
      %v384 = vmax.f32 %v352, 0.0
      %v385 = vmax.f32 %v353, 0.0
      %v386 = vmax.f32 %v354, 0.0
      %v387 = vmax.f32 %v355, 0.0
      %v388 = vmax.f32 %v356, 0.0
      %v389 = vmax.f32 %v357, 0.0
      %v390 = vmax.f32 %v358, 0.0
      %v391 = vmax.f32 %v359, 0.0
      %v392 = vmax.f32 %v360, 0.0
      %v393 = vmax.f32 %v361, 0.0
      %v394 = vmax.f32 %v362, 0.0
      %v395 = vmax.f32 %v363, 0.0
      %v396 = vmax.f32 %v364, 0.0
      %v397 = vmax.f32 %v365, 0.0
      %v398 = vmax.f32 %v366, 0.0
      %v399 = vmax.f32 %v367, 0.0
      %v400 = vmax.f32 %v368, 0.0
      %v401 = vmax.f32 %v369, 0.0
      %v402 = vmax.f32 %v370, 0.0
      %v403 = vmax.f32 %v371, 0.0
      %v404 = vmax.f32 %v372, 0.0
      %v405 = vmax.f32 %v373, 0.0
      %v406 = vmax.f32 %v374, 0.0
      %v407 = vmax.f32 %v375, 0.0
      %v408 = vmax.f32 %v376, 0.0
      %v409 = vmax.f32 %v377, 0.0
      %v410 = vmax.f32 %v378, 0.0
      %v411 = vlaneseq
      %v412 = vshrl.u32 %v411, 7
      %v413 = vadd.s32 %v412, 8
      %v414 = vadd.s32 %v412, 16
      %v415 = vadd.s32 %v412, 24
      %v416 = vadd.s32 %v412, 32
      %v417 = vadd.s32 %v412, 40
      %v418 = vadd.s32 %v412, 48
      %v419 = vadd.s32 %v412, 56
      %v420 = vadd.s32 %v412, 64
      %v421 = vadd.s32 %v412, 72
      %v422 = vadd.s32 %v412, 80
      %v423 = vadd.s32 %v412, 88
      %v424 = vadd.s32 %v412, 96
      %v425 = vadd.s32 %v412, 104
      %v426 = vadd.s32 %v412, 112
      %v427 = vadd.s32 %v412, 120
      %v428 = vadd.s32 %v412, 128
      %v429 = vadd.s32 %v412, 136
      %v430 = vadd.s32 %v412, 144
      %v431 = vadd.s32 %v412, 152
      %v432 = vadd.s32 %v412, 160
      %v433 = vadd.s32 %v412, 168
      %v434 = vadd.s32 %v412, 176
      %v435 = vadd.s32 %v412, 184
      %v436 = vadd.s32 %v412, 192
      %v437 = vadd.s32 %v412, 200
      %v438 = vadd.s32 %v412, 208
      %v439 = vadd.s32 %v412, 216
      %v440 = vadd.s32 %v412, 224
      %v441 = vadd.s32 %v412, 232
      %v442 = vadd.s32 %v412, 240
      %v443 = vadd.s32 %v412, 248
      %vm444 = vcmp.lt.s32.totalorder %v412, 0
      %v445 = vsub.s32 0, %v412
      %v446 = vsel %vm444, %v445, %v412
      %v447 = vshrl.u32 %v446, 4
      %v448 = vand.u32 %v446, 15
      %v449 = vsub.s32 0, %v448
      %v450 = vsel %vm444, %v449, %v448
      %vm451 = vcmp.lt.s32.totalorder %v413, 0
      %v452 = vsub.s32 0, %v413
      %v453 = vsel %vm451, %v452, %v413
      %v454 = vshrl.u32 %v453, 4
      %v455 = vand.u32 %v453, 15
      %v456 = vsub.s32 0, %v455
      %v457 = vsel %vm451, %v456, %v455
      %vm458 = vcmp.lt.s32.totalorder %v414, 0
      %v459 = vsub.s32 0, %v414
      %v460 = vsel %vm458, %v459, %v414
      %v461 = vshrl.u32 %v460, 4
      %v462 = vand.u32 %v460, 15
      %v463 = vsub.s32 0, %v462
      %v464 = vsel %vm458, %v463, %v462
      %vm465 = vcmp.lt.s32.totalorder %v415, 0
      %v466 = vsub.s32 0, %v415
      %v467 = vsel %vm465, %v466, %v415
      %v468 = vshrl.u32 %v467, 4
      %v469 = vand.u32 %v467, 15
      %v470 = vsub.s32 0, %v469
      %v471 = vsel %vm465, %v470, %v469
      %vm472 = vcmp.lt.s32.totalorder %v416, 0
      %v473 = vsub.s32 0, %v416
      %v474 = vsel %vm472, %v473, %v416
      %v475 = vshrl.u32 %v474, 4
      %v476 = vand.u32 %v474, 15
      %v477 = vsub.s32 0, %v476
      %v478 = vsel %vm472, %v477, %v476
      %vm479 = vcmp.lt.s32.totalorder %v417, 0
      %v480 = vsub.s32 0, %v417
      %v481 = vsel %vm479, %v480, %v417
      %v482 = vshrl.u32 %v481, 4
      %v483 = vand.u32 %v481, 15
      %v484 = vsub.s32 0, %v483
      %v485 = vsel %vm479, %v484, %v483
      %vm486 = vcmp.lt.s32.totalorder %v418, 0
      %v487 = vsub.s32 0, %v418
      %v488 = vsel %vm486, %v487, %v418
      %v489 = vshrl.u32 %v488, 4
      %v490 = vand.u32 %v488, 15
      %v491 = vsub.s32 0, %v490
      %v492 = vsel %vm486, %v491, %v490
      %vm493 = vcmp.lt.s32.totalorder %v419, 0
      %v494 = vsub.s32 0, %v419
      %v495 = vsel %vm493, %v494, %v419
      %v496 = vshrl.u32 %v495, 4
      %v497 = vand.u32 %v495, 15
      %v498 = vsub.s32 0, %v497
      %v499 = vsel %vm493, %v498, %v497
      %vm500 = vcmp.lt.s32.totalorder %v420, 0
      %v501 = vsub.s32 0, %v420
      %v502 = vsel %vm500, %v501, %v420
      %v503 = vshrl.u32 %v502, 4
      %v504 = vand.u32 %v502, 15
      %v505 = vsub.s32 0, %v504
      %v506 = vsel %vm500, %v505, %v504
      %vm507 = vcmp.lt.s32.totalorder %v421, 0
      %v508 = vsub.s32 0, %v421
      %v509 = vsel %vm507, %v508, %v421
      %v510 = vshrl.u32 %v509, 4
      %v511 = vand.u32 %v509, 15
      %v512 = vsub.s32 0, %v511
      %v513 = vsel %vm507, %v512, %v511
      %vm514 = vcmp.lt.s32.totalorder %v422, 0
      %v515 = vsub.s32 0, %v422
      %v516 = vsel %vm514, %v515, %v422
      %v517 = vshrl.u32 %v516, 4
      %v518 = vand.u32 %v516, 15
      %v519 = vsub.s32 0, %v518
      %v520 = vsel %vm514, %v519, %v518
      %vm521 = vcmp.lt.s32.totalorder %v423, 0
      %v522 = vsub.s32 0, %v423
      %v523 = vsel %vm521, %v522, %v423
      %v524 = vshrl.u32 %v523, 4
      %v525 = vand.u32 %v523, 15
      %v526 = vsub.s32 0, %v525
      %v527 = vsel %vm521, %v526, %v525
      %vm528 = vcmp.lt.s32.totalorder %v424, 0
      %v529 = vsub.s32 0, %v424
      %v530 = vsel %vm528, %v529, %v424
      %v531 = vshrl.u32 %v530, 4
      %v532 = vand.u32 %v530, 15
      %v533 = vsub.s32 0, %v532
      %v534 = vsel %vm528, %v533, %v532
      %vm535 = vcmp.lt.s32.totalorder %v425, 0
      %v536 = vsub.s32 0, %v425
      %v537 = vsel %vm535, %v536, %v425
      %v538 = vshrl.u32 %v537, 4
      %v539 = vand.u32 %v537, 15
      %v540 = vsub.s32 0, %v539
      %v541 = vsel %vm535, %v540, %v539
      %vm542 = vcmp.lt.s32.totalorder %v426, 0
      %v543 = vsub.s32 0, %v426
      %v544 = vsel %vm542, %v543, %v426
      %v545 = vshrl.u32 %v544, 4
      %v546 = vand.u32 %v544, 15
      %v547 = vsub.s32 0, %v546
      %v548 = vsel %vm542, %v547, %v546
      %vm549 = vcmp.lt.s32.totalorder %v427, 0
      %v550 = vsub.s32 0, %v427
      %v551 = vsel %vm549, %v550, %v427
      %v552 = vshrl.u32 %v551, 4
      %v553 = vand.u32 %v551, 15
      %v554 = vsub.s32 0, %v553
      %v555 = vsel %vm549, %v554, %v553
      %vm556 = vcmp.lt.s32.totalorder %v428, 0
      %v557 = vsub.s32 0, %v428
      %v558 = vsel %vm556, %v557, %v428
      %v559 = vshrl.u32 %v558, 4
      %v560 = vand.u32 %v558, 15
      %v561 = vsub.s32 0, %v560
      %v562 = vsel %vm556, %v561, %v560
      %vm563 = vcmp.lt.s32.totalorder %v429, 0
      %v564 = vsub.s32 0, %v429
      %v565 = vsel %vm563, %v564, %v429
      %v566 = vshrl.u32 %v565, 4
      %v567 = vand.u32 %v565, 15
      %v568 = vsub.s32 0, %v567
      %v569 = vsel %vm563, %v568, %v567
      %vm570 = vcmp.lt.s32.totalorder %v430, 0
      %v571 = vsub.s32 0, %v430
      %v572 = vsel %vm570, %v571, %v430
      %v573 = vshrl.u32 %v572, 4
      %v574 = vand.u32 %v572, 15
      %v575 = vsub.s32 0, %v574
      %v576 = vsel %vm570, %v575, %v574
      %vm577 = vcmp.lt.s32.totalorder %v431, 0
      %v578 = vsub.s32 0, %v431
      %v579 = vsel %vm577, %v578, %v431
      %v580 = vshrl.u32 %v579, 4
      %v581 = vand.u32 %v579, 15
      %v582 = vsub.s32 0, %v581
      %v583 = vsel %vm577, %v582, %v581
      %vm584 = vcmp.lt.s32.totalorder %v432, 0
      %v585 = vsub.s32 0, %v432
      %v586 = vsel %vm584, %v585, %v432
      %v587 = vshrl.u32 %v586, 4
      %v588 = vand.u32 %v586, 15
      %v589 = vsub.s32 0, %v588
      %v590 = vsel %vm584, %v589, %v588
      %vm591 = vcmp.lt.s32.totalorder %v433, 0
      %v592 = vsub.s32 0, %v433
      %v593 = vsel %vm591, %v592, %v433
      %v594 = vshrl.u32 %v593, 4
      %v595 = vand.u32 %v593, 15
      %v596 = vsub.s32 0, %v595
      %v597 = vsel %vm591, %v596, %v595
      %vm598 = vcmp.lt.s32.totalorder %v434, 0
      %v599 = vsub.s32 0, %v434
      %v600 = vsel %vm598, %v599, %v434
      %v601 = vshrl.u32 %v600, 4
      %v602 = vand.u32 %v600, 15
      %v603 = vsub.s32 0, %v602
      %v604 = vsel %vm598, %v603, %v602
      %vm605 = vcmp.lt.s32.totalorder %v435, 0
      %v606 = vsub.s32 0, %v435
      %v607 = vsel %vm605, %v606, %v435
      %v608 = vshrl.u32 %v607, 4
      %v609 = vand.u32 %v607, 15
      %v610 = vsub.s32 0, %v609
      %v611 = vsel %vm605, %v610, %v609
      %vm612 = vcmp.lt.s32.totalorder %v436, 0
      %v613 = vsub.s32 0, %v436
      %v614 = vsel %vm612, %v613, %v436
      %v615 = vshrl.u32 %v614, 4
      %v616 = vand.u32 %v614, 15
      %v617 = vsub.s32 0, %v616
      %v618 = vsel %vm612, %v617, %v616
      %vm619 = vcmp.lt.s32.totalorder %v437, 0
      %v620 = vsub.s32 0, %v437
      %v621 = vsel %vm619, %v620, %v437
      %v622 = vshrl.u32 %v621, 4
      %v623 = vand.u32 %v621, 15
      %v624 = vsub.s32 0, %v623
      %v625 = vsel %vm619, %v624, %v623
      %vm626 = vcmp.lt.s32.totalorder %v438, 0
      %v627 = vsub.s32 0, %v438
      %v628 = vsel %vm626, %v627, %v438
      %v629 = vshrl.u32 %v628, 4
      %v630 = vand.u32 %v628, 15
      %v631 = vsub.s32 0, %v630
      %v632 = vsel %vm626, %v631, %v630
      %vm633 = vcmp.lt.s32.totalorder %v439, 0
      %v634 = vsub.s32 0, %v439
      %v635 = vsel %vm633, %v634, %v439
      %v636 = vshrl.u32 %v635, 4
      %v637 = vand.u32 %v635, 15
      %v638 = vsub.s32 0, %v637
      %v639 = vsel %vm633, %v638, %v637
      %vm640 = vcmp.lt.s32.totalorder %v440, 0
      %v641 = vsub.s32 0, %v440
      %v642 = vsel %vm640, %v641, %v440
      %v643 = vshrl.u32 %v642, 4
      %v644 = vand.u32 %v642, 15
      %v645 = vsub.s32 0, %v644
      %v646 = vsel %vm640, %v645, %v644
      %vm647 = vcmp.lt.s32.totalorder %v441, 0
      %v648 = vsub.s32 0, %v441
      %v649 = vsel %vm647, %v648, %v441
      %v650 = vshrl.u32 %v649, 4
      %v651 = vand.u32 %v649, 15
      %v652 = vsub.s32 0, %v651
      %v653 = vsel %vm647, %v652, %v651
      %vm654 = vcmp.lt.s32.totalorder %v442, 0
      %v655 = vsub.s32 0, %v442
      %v656 = vsel %vm654, %v655, %v442
      %v657 = vshrl.u32 %v656, 4
      %v658 = vand.u32 %v656, 15
      %v659 = vsub.s32 0, %v658
      %v660 = vsel %vm654, %v659, %v658
      %vm661 = vcmp.lt.s32.totalorder %v443, 0
      %v662 = vsub.s32 0, %v443
      %v663 = vsel %vm661, %v662, %v443
      %v664 = vshrl.u32 %v663, 4
      %v665 = vand.u32 %v663, 15
      %v666 = vsub.s32 0, %v665
      %v667 = vsel %vm661, %v666, %v665
      %vm668 = vcmp.ne.s32.totalorder %v450, 0
      %vm669 = vcmp.ne.s32.totalorder %v457, 0
      %vm670 = vcmp.ne.s32.totalorder %v464, 0
      %vm671 = vcmp.ne.s32.totalorder %v471, 0
      %vm672 = vcmp.ne.s32.totalorder %v478, 0
      %vm673 = vcmp.ne.s32.totalorder %v485, 0
      %vm674 = vcmp.ne.s32.totalorder %v492, 0
      %vm675 = vcmp.ne.s32.totalorder %v499, 0
      %vm676 = vcmp.ne.s32.totalorder %v506, 0
      %vm677 = vcmp.ne.s32.totalorder %v513, 0
      %vm678 = vcmp.ne.s32.totalorder %v520, 0
      %vm679 = vcmp.ne.s32.totalorder %v527, 0
      %vm680 = vcmp.ne.s32.totalorder %v534, 0
      %vm681 = vcmp.ne.s32.totalorder %v541, 0
      %vm682 = vcmp.ne.s32.totalorder %v548, 0
      %vm683 = vcmp.ne.s32.totalorder %v555, 0
      %vm684 = vcmp.ne.s32.totalorder %v562, 0
      %vm685 = vcmp.ne.s32.totalorder %v569, 0
      %vm686 = vcmp.ne.s32.totalorder %v576, 0
      %vm687 = vcmp.ne.s32.totalorder %v583, 0
      %vm688 = vcmp.ne.s32.totalorder %v590, 0
      %vm689 = vcmp.ne.s32.totalorder %v597, 0
      %vm690 = vcmp.ne.s32.totalorder %v604, 0
      %vm691 = vcmp.ne.s32.totalorder %v611, 0
      %vm692 = vcmp.ne.s32.totalorder %v618, 0
      %vm693 = vcmp.ne.s32.totalorder %v625, 0
      %vm694 = vcmp.ne.s32.totalorder %v632, 0
      %vm695 = vcmp.ne.s32.totalorder %v639, 0
      %vm696 = vcmp.ne.s32.totalorder %v646, 0
      %vm697 = vcmp.ne.s32.totalorder %v653, 0
      %vm698 = vcmp.ne.s32.totalorder %v660, 0
      %vm699 = vcmp.ne.s32.totalorder %v667, 0
      %vm700 = vcmp.lt.s32.totalorder %v450, 0
      %vm701 = vcmp.lt.s32.totalorder %v457, 0
      %vm702 = vcmp.lt.s32.totalorder %v464, 0
      %vm703 = vcmp.lt.s32.totalorder %v471, 0
      %vm704 = vcmp.lt.s32.totalorder %v478, 0
      %vm705 = vcmp.lt.s32.totalorder %v485, 0
      %vm706 = vcmp.lt.s32.totalorder %v492, 0
      %vm707 = vcmp.lt.s32.totalorder %v499, 0
      %vm708 = vcmp.lt.s32.totalorder %v506, 0
      %vm709 = vcmp.lt.s32.totalorder %v513, 0
      %vm710 = vcmp.lt.s32.totalorder %v520, 0
      %vm711 = vcmp.lt.s32.totalorder %v527, 0
      %vm712 = vcmp.lt.s32.totalorder %v534, 0
      %vm713 = vcmp.lt.s32.totalorder %v541, 0
      %vm714 = vcmp.lt.s32.totalorder %v548, 0
      %vm715 = vcmp.lt.s32.totalorder %v555, 0
      %vm716 = vcmp.lt.s32.totalorder %v562, 0
      %vm717 = vcmp.lt.s32.totalorder %v569, 0
      %vm718 = vcmp.lt.s32.totalorder %v576, 0
      %vm719 = vcmp.lt.s32.totalorder %v583, 0
      %vm720 = vcmp.lt.s32.totalorder %v590, 0
      %vm721 = vcmp.lt.s32.totalorder %v597, 0
      %vm722 = vcmp.lt.s32.totalorder %v604, 0
      %vm723 = vcmp.lt.s32.totalorder %v611, 0
      %vm724 = vcmp.lt.s32.totalorder %v618, 0
      %vm725 = vcmp.lt.s32.totalorder %v625, 0
      %vm726 = vcmp.lt.s32.totalorder %v632, 0
      %vm727 = vcmp.lt.s32.totalorder %v639, 0
      %vm728 = vcmp.lt.s32.totalorder %v646, 0
      %vm729 = vcmp.lt.s32.totalorder %v653, 0
      %vm730 = vcmp.lt.s32.totalorder %v660, 0
      %vm731 = vcmp.lt.s32.totalorder %v667, 0
      %vm732 = vmand %vm700, %vm668
      %vm733 = vmand %vm701, %vm669
      %vm734 = vmand %vm702, %vm670
      %vm735 = vmand %vm703, %vm671
      %vm736 = vmand %vm704, %vm672
      %vm737 = vmand %vm705, %vm673
      %vm738 = vmand %vm706, %vm674
      %vm739 = vmand %vm707, %vm675
      %vm740 = vmand %vm708, %vm676
      %vm741 = vmand %vm709, %vm677
      %vm742 = vmand %vm710, %vm678
      %vm743 = vmand %vm711, %vm679
      %vm744 = vmand %vm712, %vm680
      %vm745 = vmand %vm713, %vm681
      %vm746 = vmand %vm714, %vm682
      %vm747 = vmand %vm715, %vm683
      %vm748 = vmand %vm716, %vm684
      %vm749 = vmand %vm717, %vm685
      %vm750 = vmand %vm718, %vm686
      %vm751 = vmand %vm719, %vm687
      %vm752 = vmand %vm720, %vm688
      %vm753 = vmand %vm721, %vm689
      %vm754 = vmand %vm722, %vm690
      %vm755 = vmand %vm723, %vm691
      %vm756 = vmand %vm724, %vm692
      %vm757 = vmand %vm725, %vm693
      %vm758 = vmand %vm726, %vm694
      %vm759 = vmand %vm727, %vm695
      %vm760 = vmand %vm728, %vm696
      %vm761 = vmand %vm729, %vm697
      %vm762 = vmand %vm730, %vm698
      %vm763 = vmand %vm731, %vm699
      %v764 = vadd.s32 %v450, 16
      %v765 = vadd.s32 %v457, 16
      %v766 = vadd.s32 %v464, 16
      %v767 = vadd.s32 %v471, 16
      %v768 = vadd.s32 %v478, 16
      %v769 = vadd.s32 %v485, 16
      %v770 = vadd.s32 %v492, 16
      %v771 = vadd.s32 %v499, 16
      %v772 = vadd.s32 %v506, 16
      %v773 = vadd.s32 %v513, 16
      %v774 = vadd.s32 %v520, 16
      %v775 = vadd.s32 %v527, 16
      %v776 = vadd.s32 %v534, 16
      %v777 = vadd.s32 %v541, 16
      %v778 = vadd.s32 %v548, 16
      %v779 = vadd.s32 %v555, 16
      %v780 = vadd.s32 %v562, 16
      %v781 = vadd.s32 %v569, 16
      %v782 = vadd.s32 %v576, 16
      %v783 = vadd.s32 %v583, 16
      %v784 = vadd.s32 %v590, 16
      %v785 = vadd.s32 %v597, 16
      %v786 = vadd.s32 %v604, 16
      %v787 = vadd.s32 %v611, 16
      %v788 = vadd.s32 %v618, 16
      %v789 = vadd.s32 %v625, 16
      %v790 = vadd.s32 %v632, 16
      %v791 = vadd.s32 %v639, 16
      %v792 = vadd.s32 %v646, 16
      %v793 = vadd.s32 %v653, 16
      %v794 = vadd.s32 %v660, 16
      %v795 = vadd.s32 %v667, 16
      %v796 = vsel %vm732, %v764, %v450
      %v797 = vsel %vm733, %v765, %v457
      %v798 = vsel %vm734, %v766, %v464
      %v799 = vsel %vm735, %v767, %v471
      %v800 = vsel %vm736, %v768, %v478
      %v801 = vsel %vm737, %v769, %v485
      %v802 = vsel %vm738, %v770, %v492
      %v803 = vsel %vm739, %v771, %v499
      %v804 = vsel %vm740, %v772, %v506
      %v805 = vsel %vm741, %v773, %v513
      %v806 = vsel %vm742, %v774, %v520
      %v807 = vsel %vm743, %v775, %v527
      %v808 = vsel %vm744, %v776, %v534
      %v809 = vsel %vm745, %v777, %v541
      %v810 = vsel %vm746, %v778, %v548
      %v811 = vsel %vm747, %v779, %v555
      %v812 = vsel %vm748, %v780, %v562
      %v813 = vsel %vm749, %v781, %v569
      %v814 = vsel %vm750, %v782, %v576
      %v815 = vsel %vm751, %v783, %v583
      %v816 = vsel %vm752, %v784, %v590
      %v817 = vsel %vm753, %v785, %v597
      %v818 = vsel %vm754, %v786, %v604
      %v819 = vsel %vm755, %v787, %v611
      %v820 = vsel %vm756, %v788, %v618
      %v821 = vsel %vm757, %v789, %v625
      %v822 = vsel %vm758, %v790, %v632
      %v823 = vsel %vm759, %v791, %v639
      %v824 = vsel %vm760, %v792, %v646
      %v825 = vsel %vm761, %v793, %v653
      %v826 = vsel %vm762, %v794, %v660
      %v827 = vsel %vm763, %v795, %v667
      %vm828 = vcmp.ne.s32.totalorder %v796, 0
      %vm829 = vcmp.ne.s32.totalorder %v797, 0
      %vm830 = vcmp.ne.s32.totalorder %v798, 0
      %vm831 = vcmp.ne.s32.totalorder %v799, 0
      %vm832 = vcmp.ne.s32.totalorder %v800, 0
      %vm833 = vcmp.ne.s32.totalorder %v801, 0
      %vm834 = vcmp.ne.s32.totalorder %v802, 0
      %vm835 = vcmp.ne.s32.totalorder %v803, 0
      %vm836 = vcmp.ne.s32.totalorder %v804, 0
      %vm837 = vcmp.ne.s32.totalorder %v805, 0
      %vm838 = vcmp.ne.s32.totalorder %v806, 0
      %vm839 = vcmp.ne.s32.totalorder %v807, 0
      %vm840 = vcmp.ne.s32.totalorder %v808, 0
      %vm841 = vcmp.ne.s32.totalorder %v809, 0
      %vm842 = vcmp.ne.s32.totalorder %v810, 0
      %vm843 = vcmp.ne.s32.totalorder %v811, 0
      %vm844 = vcmp.ne.s32.totalorder %v812, 0
      %vm845 = vcmp.ne.s32.totalorder %v813, 0
      %vm846 = vcmp.ne.s32.totalorder %v814, 0
      %vm847 = vcmp.ne.s32.totalorder %v815, 0
      %vm848 = vcmp.ne.s32.totalorder %v816, 0
      %vm849 = vcmp.ne.s32.totalorder %v817, 0
      %vm850 = vcmp.ne.s32.totalorder %v818, 0
      %vm851 = vcmp.ne.s32.totalorder %v819, 0
      %vm852 = vcmp.ne.s32.totalorder %v820, 0
      %vm853 = vcmp.ne.s32.totalorder %v821, 0
      %vm854 = vcmp.ne.s32.totalorder %v822, 0
      %vm855 = vcmp.ne.s32.totalorder %v823, 0
      %vm856 = vcmp.ne.s32.totalorder %v824, 0
      %vm857 = vcmp.ne.s32.totalorder %v825, 0
      %vm858 = vcmp.ne.s32.totalorder %v826, 0
      %vm859 = vcmp.ne.s32.totalorder %v827, 0
      %vm892 = vcmask 1040384
      %v893 = vrot.slane %v379, 7
      %v894 = vrot.slane %v380, 7
      %v895 = vsel %vm892, %v893, %v894
      %v896 = vrot.slane %v381, 7
      %v897 = vsel %vm892, %v894, %v896
      %v898 = vrot.slane %v382, 7
      %v899 = vsel %vm892, %v896, %v898
      %v900 = vrot.slane %v383, 7
      %v901 = vsel %vm892, %v898, %v900
      %v902 = vrot.slane %v384, 7
      %v903 = vsel %vm892, %v900, %v902
      %v904 = vrot.slane %v385, 7
      %v905 = vsel %vm892, %v902, %v904
      %v906 = vrot.slane %v386, 7
      %v907 = vsel %vm892, %v904, %v906
      %v908 = vrot.slane %v387, 7
      %v909 = vsel %vm892, %v906, %v908
      %v910 = vrot.slane %v388, 7
      %v911 = vsel %vm892, %v908, %v910
      %v912 = vrot.slane %v389, 7
      %v913 = vsel %vm892, %v910, %v912
      %v914 = vrot.slane %v390, 7
      %v915 = vsel %vm892, %v912, %v914
      %v916 = vrot.slane %v391, 7
      %v917 = vsel %vm892, %v914, %v916
      %v918 = vrot.slane %v392, 7
      %v919 = vsel %vm892, %v916, %v918
      %v920 = vrot.slane %v393, 7
      %v921 = vsel %vm892, %v918, %v920
      %v922 = vrot.slane %v394, 7
      %v923 = vsel %vm892, %v920, %v922
      %v924 = vrot.slane %v395, 7
      %v925 = vsel %vm892, %v922, %v924
      %v926 = vrot.slane %v396, 7
      %v927 = vsel %vm892, %v924, %v926
      %v928 = vrot.slane %v397, 7
      %v929 = vsel %vm892, %v926, %v928
      %v930 = vrot.slane %v398, 7
      %v931 = vsel %vm892, %v928, %v930
      %v932 = vrot.slane %v399, 7
      %v933 = vsel %vm892, %v930, %v932
      %v934 = vrot.slane %v400, 7
      %v935 = vsel %vm892, %v932, %v934
      %v936 = vrot.slane %v401, 7
      %v937 = vsel %vm892, %v934, %v936
      %v938 = vrot.slane %v402, 7
      %v939 = vsel %vm892, %v936, %v938
      %v940 = vrot.slane %v403, 7
      %v941 = vsel %vm892, %v938, %v940
      %v942 = vrot.slane %v404, 7
      %v943 = vsel %vm892, %v940, %v942
      %v944 = vrot.slane %v405, 7
      %v945 = vsel %vm892, %v942, %v944
      %v946 = vrot.slane %v406, 7
      %v947 = vsel %vm892, %v944, %v946
      %v948 = vrot.slane %v407, 7
      %v949 = vsel %vm892, %v946, %v948
      %v950 = vrot.slane %v408, 7
      %v951 = vsel %vm892, %v948, %v950
      %v952 = vrot.slane %v409, 7
      %v953 = vsel %vm892, %v950, %v952
      %v954 = vrot.slane %v410, 7
      %v955 = vsel %vm892, %v952, %v954
      %v988 = vsel %vm892, 0.0, %v893
      %v989 = vsel %vm828, 1, 0
      %v990 = vsel %vm829, 1, 0
      %v991 = vsel %vm830, 1, 0
      %v992 = vsel %vm831, 1, 0
      %v993 = vsel %vm832, 1, 0
      %v994 = vsel %vm833, 1, 0
      %v995 = vsel %vm834, 1, 0
      %v996 = vsel %vm835, 1, 0
      %v997 = vsel %vm836, 1, 0
      %v998 = vsel %vm837, 1, 0
      %v999 = vsel %vm838, 1, 0
      %v1000 = vsel %vm839, 1, 0
      %v1001 = vsel %vm840, 1, 0
      %v1002 = vsel %vm841, 1, 0
      %v1003 = vsel %vm842, 1, 0
      %v1004 = vsel %vm843, 1, 0
      %v1005 = vsel %vm844, 1, 0
      %v1006 = vsel %vm845, 1, 0
      %v1007 = vsel %vm846, 1, 0
      %v1008 = vsel %vm847, 1, 0
      %v1009 = vsel %vm848, 1, 0
      %v1010 = vsel %vm849, 1, 0
      %v1011 = vsel %vm850, 1, 0
      %v1012 = vsel %vm851, 1, 0
      %v1013 = vsel %vm852, 1, 0
      %v1014 = vsel %vm853, 1, 0
      %v1015 = vsel %vm854, 1, 0
      %v1016 = vsel %vm855, 1, 0
      %v1017 = vsel %vm856, 1, 0
      %v1018 = vsel %vm857, 1, 0
      %v1019 = vsel %vm858, 1, 0
      %v1020 = vsel %vm859, 1, 0
      %vm1021 = vcmp.eq.s32.totalorder %v989, 1
      %vm1022 = vcmp.eq.s32.totalorder %v990, 1
      %vm1023 = vcmp.eq.s32.totalorder %v991, 1
      %vm1024 = vcmp.eq.s32.totalorder %v992, 1
      %vm1025 = vcmp.eq.s32.totalorder %v993, 1
      %vm1026 = vcmp.eq.s32.totalorder %v994, 1
      %vm1027 = vcmp.eq.s32.totalorder %v995, 1
      %vm1028 = vcmp.eq.s32.totalorder %v996, 1
      %vm1029 = vcmp.eq.s32.totalorder %v997, 1
      %vm1030 = vcmp.eq.s32.totalorder %v998, 1
      %vm1031 = vcmp.eq.s32.totalorder %v999, 1
      %vm1032 = vcmp.eq.s32.totalorder %v1000, 1
      %vm1033 = vcmp.eq.s32.totalorder %v1001, 1
      %vm1034 = vcmp.eq.s32.totalorder %v1002, 1
      %vm1035 = vcmp.eq.s32.totalorder %v1003, 1
      %vm1036 = vcmp.eq.s32.totalorder %v1004, 1
      %vm1037 = vcmp.eq.s32.totalorder %v1005, 1
      %vm1038 = vcmp.eq.s32.totalorder %v1006, 1
      %vm1039 = vcmp.eq.s32.totalorder %v1007, 1
      %vm1040 = vcmp.eq.s32.totalorder %v1008, 1
      %vm1041 = vcmp.eq.s32.totalorder %v1009, 1
      %vm1042 = vcmp.eq.s32.totalorder %v1010, 1
      %vm1043 = vcmp.eq.s32.totalorder %v1011, 1
      %vm1044 = vcmp.eq.s32.totalorder %v1012, 1
      %vm1045 = vcmp.eq.s32.totalorder %v1013, 1
      %vm1046 = vcmp.eq.s32.totalorder %v1014, 1
      %vm1047 = vcmp.eq.s32.totalorder %v1015, 1
      %vm1048 = vcmp.eq.s32.totalorder %v1016, 1
      %vm1049 = vcmp.eq.s32.totalorder %v1017, 1
      %vm1050 = vcmp.eq.s32.totalorder %v1018, 1
      %vm1051 = vcmp.eq.s32.totalorder %v1019, 1
      %vm1052 = vcmp.eq.s32.totalorder %v1020, 1
      %v1053 = vsel %vm1021, %v988, 0.0
      %v1054 = vsel %vm1022, %v895, 0.0
      %v1055 = vsel %vm1023, %v897, 0.0
      %v1056 = vsel %vm1024, %v899, 0.0
      %v1057 = vsel %vm1025, %v901, 0.0
      %v1058 = vsel %vm1026, %v903, 0.0
      %v1059 = vsel %vm1027, %v905, 0.0
      %v1060 = vsel %vm1028, %v907, 0.0
      %v1061 = vsel %vm1029, %v909, 0.0
      %v1062 = vsel %vm1030, %v911, 0.0
      %v1063 = vsel %vm1031, %v913, 0.0
      %v1064 = vsel %vm1032, %v915, 0.0
      %v1065 = vsel %vm1033, %v917, 0.0
      %v1066 = vsel %vm1034, %v919, 0.0
      %v1067 = vsel %vm1035, %v921, 0.0
      %v1068 = vsel %vm1036, %v923, 0.0
      %v1069 = vsel %vm1037, %v925, 0.0
      %v1070 = vsel %vm1038, %v927, 0.0
      %v1071 = vsel %vm1039, %v929, 0.0
      %v1072 = vsel %vm1040, %v931, 0.0
      %v1073 = vsel %vm1041, %v933, 0.0
      %v1074 = vsel %vm1042, %v935, 0.0
      %v1075 = vsel %vm1043, %v937, 0.0
      %v1076 = vsel %vm1044, %v939, 0.0
      %v1077 = vsel %vm1045, %v941, 0.0
      %v1078 = vsel %vm1046, %v943, 0.0
      %v1079 = vsel %vm1047, %v945, 0.0
      %v1080 = vsel %vm1048, %v947, 0.0
      %v1081 = vsel %vm1049, %v949, 0.0
      %v1082 = vsel %vm1050, %v951, 0.0
      %v1083 = vsel %vm1051, %v953, 0.0
      %v1084 = vsel %vm1052, %v955, 0.0
      %vm1085 = vcmp.ne.s32.totalorder %v796, 15
      %vm1086 = vcmp.ne.s32.totalorder %v797, 15
      %vm1087 = vcmp.ne.s32.totalorder %v798, 15
      %vm1088 = vcmp.ne.s32.totalorder %v799, 15
      %vm1089 = vcmp.ne.s32.totalorder %v800, 15
      %vm1090 = vcmp.ne.s32.totalorder %v801, 15
      %vm1091 = vcmp.ne.s32.totalorder %v802, 15
      %vm1092 = vcmp.ne.s32.totalorder %v803, 15
      %vm1093 = vcmp.ne.s32.totalorder %v804, 15
      %vm1094 = vcmp.ne.s32.totalorder %v805, 15
      %vm1095 = vcmp.ne.s32.totalorder %v806, 15
      %vm1096 = vcmp.ne.s32.totalorder %v807, 15
      %vm1097 = vcmp.ne.s32.totalorder %v808, 15
      %vm1098 = vcmp.ne.s32.totalorder %v809, 15
      %vm1099 = vcmp.ne.s32.totalorder %v810, 15
      %vm1100 = vcmp.ne.s32.totalorder %v811, 15
      %vm1101 = vcmp.ne.s32.totalorder %v812, 15
      %vm1102 = vcmp.ne.s32.totalorder %v813, 15
      %vm1103 = vcmp.ne.s32.totalorder %v814, 15
      %vm1104 = vcmp.ne.s32.totalorder %v815, 15
      %vm1105 = vcmp.ne.s32.totalorder %v816, 15
      %vm1106 = vcmp.ne.s32.totalorder %v817, 15
      %vm1107 = vcmp.ne.s32.totalorder %v818, 15
      %vm1108 = vcmp.ne.s32.totalorder %v819, 15
      %vm1109 = vcmp.ne.s32.totalorder %v820, 15
      %vm1110 = vcmp.ne.s32.totalorder %v821, 15
      %vm1111 = vcmp.ne.s32.totalorder %v822, 15
      %vm1112 = vcmp.ne.s32.totalorder %v823, 15
      %vm1113 = vcmp.ne.s32.totalorder %v824, 15
      %vm1114 = vcmp.ne.s32.totalorder %v825, 15
      %vm1115 = vcmp.ne.s32.totalorder %v826, 15
      %vm1116 = vcmp.ne.s32.totalorder %v827, 15
      %vm1117 = vcmask 1046528
      %v1118 = vrot.slane %v379, 1
      %v1119 = vrot.slane %v380, 1
      %v1120 = vsel %vm1117, %v1118, %v1119
      %v1121 = vrot.slane %v381, 1
      %v1122 = vsel %vm1117, %v1119, %v1121
      %v1123 = vrot.slane %v382, 1
      %v1124 = vsel %vm1117, %v1121, %v1123
      %v1125 = vrot.slane %v383, 1
      %v1126 = vsel %vm1117, %v1123, %v1125
      %v1127 = vrot.slane %v384, 1
      %v1128 = vsel %vm1117, %v1125, %v1127
      %v1129 = vrot.slane %v385, 1
      %v1130 = vsel %vm1117, %v1127, %v1129
      %v1131 = vrot.slane %v386, 1
      %v1132 = vsel %vm1117, %v1129, %v1131
      %v1133 = vrot.slane %v387, 1
      %v1134 = vsel %vm1117, %v1131, %v1133
      %v1135 = vrot.slane %v388, 1
      %v1136 = vsel %vm1117, %v1133, %v1135
      %v1137 = vrot.slane %v389, 1
      %v1138 = vsel %vm1117, %v1135, %v1137
      %v1139 = vrot.slane %v390, 1
      %v1140 = vsel %vm1117, %v1137, %v1139
      %v1141 = vrot.slane %v391, 1
      %v1142 = vsel %vm1117, %v1139, %v1141
      %v1143 = vrot.slane %v392, 1
      %v1144 = vsel %vm1117, %v1141, %v1143
      %v1145 = vrot.slane %v393, 1
      %v1146 = vsel %vm1117, %v1143, %v1145
      %v1147 = vrot.slane %v394, 1
      %v1148 = vsel %vm1117, %v1145, %v1147
      %v1149 = vrot.slane %v395, 1
      %v1150 = vsel %vm1117, %v1147, %v1149
      %v1151 = vrot.slane %v396, 1
      %v1152 = vsel %vm1117, %v1149, %v1151
      %v1153 = vrot.slane %v397, 1
      %v1154 = vsel %vm1117, %v1151, %v1153
      %v1155 = vrot.slane %v398, 1
      %v1156 = vsel %vm1117, %v1153, %v1155
      %v1157 = vrot.slane %v399, 1
      %v1158 = vsel %vm1117, %v1155, %v1157
      %v1159 = vrot.slane %v400, 1
      %v1160 = vsel %vm1117, %v1157, %v1159
      %v1161 = vrot.slane %v401, 1
      %v1162 = vsel %vm1117, %v1159, %v1161
      %v1163 = vrot.slane %v402, 1
      %v1164 = vsel %vm1117, %v1161, %v1163
      %v1165 = vrot.slane %v403, 1
      %v1166 = vsel %vm1117, %v1163, %v1165
      %v1167 = vrot.slane %v404, 1
      %v1168 = vsel %vm1117, %v1165, %v1167
      %v1169 = vrot.slane %v405, 1
      %v1170 = vsel %vm1117, %v1167, %v1169
      %v1171 = vrot.slane %v406, 1
      %v1172 = vsel %vm1117, %v1169, %v1171
      %v1173 = vrot.slane %v407, 1
      %v1174 = vsel %vm1117, %v1171, %v1173
      %v1175 = vrot.slane %v408, 1
      %v1176 = vsel %vm1117, %v1173, %v1175
      %v1177 = vrot.slane %v409, 1
      %v1178 = vsel %vm1117, %v1175, %v1177
      %v1179 = vrot.slane %v410, 1
      %v1180 = vsel %vm1117, %v1177, %v1179
      %v1213 = vsel %vm1117, %v1179, 0.0
      %v1214 = vsel %vm1085, 1, 0
      %v1215 = vsel %vm1086, 1, 0
      %v1216 = vsel %vm1087, 1, 0
      %v1217 = vsel %vm1088, 1, 0
      %v1218 = vsel %vm1089, 1, 0
      %v1219 = vsel %vm1090, 1, 0
      %v1220 = vsel %vm1091, 1, 0
      %v1221 = vsel %vm1092, 1, 0
      %v1222 = vsel %vm1093, 1, 0
      %v1223 = vsel %vm1094, 1, 0
      %v1224 = vsel %vm1095, 1, 0
      %v1225 = vsel %vm1096, 1, 0
      %v1226 = vsel %vm1097, 1, 0
      %v1227 = vsel %vm1098, 1, 0
      %v1228 = vsel %vm1099, 1, 0
      %v1229 = vsel %vm1100, 1, 0
      %v1230 = vsel %vm1101, 1, 0
      %v1231 = vsel %vm1102, 1, 0
      %v1232 = vsel %vm1103, 1, 0
      %v1233 = vsel %vm1104, 1, 0
      %v1234 = vsel %vm1105, 1, 0
      %v1235 = vsel %vm1106, 1, 0
      %v1236 = vsel %vm1107, 1, 0
      %v1237 = vsel %vm1108, 1, 0
      %v1238 = vsel %vm1109, 1, 0
      %v1239 = vsel %vm1110, 1, 0
      %v1240 = vsel %vm1111, 1, 0
      %v1241 = vsel %vm1112, 1, 0
      %v1242 = vsel %vm1113, 1, 0
      %v1243 = vsel %vm1114, 1, 0
      %v1244 = vsel %vm1115, 1, 0
      %v1245 = vsel %vm1116, 1, 0
      %vm1246 = vcmp.eq.s32.totalorder %v1214, 1
      %vm1247 = vcmp.eq.s32.totalorder %v1215, 1
      %vm1248 = vcmp.eq.s32.totalorder %v1216, 1
      %vm1249 = vcmp.eq.s32.totalorder %v1217, 1
      %vm1250 = vcmp.eq.s32.totalorder %v1218, 1
      %vm1251 = vcmp.eq.s32.totalorder %v1219, 1
      %vm1252 = vcmp.eq.s32.totalorder %v1220, 1
      %vm1253 = vcmp.eq.s32.totalorder %v1221, 1
      %vm1254 = vcmp.eq.s32.totalorder %v1222, 1
      %vm1255 = vcmp.eq.s32.totalorder %v1223, 1
      %vm1256 = vcmp.eq.s32.totalorder %v1224, 1
      %vm1257 = vcmp.eq.s32.totalorder %v1225, 1
      %vm1258 = vcmp.eq.s32.totalorder %v1226, 1
      %vm1259 = vcmp.eq.s32.totalorder %v1227, 1
      %vm1260 = vcmp.eq.s32.totalorder %v1228, 1
      %vm1261 = vcmp.eq.s32.totalorder %v1229, 1
      %vm1262 = vcmp.eq.s32.totalorder %v1230, 1
      %vm1263 = vcmp.eq.s32.totalorder %v1231, 1
      %vm1264 = vcmp.eq.s32.totalorder %v1232, 1
      %vm1265 = vcmp.eq.s32.totalorder %v1233, 1
      %vm1266 = vcmp.eq.s32.totalorder %v1234, 1
      %vm1267 = vcmp.eq.s32.totalorder %v1235, 1
      %vm1268 = vcmp.eq.s32.totalorder %v1236, 1
      %vm1269 = vcmp.eq.s32.totalorder %v1237, 1
      %vm1270 = vcmp.eq.s32.totalorder %v1238, 1
      %vm1271 = vcmp.eq.s32.totalorder %v1239, 1
      %vm1272 = vcmp.eq.s32.totalorder %v1240, 1
      %vm1273 = vcmp.eq.s32.totalorder %v1241, 1
      %vm1274 = vcmp.eq.s32.totalorder %v1242, 1
      %vm1275 = vcmp.eq.s32.totalorder %v1243, 1
      %vm1276 = vcmp.eq.s32.totalorder %v1244, 1
      %vm1277 = vcmp.eq.s32.totalorder %v1245, 1
      %v1278 = vsel %vm1246, %v1120, 0.0
      %v1279 = vsel %vm1247, %v1122, 0.0
      %v1280 = vsel %vm1248, %v1124, 0.0
      %v1281 = vsel %vm1249, %v1126, 0.0
      %v1282 = vsel %vm1250, %v1128, 0.0
      %v1283 = vsel %vm1251, %v1130, 0.0
      %v1284 = vsel %vm1252, %v1132, 0.0
      %v1285 = vsel %vm1253, %v1134, 0.0
      %v1286 = vsel %vm1254, %v1136, 0.0
      %v1287 = vsel %vm1255, %v1138, 0.0
      %v1288 = vsel %vm1256, %v1140, 0.0
      %v1289 = vsel %vm1257, %v1142, 0.0
      %v1290 = vsel %vm1258, %v1144, 0.0
      %v1291 = vsel %vm1259, %v1146, 0.0
      %v1292 = vsel %vm1260, %v1148, 0.0
      %v1293 = vsel %vm1261, %v1150, 0.0
      %v1294 = vsel %vm1262, %v1152, 0.0
      %v1295 = vsel %vm1263, %v1154, 0.0
      %v1296 = vsel %vm1264, %v1156, 0.0
      %v1297 = vsel %vm1265, %v1158, 0.0
      %v1298 = vsel %vm1266, %v1160, 0.0
      %v1299 = vsel %vm1267, %v1162, 0.0
      %v1300 = vsel %vm1268, %v1164, 0.0
      %v1301 = vsel %vm1269, %v1166, 0.0
      %v1302 = vsel %vm1270, %v1168, 0.0
      %v1303 = vsel %vm1271, %v1170, 0.0
      %v1304 = vsel %vm1272, %v1172, 0.0
      %v1305 = vsel %vm1273, %v1174, 0.0
      %v1306 = vsel %vm1274, %v1176, 0.0
      %v1307 = vsel %vm1275, %v1178, 0.0
      %v1308 = vsel %vm1276, %v1180, 0.0
      %v1309 = vsel %vm1277, %v1213, 0.0
      %1310 = vst [vmem:[#allocation2] sm:$0xff] 0
      %1311 = vst [vmem:[#allocation2 + $0x8] sm:$0xf] 0
      %1312 = vst [vmem:[#allocation2 + $0xc] sm:$0xff] 0
      %1313 = vst [vmem:[#allocation2 + $0x14] sm:$0xf] 0
      %1314 = vst [vmem:[#allocation2 + $0x198] sm:$0xff] 0
      %1315 = vst [vmem:[#allocation2 + $0x1a0] sm:$0xf] 0
      %1316 = vst [vmem:[#allocation2 + $0x1a4] sm:$0xff] 0
      %1317 = vst [vmem:[#allocation2 + $0x1ac] sm:$0xf] 0
      %v1318 = vpack.c.bf16 %v1054, %v1053
      %v1319 = vpack.c.bf16 %v1056, %v1055
      %v1320 = vpack.c.bf16 %v1058, %v1057
      %v1321 = vpack.c.bf16 %v1060, %v1059
      %v1322 = vpack.c.bf16 %v1062, %v1061
      %v1323 = vpack.c.bf16 %v1064, %v1063
      %v1324 = vpack.c.bf16 %v1066, %v1065
      %v1325 = vpack.c.bf16 %v1068, %v1067
      %v1326 = vpack.c.bf16 %v1070, %v1069
      %v1327 = vpack.c.bf16 %v1072, %v1071
      %v1328 = vpack.c.bf16 %v1074, %v1073
      %v1329 = vpack.c.bf16 %v1076, %v1075
      %v1330 = vpack.c.bf16 %v1078, %v1077
      %v1331 = vpack.c.bf16 %v1080, %v1079
      %v1332 = vpack.c.bf16 %v1082, %v1081
      %v1333 = vpack.c.bf16 %v1084, %v1083
      %v1350 = vunpack.c.l.b16 %v1318
      %v1351 = vunpack.c.h.b16 %v1318
      %v1352 = vunpack.c.l.b16 %v1319
      %v1353 = vunpack.c.h.b16 %v1319
      %v1354 = vunpack.c.l.b16 %v1320
      %v1355 = vunpack.c.h.b16 %v1320
      %v1356 = vunpack.c.l.b16 %v1321
      %v1357 = vunpack.c.h.b16 %v1321
      %v1358 = vunpack.c.l.b16 %v1322
      %v1359 = vunpack.c.h.b16 %v1322
      %v1360 = vunpack.c.l.b16 %v1323
      %v1361 = vunpack.c.h.b16 %v1323
      %v1362 = vunpack.c.l.b16 %v1324
      %v1363 = vunpack.c.h.b16 %v1324
      %v1364 = vunpack.c.l.b16 %v1325
      %v1365 = vunpack.c.h.b16 %v1325
      %v1366 = vunpack.c.l.b16 %v1326
      %v1367 = vunpack.c.h.b16 %v1326
      %v1368 = vunpack.c.l.b16 %v1327
      %v1369 = vunpack.c.h.b16 %v1327
      %v1370 = vunpack.c.l.b16 %v1328
      %v1371 = vunpack.c.h.b16 %v1328
      %v1372 = vunpack.c.l.b16 %v1329
      %v1373 = vunpack.c.h.b16 %v1329
      %v1374 = vunpack.c.l.b16 %v1330
      %v1375 = vunpack.c.h.b16 %v1330
      %v1376 = vunpack.c.l.b16 %v1331
      %v1377 = vunpack.c.h.b16 %v1331
      %v1378 = vunpack.c.l.b16 %v1332
      %v1379 = vunpack.c.h.b16 %v1332
      %v1380 = vunpack.c.l.b16 %v1333
      %v1381 = vunpack.c.h.b16 %v1333
      %v1382 = vpack.c.b16 %v1350, %v1350
      %v1383 = vpack.c.b16 %v1351, %v1351
      %v1384 = vpack.c.b16 %v1352, %v1352
      %v1385 = vpack.c.b16 %v1353, %v1353
      %v1386 = vpack.c.b16 %v1354, %v1354
      %v1387 = vpack.c.b16 %v1355, %v1355
      %v1388 = vpack.c.b16 %v1356, %v1356
      %v1389 = vpack.c.b16 %v1357, %v1357
      %v1390 = vpack.c.b16 %v1358, %v1358
      %v1391 = vpack.c.b16 %v1359, %v1359
      %v1392 = vpack.c.b16 %v1360, %v1360
      %v1393 = vpack.c.b16 %v1361, %v1361
      %v1394 = vpack.c.b16 %v1362, %v1362
      %v1395 = vpack.c.b16 %v1363, %v1363
      %v1396 = vpack.c.b16 %v1364, %v1364
      %v1397 = vpack.c.b16 %v1365, %v1365
      %v1398 = vpack.c.b16 %v1366, %v1366
      %v1399 = vpack.c.b16 %v1367, %v1367
      %v1400 = vpack.c.b16 %v1368, %v1368
      %v1401 = vpack.c.b16 %v1369, %v1369
      %v1402 = vpack.c.b16 %v1370, %v1370
      %v1403 = vpack.c.b16 %v1371, %v1371
      %v1404 = vpack.c.b16 %v1372, %v1372
      %v1405 = vpack.c.b16 %v1373, %v1373
      %v1406 = vpack.c.b16 %v1374, %v1374
      %v1407 = vpack.c.b16 %v1375, %v1375
      %v1408 = vpack.c.b16 %v1376, %v1376
      %v1409 = vpack.c.b16 %v1377, %v1377
      %v1410 = vpack.c.b16 %v1378, %v1378
      %v1411 = vpack.c.b16 %v1379, %v1379
      %v1412 = vpack.c.b16 %v1380, %v1380
      %v1413 = vpack.c.b16 %v1381, %v1381
      %1446 = vst [vmem:[#allocation2 + $0x18] sm:$0xf] %v1382
      %1447 = vst [vmem:[#allocation2 + $0x24] sm:$0xf] %v1383
      %1448 = vst [vmem:[#allocation2 + $0x30] sm:$0xf] %v1384
      %1449 = vst [vmem:[#allocation2 + $0x3c] sm:$0xf] %v1385
      %1450 = vst [vmem:[#allocation2 + $0x48] sm:$0xf] %v1386
      %1451 = vst [vmem:[#allocation2 + $0x54] sm:$0xf] %v1387
      %1452 = vst [vmem:[#allocation2 + $0x60] sm:$0xf] %v1388
      %1453 = vst [vmem:[#allocation2 + $0x6c] sm:$0xf] %v1389
      %1454 = vst [vmem:[#allocation2 + $0x78] sm:$0xf] %v1390
      %1455 = vst [vmem:[#allocation2 + $0x84] sm:$0xf] %v1391
      %1456 = vst [vmem:[#allocation2 + $0x90] sm:$0xf] %v1392
      %1457 = vst [vmem:[#allocation2 + $0x9c] sm:$0xf] %v1393
      %1458 = vst [vmem:[#allocation2 + $0xa8] sm:$0xf] %v1394
      %1459 = vst [vmem:[#allocation2 + $0xb4] sm:$0xf] %v1395
      %1460 = vst [vmem:[#allocation2 + $0xc0] sm:$0xf] %v1396
      %1461 = vst [vmem:[#allocation2 + $0xcc] sm:$0xf] %v1397
      %1462 = vst [vmem:[#allocation2 + $0xd8] sm:$0xf] %v1398
      %1463 = vst [vmem:[#allocation2 + $0xe4] sm:$0xf] %v1399
      %1464 = vst [vmem:[#allocation2 + $0xf0] sm:$0xf] %v1400
      %1465 = vst [vmem:[#allocation2 + $0xfc] sm:$0xf] %v1401
      %1466 = vst [vmem:[#allocation2 + $0x108] sm:$0xf] %v1402
      %1467 = vst [vmem:[#allocation2 + $0x114] sm:$0xf] %v1403
      %1468 = vst [vmem:[#allocation2 + $0x120] sm:$0xf] %v1404
      %1469 = vst [vmem:[#allocation2 + $0x12c] sm:$0xf] %v1405
      %1470 = vst [vmem:[#allocation2 + $0x138] sm:$0xf] %v1406
      %1471 = vst [vmem:[#allocation2 + $0x144] sm:$0xf] %v1407
      %1472 = vst [vmem:[#allocation2 + $0x150] sm:$0xf] %v1408
      %1473 = vst [vmem:[#allocation2 + $0x15c] sm:$0xf] %v1409
      %1474 = vst [vmem:[#allocation2 + $0x168] sm:$0xf] %v1410
      %1475 = vst [vmem:[#allocation2 + $0x174] sm:$0xf] %v1411
      %1476 = vst [vmem:[#allocation2 + $0x180] sm:$0xf] %v1412
      %1477 = vst [vmem:[#allocation2 + $0x18c] sm:$0xf] %v1413
      %v1478 = vpack.c.bf16 %v380, %v379
      %v1479 = vpack.c.bf16 %v382, %v381
      %v1480 = vpack.c.bf16 %v384, %v383
      %v1481 = vpack.c.bf16 %v386, %v385
      %v1482 = vpack.c.bf16 %v388, %v387
      %v1483 = vpack.c.bf16 %v390, %v389
      %v1484 = vpack.c.bf16 %v392, %v391
      %v1485 = vpack.c.bf16 %v394, %v393
      %v1486 = vpack.c.bf16 %v396, %v395
      %v1487 = vpack.c.bf16 %v398, %v397
      %v1488 = vpack.c.bf16 %v400, %v399
      %v1489 = vpack.c.bf16 %v402, %v401
      %v1490 = vpack.c.bf16 %v404, %v403
      %v1491 = vpack.c.bf16 %v406, %v405
      %v1492 = vpack.c.bf16 %v408, %v407
      %v1493 = vpack.c.bf16 %v410, %v409
      %v1510 = vunpack.c.l.b16 %v1478
      %v1511 = vunpack.c.h.b16 %v1478
      %v1512 = vunpack.c.l.b16 %v1479
      %v1513 = vunpack.c.h.b16 %v1479
      %v1514 = vunpack.c.l.b16 %v1480
      %v1515 = vunpack.c.h.b16 %v1480
      %v1516 = vunpack.c.l.b16 %v1481
      %v1517 = vunpack.c.h.b16 %v1481
      %v1518 = vunpack.c.l.b16 %v1482
      %v1519 = vunpack.c.h.b16 %v1482
      %v1520 = vunpack.c.l.b16 %v1483
      %v1521 = vunpack.c.h.b16 %v1483
      %v1522 = vunpack.c.l.b16 %v1484
      %v1523 = vunpack.c.h.b16 %v1484
      %v1524 = vunpack.c.l.b16 %v1485
      %v1525 = vunpack.c.h.b16 %v1485
      %v1526 = vunpack.c.l.b16 %v1486
      %v1527 = vunpack.c.h.b16 %v1486
      %v1528 = vunpack.c.l.b16 %v1487
      %v1529 = vunpack.c.h.b16 %v1487
      %v1530 = vunpack.c.l.b16 %v1488
      %v1531 = vunpack.c.h.b16 %v1488
      %v1532 = vunpack.c.l.b16 %v1489
      %v1533 = vunpack.c.h.b16 %v1489
      %v1534 = vunpack.c.l.b16 %v1490
      %v1535 = vunpack.c.h.b16 %v1490
      %v1536 = vunpack.c.l.b16 %v1491
      %v1537 = vunpack.c.h.b16 %v1491
      %v1538 = vunpack.c.l.b16 %v1492
      %v1539 = vunpack.c.h.b16 %v1492
      %v1540 = vunpack.c.l.b16 %v1493
      %v1541 = vunpack.c.h.b16 %v1493
      %v1542 = vpack.c.b16 %v1510, %v1510
      %v1543 = vpack.c.b16 %v1511, %v1511
      %v1544 = vpack.c.b16 %v1512, %v1512
      %v1545 = vpack.c.b16 %v1513, %v1513
      %v1546 = vpack.c.b16 %v1514, %v1514
      %v1547 = vpack.c.b16 %v1515, %v1515
      %v1548 = vpack.c.b16 %v1516, %v1516
      %v1549 = vpack.c.b16 %v1517, %v1517
      %v1550 = vpack.c.b16 %v1518, %v1518
      %v1551 = vpack.c.b16 %v1519, %v1519
      %v1552 = vpack.c.b16 %v1520, %v1520
      %v1553 = vpack.c.b16 %v1521, %v1521
      %v1554 = vpack.c.b16 %v1522, %v1522
      %v1555 = vpack.c.b16 %v1523, %v1523
      %v1556 = vpack.c.b16 %v1524, %v1524
      %v1557 = vpack.c.b16 %v1525, %v1525
      %v1558 = vpack.c.b16 %v1526, %v1526
      %v1559 = vpack.c.b16 %v1527, %v1527
      %v1560 = vpack.c.b16 %v1528, %v1528
      %v1561 = vpack.c.b16 %v1529, %v1529
      %v1562 = vpack.c.b16 %v1530, %v1530
      %v1563 = vpack.c.b16 %v1531, %v1531
      %v1564 = vpack.c.b16 %v1532, %v1532
      %v1565 = vpack.c.b16 %v1533, %v1533
      %v1566 = vpack.c.b16 %v1534, %v1534
      %v1567 = vpack.c.b16 %v1535, %v1535
      %v1568 = vpack.c.b16 %v1536, %v1536
      %v1569 = vpack.c.b16 %v1537, %v1537
      %v1570 = vpack.c.b16 %v1538, %v1538
      %v1571 = vpack.c.b16 %v1539, %v1539
      %v1572 = vpack.c.b16 %v1540, %v1540
      %v1573 = vpack.c.b16 %v1541, %v1541
      %1606 = vst [vmem:[#allocation2 + $0x1c] sm:$0xf] %v1542
      %1607 = vst [vmem:[#allocation2 + $0x28] sm:$0xf] %v1543
      %1608 = vst [vmem:[#allocation2 + $0x34] sm:$0xf] %v1544
      %1609 = vst [vmem:[#allocation2 + $0x40] sm:$0xf] %v1545
      %1610 = vst [vmem:[#allocation2 + $0x4c] sm:$0xf] %v1546
      %1611 = vst [vmem:[#allocation2 + $0x58] sm:$0xf] %v1547
      %1612 = vst [vmem:[#allocation2 + $0x64] sm:$0xf] %v1548
      %1613 = vst [vmem:[#allocation2 + $0x70] sm:$0xf] %v1549
      %1614 = vst [vmem:[#allocation2 + $0x7c] sm:$0xf] %v1550
      %1615 = vst [vmem:[#allocation2 + $0x88] sm:$0xf] %v1551
      %1616 = vst [vmem:[#allocation2 + $0x94] sm:$0xf] %v1552
      %1617 = vst [vmem:[#allocation2 + $0xa0] sm:$0xf] %v1553
      %1618 = vst [vmem:[#allocation2 + $0xac] sm:$0xf] %v1554
      %1619 = vst [vmem:[#allocation2 + $0xb8] sm:$0xf] %v1555
      %1620 = vst [vmem:[#allocation2 + $0xc4] sm:$0xf] %v1556
      %1621 = vst [vmem:[#allocation2 + $0xd0] sm:$0xf] %v1557
      %1622 = vst [vmem:[#allocation2 + $0xdc] sm:$0xf] %v1558
      %1623 = vst [vmem:[#allocation2 + $0xe8] sm:$0xf] %v1559
      %1624 = vst [vmem:[#allocation2 + $0xf4] sm:$0xf] %v1560
      %1625 = vst [vmem:[#allocation2 + $0x100] sm:$0xf] %v1561
      %1626 = vst [vmem:[#allocation2 + $0x10c] sm:$0xf] %v1562
      %1627 = vst [vmem:[#allocation2 + $0x118] sm:$0xf] %v1563
      %1628 = vst [vmem:[#allocation2 + $0x124] sm:$0xf] %v1564
      %1629 = vst [vmem:[#allocation2 + $0x130] sm:$0xf] %v1565
      %1630 = vst [vmem:[#allocation2 + $0x13c] sm:$0xf] %v1566
      %1631 = vst [vmem:[#allocation2 + $0x148] sm:$0xf] %v1567
      %1632 = vst [vmem:[#allocation2 + $0x154] sm:$0xf] %v1568
      %1633 = vst [vmem:[#allocation2 + $0x160] sm:$0xf] %v1569
      %1634 = vst [vmem:[#allocation2 + $0x16c] sm:$0xf] %v1570
      %1635 = vst [vmem:[#allocation2 + $0x178] sm:$0xf] %v1571
      %1636 = vst [vmem:[#allocation2 + $0x184] sm:$0xf] %v1572
      %1637 = vst [vmem:[#allocation2 + $0x190] sm:$0xf] %v1573
      %v1638 = vpack.c.bf16 %v1279, %v1278
      %v1639 = vpack.c.bf16 %v1281, %v1280
      %v1640 = vpack.c.bf16 %v1283, %v1282
      %v1641 = vpack.c.bf16 %v1285, %v1284
      %v1642 = vpack.c.bf16 %v1287, %v1286
      %v1643 = vpack.c.bf16 %v1289, %v1288
      %v1644 = vpack.c.bf16 %v1291, %v1290
      %v1645 = vpack.c.bf16 %v1293, %v1292
      %v1646 = vpack.c.bf16 %v1295, %v1294
      %v1647 = vpack.c.bf16 %v1297, %v1296
      %v1648 = vpack.c.bf16 %v1299, %v1298
      %v1649 = vpack.c.bf16 %v1301, %v1300
      %v1650 = vpack.c.bf16 %v1303, %v1302
      %v1651 = vpack.c.bf16 %v1305, %v1304
      %v1652 = vpack.c.bf16 %v1307, %v1306
      %v1653 = vpack.c.bf16 %v1309, %v1308
      %v1670 = vunpack.c.l.b16 %v1638
      %v1671 = vunpack.c.h.b16 %v1638
      %v1672 = vunpack.c.l.b16 %v1639
      %v1673 = vunpack.c.h.b16 %v1639
      %v1674 = vunpack.c.l.b16 %v1640
      %v1675 = vunpack.c.h.b16 %v1640
      %v1676 = vunpack.c.l.b16 %v1641
      %v1677 = vunpack.c.h.b16 %v1641
      %v1678 = vunpack.c.l.b16 %v1642
      %v1679 = vunpack.c.h.b16 %v1642
      %v1680 = vunpack.c.l.b16 %v1643
      %v1681 = vunpack.c.h.b16 %v1643
      %v1682 = vunpack.c.l.b16 %v1644
      %v1683 = vunpack.c.h.b16 %v1644
      %v1684 = vunpack.c.l.b16 %v1645
      %v1685 = vunpack.c.h.b16 %v1645
      %v1686 = vunpack.c.l.b16 %v1646
      %v1687 = vunpack.c.h.b16 %v1646
      %v1688 = vunpack.c.l.b16 %v1647
      %v1689 = vunpack.c.h.b16 %v1647
      %v1690 = vunpack.c.l.b16 %v1648
      %v1691 = vunpack.c.h.b16 %v1648
      %v1692 = vunpack.c.l.b16 %v1649
      %v1693 = vunpack.c.h.b16 %v1649
      %v1694 = vunpack.c.l.b16 %v1650
      %v1695 = vunpack.c.h.b16 %v1650
      %v1696 = vunpack.c.l.b16 %v1651
      %v1697 = vunpack.c.h.b16 %v1651
      %v1698 = vunpack.c.l.b16 %v1652
      %v1699 = vunpack.c.h.b16 %v1652
      %v1700 = vunpack.c.l.b16 %v1653
      %v1701 = vunpack.c.h.b16 %v1653
      %v1702 = vpack.c.b16 %v1670, %v1670
      %v1703 = vpack.c.b16 %v1671, %v1671
      %v1704 = vpack.c.b16 %v1672, %v1672
      %v1705 = vpack.c.b16 %v1673, %v1673
      %v1706 = vpack.c.b16 %v1674, %v1674
      %v1707 = vpack.c.b16 %v1675, %v1675
      %v1708 = vpack.c.b16 %v1676, %v1676
      %v1709 = vpack.c.b16 %v1677, %v1677
      %v1710 = vpack.c.b16 %v1678, %v1678
      %v1711 = vpack.c.b16 %v1679, %v1679
      %v1712 = vpack.c.b16 %v1680, %v1680
      %v1713 = vpack.c.b16 %v1681, %v1681
      %v1714 = vpack.c.b16 %v1682, %v1682
      %v1715 = vpack.c.b16 %v1683, %v1683
      %v1716 = vpack.c.b16 %v1684, %v1684
      %v1717 = vpack.c.b16 %v1685, %v1685
      %v1718 = vpack.c.b16 %v1686, %v1686
      %v1719 = vpack.c.b16 %v1687, %v1687
      %v1720 = vpack.c.b16 %v1688, %v1688
      %v1721 = vpack.c.b16 %v1689, %v1689
      %v1722 = vpack.c.b16 %v1690, %v1690
      %v1723 = vpack.c.b16 %v1691, %v1691
      %v1724 = vpack.c.b16 %v1692, %v1692
      %v1725 = vpack.c.b16 %v1693, %v1693
      %v1726 = vpack.c.b16 %v1694, %v1694
      %v1727 = vpack.c.b16 %v1695, %v1695
      %v1728 = vpack.c.b16 %v1696, %v1696
      %v1729 = vpack.c.b16 %v1697, %v1697
      %v1730 = vpack.c.b16 %v1698, %v1698
      %v1731 = vpack.c.b16 %v1699, %v1699
      %v1732 = vpack.c.b16 %v1700, %v1700
      %v1733 = vpack.c.b16 %v1701, %v1701
      %1766 = vst [vmem:[#allocation2 + $0x20] sm:$0xf] %v1702
      %1767 = vst [vmem:[#allocation2 + $0x2c] sm:$0xf] %v1703
      %1768 = vst [vmem:[#allocation2 + $0x38] sm:$0xf] %v1704
      %1769 = vst [vmem:[#allocation2 + $0x44] sm:$0xf] %v1705
      %1770 = vst [vmem:[#allocation2 + $0x50] sm:$0xf] %v1706
      %1771 = vst [vmem:[#allocation2 + $0x5c] sm:$0xf] %v1707
      %1772 = vst [vmem:[#allocation2 + $0x68] sm:$0xf] %v1708
      %1773 = vst [vmem:[#allocation2 + $0x74] sm:$0xf] %v1709
      %1774 = vst [vmem:[#allocation2 + $0x80] sm:$0xf] %v1710
      %1775 = vst [vmem:[#allocation2 + $0x8c] sm:$0xf] %v1711
      %1776 = vst [vmem:[#allocation2 + $0x98] sm:$0xf] %v1712
      %1777 = vst [vmem:[#allocation2 + $0xa4] sm:$0xf] %v1713
      %1778 = vst [vmem:[#allocation2 + $0xb0] sm:$0xf] %v1714
      %1779 = vst [vmem:[#allocation2 + $0xbc] sm:$0xf] %v1715
      %1780 = vst [vmem:[#allocation2 + $0xc8] sm:$0xf] %v1716
      %1781 = vst [vmem:[#allocation2 + $0xd4] sm:$0xf] %v1717
      %1782 = vst [vmem:[#allocation2 + $0xe0] sm:$0xf] %v1718
      %1783 = vst [vmem:[#allocation2 + $0xec] sm:$0xf] %v1719
      %1784 = vst [vmem:[#allocation2 + $0xf8] sm:$0xf] %v1720
      %1785 = vst [vmem:[#allocation2 + $0x104] sm:$0xf] %v1721
      %1786 = vst [vmem:[#allocation2 + $0x110] sm:$0xf] %v1722
      %1787 = vst [vmem:[#allocation2 + $0x11c] sm:$0xf] %v1723
      %1788 = vst [vmem:[#allocation2 + $0x128] sm:$0xf] %v1724
      %1789 = vst [vmem:[#allocation2 + $0x134] sm:$0xf] %v1725
      %1790 = vst [vmem:[#allocation2 + $0x140] sm:$0xf] %v1726
      %1791 = vst [vmem:[#allocation2 + $0x14c] sm:$0xf] %v1727
      %1792 = vst [vmem:[#allocation2 + $0x158] sm:$0xf] %v1728
      %1793 = vst [vmem:[#allocation2 + $0x164] sm:$0xf] %v1729
      %1794 = vst [vmem:[#allocation2 + $0x170] sm:$0xf] %v1730
      %1795 = vst [vmem:[#allocation2 + $0x17c] sm:$0xf] %v1731
      %1796 = vst [vmem:[#allocation2 + $0x188] sm:$0xf] %v1732
      %1797 = vst [vmem:[#allocation2 + $0x194] sm:$0xf] %v1733
      %v1798 = vld [vmem:[#allocation2] sm:$0xff]
      %v1799 = vld [vmem:[#allocation2 + $0x8] sm:$0xf]
      %v1800 = vld [vmem:[#allocation2 + $0xc] sm:$0xff]
      %v1801 = vld [vmem:[#allocation2 + $0x14] sm:$0xf]
      %v1802 = vld [vmem:[#allocation2 + $0x18] sm:$0xff]
      %v1803 = vld [vmem:[#allocation2 + $0x20] sm:$0xf]
      %v1804 = vld [vmem:[#allocation2 + $0x24] sm:$0xff]
      %v1805 = vld [vmem:[#allocation2 + $0x2c] sm:$0xf]
      %v1806 = vld [vmem:[#allocation2 + $0x30] sm:$0xff]
      %v1807 = vld [vmem:[#allocation2 + $0x38] sm:$0xf]
      %v1808 = vld [vmem:[#allocation2 + $0x3c] sm:$0xff]
      %v1809 = vld [vmem:[#allocation2 + $0x44] sm:$0xf]
      %v1810 = vld [vmem:[#allocation2 + $0x48] sm:$0xff]
      %v1811 = vld [vmem:[#allocation2 + $0x50] sm:$0xf]
      %v1812 = vld [vmem:[#allocation2 + $0x54] sm:$0xff]
      %v1813 = vld [vmem:[#allocation2 + $0x5c] sm:$0xf]
      %v1814 = vld [vmem:[#allocation2 + $0x60] sm:$0xff]
      %v1815 = vld [vmem:[#allocation2 + $0x68] sm:$0xf]
      %v1816 = vld [vmem:[#allocation2 + $0x6c] sm:$0xff]
      %v1817 = vld [vmem:[#allocation2 + $0x74] sm:$0xf]
      %v1818 = vld [vmem:[#allocation2 + $0x78] sm:$0xff]
      %v1819 = vld [vmem:[#allocation2 + $0x80] sm:$0xf]
      %v1820 = vld [vmem:[#allocation2 + $0x84] sm:$0xff]
      %v1821 = vld [vmem:[#allocation2 + $0x8c] sm:$0xf]
      %v1822 = vld [vmem:[#allocation2 + $0x90] sm:$0xff]
      %v1823 = vld [vmem:[#allocation2 + $0x98] sm:$0xf]
      %v1824 = vld [vmem:[#allocation2 + $0x9c] sm:$0xff]
      %v1825 = vld [vmem:[#allocation2 + $0xa4] sm:$0xf]
      %v1826 = vld [vmem:[#allocation2 + $0xa8] sm:$0xff]
      %v1827 = vld [vmem:[#allocation2 + $0xb0] sm:$0xf]
      %v1828 = vld [vmem:[#allocation2 + $0xb4] sm:$0xff]
      %v1829 = vld [vmem:[#allocation2 + $0xbc] sm:$0xf]
      %v1830 = vld [vmem:[#allocation2 + $0xc0] sm:$0xff]
      %v1831 = vld [vmem:[#allocation2 + $0xc8] sm:$0xf]
      %v1832 = vld [vmem:[#allocation2 + $0xcc] sm:$0xff]
      %v1833 = vld [vmem:[#allocation2 + $0xd4] sm:$0xf]
      %v1834 = vld [vmem:[#allocation2 + $0xd8] sm:$0xff]
      %v1835 = vld [vmem:[#allocation2 + $0xe0] sm:$0xf]
      %v1836 = vld [vmem:[#allocation2 + $0xe4] sm:$0xff]
      %v1837 = vld [vmem:[#allocation2 + $0xec] sm:$0xf]
      %v1838 = vld [vmem:[#allocation2 + $0xf0] sm:$0xff]
      %v1839 = vld [vmem:[#allocation2 + $0xf8] sm:$0xf]
      %v1840 = vld [vmem:[#allocation2 + $0xfc] sm:$0xff]
      %v1841 = vld [vmem:[#allocation2 + $0x104] sm:$0xf]
      %v1842 = vld [vmem:[#allocation2 + $0x108] sm:$0xff]
      %v1843 = vld [vmem:[#allocation2 + $0x110] sm:$0xf]
      %v1844 = vld [vmem:[#allocation2 + $0x114] sm:$0xff]
      %v1845 = vld [vmem:[#allocation2 + $0x11c] sm:$0xf]
      %v1846 = vld [vmem:[#allocation2 + $0x120] sm:$0xff]
      %v1847 = vld [vmem:[#allocation2 + $0x128] sm:$0xf]
      %v1848 = vld [vmem:[#allocation2 + $0x12c] sm:$0xff]
      %v1849 = vld [vmem:[#allocation2 + $0x134] sm:$0xf]
      %v1850 = vld [vmem:[#allocation2 + $0x138] sm:$0xff]
      %v1851 = vld [vmem:[#allocation2 + $0x140] sm:$0xf]
      %v1852 = vld [vmem:[#allocation2 + $0x144] sm:$0xff]
      %v1853 = vld [vmem:[#allocation2 + $0x14c] sm:$0xf]
      %v1854 = vld [vmem:[#allocation2 + $0x150] sm:$0xff]
      %v1855 = vld [vmem:[#allocation2 + $0x158] sm:$0xf]
      %v1856 = vld [vmem:[#allocation2 + $0x15c] sm:$0xff]
      %v1857 = vld [vmem:[#allocation2 + $0x164] sm:$0xf]
      %v1858 = vld [vmem:[#allocation2 + $0x168] sm:$0xff]
      %v1859 = vld [vmem:[#allocation2 + $0x170] sm:$0xf]
      %v1860 = vld [vmem:[#allocation2 + $0x174] sm:$0xff]
      %v1861 = vld [vmem:[#allocation2 + $0x17c] sm:$0xf]
      %v1862 = vld [vmem:[%s3] sm:$0xf]
      %v1863 = vld [vmem:[%s3 + $0x4] sm:$0xf]
      %v1864 = vld [vmem:[%s3 + $0x8] sm:$0xf]
      %v1865 = vld [vmem:[%s3 + $0xc] sm:$0xf]
      %v1866 = vld [vmem:[%s3 + $0x10] sm:$0xf]
      %v1867 = vld [vmem:[%s3 + $0x14] sm:$0xf]
      %v1868 = vld [vmem:[%s3 + $0x18] sm:$0xf]
      %v1869 = vld [vmem:[%s3 + $0x1c] sm:$0xf]
      %v1870 = vld [vmem:[%s3 + $0x20] sm:$0xf]
      %v1871 = vld [vmem:[%s3 + $0x24] sm:$0xf]
      %v1872 = vld [vmem:[%s3 + $0x28] sm:$0xf]
      %v1873 = vld [vmem:[%s3 + $0x2c] sm:$0xf]
      %v1874 = vld [vmem:[%s3 + $0x30] sm:$0xf]
      %v1875 = vld [vmem:[%s3 + $0x34] sm:$0xf]
      %v1876 = vld [vmem:[%s3 + $0x38] sm:$0xf]
      %v1877 = vld [vmem:[%s3 + $0x3c] sm:$0xf]
      %v1878 = vld [vmem:[%s3 + $0x40] sm:$0xf]
      %v1879 = vld [vmem:[%s3 + $0x44] sm:$0xf]
      %v1880 = vld [vmem:[%s3 + $0x48] sm:$0xf]
      %v1881 = vld [vmem:[%s3 + $0x4c] sm:$0xf]
      %v1882 = vld [vmem:[%s3 + $0x50] sm:$0xf]
      %v1883 = vld [vmem:[%s3 + $0x54] sm:$0xf]
      %v1884 = vld [vmem:[%s3 + $0x58] sm:$0xf]
      %v1885 = vld [vmem:[%s3 + $0x5c] sm:$0xf]
      %v1886 = vld [vmem:[%s3 + $0x60] sm:$0xf]
      %v1887 = vld [vmem:[%s3 + $0x64] sm:$0xf]
      %v1888 = vld [vmem:[%s3 + $0x68] sm:$0xf]
      %v1889 = vld [vmem:[%s3 + $0x6c] sm:$0xf]
      %v1890 = vld [vmem:[%s3 + $0x70] sm:$0xf]
      %v1891 = vld [vmem:[%s3 + $0x74] sm:$0xf]
      %v1892 = vld [vmem:[%s3 + $0x78] sm:$0xf]
      %v1893 = vld [vmem:[%s3 + $0x7c] sm:$0xf]
      %v1894 = vld [vmem:[%s3 + $0x80] sm:$0xf]
      %v1895 = vld [vmem:[%s3 + $0x84] sm:$0xf]
      %v1896 = vld [vmem:[%s3 + $0x88] sm:$0xf]
      %v1897 = vld [vmem:[%s3 + $0x8c] sm:$0xf]
      %v1898 = vld [vmem:[%s3 + $0x90] sm:$0xf]
      %v1899 = vld [vmem:[%s3 + $0x94] sm:$0xf]
      %v1900 = vld [vmem:[%s3 + $0x98] sm:$0xf]
      %v1901 = vld [vmem:[%s3 + $0x9c] sm:$0xf]
      %v1902 = vld [vmem:[%s3 + $0xa0] sm:$0xf]
      %v1903 = vld [vmem:[%s3 + $0xa4] sm:$0xf]
      %v1904 = vld [vmem:[%s3 + $0xa8] sm:$0xf]
      %v1905 = vld [vmem:[%s3 + $0xac] sm:$0xf]
      %v1906 = vld [vmem:[%s3 + $0xb0] sm:$0xf]
      %v1907 = vld [vmem:[%s3 + $0xb4] sm:$0xf]
      %v1908 = vld [vmem:[%s3 + $0xb8] sm:$0xf]
      %v1909 = vld [vmem:[%s3 + $0xbc] sm:$0xf]
      %v1910 = vld [vmem:[#allocation2 + $0x180] sm:$0xff]
      %v1911 = vld [vmem:[#allocation2 + $0x188] sm:$0xf]
      %v1912 = vld [vmem:[#allocation2 + $0x18c] sm:$0xff]
      %v1913 = vld [vmem:[#allocation2 + $0x194] sm:$0xf]
      %s1914 = scalar_lea.vmem %s3, 192
      %v1915 = vld [vmem:[%s1914] sm:$0xf]
      %v1916 = vld [vmem:[%s1914 + $0x4] sm:$0xf]
      %v1917 = vld [vmem:[%s1914 + $0x8] sm:$0xf]
      %v1918 = vld [vmem:[%s1914 + $0xc] sm:$0xf]
      %v1919 = vld [vmem:[%s1914 + $0x10] sm:$0xf]
      %v1920 = vld [vmem:[%s1914 + $0x14] sm:$0xf]
      %v1921 = vld [vmem:[%s1914 + $0x18] sm:$0xf]
      %v1922 = vld [vmem:[%s1914 + $0x1c] sm:$0xf]
      %v1923 = vld [vmem:[%s1914 + $0x20] sm:$0xf]
      %v1924 = vld [vmem:[%s1914 + $0x24] sm:$0xf]
      %v1925 = vld [vmem:[%s1914 + $0x28] sm:$0xf]
      %v1926 = vld [vmem:[%s1914 + $0x2c] sm:$0xf]
      %v1927 = vld [vmem:[%s1914 + $0x30] sm:$0xf]
      %v1928 = vld [vmem:[%s1914 + $0x34] sm:$0xf]
      %v1929 = vld [vmem:[%s1914 + $0x38] sm:$0xf]
      %v1930 = vld [vmem:[%s1914 + $0x3c] sm:$0xf]
      %v1931 = vld [vmem:[%s1914 + $0x40] sm:$0xf]
      %v1932 = vld [vmem:[%s1914 + $0x44] sm:$0xf]
      %v1933 = vld [vmem:[%s1914 + $0x48] sm:$0xf]
      %v1934 = vld [vmem:[%s1914 + $0x4c] sm:$0xf]
      %v1935 = vld [vmem:[%s1914 + $0x50] sm:$0xf]
      %v1936 = vld [vmem:[%s1914 + $0x54] sm:$0xf]
      %v1937 = vld [vmem:[%s1914 + $0x58] sm:$0xf]
      %v1938 = vld [vmem:[%s1914 + $0x5c] sm:$0xf]
      %v1939 = vld [vmem:[%s1914 + $0x60] sm:$0xf]
      %v1940 = vld [vmem:[%s1914 + $0x64] sm:$0xf]
      %v1941 = vld [vmem:[%s1914 + $0x68] sm:$0xf]
      %v1942 = vld [vmem:[%s1914 + $0x6c] sm:$0xf]
      %v1943 = vld [vmem:[%s1914 + $0x70] sm:$0xf]
      %v1944 = vld [vmem:[%s1914 + $0x74] sm:$0xf]
      %v1945 = vld [vmem:[%s1914 + $0x78] sm:$0xf]
      %v1946 = vld [vmem:[%s1914 + $0x7c] sm:$0xf]
      %v1947 = vld [vmem:[%s1914 + $0x80] sm:$0xf]
      %v1948 = vld [vmem:[%s1914 + $0x84] sm:$0xf]
      %v1949 = vld [vmem:[%s1914 + $0x88] sm:$0xf]
      %v1950 = vld [vmem:[%s1914 + $0x8c] sm:$0xf]
      %v1951 = vld [vmem:[%s1914 + $0x90] sm:$0xf]
      %v1952 = vld [vmem:[%s1914 + $0x94] sm:$0xf]
      %v1953 = vld [vmem:[%s1914 + $0x98] sm:$0xf]
      %v1954 = vld [vmem:[%s1914 + $0x9c] sm:$0xf]
      %v1955 = vld [vmem:[%s1914 + $0xa0] sm:$0xf]
      %v1956 = vld [vmem:[%s1914 + $0xa4] sm:$0xf]
      %v1957 = vld [vmem:[%s1914 + $0xa8] sm:$0xf]
      %v1958 = vld [vmem:[%s1914 + $0xac] sm:$0xf]
      %v1959 = vld [vmem:[%s1914 + $0xb0] sm:$0xf]
      %v1960 = vld [vmem:[%s1914 + $0xb4] sm:$0xf]
      %v1961 = vld [vmem:[%s1914 + $0xb8] sm:$0xf]
      %v1962 = vld [vmem:[%s1914 + $0xbc] sm:$0xf]
      %v2027 = vunpack.c.l.b16 %v1802
      %v2028 = vunpack.c.h.b16 %v1802
      %v2029 = vunpack.c.l.b16 %v1803
      %v2030 = vunpack.c.l.b16 %v1804
      %v2031 = vunpack.c.h.b16 %v1804
      %v2032 = vunpack.c.l.b16 %v1805
      %v2033 = vunpack.c.l.b16 %v1806
      %v2034 = vunpack.c.h.b16 %v1806
      %v2035 = vunpack.c.l.b16 %v1807
      %v2036 = vunpack.c.l.b16 %v1808
      %v2037 = vunpack.c.h.b16 %v1808
      %v2038 = vunpack.c.l.b16 %v1809
      %v2039 = vunpack.c.l.b16 %v1810
      %v2040 = vunpack.c.h.b16 %v1810
      %v2041 = vunpack.c.l.b16 %v1811
      %v2042 = vunpack.c.l.b16 %v1812
      %v2043 = vunpack.c.h.b16 %v1812
      %v2044 = vunpack.c.l.b16 %v1813
      %v2045 = vunpack.c.l.b16 %v1814
      %v2046 = vunpack.c.h.b16 %v1814
      %v2047 = vunpack.c.l.b16 %v1815
      %v2048 = vunpack.c.l.b16 %v1816
      %v2049 = vunpack.c.h.b16 %v1816
      %v2050 = vunpack.c.l.b16 %v1817
      %v2051 = vunpack.c.l.b16 %v1818
      %v2052 = vunpack.c.h.b16 %v1818
      %v2053 = vunpack.c.l.b16 %v1819
      %v2054 = vunpack.c.l.b16 %v1820
      %v2055 = vunpack.c.h.b16 %v1820
      %v2056 = vunpack.c.l.b16 %v1821
      %v2057 = vunpack.c.l.b16 %v1822
      %v2058 = vunpack.c.h.b16 %v1822
      %v2059 = vunpack.c.l.b16 %v1823
      %v2060 = vunpack.c.l.b16 %v1824
      %v2061 = vunpack.c.h.b16 %v1824
      %v2062 = vunpack.c.l.b16 %v1825
      %v2063 = vunpack.c.l.b16 %v1826
      %v2064 = vunpack.c.h.b16 %v1826
      %v2065 = vunpack.c.l.b16 %v1827
      %v2066 = vunpack.c.l.b16 %v1828
      %v2067 = vunpack.c.h.b16 %v1828
      %v2068 = vunpack.c.l.b16 %v1829
      %v2069 = vunpack.c.l.b16 %v1830
      %v2070 = vunpack.c.h.b16 %v1830
      %v2071 = vunpack.c.l.b16 %v1831
      %v2072 = vunpack.c.l.b16 %v1832
      %v2073 = vunpack.c.h.b16 %v1832
      %v2074 = vunpack.c.l.b16 %v1833
      %v2075 = vunpack.c.l.b16 %v1834
      %v2076 = vunpack.c.h.b16 %v1834
      %v2077 = vunpack.c.l.b16 %v1835
      %v2078 = vunpack.c.l.b16 %v1836
      %v2079 = vunpack.c.h.b16 %v1836
      %v2080 = vunpack.c.l.b16 %v1837
      %v2081 = vunpack.c.l.b16 %v1838
      %v2082 = vunpack.c.h.b16 %v1838
      %v2083 = vunpack.c.l.b16 %v1839
      %v2084 = vunpack.c.l.b16 %v1840
      %v2085 = vunpack.c.h.b16 %v1840
      %v2086 = vunpack.c.l.b16 %v1841
      %v2087 = vunpack.c.l.b16 %v1842
      %v2088 = vunpack.c.h.b16 %v1842
      %v2089 = vunpack.c.l.b16 %v1843
      %v2090 = vunpack.c.l.b16 %v1844
      %v2091 = vunpack.c.h.b16 %v1844
      %v2092 = vunpack.c.l.b16 %v1845
      %v2093 = vunpack.c.l.b16 %v1846
      %v2094 = vunpack.c.h.b16 %v1846
      %v2095 = vunpack.c.l.b16 %v1847
      %v2096 = vunpack.c.l.b16 %v1848
      %v2097 = vunpack.c.h.b16 %v1848
      %v2098 = vunpack.c.l.b16 %v1849
      %v2099 = vunpack.c.l.b16 %v1850
      %v2100 = vunpack.c.h.b16 %v1850
      %v2101 = vunpack.c.l.b16 %v1851
      %v2102 = vunpack.c.l.b16 %v1852
      %v2103 = vunpack.c.h.b16 %v1852
      %v2104 = vunpack.c.l.b16 %v1853
      %v2105 = vunpack.c.l.b16 %v1854
      %v2106 = vunpack.c.h.b16 %v1854
      %v2107 = vunpack.c.l.b16 %v1855
      %v2108 = vunpack.c.l.b16 %v1856
      %v2109 = vunpack.c.h.b16 %v1856
      %v2110 = vunpack.c.l.b16 %v1857
      %v2111 = vunpack.c.l.b16 %v1858
      %v2112 = vunpack.c.h.b16 %v1858
      %v2113 = vunpack.c.l.b16 %v1859
      %v2114 = vunpack.c.l.b16 %v1860
      %v2115 = vunpack.c.h.b16 %v1860
      %v2116 = vunpack.c.l.b16 %v1861
      %v2117 = vunpack.c.l.b16 %v1910
      %v2118 = vunpack.c.h.b16 %v1910
      %v2119 = vunpack.c.l.b16 %v1911
      %v2120 = vunpack.c.l.b16 %v1912
      %v2121 = vunpack.c.h.b16 %v1912
      %v2122 = vunpack.c.l.b16 %v1913
      %v2123 = vpack.c.b16 %v2030, %v2027
      %v2124 = vpack.c.b16 %v2031, %v2028
      %v2125 = vpack.c.b16 %v2032, %v2029
      %v2126 = vpack.c.b16 %v2036, %v2033
      %v2127 = vpack.c.b16 %v2037, %v2034
      %v2128 = vpack.c.b16 %v2038, %v2035
      %v2129 = vpack.c.b16 %v2042, %v2039
      %v2130 = vpack.c.b16 %v2043, %v2040
      %v2131 = vpack.c.b16 %v2044, %v2041
      %v2132 = vpack.c.b16 %v2048, %v2045
      %v2133 = vpack.c.b16 %v2049, %v2046
      %v2134 = vpack.c.b16 %v2050, %v2047
      %v2135 = vpack.c.b16 %v2054, %v2051
      %v2136 = vpack.c.b16 %v2055, %v2052
      %v2137 = vpack.c.b16 %v2056, %v2053
      %v2138 = vpack.c.b16 %v2060, %v2057
      %v2139 = vpack.c.b16 %v2061, %v2058
      %v2140 = vpack.c.b16 %v2062, %v2059
      %v2141 = vpack.c.b16 %v2066, %v2063
      %v2142 = vpack.c.b16 %v2067, %v2064
      %v2143 = vpack.c.b16 %v2068, %v2065
      %v2144 = vpack.c.b16 %v2072, %v2069
      %v2145 = vpack.c.b16 %v2073, %v2070
      %v2146 = vpack.c.b16 %v2074, %v2071
      %v2147 = vpack.c.b16 %v2078, %v2075
      %v2148 = vpack.c.b16 %v2079, %v2076
      %v2149 = vpack.c.b16 %v2080, %v2077
      %v2150 = vpack.c.b16 %v2084, %v2081
      %v2151 = vpack.c.b16 %v2085, %v2082
      %v2152 = vpack.c.b16 %v2086, %v2083
      %v2153 = vpack.c.b16 %v2090, %v2087
      %v2154 = vpack.c.b16 %v2091, %v2088
      %v2155 = vpack.c.b16 %v2092, %v2089
      %v2156 = vpack.c.b16 %v2096, %v2093
      %v2157 = vpack.c.b16 %v2097, %v2094
      %v2158 = vpack.c.b16 %v2098, %v2095
      %v2159 = vpack.c.b16 %v2102, %v2099
      %v2160 = vpack.c.b16 %v2103, %v2100
      %v2161 = vpack.c.b16 %v2104, %v2101
      %v2162 = vpack.c.b16 %v2108, %v2105
      %v2163 = vpack.c.b16 %v2109, %v2106
      %v2164 = vpack.c.b16 %v2110, %v2107
      %v2165 = vpack.c.b16 %v2114, %v2111
      %v2166 = vpack.c.b16 %v2115, %v2112
      %v2167 = vpack.c.b16 %v2116, %v2113
      %v2168 = vpack.c.b16 %v2120, %v2117
      %v2169 = vpack.c.b16 %v2121, %v2118
      %v2170 = vpack.c.b16 %v2122, %v2119
      %v2267 = vunpack.c.l.b16 %v1915
      %v2268 = vunpack.c.l.b16 %v1916
      %v2269 = vunpack.c.l.b16 %v1917
      %v2270 = vunpack.c.l.b16 %v1918
      %v2271 = vunpack.c.l.b16 %v1919
      %v2272 = vunpack.c.l.b16 %v1920
      %v2273 = vunpack.c.l.b16 %v1921
      %v2274 = vunpack.c.l.b16 %v1922
      %v2275 = vunpack.c.l.b16 %v1923
      %v2276 = vunpack.c.l.b16 %v1924
      %v2277 = vunpack.c.l.b16 %v1925
      %v2278 = vunpack.c.l.b16 %v1926
      %v2279 = vunpack.c.l.b16 %v1927
      %v2280 = vunpack.c.l.b16 %v1928
      %v2281 = vunpack.c.l.b16 %v1929
      %v2282 = vunpack.c.l.b16 %v1930
      %v2283 = vunpack.c.l.b16 %v1931
      %v2284 = vunpack.c.l.b16 %v1932
      %v2285 = vunpack.c.l.b16 %v1933
      %v2286 = vunpack.c.l.b16 %v1934
      %v2287 = vunpack.c.l.b16 %v1935
      %v2288 = vunpack.c.l.b16 %v1936
      %v2289 = vunpack.c.l.b16 %v1937
      %v2290 = vunpack.c.l.b16 %v1938
      %v2291 = vunpack.c.l.b16 %v1939
      %v2292 = vunpack.c.l.b16 %v1940
      %v2293 = vunpack.c.l.b16 %v1941
      %v2294 = vunpack.c.l.b16 %v1942
      %v2295 = vunpack.c.l.b16 %v1943
      %v2296 = vunpack.c.l.b16 %v1944
      %v2297 = vunpack.c.l.b16 %v1945
      %v2298 = vunpack.c.l.b16 %v1946
      %v2299 = vunpack.c.l.b16 %v1947
      %v2300 = vunpack.c.l.b16 %v1948
      %v2301 = vunpack.c.l.b16 %v1949
      %v2302 = vunpack.c.l.b16 %v1950
      %v2303 = vunpack.c.l.b16 %v1951
      %v2304 = vunpack.c.l.b16 %v1952
      %v2305 = vunpack.c.l.b16 %v1953
      %v2306 = vunpack.c.l.b16 %v1954
      %v2307 = vunpack.c.l.b16 %v1955
      %v2308 = vunpack.c.l.b16 %v1956
      %v2309 = vunpack.c.l.b16 %v1957
      %v2310 = vunpack.c.l.b16 %v1958
      %v2311 = vunpack.c.l.b16 %v1959
      %v2312 = vunpack.c.l.b16 %v1960
      %v2313 = vunpack.c.l.b16 %v1961
      %v2314 = vunpack.c.l.b16 %v1962
      %v2315 = vpack.c.b16 %v2268, %v2267
      %v2316 = vpack.c.b16 %v2270, %v2269
      %v2317 = vpack.c.b16 %v2272, %v2271
      %v2318 = vpack.c.b16 %v2274, %v2273
      %v2319 = vpack.c.b16 %v2276, %v2275
      %v2320 = vpack.c.b16 %v2278, %v2277
      %v2321 = vpack.c.b16 %v2280, %v2279
      %v2322 = vpack.c.b16 %v2282, %v2281
      %v2323 = vpack.c.b16 %v2284, %v2283
      %v2324 = vpack.c.b16 %v2286, %v2285
      %v2325 = vpack.c.b16 %v2288, %v2287
      %v2326 = vpack.c.b16 %v2290, %v2289
      %v2327 = vpack.c.b16 %v2292, %v2291
      %v2328 = vpack.c.b16 %v2294, %v2293
      %v2329 = vpack.c.b16 %v2296, %v2295
      %v2330 = vpack.c.b16 %v2298, %v2297
      %v2331 = vpack.c.b16 %v2300, %v2299
      %v2332 = vpack.c.b16 %v2302, %v2301
      %v2333 = vpack.c.b16 %v2304, %v2303
      %v2334 = vpack.c.b16 %v2306, %v2305
      %v2335 = vpack.c.b16 %v2308, %v2307
      %v2336 = vpack.c.b16 %v2310, %v2309
      %v2337 = vpack.c.b16 %v2312, %v2311
      %v2338 = vpack.c.b16 %v2314, %v2313
      %2363 = vmatprep.subr.bf16.mxu0 0
      %2364 = vmatpush1.bf16.msra.mxu0 %v2322
      %2365 = vmatprep.subr.bf16.mxu0 0
      %2366 = vmatpush1.bf16.msra.mxu0 %v2321
      %2367 = vmatprep.subr.bf16.mxu0 0
      %2368 = vmatpush1.bf16.msra.mxu0 %v2320
      %2369 = vmatprep.subr.bf16.mxu0 0
      %2370 = vmatpush1.bf16.msra.mxu0 %v2319
      %2371 = vmatprep.subr.bf16.mxu0 0
      %2372 = vmatpush1.bf16.msra.mxu0 %v2318
      %2373 = vmatprep.subr.bf16.mxu0 0
      %2374 = vmatpush1.bf16.msra.mxu0 %v2317
      %2375 = vmatprep.subr.bf16.mxu0 0
      %2376 = vmatpush1.bf16.msra.mxu0 %v2316
      %2377 = vmatprep.subr.bf16.mxu0 0
      %2378 = vmatpush1.bf16.msra.mxu0 %v2315
      %2379 = vmatprep.subr.bf16.mxu0 0
      %2380 = vmatpush2.bf16.msra.mxu0 %v2330
      %2381 = vmatprep.subr.bf16.mxu0 0
      %2382 = vmatpush2.bf16.msra.mxu0 %v2329
      %2383 = vmatprep.subr.bf16.mxu0 0
      %2384 = vmatpush2.bf16.msra.mxu0 %v2328
      %2385 = vmatprep.subr.bf16.mxu0 0
      %2386 = vmatpush2.bf16.msra.mxu0 %v2327
      %2387 = vmatprep.subr.bf16.mxu0 0
      %2388 = vmatpush2.bf16.msra.mxu0 %v2326
      %2389 = vmatprep.subr.bf16.mxu0 0
      %2390 = vmatpush2.bf16.msra.mxu0 %v2325
      %2391 = vmatprep.subr.bf16.mxu0 0
      %2392 = vmatpush2.bf16.msra.mxu0 %v2324
      %2393 = vmatprep.subr.bf16.mxu0 0
      %2394 = vmatpush2.bf16.msra.mxu0 %v2323
      %2395 = vmatprep.mubr.bf16.mxu0 %v2124
      %2396 = vmatmul.mubr.bf16.gmra.mxu0 %v2123
      %v2397 = vpop.f32.mrf.mxu0
      %v2398 = vadd.f32 0.0, %v2397
      %v2399 = vpop.f32.mrf.mxu0
      %v2400 = vpop.f32.mrf.mxu0
      %v2401 = vadd.f32 0.0, %v2400
      %v2402 = vpop.f32.mrf.mxu0
      %2403 = vmatprep.mubr.bf16.mxu0 %v2127
      %2404 = vmatmul.mubr.bf16.gmra.mxu0 %v2126
      %v2405 = vpop.f32.mrf.mxu0
      %v2406 = vadd.f32 0.0, %v2405
      %v2407 = vpop.f32.mrf.mxu0
      %v2408 = vpop.f32.mrf.mxu0
      %v2409 = vadd.f32 0.0, %v2408
      %v2410 = vpop.f32.mrf.mxu0
      %2411 = vmatprep.mubr.bf16.mxu0 %v2130
      %2412 = vmatmul.mubr.bf16.gmra.mxu0 %v2129
      %v2413 = vpop.f32.mrf.mxu0
      %v2414 = vadd.f32 0.0, %v2413
      %v2415 = vpop.f32.mrf.mxu0
      %v2416 = vpop.f32.mrf.mxu0
      %v2417 = vadd.f32 0.0, %v2416
      %v2418 = vpop.f32.mrf.mxu0
      %2419 = vmatprep.mubr.bf16.mxu0 %v2133
      %2420 = vmatmul.mubr.bf16.gmra.mxu0 %v2132
      %v2421 = vpop.f32.mrf.mxu0
      %v2422 = vadd.f32 0.0, %v2421
      %v2423 = vpop.f32.mrf.mxu0
      %v2424 = vpop.f32.mrf.mxu0
      %v2425 = vadd.f32 0.0, %v2424
      %v2426 = vpop.f32.mrf.mxu0
      %2427 = vmatprep.mubr.bf16.mxu0 %v2136
      %2428 = vmatmul.mubr.bf16.gmra.mxu0 %v2135
      %v2429 = vpop.f32.mrf.mxu0
      %v2430 = vadd.f32 0.0, %v2429
      %v2431 = vpop.f32.mrf.mxu0
      %v2432 = vpop.f32.mrf.mxu0
      %v2433 = vadd.f32 0.0, %v2432
      %v2434 = vpop.f32.mrf.mxu0
      %2435 = vmatprep.mubr.bf16.mxu0 %v2139
      %2436 = vmatmul.mubr.bf16.gmra.mxu0 %v2138
      %v2437 = vpop.f32.mrf.mxu0
      %v2438 = vadd.f32 0.0, %v2437
      %v2439 = vpop.f32.mrf.mxu0
      %v2440 = vpop.f32.mrf.mxu0
      %v2441 = vadd.f32 0.0, %v2440
      %v2442 = vpop.f32.mrf.mxu0
      %2443 = vmatprep.mubr.bf16.mxu0 %v2142
      %2444 = vmatmul.mubr.bf16.gmra.mxu0 %v2141
      %v2445 = vpop.f32.mrf.mxu0
      %v2446 = vadd.f32 0.0, %v2445
      %v2447 = vpop.f32.mrf.mxu0
      %v2448 = vpop.f32.mrf.mxu0
      %v2449 = vadd.f32 0.0, %v2448
      %v2450 = vpop.f32.mrf.mxu0
      %2451 = vmatprep.mubr.bf16.mxu0 %v2145
      %2452 = vmatmul.mubr.bf16.gmra.mxu0 %v2144
      %v2453 = vpop.f32.mrf.mxu0
      %v2454 = vadd.f32 0.0, %v2453
      %v2455 = vpop.f32.mrf.mxu0
      %v2456 = vpop.f32.mrf.mxu0
      %v2457 = vadd.f32 0.0, %v2456
      %v2458 = vpop.f32.mrf.mxu0
      %2459 = vmatprep.mubr.bf16.mxu0 %v2148
      %2460 = vmatmul.mubr.bf16.gmra.mxu0 %v2147
      %v2461 = vpop.f32.mrf.mxu0
      %v2462 = vadd.f32 0.0, %v2461
      %v2463 = vpop.f32.mrf.mxu0
      %v2464 = vpop.f32.mrf.mxu0
      %v2465 = vadd.f32 0.0, %v2464
      %v2466 = vpop.f32.mrf.mxu0
      %2467 = vmatprep.mubr.bf16.mxu0 %v2151
      %2468 = vmatmul.mubr.bf16.gmra.mxu0 %v2150
      %v2469 = vpop.f32.mrf.mxu0
      %v2470 = vadd.f32 0.0, %v2469
      %v2471 = vpop.f32.mrf.mxu0
      %v2472 = vpop.f32.mrf.mxu0
      %v2473 = vadd.f32 0.0, %v2472
      %v2474 = vpop.f32.mrf.mxu0
      %2475 = vmatprep.mubr.bf16.mxu0 %v2154
      %2476 = vmatmul.mubr.bf16.gmra.mxu0 %v2153
      %v2477 = vpop.f32.mrf.mxu0
      %v2478 = vadd.f32 0.0, %v2477
      %v2479 = vpop.f32.mrf.mxu0
      %v2480 = vpop.f32.mrf.mxu0
      %v2481 = vadd.f32 0.0, %v2480
      %v2482 = vpop.f32.mrf.mxu0
      %2483 = vmatprep.mubr.bf16.mxu0 %v2157
      %2484 = vmatmul.mubr.bf16.gmra.mxu0 %v2156
      %v2485 = vpop.f32.mrf.mxu0
      %v2486 = vadd.f32 0.0, %v2485
      %v2487 = vpop.f32.mrf.mxu0
      %v2488 = vpop.f32.mrf.mxu0
      %v2489 = vadd.f32 0.0, %v2488
      %v2490 = vpop.f32.mrf.mxu0
      %2491 = vmatprep.mubr.bf16.mxu0 %v2160
      %2492 = vmatmul.mubr.bf16.gmra.mxu0 %v2159
      %v2493 = vpop.f32.mrf.mxu0
      %v2494 = vadd.f32 0.0, %v2493
      %v2495 = vpop.f32.mrf.mxu0
      %v2496 = vpop.f32.mrf.mxu0
      %v2497 = vadd.f32 0.0, %v2496
      %v2498 = vpop.f32.mrf.mxu0
      %2499 = vmatprep.mubr.bf16.mxu0 %v2163
      %2500 = vmatmul.mubr.bf16.gmra.mxu0 %v2162
      %v2501 = vpop.f32.mrf.mxu0
      %v2502 = vadd.f32 0.0, %v2501
      %v2503 = vpop.f32.mrf.mxu0
      %v2504 = vpop.f32.mrf.mxu0
      %v2505 = vadd.f32 0.0, %v2504
      %v2506 = vpop.f32.mrf.mxu0
      %2507 = vmatprep.mubr.bf16.mxu0 %v2166
      %2508 = vmatmul.mubr.bf16.gmra.mxu0 %v2165
      %v2509 = vpop.f32.mrf.mxu0
      %v2510 = vadd.f32 0.0, %v2509
      %v2511 = vpop.f32.mrf.mxu0
      %v2512 = vpop.f32.mrf.mxu0
      %v2513 = vadd.f32 0.0, %v2512
      %v2514 = vpop.f32.mrf.mxu0
      %2515 = vmatprep.mubr.bf16.mxu0 %v2169
      %2516 = vmatmul.mubr.bf16.gmra.mxu0 %v2168
      %v2517 = vpop.f32.mrf.mxu0
      %v2518 = vadd.f32 0.0, %v2517
      %v2519 = vpop.f32.mrf.mxu0
      %v2520 = vpop.f32.mrf.mxu0
      %v2521 = vadd.f32 0.0, %v2520
      %v2522 = vpop.f32.mrf.mxu0
      %2523 = vdwg.mxu0
      %2524 = vmatprep.subr.bf16.mxu0 0
      %2525 = vmatpush1.bf16.msra.mxu0 %v2338
      %2526 = vmatprep.subr.bf16.mxu0 0
      %2527 = vmatpush1.bf16.msra.mxu0 %v2337
      %2528 = vmatprep.subr.bf16.mxu0 0
      %2529 = vmatpush1.bf16.msra.mxu0 %v2336
      %2530 = vmatprep.subr.bf16.mxu0 0
      %2531 = vmatpush1.bf16.msra.mxu0 %v2335
      %2532 = vmatprep.subr.bf16.mxu0 0
      %2533 = vmatpush1.bf16.msra.mxu0 %v2334
      %2534 = vmatprep.subr.bf16.mxu0 0
      %2535 = vmatpush1.bf16.msra.mxu0 %v2333
      %2536 = vmatprep.subr.bf16.mxu0 0
      %2537 = vmatpush1.bf16.msra.mxu0 %v2332
      %2538 = vmatprep.subr.bf16.mxu0 0
      %2539 = vmatpush1.bf16.msra.mxu0 %v2331
      %2540 = vmatprep.subr.bf16.mxu0 0
      %2541 = vmatpush2.bf16.msra.mxu0 0
      %2542 = vmatprep.subr.bf16.mxu0 0
      %2543 = vmatpush2.bf16.msra.mxu0 0
      %2544 = vmatprep.subr.bf16.mxu0 0
      %2545 = vmatpush2.bf16.msra.mxu0 0
      %2546 = vmatprep.subr.bf16.mxu0 0
      %2547 = vmatpush2.bf16.msra.mxu0 0
      %2548 = vmatprep.subr.bf16.mxu0 0
      %2549 = vmatpush2.bf16.msra.mxu0 0
      %2550 = vmatprep.subr.bf16.mxu0 0
      %2551 = vmatpush2.bf16.msra.mxu0 0
      %2552 = vmatprep.subr.bf16.mxu0 0
      %2553 = vmatpush2.bf16.msra.mxu0 0
      %2554 = vmatprep.subr.bf16.mxu0 0
      %2555 = vmatpush2.bf16.msra.mxu0 0
      %2556 = vmatprep.mubr.bf16.mxu0 0
      %2557 = vmatmul.mubr.bf16.gmra.mxu0 %v2125
      %v2558 = vpop.f32.mrf.mxu0
      %v2559 = vadd.f32 %v2398, %v2558
      %v2560 = vpop.f32.mrf.mxu0
      %v2561 = vpop.f32.mrf.mxu0
      %v2562 = vadd.f32 %v2401, %v2561
      %v2563 = vpop.f32.mrf.mxu0
      %2564 = vmatprep.mubr.bf16.mxu0 0
      %2565 = vmatmul.mubr.bf16.gmra.mxu0 %v2128
      %v2566 = vpop.f32.mrf.mxu0
      %v2567 = vadd.f32 %v2406, %v2566
      %v2568 = vpop.f32.mrf.mxu0
      %v2569 = vpop.f32.mrf.mxu0
      %v2570 = vadd.f32 %v2409, %v2569
      %v2571 = vpop.f32.mrf.mxu0
      %2572 = vmatprep.mubr.bf16.mxu0 0
      %2573 = vmatmul.mubr.bf16.gmra.mxu0 %v2131
      %v2574 = vpop.f32.mrf.mxu0
      %v2575 = vadd.f32 %v2414, %v2574
      %v2576 = vpop.f32.mrf.mxu0
      %v2577 = vpop.f32.mrf.mxu0
      %v2578 = vadd.f32 %v2417, %v2577
      %v2579 = vpop.f32.mrf.mxu0
      %2580 = vmatprep.mubr.bf16.mxu0 0
      %2581 = vmatmul.mubr.bf16.gmra.mxu0 %v2134
      %v2582 = vpop.f32.mrf.mxu0
      %v2583 = vadd.f32 %v2422, %v2582
      %v2584 = vpop.f32.mrf.mxu0
      %v2585 = vpop.f32.mrf.mxu0
      %v2586 = vadd.f32 %v2425, %v2585
      %v2587 = vpop.f32.mrf.mxu0
      %2588 = vmatprep.mubr.bf16.mxu0 0
      %2589 = vmatmul.mubr.bf16.gmra.mxu0 %v2137
      %v2590 = vpop.f32.mrf.mxu0
      %v2591 = vadd.f32 %v2430, %v2590
      %v2592 = vpop.f32.mrf.mxu0
      %v2593 = vpop.f32.mrf.mxu0
      %v2594 = vadd.f32 %v2433, %v2593
      %v2595 = vpop.f32.mrf.mxu0
      %2596 = vmatprep.mubr.bf16.mxu0 0
      %2597 = vmatmul.mubr.bf16.gmra.mxu0 %v2140
      %v2598 = vpop.f32.mrf.mxu0
      %v2599 = vadd.f32 %v2438, %v2598
      %v2600 = vpop.f32.mrf.mxu0
      %v2601 = vpop.f32.mrf.mxu0
      %v2602 = vadd.f32 %v2441, %v2601
      %v2603 = vpop.f32.mrf.mxu0
      %2604 = vmatprep.mubr.bf16.mxu0 0
      %2605 = vmatmul.mubr.bf16.gmra.mxu0 %v2143
      %v2606 = vpop.f32.mrf.mxu0
      %v2607 = vadd.f32 %v2446, %v2606
      %v2608 = vpop.f32.mrf.mxu0
      %v2609 = vpop.f32.mrf.mxu0
      %v2610 = vadd.f32 %v2449, %v2609
      %v2611 = vpop.f32.mrf.mxu0
      %2612 = vmatprep.mubr.bf16.mxu0 0
      %2613 = vmatmul.mubr.bf16.gmra.mxu0 %v2146
      %v2614 = vpop.f32.mrf.mxu0
      %v2615 = vadd.f32 %v2454, %v2614
      %v2616 = vpop.f32.mrf.mxu0
      %v2617 = vpop.f32.mrf.mxu0
      %v2618 = vadd.f32 %v2457, %v2617
      %v2619 = vpop.f32.mrf.mxu0
      %2620 = vmatprep.mubr.bf16.mxu0 0
      %2621 = vmatmul.mubr.bf16.gmra.mxu0 %v2149
      %v2622 = vpop.f32.mrf.mxu0
      %v2623 = vadd.f32 %v2462, %v2622
      %v2624 = vpop.f32.mrf.mxu0
      %v2625 = vpop.f32.mrf.mxu0
      %v2626 = vadd.f32 %v2465, %v2625
      %v2627 = vpop.f32.mrf.mxu0
      %2628 = vmatprep.mubr.bf16.mxu0 0
      %2629 = vmatmul.mubr.bf16.gmra.mxu0 %v2152
      %v2630 = vpop.f32.mrf.mxu0
      %v2631 = vadd.f32 %v2470, %v2630
      %v2632 = vpop.f32.mrf.mxu0
      %v2633 = vpop.f32.mrf.mxu0
      %v2634 = vadd.f32 %v2473, %v2633
      %v2635 = vpop.f32.mrf.mxu0
      %2636 = vmatprep.mubr.bf16.mxu0 0
      %2637 = vmatmul.mubr.bf16.gmra.mxu0 %v2155
      %v2638 = vpop.f32.mrf.mxu0
      %v2639 = vadd.f32 %v2478, %v2638
      %v2640 = vpop.f32.mrf.mxu0
      %v2641 = vpop.f32.mrf.mxu0
      %v2642 = vadd.f32 %v2481, %v2641
      %v2643 = vpop.f32.mrf.mxu0
      %2644 = vmatprep.mubr.bf16.mxu0 0
      %2645 = vmatmul.mubr.bf16.gmra.mxu0 %v2158
      %v2646 = vpop.f32.mrf.mxu0
      %v2647 = vadd.f32 %v2486, %v2646
      %v2648 = vpop.f32.mrf.mxu0
      %v2649 = vpop.f32.mrf.mxu0
      %v2650 = vadd.f32 %v2489, %v2649
      %v2651 = vpop.f32.mrf.mxu0
      %2652 = vmatprep.mubr.bf16.mxu0 0
      %2653 = vmatmul.mubr.bf16.gmra.mxu0 %v2161
      %v2654 = vpop.f32.mrf.mxu0
      %v2655 = vadd.f32 %v2494, %v2654
      %v2656 = vpop.f32.mrf.mxu0
      %v2657 = vpop.f32.mrf.mxu0
      %v2658 = vadd.f32 %v2497, %v2657
      %v2659 = vpop.f32.mrf.mxu0
      %2660 = vmatprep.mubr.bf16.mxu0 0
      %2661 = vmatmul.mubr.bf16.gmra.mxu0 %v2164
      %v2662 = vpop.f32.mrf.mxu0
      %v2663 = vadd.f32 %v2502, %v2662
      %v2664 = vpop.f32.mrf.mxu0
      %v2665 = vpop.f32.mrf.mxu0
      %v2666 = vadd.f32 %v2505, %v2665
      %v2667 = vpop.f32.mrf.mxu0
      %2668 = vmatprep.mubr.bf16.mxu0 0
      %2669 = vmatmul.mubr.bf16.gmra.mxu0 %v2167
      %v2670 = vpop.f32.mrf.mxu0
      %v2671 = vadd.f32 %v2510, %v2670
      %v2672 = vpop.f32.mrf.mxu0
      %v2673 = vpop.f32.mrf.mxu0
      %v2674 = vadd.f32 %v2513, %v2673
      %v2675 = vpop.f32.mrf.mxu0
      %2676 = vmatprep.mubr.bf16.mxu0 0
      %2677 = vmatmul.mubr.bf16.gmra.mxu0 %v2170
      %v2678 = vpop.f32.mrf.mxu0
      %v2679 = vadd.f32 %v2518, %v2678
      %v2680 = vpop.f32.mrf.mxu0
      %v2681 = vpop.f32.mrf.mxu0
      %v2682 = vadd.f32 %v2521, %v2681
      %v2683 = vpop.f32.mrf.mxu0
      %2684 = vdwg.mxu0
      %v2689 = vunpack.c.l.b16 %v1798
      %v2690 = vunpack.c.h.b16 %v1798
      %v2691 = vunpack.c.l.b16 %v1799
      %v2692 = vunpack.c.l.b16 %v1800
      %v2693 = vunpack.c.h.b16 %v1800
      %v2694 = vunpack.c.l.b16 %v1801
      %v2695 = vpack.c.b16 %v2692, %v2689
      %v2696 = vpack.c.b16 %v2693, %v2690
      %v2697 = vpack.c.b16 %v2694, %v2691
      %v2749 = vunpack.c.l.b16 %v1862
      %v2750 = vunpack.c.l.b16 %v1863
      %v2751 = vunpack.c.l.b16 %v1864
      %v2752 = vunpack.c.l.b16 %v1865
      %v2753 = vunpack.c.l.b16 %v1866
      %v2754 = vunpack.c.l.b16 %v1867
      %v2755 = vunpack.c.l.b16 %v1868
      %v2756 = vunpack.c.l.b16 %v1869
      %v2757 = vunpack.c.l.b16 %v1870
      %v2758 = vunpack.c.l.b16 %v1871
      %v2759 = vunpack.c.l.b16 %v1872
      %v2760 = vunpack.c.l.b16 %v1873
      %v2761 = vunpack.c.l.b16 %v1874
      %v2762 = vunpack.c.l.b16 %v1875
      %v2763 = vunpack.c.l.b16 %v1876
      %v2764 = vunpack.c.l.b16 %v1877
      %v2765 = vunpack.c.l.b16 %v1878
      %v2766 = vunpack.c.l.b16 %v1879
      %v2767 = vunpack.c.l.b16 %v1880
      %v2768 = vunpack.c.l.b16 %v1881
      %v2769 = vunpack.c.l.b16 %v1882
      %v2770 = vunpack.c.l.b16 %v1883
      %v2771 = vunpack.c.l.b16 %v1884
      %v2772 = vunpack.c.l.b16 %v1885
      %v2773 = vunpack.c.l.b16 %v1886
      %v2774 = vunpack.c.l.b16 %v1887
      %v2775 = vunpack.c.l.b16 %v1888
      %v2776 = vunpack.c.l.b16 %v1889
      %v2777 = vunpack.c.l.b16 %v1890
      %v2778 = vunpack.c.l.b16 %v1891
      %v2779 = vunpack.c.l.b16 %v1892
      %v2780 = vunpack.c.l.b16 %v1893
      %v2781 = vunpack.c.l.b16 %v1894
      %v2782 = vunpack.c.l.b16 %v1895
      %v2783 = vunpack.c.l.b16 %v1896
      %v2784 = vunpack.c.l.b16 %v1897
      %v2785 = vunpack.c.l.b16 %v1898
      %v2786 = vunpack.c.l.b16 %v1899
      %v2787 = vunpack.c.l.b16 %v1900
      %v2788 = vunpack.c.l.b16 %v1901
      %v2789 = vunpack.c.l.b16 %v1902
      %v2790 = vunpack.c.l.b16 %v1903
      %v2791 = vunpack.c.l.b16 %v1904
      %v2792 = vunpack.c.l.b16 %v1905
      %v2793 = vunpack.c.l.b16 %v1906
      %v2794 = vunpack.c.l.b16 %v1907
      %v2795 = vunpack.c.l.b16 %v1908
      %v2796 = vunpack.c.l.b16 %v1909
      %v2797 = vpack.c.b16 %v2750, %v2749
      %v2798 = vpack.c.b16 %v2752, %v2751
      %v2799 = vpack.c.b16 %v2754, %v2753
      %v2800 = vpack.c.b16 %v2756, %v2755
      %v2801 = vpack.c.b16 %v2758, %v2757
      %v2802 = vpack.c.b16 %v2760, %v2759
      %v2803 = vpack.c.b16 %v2762, %v2761
      %v2804 = vpack.c.b16 %v2764, %v2763
      %v2805 = vpack.c.b16 %v2766, %v2765
      %v2806 = vpack.c.b16 %v2768, %v2767
      %v2807 = vpack.c.b16 %v2770, %v2769
      %v2808 = vpack.c.b16 %v2772, %v2771
      %v2809 = vpack.c.b16 %v2774, %v2773
      %v2810 = vpack.c.b16 %v2776, %v2775
      %v2811 = vpack.c.b16 %v2778, %v2777
      %v2812 = vpack.c.b16 %v2780, %v2779
      %v2813 = vpack.c.b16 %v2782, %v2781
      %v2814 = vpack.c.b16 %v2784, %v2783
      %v2815 = vpack.c.b16 %v2786, %v2785
      %v2816 = vpack.c.b16 %v2788, %v2787
      %v2817 = vpack.c.b16 %v2790, %v2789
      %v2818 = vpack.c.b16 %v2792, %v2791
      %v2819 = vpack.c.b16 %v2794, %v2793
      %v2820 = vpack.c.b16 %v2796, %v2795
      %2845 = vmatprep.subr.bf16.mxu0 0
      %2846 = vmatpush1.bf16.msra.mxu0 %v2804
      %2847 = vmatprep.subr.bf16.mxu0 0
      %2848 = vmatpush1.bf16.msra.mxu0 %v2803
      %2849 = vmatprep.subr.bf16.mxu0 0
      %2850 = vmatpush1.bf16.msra.mxu0 %v2802
      %2851 = vmatprep.subr.bf16.mxu0 0
      %2852 = vmatpush1.bf16.msra.mxu0 %v2801
      %2853 = vmatprep.subr.bf16.mxu0 0
      %2854 = vmatpush1.bf16.msra.mxu0 %v2800
      %2855 = vmatprep.subr.bf16.mxu0 0
      %2856 = vmatpush1.bf16.msra.mxu0 %v2799
      %2857 = vmatprep.subr.bf16.mxu0 0
      %2858 = vmatpush1.bf16.msra.mxu0 %v2798
      %2859 = vmatprep.subr.bf16.mxu0 0
      %2860 = vmatpush1.bf16.msra.mxu0 %v2797
      %2861 = vmatprep.subr.bf16.mxu0 0
      %2862 = vmatpush2.bf16.msra.mxu0 %v2812
      %2863 = vmatprep.subr.bf16.mxu0 0
      %2864 = vmatpush2.bf16.msra.mxu0 %v2811
      %2865 = vmatprep.subr.bf16.mxu0 0
      %2866 = vmatpush2.bf16.msra.mxu0 %v2810
      %2867 = vmatprep.subr.bf16.mxu0 0
      %2868 = vmatpush2.bf16.msra.mxu0 %v2809
      %2869 = vmatprep.subr.bf16.mxu0 0
      %2870 = vmatpush2.bf16.msra.mxu0 %v2808
      %2871 = vmatprep.subr.bf16.mxu0 0
      %2872 = vmatpush2.bf16.msra.mxu0 %v2807
      %2873 = vmatprep.subr.bf16.mxu0 0
      %2874 = vmatpush2.bf16.msra.mxu0 %v2806
      %2875 = vmatprep.subr.bf16.mxu0 0
      %2876 = vmatpush2.bf16.msra.mxu0 %v2805
      %2877 = vmatprep.mubr.bf16.mxu0 %v2696
      %2878 = vmatmul.mubr.bf16.gmra.mxu0 %v2695
      %v2879 = vpop.f32.mrf.mxu0
      %v2880 = vadd.f32 %v2559, %v2879
      %v2881 = vpop.f32.mrf.mxu0
      %v2882 = vpop.f32.mrf.mxu0
      %v2883 = vadd.f32 %v2562, %v2882
      %v2884 = vpop.f32.mrf.mxu0
      %2885 = vmatprep.mubr.bf16.mxu0 %v2124
      %2886 = vmatmul.mubr.bf16.gmra.mxu0 %v2123
      %v2887 = vpop.f32.mrf.mxu0
      %v2888 = vadd.f32 %v2567, %v2887
      %v2889 = vpop.f32.mrf.mxu0
      %v2890 = vpop.f32.mrf.mxu0
      %v2891 = vadd.f32 %v2570, %v2890
      %v2892 = vpop.f32.mrf.mxu0
      %2893 = vmatprep.mubr.bf16.mxu0 %v2127
      %2894 = vmatmul.mubr.bf16.gmra.mxu0 %v2126
      %v2895 = vpop.f32.mrf.mxu0
      %v2896 = vadd.f32 %v2575, %v2895
      %v2897 = vpop.f32.mrf.mxu0
      %v2898 = vpop.f32.mrf.mxu0
      %v2899 = vadd.f32 %v2578, %v2898
      %v2900 = vpop.f32.mrf.mxu0
      %2901 = vmatprep.mubr.bf16.mxu0 %v2130
      %2902 = vmatmul.mubr.bf16.gmra.mxu0 %v2129
      %v2903 = vpop.f32.mrf.mxu0
      %v2904 = vadd.f32 %v2583, %v2903
      %v2905 = vpop.f32.mrf.mxu0
      %v2906 = vpop.f32.mrf.mxu0
      %v2907 = vadd.f32 %v2586, %v2906
      %v2908 = vpop.f32.mrf.mxu0
      %2909 = vmatprep.mubr.bf16.mxu0 %v2133
      %2910 = vmatmul.mubr.bf16.gmra.mxu0 %v2132
      %v2911 = vpop.f32.mrf.mxu0
      %v2912 = vadd.f32 %v2591, %v2911
      %v2913 = vpop.f32.mrf.mxu0
      %v2914 = vpop.f32.mrf.mxu0
      %v2915 = vadd.f32 %v2594, %v2914
      %v2916 = vpop.f32.mrf.mxu0
      %2917 = vmatprep.mubr.bf16.mxu0 %v2136
      %2918 = vmatmul.mubr.bf16.gmra.mxu0 %v2135
      %v2919 = vpop.f32.mrf.mxu0
      %v2920 = vadd.f32 %v2599, %v2919
      %v2921 = vpop.f32.mrf.mxu0
      %v2922 = vpop.f32.mrf.mxu0
      %v2923 = vadd.f32 %v2602, %v2922
      %v2924 = vpop.f32.mrf.mxu0
      %2925 = vmatprep.mubr.bf16.mxu0 %v2139
      %2926 = vmatmul.mubr.bf16.gmra.mxu0 %v2138
      %v2927 = vpop.f32.mrf.mxu0
      %v2928 = vadd.f32 %v2607, %v2927
      %v2929 = vpop.f32.mrf.mxu0
      %v2930 = vpop.f32.mrf.mxu0
      %v2931 = vadd.f32 %v2610, %v2930
      %v2932 = vpop.f32.mrf.mxu0
      %2933 = vmatprep.mubr.bf16.mxu0 %v2142
      %2934 = vmatmul.mubr.bf16.gmra.mxu0 %v2141
      %v2935 = vpop.f32.mrf.mxu0
      %v2936 = vadd.f32 %v2615, %v2935
      %v2937 = vpop.f32.mrf.mxu0
      %v2938 = vpop.f32.mrf.mxu0
      %v2939 = vadd.f32 %v2618, %v2938
      %v2940 = vpop.f32.mrf.mxu0
      %2941 = vmatprep.mubr.bf16.mxu0 %v2145
      %2942 = vmatmul.mubr.bf16.gmra.mxu0 %v2144
      %v2943 = vpop.f32.mrf.mxu0
      %v2944 = vadd.f32 %v2623, %v2943
      %v2945 = vpop.f32.mrf.mxu0
      %v2946 = vpop.f32.mrf.mxu0
      %v2947 = vadd.f32 %v2626, %v2946
      %v2948 = vpop.f32.mrf.mxu0
      %2949 = vmatprep.mubr.bf16.mxu0 %v2148
      %2950 = vmatmul.mubr.bf16.gmra.mxu0 %v2147
      %v2951 = vpop.f32.mrf.mxu0
      %v2952 = vadd.f32 %v2631, %v2951
      %v2953 = vpop.f32.mrf.mxu0
      %v2954 = vpop.f32.mrf.mxu0
      %v2955 = vadd.f32 %v2634, %v2954
      %v2956 = vpop.f32.mrf.mxu0
      %2957 = vmatprep.mubr.bf16.mxu0 %v2151
      %2958 = vmatmul.mubr.bf16.gmra.mxu0 %v2150
      %v2959 = vpop.f32.mrf.mxu0
      %v2960 = vadd.f32 %v2639, %v2959
      %v2961 = vpop.f32.mrf.mxu0
      %v2962 = vpop.f32.mrf.mxu0
      %v2963 = vadd.f32 %v2642, %v2962
      %v2964 = vpop.f32.mrf.mxu0
      %2965 = vmatprep.mubr.bf16.mxu0 %v2154
      %2966 = vmatmul.mubr.bf16.gmra.mxu0 %v2153
      %v2967 = vpop.f32.mrf.mxu0
      %v2968 = vadd.f32 %v2647, %v2967
      %v2969 = vpop.f32.mrf.mxu0
      %v2970 = vpop.f32.mrf.mxu0
      %v2971 = vadd.f32 %v2650, %v2970
      %v2972 = vpop.f32.mrf.mxu0
      %2973 = vmatprep.mubr.bf16.mxu0 %v2157
      %2974 = vmatmul.mubr.bf16.gmra.mxu0 %v2156
      %v2975 = vpop.f32.mrf.mxu0
      %v2976 = vadd.f32 %v2655, %v2975
      %v2977 = vpop.f32.mrf.mxu0
      %v2978 = vpop.f32.mrf.mxu0
      %v2979 = vadd.f32 %v2658, %v2978
      %v2980 = vpop.f32.mrf.mxu0
      %2981 = vmatprep.mubr.bf16.mxu0 %v2160
      %2982 = vmatmul.mubr.bf16.gmra.mxu0 %v2159
      %v2983 = vpop.f32.mrf.mxu0
      %v2984 = vadd.f32 %v2663, %v2983
      %v2985 = vpop.f32.mrf.mxu0
      %v2986 = vpop.f32.mrf.mxu0
      %v2987 = vadd.f32 %v2666, %v2986
      %v2988 = vpop.f32.mrf.mxu0
      %2989 = vmatprep.mubr.bf16.mxu0 %v2163
      %2990 = vmatmul.mubr.bf16.gmra.mxu0 %v2162
      %v2991 = vpop.f32.mrf.mxu0
      %v2992 = vadd.f32 %v2671, %v2991
      %v2993 = vpop.f32.mrf.mxu0
      %v2994 = vpop.f32.mrf.mxu0
      %v2995 = vadd.f32 %v2674, %v2994
      %v2996 = vpop.f32.mrf.mxu0
      %2997 = vmatprep.mubr.bf16.mxu0 %v2166
      %2998 = vmatmul.mubr.bf16.gmra.mxu0 %v2165
      %v2999 = vpop.f32.mrf.mxu0
      %v3000 = vadd.f32 %v2679, %v2999
      %v3001 = vpop.f32.mrf.mxu0
      %v3002 = vpop.f32.mrf.mxu0
      %v3003 = vadd.f32 %v2682, %v3002
      %v3004 = vpop.f32.mrf.mxu0
      %3005 = vdwg.mxu0
      %3006 = vmatprep.subr.bf16.mxu0 0
      %3007 = vmatpush1.bf16.msra.mxu0 %v2820
      %3008 = vmatprep.subr.bf16.mxu0 0
      %3009 = vmatpush1.bf16.msra.mxu0 %v2819
      %3010 = vmatprep.subr.bf16.mxu0 0
      %3011 = vmatpush1.bf16.msra.mxu0 %v2818
      %3012 = vmatprep.subr.bf16.mxu0 0
      %3013 = vmatpush1.bf16.msra.mxu0 %v2817
      %3014 = vmatprep.subr.bf16.mxu0 0
      %3015 = vmatpush1.bf16.msra.mxu0 %v2816
      %3016 = vmatprep.subr.bf16.mxu0 0
      %3017 = vmatpush1.bf16.msra.mxu0 %v2815
      %3018 = vmatprep.subr.bf16.mxu0 0
      %3019 = vmatpush1.bf16.msra.mxu0 %v2814
      %3020 = vmatprep.subr.bf16.mxu0 0
      %3021 = vmatpush1.bf16.msra.mxu0 %v2813
      %3022 = vmatprep.subr.bf16.mxu0 0
      %3023 = vmatpush2.bf16.msra.mxu0 0
      %3024 = vmatprep.subr.bf16.mxu0 0
      %3025 = vmatpush2.bf16.msra.mxu0 0
      %3026 = vmatprep.subr.bf16.mxu0 0
      %3027 = vmatpush2.bf16.msra.mxu0 0
      %3028 = vmatprep.subr.bf16.mxu0 0
      %3029 = vmatpush2.bf16.msra.mxu0 0
      %3030 = vmatprep.subr.bf16.mxu0 0
      %3031 = vmatpush2.bf16.msra.mxu0 0
      %3032 = vmatprep.subr.bf16.mxu0 0
      %3033 = vmatpush2.bf16.msra.mxu0 0
      %3034 = vmatprep.subr.bf16.mxu0 0
      %3035 = vmatpush2.bf16.msra.mxu0 0
      %3036 = vmatprep.subr.bf16.mxu0 0
      %3037 = vmatpush2.bf16.msra.mxu0 0
      %3038 = vmatprep.mubr.bf16.mxu0 0
      %3039 = vmatmul.mubr.bf16.gmra.mxu0 %v2697
      %v3040 = vpop.f32.mrf.mxu0
      %v3041 = vadd.f32 %v2880, %v3040
      %v3042 = vpop.f32.mrf.mxu0
      %v3043 = vpop.f32.mrf.mxu0
      %v3044 = vadd.f32 %v2883, %v3043
      %v3045 = vpop.f32.mrf.mxu0
      %3046 = vmatprep.mubr.bf16.mxu0 0
      %3047 = vmatmul.mubr.bf16.gmra.mxu0 %v2125
      %v3048 = vpop.f32.mrf.mxu0
      %v3049 = vadd.f32 %v2888, %v3048
      %v3050 = vpop.f32.mrf.mxu0
      %v3051 = vpop.f32.mrf.mxu0
      %v3052 = vadd.f32 %v2891, %v3051
      %v3053 = vpop.f32.mrf.mxu0
      %3054 = vmatprep.mubr.bf16.mxu0 0
      %3055 = vmatmul.mubr.bf16.gmra.mxu0 %v2128
      %v3056 = vpop.f32.mrf.mxu0
      %v3057 = vadd.f32 %v2896, %v3056
      %v3058 = vpop.f32.mrf.mxu0
      %v3059 = vpop.f32.mrf.mxu0
      %v3060 = vadd.f32 %v2899, %v3059
      %v3061 = vpop.f32.mrf.mxu0
      %3062 = vmatprep.mubr.bf16.mxu0 0
      %3063 = vmatmul.mubr.bf16.gmra.mxu0 %v2131
      %v3064 = vpop.f32.mrf.mxu0
      %v3065 = vadd.f32 %v2904, %v3064
      %v3066 = vpop.f32.mrf.mxu0
      %v3067 = vpop.f32.mrf.mxu0
      %v3068 = vadd.f32 %v2907, %v3067
      %v3069 = vpop.f32.mrf.mxu0
      %3070 = vmatprep.mubr.bf16.mxu0 0
      %3071 = vmatmul.mubr.bf16.gmra.mxu0 %v2134
      %v3072 = vpop.f32.mrf.mxu0
      %v3073 = vadd.f32 %v2912, %v3072
      %v3074 = vpop.f32.mrf.mxu0
      %v3075 = vpop.f32.mrf.mxu0
      %v3076 = vadd.f32 %v2915, %v3075
      %v3077 = vpop.f32.mrf.mxu0
      %3078 = vmatprep.mubr.bf16.mxu0 0
      %3079 = vmatmul.mubr.bf16.gmra.mxu0 %v2137
      %v3080 = vpop.f32.mrf.mxu0
      %v3081 = vadd.f32 %v2920, %v3080
      %v3082 = vpop.f32.mrf.mxu0
      %v3083 = vpop.f32.mrf.mxu0
      %v3084 = vadd.f32 %v2923, %v3083
      %v3085 = vpop.f32.mrf.mxu0
      %3086 = vmatprep.mubr.bf16.mxu0 0
      %3087 = vmatmul.mubr.bf16.gmra.mxu0 %v2140
      %v3088 = vpop.f32.mrf.mxu0
      %v3089 = vadd.f32 %v2928, %v3088
      %v3090 = vpop.f32.mrf.mxu0
      %v3091 = vpop.f32.mrf.mxu0
      %v3092 = vadd.f32 %v2931, %v3091
      %v3093 = vpop.f32.mrf.mxu0
      %3094 = vmatprep.mubr.bf16.mxu0 0
      %3095 = vmatmul.mubr.bf16.gmra.mxu0 %v2143
      %v3096 = vpop.f32.mrf.mxu0
      %v3097 = vadd.f32 %v2936, %v3096
      %v3098 = vpop.f32.mrf.mxu0
      %v3099 = vpop.f32.mrf.mxu0
      %v3100 = vadd.f32 %v2939, %v3099
      %v3101 = vpop.f32.mrf.mxu0
      %3102 = vmatprep.mubr.bf16.mxu0 0
      %3103 = vmatmul.mubr.bf16.gmra.mxu0 %v2146
      %v3104 = vpop.f32.mrf.mxu0
      %v3105 = vadd.f32 %v2944, %v3104
      %v3106 = vpop.f32.mrf.mxu0
      %v3107 = vpop.f32.mrf.mxu0
      %v3108 = vadd.f32 %v2947, %v3107
      %v3109 = vpop.f32.mrf.mxu0
      %3110 = vmatprep.mubr.bf16.mxu0 0
      %3111 = vmatmul.mubr.bf16.gmra.mxu0 %v2149
      %v3112 = vpop.f32.mrf.mxu0
      %v3113 = vadd.f32 %v2952, %v3112
      %v3114 = vpop.f32.mrf.mxu0
      %v3115 = vpop.f32.mrf.mxu0
      %v3116 = vadd.f32 %v2955, %v3115
      %v3117 = vpop.f32.mrf.mxu0
      %3118 = vmatprep.mubr.bf16.mxu0 0
      %3119 = vmatmul.mubr.bf16.gmra.mxu0 %v2152
      %v3120 = vpop.f32.mrf.mxu0
      %v3121 = vadd.f32 %v2960, %v3120
      %v3122 = vpop.f32.mrf.mxu0
      %v3123 = vpop.f32.mrf.mxu0
      %v3124 = vadd.f32 %v2963, %v3123
      %v3125 = vpop.f32.mrf.mxu0
      %3126 = vmatprep.mubr.bf16.mxu0 0
      %3127 = vmatmul.mubr.bf16.gmra.mxu0 %v2155
      %v3128 = vpop.f32.mrf.mxu0
      %v3129 = vadd.f32 %v2968, %v3128
      %v3130 = vpop.f32.mrf.mxu0
      %v3131 = vpop.f32.mrf.mxu0
      %v3132 = vadd.f32 %v2971, %v3131
      %v3133 = vpop.f32.mrf.mxu0
      %3134 = vmatprep.mubr.bf16.mxu0 0
      %3135 = vmatmul.mubr.bf16.gmra.mxu0 %v2158
      %v3136 = vpop.f32.mrf.mxu0
      %v3137 = vadd.f32 %v2976, %v3136
      %v3138 = vpop.f32.mrf.mxu0
      %v3139 = vpop.f32.mrf.mxu0
      %v3140 = vadd.f32 %v2979, %v3139
      %v3141 = vpop.f32.mrf.mxu0
      %3142 = vmatprep.mubr.bf16.mxu0 0
      %3143 = vmatmul.mubr.bf16.gmra.mxu0 %v2161
      %v3144 = vpop.f32.mrf.mxu0
      %v3145 = vadd.f32 %v2984, %v3144
      %v3146 = vpop.f32.mrf.mxu0
      %v3147 = vpop.f32.mrf.mxu0
      %v3148 = vadd.f32 %v2987, %v3147
      %v3149 = vpop.f32.mrf.mxu0
      %3150 = vmatprep.mubr.bf16.mxu0 0
      %3151 = vmatmul.mubr.bf16.gmra.mxu0 %v2164
      %v3152 = vpop.f32.mrf.mxu0
      %v3153 = vadd.f32 %v2992, %v3152
      %v3154 = vpop.f32.mrf.mxu0
      %v3155 = vpop.f32.mrf.mxu0
      %v3156 = vadd.f32 %v2995, %v3155
      %v3157 = vpop.f32.mrf.mxu0
      %3158 = vmatprep.mubr.bf16.mxu0 0
      %3159 = vmatmul.mubr.bf16.gmra.mxu0 %v2167
      %v3160 = vpop.f32.mrf.mxu0
      %v3161 = vadd.f32 %v3000, %v3160
      %v3162 = vpop.f32.mrf.mxu0
      %v3163 = vpop.f32.mrf.mxu0
      %v3164 = vadd.f32 %v3003, %v3163
      %v3165 = vpop.f32.mrf.mxu0
      %3166 = vdwg.mxu0
      %v3167 = vld [vmem:[#allocation2 + $0x30] sm:$0xff]
      %v3168 = vld [vmem:[#allocation2 + $0x38] sm:$0xf]
      %v3169 = vld [vmem:[#allocation2 + $0x3c] sm:$0xff]
      %v3170 = vld [vmem:[#allocation2 + $0x44] sm:$0xf]
      %v3171 = vld [vmem:[#allocation2 + $0x48] sm:$0xff]
      %v3172 = vld [vmem:[#allocation2 + $0x50] sm:$0xf]
      %v3173 = vld [vmem:[#allocation2 + $0x54] sm:$0xff]
      %v3174 = vld [vmem:[#allocation2 + $0x5c] sm:$0xf]
      %v3175 = vld [vmem:[#allocation2 + $0x60] sm:$0xff]
      %v3176 = vld [vmem:[#allocation2 + $0x68] sm:$0xf]
      %v3177 = vld [vmem:[#allocation2 + $0x6c] sm:$0xff]
      %v3178 = vld [vmem:[#allocation2 + $0x74] sm:$0xf]
      %v3179 = vld [vmem:[#allocation2 + $0x78] sm:$0xff]
      %v3180 = vld [vmem:[#allocation2 + $0x80] sm:$0xf]
      %v3181 = vld [vmem:[#allocation2 + $0x84] sm:$0xff]
      %v3182 = vld [vmem:[#allocation2 + $0x8c] sm:$0xf]
      %v3183 = vld [vmem:[#allocation2 + $0x90] sm:$0xff]
      %v3184 = vld [vmem:[#allocation2 + $0x98] sm:$0xf]
      %v3185 = vld [vmem:[#allocation2 + $0x9c] sm:$0xff]
      %v3186 = vld [vmem:[#allocation2 + $0xa4] sm:$0xf]
      %v3187 = vld [vmem:[#allocation2 + $0xa8] sm:$0xff]
      %v3188 = vld [vmem:[#allocation2 + $0xb0] sm:$0xf]
      %v3189 = vld [vmem:[#allocation2 + $0xb4] sm:$0xff]
      %v3190 = vld [vmem:[#allocation2 + $0xbc] sm:$0xf]
      %v3191 = vld [vmem:[#allocation2 + $0xc0] sm:$0xff]
      %v3192 = vld [vmem:[#allocation2 + $0xc8] sm:$0xf]
      %v3193 = vld [vmem:[#allocation2 + $0xcc] sm:$0xff]
      %v3194 = vld [vmem:[#allocation2 + $0xd4] sm:$0xf]
      %v3195 = vld [vmem:[#allocation2 + $0xd8] sm:$0xff]
      %v3196 = vld [vmem:[#allocation2 + $0xe0] sm:$0xf]
      %v3197 = vld [vmem:[#allocation2 + $0xe4] sm:$0xff]
      %v3198 = vld [vmem:[#allocation2 + $0xec] sm:$0xf]
      %v3199 = vld [vmem:[#allocation2 + $0xf0] sm:$0xff]
      %v3200 = vld [vmem:[#allocation2 + $0xf8] sm:$0xf]
      %v3201 = vld [vmem:[#allocation2 + $0xfc] sm:$0xff]
      %v3202 = vld [vmem:[#allocation2 + $0x104] sm:$0xf]
      %v3203 = vld [vmem:[#allocation2 + $0x108] sm:$0xff]
      %v3204 = vld [vmem:[#allocation2 + $0x110] sm:$0xf]
      %v3205 = vld [vmem:[#allocation2 + $0x114] sm:$0xff]
      %v3206 = vld [vmem:[#allocation2 + $0x11c] sm:$0xf]
      %v3207 = vld [vmem:[#allocation2 + $0x120] sm:$0xff]
      %v3208 = vld [vmem:[#allocation2 + $0x128] sm:$0xf]
      %v3209 = vld [vmem:[#allocation2 + $0x12c] sm:$0xff]
      %v3210 = vld [vmem:[#allocation2 + $0x134] sm:$0xf]
      %v3211 = vld [vmem:[#allocation2 + $0x138] sm:$0xff]
      %v3212 = vld [vmem:[#allocation2 + $0x140] sm:$0xf]
      %v3213 = vld [vmem:[#allocation2 + $0x144] sm:$0xff]
      %v3214 = vld [vmem:[#allocation2 + $0x14c] sm:$0xf]
      %v3215 = vld [vmem:[#allocation2 + $0x150] sm:$0xff]
      %v3216 = vld [vmem:[#allocation2 + $0x158] sm:$0xf]
      %v3217 = vld [vmem:[#allocation2 + $0x15c] sm:$0xff]
      %v3218 = vld [vmem:[#allocation2 + $0x164] sm:$0xf]
      %v3219 = vld [vmem:[#allocation2 + $0x168] sm:$0xff]
      %v3220 = vld [vmem:[#allocation2 + $0x170] sm:$0xf]
      %v3221 = vld [vmem:[#allocation2 + $0x174] sm:$0xff]
      %v3222 = vld [vmem:[#allocation2 + $0x17c] sm:$0xf]
      %v3223 = vld [vmem:[#allocation2 + $0x180] sm:$0xff]
      %v3224 = vld [vmem:[#allocation2 + $0x188] sm:$0xf]
      %v3225 = vld [vmem:[#allocation2 + $0x18c] sm:$0xff]
      %v3226 = vld [vmem:[#allocation2 + $0x194] sm:$0xf]
      %v3227 = vld [vmem:[#allocation2 + $0x198] sm:$0xff]
      %v3228 = vld [vmem:[#allocation2 + $0x1a0] sm:$0xf]
      %v3229 = vld [vmem:[#allocation2 + $0x1a4] sm:$0xff]
      %v3230 = vld [vmem:[#allocation2 + $0x1ac] sm:$0xf]
      %s3231 = scalar_lea.vmem %s3, 384
      %v3232 = vld [vmem:[%s3231] sm:$0xf]
      %v3233 = vld [vmem:[%s3231 + $0x4] sm:$0xf]
      %v3234 = vld [vmem:[%s3231 + $0x8] sm:$0xf]
      %v3235 = vld [vmem:[%s3231 + $0xc] sm:$0xf]
      %v3236 = vld [vmem:[%s3231 + $0x10] sm:$0xf]
      %v3237 = vld [vmem:[%s3231 + $0x14] sm:$0xf]
      %v3238 = vld [vmem:[%s3231 + $0x18] sm:$0xf]
      %v3239 = vld [vmem:[%s3231 + $0x1c] sm:$0xf]
      %v3240 = vld [vmem:[%s3231 + $0x20] sm:$0xf]
      %v3241 = vld [vmem:[%s3231 + $0x24] sm:$0xf]
      %v3242 = vld [vmem:[%s3231 + $0x28] sm:$0xf]
      %v3243 = vld [vmem:[%s3231 + $0x2c] sm:$0xf]
      %v3244 = vld [vmem:[%s3231 + $0x30] sm:$0xf]
      %v3245 = vld [vmem:[%s3231 + $0x34] sm:$0xf]
      %v3246 = vld [vmem:[%s3231 + $0x38] sm:$0xf]
      %v3247 = vld [vmem:[%s3231 + $0x3c] sm:$0xf]
      %v3248 = vld [vmem:[%s3231 + $0x40] sm:$0xf]
      %v3249 = vld [vmem:[%s3231 + $0x44] sm:$0xf]
      %v3250 = vld [vmem:[%s3231 + $0x48] sm:$0xf]
      %v3251 = vld [vmem:[%s3231 + $0x4c] sm:$0xf]
      %v3252 = vld [vmem:[%s3231 + $0x50] sm:$0xf]
      %v3253 = vld [vmem:[%s3231 + $0x54] sm:$0xf]
      %v3254 = vld [vmem:[%s3231 + $0x58] sm:$0xf]
      %v3255 = vld [vmem:[%s3231 + $0x5c] sm:$0xf]
      %v3256 = vld [vmem:[%s3231 + $0x60] sm:$0xf]
      %v3257 = vld [vmem:[%s3231 + $0x64] sm:$0xf]
      %v3258 = vld [vmem:[%s3231 + $0x68] sm:$0xf]
      %v3259 = vld [vmem:[%s3231 + $0x6c] sm:$0xf]
      %v3260 = vld [vmem:[%s3231 + $0x70] sm:$0xf]
      %v3261 = vld [vmem:[%s3231 + $0x74] sm:$0xf]
      %v3262 = vld [vmem:[%s3231 + $0x78] sm:$0xf]
      %v3263 = vld [vmem:[%s3231 + $0x7c] sm:$0xf]
      %v3264 = vld [vmem:[%s3231 + $0x80] sm:$0xf]
      %v3265 = vld [vmem:[%s3231 + $0x84] sm:$0xf]
      %v3266 = vld [vmem:[%s3231 + $0x88] sm:$0xf]
      %v3267 = vld [vmem:[%s3231 + $0x8c] sm:$0xf]
      %v3268 = vld [vmem:[%s3231 + $0x90] sm:$0xf]
      %v3269 = vld [vmem:[%s3231 + $0x94] sm:$0xf]
      %v3270 = vld [vmem:[%s3231 + $0x98] sm:$0xf]
      %v3271 = vld [vmem:[%s3231 + $0x9c] sm:$0xf]
      %v3272 = vld [vmem:[%s3231 + $0xa0] sm:$0xf]
      %v3273 = vld [vmem:[%s3231 + $0xa4] sm:$0xf]
      %v3274 = vld [vmem:[%s3231 + $0xa8] sm:$0xf]
      %v3275 = vld [vmem:[%s3231 + $0xac] sm:$0xf]
      %v3276 = vld [vmem:[%s3231 + $0xb0] sm:$0xf]
      %v3277 = vld [vmem:[%s3231 + $0xb4] sm:$0xf]
      %v3278 = vld [vmem:[%s3231 + $0xb8] sm:$0xf]
      %v3279 = vld [vmem:[%s3231 + $0xbc] sm:$0xf]
      %v3344 = vunpack.c.l.b16 %v3167
      %v3345 = vunpack.c.h.b16 %v3167
      %v3346 = vunpack.c.l.b16 %v3168
      %v3347 = vunpack.c.l.b16 %v3169
      %v3348 = vunpack.c.h.b16 %v3169
      %v3349 = vunpack.c.l.b16 %v3170
      %v3350 = vunpack.c.l.b16 %v3171
      %v3351 = vunpack.c.h.b16 %v3171
      %v3352 = vunpack.c.l.b16 %v3172
      %v3353 = vunpack.c.l.b16 %v3173
      %v3354 = vunpack.c.h.b16 %v3173
      %v3355 = vunpack.c.l.b16 %v3174
      %v3356 = vunpack.c.l.b16 %v3175
      %v3357 = vunpack.c.h.b16 %v3175
      %v3358 = vunpack.c.l.b16 %v3176
      %v3359 = vunpack.c.l.b16 %v3177
      %v3360 = vunpack.c.h.b16 %v3177
      %v3361 = vunpack.c.l.b16 %v3178
      %v3362 = vunpack.c.l.b16 %v3179
      %v3363 = vunpack.c.h.b16 %v3179
      %v3364 = vunpack.c.l.b16 %v3180
      %v3365 = vunpack.c.l.b16 %v3181
      %v3366 = vunpack.c.h.b16 %v3181
      %v3367 = vunpack.c.l.b16 %v3182
      %v3368 = vunpack.c.l.b16 %v3183
      %v3369 = vunpack.c.h.b16 %v3183
      %v3370 = vunpack.c.l.b16 %v3184
      %v3371 = vunpack.c.l.b16 %v3185
      %v3372 = vunpack.c.h.b16 %v3185
      %v3373 = vunpack.c.l.b16 %v3186
      %v3374 = vunpack.c.l.b16 %v3187
      %v3375 = vunpack.c.h.b16 %v3187
      %v3376 = vunpack.c.l.b16 %v3188
      %v3377 = vunpack.c.l.b16 %v3189
      %v3378 = vunpack.c.h.b16 %v3189
      %v3379 = vunpack.c.l.b16 %v3190
      %v3380 = vunpack.c.l.b16 %v3191
      %v3381 = vunpack.c.h.b16 %v3191
      %v3382 = vunpack.c.l.b16 %v3192
      %v3383 = vunpack.c.l.b16 %v3193
      %v3384 = vunpack.c.h.b16 %v3193
      %v3385 = vunpack.c.l.b16 %v3194
      %v3386 = vunpack.c.l.b16 %v3195
      %v3387 = vunpack.c.h.b16 %v3195
      %v3388 = vunpack.c.l.b16 %v3196
      %v3389 = vunpack.c.l.b16 %v3197
      %v3390 = vunpack.c.h.b16 %v3197
      %v3391 = vunpack.c.l.b16 %v3198
      %v3392 = vunpack.c.l.b16 %v3199
      %v3393 = vunpack.c.h.b16 %v3199
      %v3394 = vunpack.c.l.b16 %v3200
      %v3395 = vunpack.c.l.b16 %v3201
      %v3396 = vunpack.c.h.b16 %v3201
      %v3397 = vunpack.c.l.b16 %v3202
      %v3398 = vunpack.c.l.b16 %v3203
      %v3399 = vunpack.c.h.b16 %v3203
      %v3400 = vunpack.c.l.b16 %v3204
      %v3401 = vunpack.c.l.b16 %v3205
      %v3402 = vunpack.c.h.b16 %v3205
      %v3403 = vunpack.c.l.b16 %v3206
      %v3404 = vunpack.c.l.b16 %v3207
      %v3405 = vunpack.c.h.b16 %v3207
      %v3406 = vunpack.c.l.b16 %v3208
      %v3407 = vunpack.c.l.b16 %v3209
      %v3408 = vunpack.c.h.b16 %v3209
      %v3409 = vunpack.c.l.b16 %v3210
      %v3410 = vunpack.c.l.b16 %v3211
      %v3411 = vunpack.c.h.b16 %v3211
      %v3412 = vunpack.c.l.b16 %v3212
      %v3413 = vunpack.c.l.b16 %v3213
      %v3414 = vunpack.c.h.b16 %v3213
      %v3415 = vunpack.c.l.b16 %v3214
      %v3416 = vunpack.c.l.b16 %v3215
      %v3417 = vunpack.c.h.b16 %v3215
      %v3418 = vunpack.c.l.b16 %v3216
      %v3419 = vunpack.c.l.b16 %v3217
      %v3420 = vunpack.c.h.b16 %v3217
      %v3421 = vunpack.c.l.b16 %v3218
      %v3422 = vunpack.c.l.b16 %v3219
      %v3423 = vunpack.c.h.b16 %v3219
      %v3424 = vunpack.c.l.b16 %v3220
      %v3425 = vunpack.c.l.b16 %v3221
      %v3426 = vunpack.c.h.b16 %v3221
      %v3427 = vunpack.c.l.b16 %v3222
      %v3428 = vunpack.c.l.b16 %v3223
      %v3429 = vunpack.c.h.b16 %v3223
      %v3430 = vunpack.c.l.b16 %v3224
      %v3431 = vunpack.c.l.b16 %v3225
      %v3432 = vunpack.c.h.b16 %v3225
      %v3433 = vunpack.c.l.b16 %v3226
      %v3434 = vunpack.c.l.b16 %v3227
      %v3435 = vunpack.c.h.b16 %v3227
      %v3436 = vunpack.c.l.b16 %v3228
      %v3437 = vunpack.c.l.b16 %v3229
      %v3438 = vunpack.c.h.b16 %v3229
      %v3439 = vunpack.c.l.b16 %v3230
      %v3440 = vpack.c.b16 %v3347, %v3344
      %v3441 = vpack.c.b16 %v3348, %v3345
      %v3442 = vpack.c.b16 %v3349, %v3346
      %v3443 = vpack.c.b16 %v3353, %v3350
      %v3444 = vpack.c.b16 %v3354, %v3351
      %v3445 = vpack.c.b16 %v3355, %v3352
      %v3446 = vpack.c.b16 %v3359, %v3356
      %v3447 = vpack.c.b16 %v3360, %v3357
      %v3448 = vpack.c.b16 %v3361, %v3358
      %v3449 = vpack.c.b16 %v3365, %v3362
      %v3450 = vpack.c.b16 %v3366, %v3363
      %v3451 = vpack.c.b16 %v3367, %v3364
      %v3452 = vpack.c.b16 %v3371, %v3368
      %v3453 = vpack.c.b16 %v3372, %v3369
      %v3454 = vpack.c.b16 %v3373, %v3370
      %v3455 = vpack.c.b16 %v3377, %v3374
      %v3456 = vpack.c.b16 %v3378, %v3375
      %v3457 = vpack.c.b16 %v3379, %v3376
      %v3458 = vpack.c.b16 %v3383, %v3380
      %v3459 = vpack.c.b16 %v3384, %v3381
      %v3460 = vpack.c.b16 %v3385, %v3382
      %v3461 = vpack.c.b16 %v3389, %v3386
      %v3462 = vpack.c.b16 %v3390, %v3387
      %v3463 = vpack.c.b16 %v3391, %v3388
      %v3464 = vpack.c.b16 %v3395, %v3392
      %v3465 = vpack.c.b16 %v3396, %v3393
      %v3466 = vpack.c.b16 %v3397, %v3394
      %v3467 = vpack.c.b16 %v3401, %v3398
      %v3468 = vpack.c.b16 %v3402, %v3399
      %v3469 = vpack.c.b16 %v3403, %v3400
      %v3470 = vpack.c.b16 %v3407, %v3404
      %v3471 = vpack.c.b16 %v3408, %v3405
      %v3472 = vpack.c.b16 %v3409, %v3406
      %v3473 = vpack.c.b16 %v3413, %v3410
      %v3474 = vpack.c.b16 %v3414, %v3411
      %v3475 = vpack.c.b16 %v3415, %v3412
      %v3476 = vpack.c.b16 %v3419, %v3416
      %v3477 = vpack.c.b16 %v3420, %v3417
      %v3478 = vpack.c.b16 %v3421, %v3418
      %v3479 = vpack.c.b16 %v3425, %v3422
      %v3480 = vpack.c.b16 %v3426, %v3423
      %v3481 = vpack.c.b16 %v3427, %v3424
      %v3482 = vpack.c.b16 %v3431, %v3428
      %v3483 = vpack.c.b16 %v3432, %v3429
      %v3484 = vpack.c.b16 %v3433, %v3430
      %v3485 = vpack.c.b16 %v3437, %v3434
      %v3486 = vpack.c.b16 %v3438, %v3435
      %v3487 = vpack.c.b16 %v3439, %v3436
      %v3584 = vunpack.c.l.b16 %v3232
      %v3585 = vunpack.c.l.b16 %v3233
      %v3586 = vunpack.c.l.b16 %v3234
      %v3587 = vunpack.c.l.b16 %v3235
      %v3588 = vunpack.c.l.b16 %v3236
      %v3589 = vunpack.c.l.b16 %v3237
      %v3590 = vunpack.c.l.b16 %v3238
      %v3591 = vunpack.c.l.b16 %v3239
      %v3592 = vunpack.c.l.b16 %v3240
      %v3593 = vunpack.c.l.b16 %v3241
      %v3594 = vunpack.c.l.b16 %v3242
      %v3595 = vunpack.c.l.b16 %v3243
      %v3596 = vunpack.c.l.b16 %v3244
      %v3597 = vunpack.c.l.b16 %v3245
      %v3598 = vunpack.c.l.b16 %v3246
      %v3599 = vunpack.c.l.b16 %v3247
      %v3600 = vunpack.c.l.b16 %v3248
      %v3601 = vunpack.c.l.b16 %v3249
      %v3602 = vunpack.c.l.b16 %v3250
      %v3603 = vunpack.c.l.b16 %v3251
      %v3604 = vunpack.c.l.b16 %v3252
      %v3605 = vunpack.c.l.b16 %v3253
      %v3606 = vunpack.c.l.b16 %v3254
      %v3607 = vunpack.c.l.b16 %v3255
      %v3608 = vunpack.c.l.b16 %v3256
      %v3609 = vunpack.c.l.b16 %v3257
      %v3610 = vunpack.c.l.b16 %v3258
      %v3611 = vunpack.c.l.b16 %v3259
      %v3612 = vunpack.c.l.b16 %v3260
      %v3613 = vunpack.c.l.b16 %v3261
      %v3614 = vunpack.c.l.b16 %v3262
      %v3615 = vunpack.c.l.b16 %v3263
      %v3616 = vunpack.c.l.b16 %v3264
      %v3617 = vunpack.c.l.b16 %v3265
      %v3618 = vunpack.c.l.b16 %v3266
      %v3619 = vunpack.c.l.b16 %v3267
      %v3620 = vunpack.c.l.b16 %v3268
      %v3621 = vunpack.c.l.b16 %v3269
      %v3622 = vunpack.c.l.b16 %v3270
      %v3623 = vunpack.c.l.b16 %v3271
      %v3624 = vunpack.c.l.b16 %v3272
      %v3625 = vunpack.c.l.b16 %v3273
      %v3626 = vunpack.c.l.b16 %v3274
      %v3627 = vunpack.c.l.b16 %v3275
      %v3628 = vunpack.c.l.b16 %v3276
      %v3629 = vunpack.c.l.b16 %v3277
      %v3630 = vunpack.c.l.b16 %v3278
      %v3631 = vunpack.c.l.b16 %v3279
      %v3632 = vpack.c.b16 %v3585, %v3584
      %v3633 = vpack.c.b16 %v3587, %v3586
      %v3634 = vpack.c.b16 %v3589, %v3588
      %v3635 = vpack.c.b16 %v3591, %v3590
      %v3636 = vpack.c.b16 %v3593, %v3592
      %v3637 = vpack.c.b16 %v3595, %v3594
      %v3638 = vpack.c.b16 %v3597, %v3596
      %v3639 = vpack.c.b16 %v3599, %v3598
      %v3640 = vpack.c.b16 %v3601, %v3600
      %v3641 = vpack.c.b16 %v3603, %v3602
      %v3642 = vpack.c.b16 %v3605, %v3604
      %v3643 = vpack.c.b16 %v3607, %v3606
      %v3644 = vpack.c.b16 %v3609, %v3608
      %v3645 = vpack.c.b16 %v3611, %v3610
      %v3646 = vpack.c.b16 %v3613, %v3612
      %v3647 = vpack.c.b16 %v3615, %v3614
      %v3648 = vpack.c.b16 %v3617, %v3616
      %v3649 = vpack.c.b16 %v3619, %v3618
      %v3650 = vpack.c.b16 %v3621, %v3620
      %v3651 = vpack.c.b16 %v3623, %v3622
      %v3652 = vpack.c.b16 %v3625, %v3624
      %v3653 = vpack.c.b16 %v3627, %v3626
      %v3654 = vpack.c.b16 %v3629, %v3628
      %v3655 = vpack.c.b16 %v3631, %v3630
      %3680 = vmatprep.subr.bf16.mxu0 0
      %3681 = vmatpush1.bf16.msra.mxu0 %v3639
      %3682 = vmatprep.subr.bf16.mxu0 0
      %3683 = vmatpush1.bf16.msra.mxu0 %v3638
      %3684 = vmatprep.subr.bf16.mxu0 0
      %3685 = vmatpush1.bf16.msra.mxu0 %v3637
      %3686 = vmatprep.subr.bf16.mxu0 0
      %3687 = vmatpush1.bf16.msra.mxu0 %v3636
      %3688 = vmatprep.subr.bf16.mxu0 0
      %3689 = vmatpush1.bf16.msra.mxu0 %v3635
      %3690 = vmatprep.subr.bf16.mxu0 0
      %3691 = vmatpush1.bf16.msra.mxu0 %v3634
      %3692 = vmatprep.subr.bf16.mxu0 0
      %3693 = vmatpush1.bf16.msra.mxu0 %v3633
      %3694 = vmatprep.subr.bf16.mxu0 0
      %3695 = vmatpush1.bf16.msra.mxu0 %v3632
      %3696 = vmatprep.subr.bf16.mxu0 0
      %3697 = vmatpush2.bf16.msra.mxu0 %v3647
      %3698 = vmatprep.subr.bf16.mxu0 0
      %3699 = vmatpush2.bf16.msra.mxu0 %v3646
      %3700 = vmatprep.subr.bf16.mxu0 0
      %3701 = vmatpush2.bf16.msra.mxu0 %v3645
      %3702 = vmatprep.subr.bf16.mxu0 0
      %3703 = vmatpush2.bf16.msra.mxu0 %v3644
      %3704 = vmatprep.subr.bf16.mxu0 0
      %3705 = vmatpush2.bf16.msra.mxu0 %v3643
      %3706 = vmatprep.subr.bf16.mxu0 0
      %3707 = vmatpush2.bf16.msra.mxu0 %v3642
      %3708 = vmatprep.subr.bf16.mxu0 0
      %3709 = vmatpush2.bf16.msra.mxu0 %v3641
      %3710 = vmatprep.subr.bf16.mxu0 0
      %3711 = vmatpush2.bf16.msra.mxu0 %v3640
      %3712 = vmatprep.mubr.bf16.mxu0 %v3441
      %3713 = vmatmul.mubr.bf16.gmra.mxu0 %v3440
      %v3714 = vpop.f32.mrf.mxu0
      %v3715 = vadd.f32 0.0, %v3714
      %v3716 = vpop.f32.mrf.mxu0
      %v3717 = vpop.f32.mrf.mxu0
      %v3718 = vadd.f32 0.0, %v3717
      %v3719 = vpop.f32.mrf.mxu0
      %3720 = vmatprep.mubr.bf16.mxu0 %v3444
      %3721 = vmatmul.mubr.bf16.gmra.mxu0 %v3443
      %v3722 = vpop.f32.mrf.mxu0
      %v3723 = vadd.f32 0.0, %v3722
      %v3724 = vpop.f32.mrf.mxu0
      %v3725 = vpop.f32.mrf.mxu0
      %v3726 = vadd.f32 0.0, %v3725
      %v3727 = vpop.f32.mrf.mxu0
      %3728 = vmatprep.mubr.bf16.mxu0 %v3447
      %3729 = vmatmul.mubr.bf16.gmra.mxu0 %v3446
      %v3730 = vpop.f32.mrf.mxu0
      %v3731 = vadd.f32 0.0, %v3730
      %v3732 = vpop.f32.mrf.mxu0
      %v3733 = vpop.f32.mrf.mxu0
      %v3734 = vadd.f32 0.0, %v3733
      %v3735 = vpop.f32.mrf.mxu0
      %3736 = vmatprep.mubr.bf16.mxu0 %v3450
      %3737 = vmatmul.mubr.bf16.gmra.mxu0 %v3449
      %v3738 = vpop.f32.mrf.mxu0
      %v3739 = vadd.f32 0.0, %v3738
      %v3740 = vpop.f32.mrf.mxu0
      %v3741 = vpop.f32.mrf.mxu0
      %v3742 = vadd.f32 0.0, %v3741
      %v3743 = vpop.f32.mrf.mxu0
      %3744 = vmatprep.mubr.bf16.mxu0 %v3453
      %3745 = vmatmul.mubr.bf16.gmra.mxu0 %v3452
      %v3746 = vpop.f32.mrf.mxu0
      %v3747 = vadd.f32 0.0, %v3746
      %v3748 = vpop.f32.mrf.mxu0
      %v3749 = vpop.f32.mrf.mxu0
      %v3750 = vadd.f32 0.0, %v3749
      %v3751 = vpop.f32.mrf.mxu0
      %3752 = vmatprep.mubr.bf16.mxu0 %v3456
      %3753 = vmatmul.mubr.bf16.gmra.mxu0 %v3455
      %v3754 = vpop.f32.mrf.mxu0
      %v3755 = vadd.f32 0.0, %v3754
      %v3756 = vpop.f32.mrf.mxu0
      %v3757 = vpop.f32.mrf.mxu0
      %v3758 = vadd.f32 0.0, %v3757
      %v3759 = vpop.f32.mrf.mxu0
      %3760 = vmatprep.mubr.bf16.mxu0 %v3459
      %3761 = vmatmul.mubr.bf16.gmra.mxu0 %v3458
      %v3762 = vpop.f32.mrf.mxu0
      %v3763 = vadd.f32 0.0, %v3762
      %v3764 = vpop.f32.mrf.mxu0
      %v3765 = vpop.f32.mrf.mxu0
      %v3766 = vadd.f32 0.0, %v3765
      %v3767 = vpop.f32.mrf.mxu0
      %3768 = vmatprep.mubr.bf16.mxu0 %v3462
      %3769 = vmatmul.mubr.bf16.gmra.mxu0 %v3461
      %v3770 = vpop.f32.mrf.mxu0
      %v3771 = vadd.f32 0.0, %v3770
      %v3772 = vpop.f32.mrf.mxu0
      %v3773 = vpop.f32.mrf.mxu0
      %v3774 = vadd.f32 0.0, %v3773
      %v3775 = vpop.f32.mrf.mxu0
      %3776 = vmatprep.mubr.bf16.mxu0 %v3465
      %3777 = vmatmul.mubr.bf16.gmra.mxu0 %v3464
      %v3778 = vpop.f32.mrf.mxu0
      %v3779 = vadd.f32 0.0, %v3778
      %v3780 = vpop.f32.mrf.mxu0
      %v3781 = vpop.f32.mrf.mxu0
      %v3782 = vadd.f32 0.0, %v3781
      %v3783 = vpop.f32.mrf.mxu0
      %3784 = vmatprep.mubr.bf16.mxu0 %v3468
      %3785 = vmatmul.mubr.bf16.gmra.mxu0 %v3467
      %v3786 = vpop.f32.mrf.mxu0
      %v3787 = vadd.f32 0.0, %v3786
      %v3788 = vpop.f32.mrf.mxu0
      %v3789 = vpop.f32.mrf.mxu0
      %v3790 = vadd.f32 0.0, %v3789
      %v3791 = vpop.f32.mrf.mxu0
      %3792 = vmatprep.mubr.bf16.mxu0 %v3471
      %3793 = vmatmul.mubr.bf16.gmra.mxu0 %v3470
      %v3794 = vpop.f32.mrf.mxu0
      %v3795 = vadd.f32 0.0, %v3794
      %v3796 = vpop.f32.mrf.mxu0
      %v3797 = vpop.f32.mrf.mxu0
      %v3798 = vadd.f32 0.0, %v3797
      %v3799 = vpop.f32.mrf.mxu0
      %3800 = vmatprep.mubr.bf16.mxu0 %v3474
      %3801 = vmatmul.mubr.bf16.gmra.mxu0 %v3473
      %v3802 = vpop.f32.mrf.mxu0
      %v3803 = vadd.f32 0.0, %v3802
      %v3804 = vpop.f32.mrf.mxu0
      %v3805 = vpop.f32.mrf.mxu0
      %v3806 = vadd.f32 0.0, %v3805
      %v3807 = vpop.f32.mrf.mxu0
      %3808 = vmatprep.mubr.bf16.mxu0 %v3477
      %3809 = vmatmul.mubr.bf16.gmra.mxu0 %v3476
      %v3810 = vpop.f32.mrf.mxu0
      %v3811 = vadd.f32 0.0, %v3810
      %v3812 = vpop.f32.mrf.mxu0
      %v3813 = vpop.f32.mrf.mxu0
      %v3814 = vadd.f32 0.0, %v3813
      %v3815 = vpop.f32.mrf.mxu0
      %3816 = vmatprep.mubr.bf16.mxu0 %v3480
      %3817 = vmatmul.mubr.bf16.gmra.mxu0 %v3479
      %v3818 = vpop.f32.mrf.mxu0
      %v3819 = vadd.f32 0.0, %v3818
      %v3820 = vpop.f32.mrf.mxu0
      %v3821 = vpop.f32.mrf.mxu0
      %v3822 = vadd.f32 0.0, %v3821
      %v3823 = vpop.f32.mrf.mxu0
      %3824 = vmatprep.mubr.bf16.mxu0 %v3483
      %3825 = vmatmul.mubr.bf16.gmra.mxu0 %v3482
      %v3826 = vpop.f32.mrf.mxu0
      %v3827 = vadd.f32 0.0, %v3826
      %v3828 = vpop.f32.mrf.mxu0
      %v3829 = vpop.f32.mrf.mxu0
      %v3830 = vadd.f32 0.0, %v3829
      %v3831 = vpop.f32.mrf.mxu0
      %3832 = vmatprep.mubr.bf16.mxu0 %v3486
      %3833 = vmatmul.mubr.bf16.gmra.mxu0 %v3485
      %v3834 = vpop.f32.mrf.mxu0
      %v3835 = vadd.f32 0.0, %v3834
      %v3836 = vpop.f32.mrf.mxu0
      %v3837 = vpop.f32.mrf.mxu0
      %v3838 = vadd.f32 0.0, %v3837
      %v3839 = vpop.f32.mrf.mxu0
      %3840 = vdwg.mxu0
      %3841 = vmatprep.subr.bf16.mxu0 0
      %3842 = vmatpush1.bf16.msra.mxu0 %v3655
      %3843 = vmatprep.subr.bf16.mxu0 0
      %3844 = vmatpush1.bf16.msra.mxu0 %v3654
      %3845 = vmatprep.subr.bf16.mxu0 0
      %3846 = vmatpush1.bf16.msra.mxu0 %v3653
      %3847 = vmatprep.subr.bf16.mxu0 0
      %3848 = vmatpush1.bf16.msra.mxu0 %v3652
      %3849 = vmatprep.subr.bf16.mxu0 0
      %3850 = vmatpush1.bf16.msra.mxu0 %v3651
      %3851 = vmatprep.subr.bf16.mxu0 0
      %3852 = vmatpush1.bf16.msra.mxu0 %v3650
      %3853 = vmatprep.subr.bf16.mxu0 0
      %3854 = vmatpush1.bf16.msra.mxu0 %v3649
      %3855 = vmatprep.subr.bf16.mxu0 0
      %3856 = vmatpush1.bf16.msra.mxu0 %v3648
      %3857 = vmatprep.subr.bf16.mxu0 0
      %3858 = vmatpush2.bf16.msra.mxu0 0
      %3859 = vmatprep.subr.bf16.mxu0 0
      %3860 = vmatpush2.bf16.msra.mxu0 0
      %3861 = vmatprep.subr.bf16.mxu0 0
      %3862 = vmatpush2.bf16.msra.mxu0 0
      %3863 = vmatprep.subr.bf16.mxu0 0
      %3864 = vmatpush2.bf16.msra.mxu0 0
      %3865 = vmatprep.subr.bf16.mxu0 0
      %3866 = vmatpush2.bf16.msra.mxu0 0
      %3867 = vmatprep.subr.bf16.mxu0 0
      %3868 = vmatpush2.bf16.msra.mxu0 0
      %3869 = vmatprep.subr.bf16.mxu0 0
      %3870 = vmatpush2.bf16.msra.mxu0 0
      %3871 = vmatprep.subr.bf16.mxu0 0
      %3872 = vmatpush2.bf16.msra.mxu0 0
      %3873 = vmatprep.mubr.bf16.mxu0 0
      %3874 = vmatmul.mubr.bf16.gmra.mxu0 %v3442
      %v3875 = vpop.f32.mrf.mxu0
      %v3876 = vadd.f32 %v3715, %v3875
      %v3877 = vpop.f32.mrf.mxu0
      %v3878 = vpop.f32.mrf.mxu0
      %v3879 = vadd.f32 %v3718, %v3878
      %v3880 = vpop.f32.mrf.mxu0
      %3881 = vmatprep.mubr.bf16.mxu0 0
      %3882 = vmatmul.mubr.bf16.gmra.mxu0 %v3445
      %v3883 = vpop.f32.mrf.mxu0
      %v3884 = vadd.f32 %v3723, %v3883
      %v3885 = vpop.f32.mrf.mxu0
      %v3886 = vpop.f32.mrf.mxu0
      %v3887 = vadd.f32 %v3726, %v3886
      %v3888 = vpop.f32.mrf.mxu0
      %3889 = vmatprep.mubr.bf16.mxu0 0
      %3890 = vmatmul.mubr.bf16.gmra.mxu0 %v3448
      %v3891 = vpop.f32.mrf.mxu0
      %v3892 = vadd.f32 %v3731, %v3891
      %v3893 = vpop.f32.mrf.mxu0
      %v3894 = vpop.f32.mrf.mxu0
      %v3895 = vadd.f32 %v3734, %v3894
      %v3896 = vpop.f32.mrf.mxu0
      %3897 = vmatprep.mubr.bf16.mxu0 0
      %3898 = vmatmul.mubr.bf16.gmra.mxu0 %v3451
      %v3899 = vpop.f32.mrf.mxu0
      %v3900 = vadd.f32 %v3739, %v3899
      %v3901 = vpop.f32.mrf.mxu0
      %v3902 = vpop.f32.mrf.mxu0
      %v3903 = vadd.f32 %v3742, %v3902
      %v3904 = vpop.f32.mrf.mxu0
      %3905 = vmatprep.mubr.bf16.mxu0 0
      %3906 = vmatmul.mubr.bf16.gmra.mxu0 %v3454
      %v3907 = vpop.f32.mrf.mxu0
      %v3908 = vadd.f32 %v3747, %v3907
      %v3909 = vpop.f32.mrf.mxu0
      %v3910 = vpop.f32.mrf.mxu0
      %v3911 = vadd.f32 %v3750, %v3910
      %v3912 = vpop.f32.mrf.mxu0
      %3913 = vmatprep.mubr.bf16.mxu0 0
      %3914 = vmatmul.mubr.bf16.gmra.mxu0 %v3457
      %v3915 = vpop.f32.mrf.mxu0
      %v3916 = vadd.f32 %v3755, %v3915
      %v3917 = vpop.f32.mrf.mxu0
      %v3918 = vpop.f32.mrf.mxu0
      %v3919 = vadd.f32 %v3758, %v3918
      %v3920 = vpop.f32.mrf.mxu0
      %3921 = vmatprep.mubr.bf16.mxu0 0
      %3922 = vmatmul.mubr.bf16.gmra.mxu0 %v3460
      %v3923 = vpop.f32.mrf.mxu0
      %v3924 = vadd.f32 %v3763, %v3923
      %v3925 = vpop.f32.mrf.mxu0
      %v3926 = vpop.f32.mrf.mxu0
      %v3927 = vadd.f32 %v3766, %v3926
      %v3928 = vpop.f32.mrf.mxu0
      %3929 = vmatprep.mubr.bf16.mxu0 0
      %3930 = vmatmul.mubr.bf16.gmra.mxu0 %v3463
      %v3931 = vpop.f32.mrf.mxu0
      %v3932 = vadd.f32 %v3771, %v3931
      %v3933 = vpop.f32.mrf.mxu0
      %v3934 = vpop.f32.mrf.mxu0
      %v3935 = vadd.f32 %v3774, %v3934
      %v3936 = vpop.f32.mrf.mxu0
      %3937 = vmatprep.mubr.bf16.mxu0 0
      %3938 = vmatmul.mubr.bf16.gmra.mxu0 %v3466
      %v3939 = vpop.f32.mrf.mxu0
      %v3940 = vadd.f32 %v3779, %v3939
      %v3941 = vpop.f32.mrf.mxu0
      %v3942 = vpop.f32.mrf.mxu0
      %v3943 = vadd.f32 %v3782, %v3942
      %v3944 = vpop.f32.mrf.mxu0
      %3945 = vmatprep.mubr.bf16.mxu0 0
      %3946 = vmatmul.mubr.bf16.gmra.mxu0 %v3469
      %v3947 = vpop.f32.mrf.mxu0
      %v3948 = vadd.f32 %v3787, %v3947
      %v3949 = vpop.f32.mrf.mxu0
      %v3950 = vpop.f32.mrf.mxu0
      %v3951 = vadd.f32 %v3790, %v3950
      %v3952 = vpop.f32.mrf.mxu0
      %3953 = vmatprep.mubr.bf16.mxu0 0
      %3954 = vmatmul.mubr.bf16.gmra.mxu0 %v3472
      %v3955 = vpop.f32.mrf.mxu0
      %v3956 = vadd.f32 %v3795, %v3955
      %v3957 = vpop.f32.mrf.mxu0
      %v3958 = vpop.f32.mrf.mxu0
      %v3959 = vadd.f32 %v3798, %v3958
      %v3960 = vpop.f32.mrf.mxu0
      %3961 = vmatprep.mubr.bf16.mxu0 0
      %3962 = vmatmul.mubr.bf16.gmra.mxu0 %v3475
      %v3963 = vpop.f32.mrf.mxu0
      %v3964 = vadd.f32 %v3803, %v3963
      %v3965 = vpop.f32.mrf.mxu0
      %v3966 = vpop.f32.mrf.mxu0
      %v3967 = vadd.f32 %v3806, %v3966
      %v3968 = vpop.f32.mrf.mxu0
      %3969 = vmatprep.mubr.bf16.mxu0 0
      %3970 = vmatmul.mubr.bf16.gmra.mxu0 %v3478
      %v3971 = vpop.f32.mrf.mxu0
      %v3972 = vadd.f32 %v3811, %v3971
      %v3973 = vpop.f32.mrf.mxu0
      %v3974 = vpop.f32.mrf.mxu0
      %v3975 = vadd.f32 %v3814, %v3974
      %v3976 = vpop.f32.mrf.mxu0
      %3977 = vmatprep.mubr.bf16.mxu0 0
      %3978 = vmatmul.mubr.bf16.gmra.mxu0 %v3481
      %v3979 = vpop.f32.mrf.mxu0
      %v3980 = vadd.f32 %v3819, %v3979
      %v3981 = vpop.f32.mrf.mxu0
      %v3982 = vpop.f32.mrf.mxu0
      %v3983 = vadd.f32 %v3822, %v3982
      %v3984 = vpop.f32.mrf.mxu0
      %3985 = vmatprep.mubr.bf16.mxu0 0
      %3986 = vmatmul.mubr.bf16.gmra.mxu0 %v3484
      %v3987 = vpop.f32.mrf.mxu0
      %v3988 = vadd.f32 %v3827, %v3987
      %v3989 = vpop.f32.mrf.mxu0
      %v3990 = vpop.f32.mrf.mxu0
      %v3991 = vadd.f32 %v3830, %v3990
      %v3992 = vpop.f32.mrf.mxu0
      %3993 = vmatprep.mubr.bf16.mxu0 0
      %3994 = vmatmul.mubr.bf16.gmra.mxu0 %v3487
      %v3995 = vpop.f32.mrf.mxu0
      %v3996 = vadd.f32 %v3835, %v3995
      %v3997 = vpop.f32.mrf.mxu0
      %v3998 = vpop.f32.mrf.mxu0
      %v3999 = vadd.f32 %v3838, %v3998
      %v4000 = vpop.f32.mrf.mxu0
      %4001 = vdwg.mxu0
      %v4002 = vadd.f32 %v3041, %v3876
      %v4003 = vadd.f32 %v3044, %v3879
      %v4004 = vadd.f32 %v3049, %v3884
      %v4005 = vadd.f32 %v3052, %v3887
      %v4006 = vadd.f32 %v3057, %v3892
      %v4007 = vadd.f32 %v3060, %v3895
      %v4008 = vadd.f32 %v3065, %v3900
      %v4009 = vadd.f32 %v3068, %v3903
      %v4010 = vadd.f32 %v3073, %v3908
      %v4011 = vadd.f32 %v3076, %v3911
      %v4012 = vadd.f32 %v3081, %v3916
      %v4013 = vadd.f32 %v3084, %v3919
      %v4014 = vadd.f32 %v3089, %v3924
      %v4015 = vadd.f32 %v3092, %v3927
      %v4016 = vadd.f32 %v3097, %v3932
      %v4017 = vadd.f32 %v3100, %v3935
      %v4018 = vadd.f32 %v3105, %v3940
      %v4019 = vadd.f32 %v3108, %v3943
      %v4020 = vadd.f32 %v3113, %v3948
      %v4021 = vadd.f32 %v3116, %v3951
      %v4022 = vadd.f32 %v3121, %v3956
      %v4023 = vadd.f32 %v3124, %v3959
      %v4024 = vadd.f32 %v3129, %v3964
      %v4025 = vadd.f32 %v3132, %v3967
      %v4026 = vadd.f32 %v3137, %v3972
      %v4027 = vadd.f32 %v3140, %v3975
      %v4028 = vadd.f32 %v3145, %v3980
      %v4029 = vadd.f32 %v3148, %v3983
      %v4030 = vadd.f32 %v3153, %v3988
      %v4031 = vadd.f32 %v3156, %v3991
      %v4032 = vadd.f32 %v3161, %v3996
      %v4033 = vadd.f32 %v3164, %v3999
      %v4034 = vpack.c.bf16 %v4003, %v4002
      %v4035 = vpack.c.bf16 %v4005, %v4004
      %v4036 = vpack.c.bf16 %v4007, %v4006
      %v4037 = vpack.c.bf16 %v4009, %v4008
      %v4038 = vpack.c.bf16 %v4011, %v4010
      %v4039 = vpack.c.bf16 %v4013, %v4012
      %v4040 = vpack.c.bf16 %v4015, %v4014
      %v4041 = vpack.c.bf16 %v4017, %v4016
      %v4042 = vpack.c.bf16 %v4019, %v4018
      %v4043 = vpack.c.bf16 %v4021, %v4020
      %v4044 = vpack.c.bf16 %v4023, %v4022
      %v4045 = vpack.c.bf16 %v4025, %v4024
      %v4046 = vpack.c.bf16 %v4027, %v4026
      %v4047 = vpack.c.bf16 %v4029, %v4028
      %v4048 = vpack.c.bf16 %v4031, %v4030
      %v4049 = vpack.c.bf16 %v4033, %v4032
      %v4066 = vunpack.c.l.b16 %v4034
      %v4067 = vunpack.c.h.b16 %v4034
      %v4068 = vunpack.c.l.b16 %v4035
      %v4069 = vunpack.c.h.b16 %v4035
      %v4070 = vunpack.c.l.b16 %v4036
      %v4071 = vunpack.c.h.b16 %v4036
      %v4072 = vunpack.c.l.b16 %v4037
      %v4073 = vunpack.c.h.b16 %v4037
      %v4074 = vunpack.c.l.b16 %v4038
      %v4075 = vunpack.c.h.b16 %v4038
      %v4076 = vunpack.c.l.b16 %v4039
      %v4077 = vunpack.c.h.b16 %v4039
      %v4078 = vunpack.c.l.b16 %v4040
      %v4079 = vunpack.c.h.b16 %v4040
      %v4080 = vunpack.c.l.b16 %v4041
      %v4081 = vunpack.c.h.b16 %v4041
      %v4082 = vunpack.c.l.b16 %v4042
      %v4083 = vunpack.c.h.b16 %v4042
      %v4084 = vunpack.c.l.b16 %v4043
      %v4085 = vunpack.c.h.b16 %v4043
      %v4086 = vunpack.c.l.b16 %v4044
      %v4087 = vunpack.c.h.b16 %v4044
      %v4088 = vunpack.c.l.b16 %v4045
      %v4089 = vunpack.c.h.b16 %v4045
      %v4090 = vunpack.c.l.b16 %v4046
      %v4091 = vunpack.c.h.b16 %v4046
      %v4092 = vunpack.c.l.b16 %v4047
      %v4093 = vunpack.c.h.b16 %v4047
      %v4094 = vunpack.c.l.b16 %v4048
      %v4095 = vunpack.c.h.b16 %v4048
      %v4096 = vunpack.c.l.b16 %v4049
      %v4097 = vunpack.c.h.b16 %v4049
      %v4098 = vpack.c.b16 %v4066, %v4066
      %v4099 = vpack.c.b16 %v4067, %v4067
      %v4100 = vpack.c.b16 %v4068, %v4068
      %v4101 = vpack.c.b16 %v4069, %v4069
      %v4102 = vpack.c.b16 %v4070, %v4070
      %v4103 = vpack.c.b16 %v4071, %v4071
      %v4104 = vpack.c.b16 %v4072, %v4072
      %v4105 = vpack.c.b16 %v4073, %v4073
      %v4106 = vpack.c.b16 %v4074, %v4074
      %v4107 = vpack.c.b16 %v4075, %v4075
      %v4108 = vpack.c.b16 %v4076, %v4076
      %v4109 = vpack.c.b16 %v4077, %v4077
      %v4110 = vpack.c.b16 %v4078, %v4078
      %v4111 = vpack.c.b16 %v4079, %v4079
      %v4112 = vpack.c.b16 %v4080, %v4080
      %v4113 = vpack.c.b16 %v4081, %v4081
      %v4114 = vpack.c.b16 %v4082, %v4082
      %v4115 = vpack.c.b16 %v4083, %v4083
      %v4116 = vpack.c.b16 %v4084, %v4084
      %v4117 = vpack.c.b16 %v4085, %v4085
      %v4118 = vpack.c.b16 %v4086, %v4086
      %v4119 = vpack.c.b16 %v4087, %v4087
      %v4120 = vpack.c.b16 %v4088, %v4088
      %v4121 = vpack.c.b16 %v4089, %v4089
      %v4122 = vpack.c.b16 %v4090, %v4090
      %v4123 = vpack.c.b16 %v4091, %v4091
      %v4124 = vpack.c.b16 %v4092, %v4092
      %v4125 = vpack.c.b16 %v4093, %v4093
      %v4126 = vpack.c.b16 %v4094, %v4094
      %v4127 = vpack.c.b16 %v4095, %v4095
      %v4128 = vpack.c.b16 %v4096, %v4096
      %v4129 = vpack.c.b16 %v4097, %v4097
      %4162 = vst [vmem:[%s231] sm:$0xf] %v4098
      %4163 = vst [vmem:[%s231 + $0x4] sm:$0xf] %v4099
      %4164 = vst [vmem:[%s231 + $0x8] sm:$0xf] %v4100
      %4165 = vst [vmem:[%s231 + $0xc] sm:$0xf] %v4101
      %4166 = vst [vmem:[%s231 + $0x10] sm:$0xf] %v4102
      %4167 = vst [vmem:[%s231 + $0x14] sm:$0xf] %v4103
      %4168 = vst [vmem:[%s231 + $0x18] sm:$0xf] %v4104
      %4169 = vst [vmem:[%s231 + $0x1c] sm:$0xf] %v4105
      %4170 = vst [vmem:[%s231 + $0x20] sm:$0xf] %v4106
      %4171 = vst [vmem:[%s231 + $0x24] sm:$0xf] %v4107
      %4172 = vst [vmem:[%s231 + $0x28] sm:$0xf] %v4108
      %4173 = vst [vmem:[%s231 + $0x2c] sm:$0xf] %v4109
      %4174 = vst [vmem:[%s231 + $0x30] sm:$0xf] %v4110
      %4175 = vst [vmem:[%s231 + $0x34] sm:$0xf] %v4111
      %4176 = vst [vmem:[%s231 + $0x38] sm:$0xf] %v4112
      %4177 = vst [vmem:[%s231 + $0x3c] sm:$0xf] %v4113
      %4178 = vst [vmem:[%s231 + $0x40] sm:$0xf] %v4114
      %4179 = vst [vmem:[%s231 + $0x44] sm:$0xf] %v4115
      %4180 = vst [vmem:[%s231 + $0x48] sm:$0xf] %v4116
      %4181 = vst [vmem:[%s231 + $0x4c] sm:$0xf] %v4117
      %4182 = vst [vmem:[%s231 + $0x50] sm:$0xf] %v4118
      %4183 = vst [vmem:[%s231 + $0x54] sm:$0xf] %v4119
      %4184 = vst [vmem:[%s231 + $0x58] sm:$0xf] %v4120
      %4185 = vst [vmem:[%s231 + $0x5c] sm:$0xf] %v4121
      %4186 = vst [vmem:[%s231 + $0x60] sm:$0xf] %v4122
      %4187 = vst [vmem:[%s231 + $0x64] sm:$0xf] %v4123
      %4188 = vst [vmem:[%s231 + $0x68] sm:$0xf] %v4124
      %4189 = vst [vmem:[%s231 + $0x6c] sm:$0xf] %v4125
      %4190 = vst [vmem:[%s231 + $0x70] sm:$0xf] %v4126
      %4191 = vst [vmem:[%s231 + $0x74] sm:$0xf] %v4127
      %4192 = vst [vmem:[%s231 + $0x78] sm:$0xf] %v4128
      %4193 = vst [vmem:[%s231 + $0x7c] sm:$0xf] %v4129
      %v4194 = vadd.f32 %v4002, %v4003
      %v4195 = vadd.f32 %v4194, %v4004
      %v4196 = vadd.f32 %v4195, %v4005
      %v4197 = vadd.f32 %v4196, %v4006
      %v4198 = vadd.f32 %v4197, %v4007
      %v4199 = vadd.f32 %v4198, %v4008
      %v4200 = vadd.f32 %v4199, %v4009
      %v4201 = vadd.f32 %v4200, %v4010
      %v4202 = vadd.f32 %v4201, %v4011
      %v4203 = vadd.f32 %v4202, %v4012
      %v4204 = vadd.f32 %v4203, %v4013
      %v4205 = vadd.f32 %v4204, %v4014
      %v4206 = vadd.f32 %v4205, %v4015
      %v4207 = vadd.f32 %v4206, %v4016
      %v4208 = vadd.f32 %v4207, %v4017
      %v4209 = vadd.f32 %v4208, %v4018
      %v4210 = vadd.f32 %v4209, %v4019
      %v4211 = vadd.f32 %v4210, %v4020
      %v4212 = vadd.f32 %v4211, %v4021
      %v4213 = vadd.f32 %v4212, %v4022
      %v4214 = vadd.f32 %v4213, %v4023
      %v4215 = vadd.f32 %v4214, %v4024
      %v4216 = vadd.f32 %v4215, %v4025
      %v4217 = vadd.f32 %v4216, %v4026
      %v4218 = vadd.f32 %v4217, %v4027
      %v4219 = vadd.f32 %v4218, %v4028
      %v4220 = vadd.f32 %v4219, %v4029
      %v4221 = vadd.f32 %v4220, %v4030
      %v4222 = vadd.f32 %v4221, %v4031
      %v4223 = vadd.f32 %v4222, %v4032
      %v4224 = vadd.f32 %v4223, %v4033
      %v4225 = vrot.slane %v4224, 4
      %v4226 = vadd.f32 %v4224, %v4225
      %v4227 = vrot.slane %v4226, 2
      %v4228 = vadd.f32 %v4226, %v4227
      %v4229 = vrot.slane %v4228, 1
      %v4230 = vadd.f32 %v4228, %v4229
      %v4231 = vmul.f32 %v4002, %v4002
      %v4232 = vmul.f32 %v4003, %v4003
      %v4233 = vmul.f32 %v4004, %v4004
      %v4234 = vmul.f32 %v4005, %v4005
      %v4235 = vmul.f32 %v4006, %v4006
      %v4236 = vmul.f32 %v4007, %v4007
      %v4237 = vmul.f32 %v4008, %v4008
      %v4238 = vmul.f32 %v4009, %v4009
      %v4239 = vmul.f32 %v4010, %v4010
      %v4240 = vmul.f32 %v4011, %v4011
      %v4241 = vmul.f32 %v4012, %v4012
      %v4242 = vmul.f32 %v4013, %v4013
      %v4243 = vmul.f32 %v4014, %v4014
      %v4244 = vmul.f32 %v4015, %v4015
      %v4245 = vmul.f32 %v4016, %v4016
      %v4246 = vmul.f32 %v4017, %v4017
      %v4247 = vmul.f32 %v4018, %v4018
      %v4248 = vmul.f32 %v4019, %v4019
      %v4249 = vmul.f32 %v4020, %v4020
      %v4250 = vmul.f32 %v4021, %v4021
      %v4251 = vmul.f32 %v4022, %v4022
      %v4252 = vmul.f32 %v4023, %v4023
      %v4253 = vmul.f32 %v4024, %v4024
      %v4254 = vmul.f32 %v4025, %v4025
      %v4255 = vmul.f32 %v4026, %v4026
      %v4256 = vmul.f32 %v4027, %v4027
      %v4257 = vmul.f32 %v4028, %v4028
      %v4258 = vmul.f32 %v4029, %v4029
      %v4259 = vmul.f32 %v4030, %v4030
      %v4260 = vmul.f32 %v4031, %v4031
      %v4261 = vmul.f32 %v4032, %v4032
      %v4262 = vmul.f32 %v4033, %v4033
      %v4263 = vadd.f32 %v4231, %v4232
      %v4264 = vadd.f32 %v4263, %v4233
      %v4265 = vadd.f32 %v4264, %v4234
      %v4266 = vadd.f32 %v4265, %v4235
      %v4267 = vadd.f32 %v4266, %v4236
      %v4268 = vadd.f32 %v4267, %v4237
      %v4269 = vadd.f32 %v4268, %v4238
      %v4270 = vadd.f32 %v4269, %v4239
      %v4271 = vadd.f32 %v4270, %v4240
      %v4272 = vadd.f32 %v4271, %v4241
      %v4273 = vadd.f32 %v4272, %v4242
      %v4274 = vadd.f32 %v4273, %v4243
      %v4275 = vadd.f32 %v4274, %v4244
      %v4276 = vadd.f32 %v4275, %v4245
      %v4277 = vadd.f32 %v4276, %v4246
      %v4278 = vadd.f32 %v4277, %v4247
      %v4279 = vadd.f32 %v4278, %v4248
      %v4280 = vadd.f32 %v4279, %v4249
      %v4281 = vadd.f32 %v4280, %v4250
      %v4282 = vadd.f32 %v4281, %v4251
      %v4283 = vadd.f32 %v4282, %v4252
      %v4284 = vadd.f32 %v4283, %v4253
      %v4285 = vadd.f32 %v4284, %v4254
      %v4286 = vadd.f32 %v4285, %v4255
      %v4287 = vadd.f32 %v4286, %v4256
      %v4288 = vadd.f32 %v4287, %v4257
      %v4289 = vadd.f32 %v4288, %v4258
      %v4290 = vadd.f32 %v4289, %v4259
      %v4291 = vadd.f32 %v4290, %v4260
      %v4292 = vadd.f32 %v4291, %v4261
      %v4293 = vadd.f32 %v4292, %v4262
      %v4294 = vrot.slane %v4293, 4
      %v4295 = vadd.f32 %v4293, %v4294
      %v4296 = vrot.slane %v4295, 2
      %v4297 = vadd.f32 %v4295, %v4296
      %v4298 = vrot.slane %v4297, 1
      %v4299 = vadd.f32 %v4297, %v4298
      %v4300 = vsel %vm892, %v4230, %v4299
      %4301 = vst [vmem:[%s235] sm:$0x3] %v4300
      %p4302 = scmp.lt.s32.totalorder %s17, 1
      %s4303 = scalar_select %p4302, %s17, 1
      %s4304 = smul.addr %s4303, 32
      %s4305 = smul.addr %s4304, 4
      %s4306 = scalar_lea.vmem %s4, %s4305
      %p4307 = scmp.lt.s32.totalorder %s17, 1
      %s4308 = scalar_select %p4307, %s17, 1
      %s4309 = smul.addr %s4308, 2
      %s4310 = scalar_lea.vmem %s5, %s4309
      // Predicated region
      $region37: #{bottleneck_forward.5} parent=35 // pred_check
        %p4311 = pneg %p124
      $region38: #{bottleneck_forward.5} parent=35 // pred_check_branch
        %4313 = sbr.rel (%p4311) target = $region40
      $region39: #{bottleneck_forward.5} parent=35 // pred_region
        _
      $region40: #{bottleneck_forward.5} parent=35 // pred_fallthru
        _
      // Predicated region
      $region41: #{bottleneck_forward.5} parent=35 // pred_check
        %p4314 = pneg %p150
      $region42: #{bottleneck_forward.5} parent=35 // pred_check_branch
        %4316 = sbr.rel (%p4314) target = $region44
      $region43: #{bottleneck_forward.5} parent=35 // pred_region
        _
      $region44: #{bottleneck_forward.5} parent=35 // pred_fallthru
        _
    $region36: #{bottleneck_forward.5} parent=5 // pred_fallthru
      _
    %p4317 = scmp.le.s32.totalorder 2, %s12
    // Predicated region
    $region45: #{bottleneck_forward.5} parent=5 // pred_check
      %p4318 = pneg %p4317
    $region46: #{bottleneck_forward.5} parent=5 // pred_check_branch
      %4320 = sbr.rel (%p4318) target = $region48
    $region47: #{bottleneck_forward.5} parent=5 // pred_region
      %s4321 = ssub.s32 %s12, 2
      // Predicated region
      $region49: #{bottleneck_forward.5} parent=47 // pred_check
        %p4322 = pneg %p130
      $region50: #{bottleneck_forward.5} parent=47 // pred_check_branch
        %4324 = sbr.rel (%p4322) target = $region52
      $region51: #{bottleneck_forward.5} parent=47 // pred_region
        %p4325 = scmp.lt.s32.totalorder %s18, 1
        %s4326 = scalar_select %p4325, %s18, 1
        %s4327 = smul.addr %s4326, 32
        %s4328 = smul.addr %s4327, 4
        %s4329 = scalar_lea.vmem %s4, %s4328
      $region52: #{bottleneck_forward.5} parent=47 // pred_fallthru
        _
      // Predicated region
      $region53: #{bottleneck_forward.5} parent=47 // pred_check
        %p4330 = pneg %p156
      $region54: #{bottleneck_forward.5} parent=47 // pred_check_branch
        %4332 = sbr.rel (%p4330) target = $region56
      $region55: #{bottleneck_forward.5} parent=47 // pred_region
        %p4333 = scmp.lt.s32.totalorder %s18, 1
        %s4334 = scalar_select %p4333, %s18, 1
        %s4335 = smul.addr %s4334, 2
        %s4336 = scalar_lea.vmem %s5, %s4335
      $region56: #{bottleneck_forward.5} parent=47 // pred_fallthru
        _
    $region48: #{bottleneck_forward.5} parent=5 // pred_fallthru
      _
  $region6: #{bottleneck_forward.5} parent=0 // loop_footer
    %s16 = sadd.s32 1, %s12
  $region7: #{bottleneck_forward.5} parent=0 // loop_footer_branch
    %11 = sbr.rel target = $region3
  $region8: #{bottleneck_forward.5} parent=0 // loop_exit
    _

</llo_original>
